<compile_context>
chip_gen: v7x
topology: tpu7x:2x2x1
jax: 0.10.0
libtpu: 0.0.40
codegen_flags: <defaults>
</compile_context>

<pallas_src>
import functools

import jax
import jax.numpy as jnp
from jax import lax
from jax.experimental import pallas as pl
from jax.experimental.pallas import tpu as pltpu

PAD_token, SOS_token, EOS_token = 0, 1, 2

H = 32           # hidden size
V = 64           # vocab size
V_PAD = 128      # vocab padded to lane width
S = 8            # (max) encoder sequence length
LANE = 128       # one gate slab per 128-lane vreg
NEG_INF = -1e30

_VMEM = pl.BlockSpec(memory_space=pltpu.MemorySpace.VMEM)
_SMEM = pl.BlockSpec(memory_space=pltpu.MemorySpace.SMEM)


# ----------------------------------------------------------------------------
# Encoder GRU step: gx (input-side gates) precomputed outside the recurrence,
# gates live on 128-lane slab boundaries (r @ 0, z @ 128, n @ 256).
# ----------------------------------------------------------------------------
def _enc_gru_step(gx, h, wh, bh):
    gh = jnp.dot(h, wh, preferred_element_type=jnp.float32) + bh     # (1, 3*128)
    s = gx + gh
    r = jax.nn.sigmoid(s[:, 0:H])
    z = jax.nn.sigmoid(s[:, LANE:LANE + H])
    n = jnp.tanh(gx[:, 2 * LANE:2 * LANE + H] + r * gh[:, 2 * LANE:2 * LANE + H])
    return (1.0 - z) * n + z * h


# ----------------------------------------------------------------------------
# One fused kernel: encoder (bi-GRU) + full greedy decode loop.
# ----------------------------------------------------------------------------
def greedy_kernel(tok_ref, len_ref, emb_ref,
                  wxf_ref, whf_ref, bxf_ref, bhf_ref,
                  wxb_ref, whb_ref, bxb_ref, bhb_ref,
                  wd_ref, bd_ref, wc_ref, bc_ref, wo_ref, bo_ref,
                  score_ref, idx_ref, *, max_len, t_pad):
    L = len_ref[0]                                         # valid encoder length

    # ---------------- hoisted loads / precompute (outside all loops) -------------
    emb_v = emb_ref[...]                                   # (V_PAD, H)
    whf, bhf = whf_ref[...], bhf_ref[...]
    whb, bhb = whb_ref[...], bhb_ref[...]
    wd, bd = wd_ref[...], bd_ref[...]
    wc, bc = wc_ref[...], bc_ref[...]
    wo, bo = wo_ref[...], bo_ref[...]
    pos = lax.broadcasted_iota(jnp.int32, (1, S), 1)
    vocab_ids = lax.broadcasted_iota(jnp.int32, (1, V_PAD), 1)

    # All encoder embeddings gathered once (off the recurrence critical path),
    # then both input-side gate projections done as single (8,32)x(32,384) matmuls.
    x_rows = [emb_ref[pl.ds(tok_ref[t], 1), :] for t in range(S)]       # S x (1, H)
    x_all = jnp.concatenate(x_rows, axis=0)                              # (S, H)
    gxf_all = (jnp.dot(x_all, wxf_ref[...], preferred_element_type=jnp.float32)
               + bxf_ref[...])                                           # (S, 3*128)
    gxb_all = (jnp.dot(x_all, wxb_ref[...], preferred_element_type=jnp.float32)
               + bxb_ref[...])                                           # (S, 3*128)

    h0 = jnp.zeros((1, H), jnp.float32)

    # ---------------- encoder: bidirectional GRU (length-masked) -----------------
    enc_f_rows = [None] * S
    h = h0
    for t in range(S):
        hn = _enc_gru_step(gxf_all[t:t + 1, :], h, whf, bhf)
        valid = (t < L).astype(jnp.float32)
        h = valid * hn + (1.0 - valid) * h                 # freeze hidden past L
        enc_f_rows[t] = valid * h                          # zero pad rows (pad_packed)
    h_dec0 = h                                             # hidden[:n_layers] (fwd final)

    enc_b_rows = [None] * S
    h = h0
    for t in range(S - 1, -1, -1):                         # reverse scan; h stays 0 past L
        hn = _enc_gru_step(gxb_all[t:t + 1, :], h, whb, bhb)
        valid = (t < L).astype(jnp.float32)
        h = valid * hn + (1.0 - valid) * h
        enc_b_rows[t] = valid * h

    # EncoderRNN sums the two directions.
    enc = jnp.concatenate(enc_f_rows, axis=0) + jnp.concatenate(enc_b_rows, axis=0)

    # ---------------- greedy decoder loop, fully in-kernel -----------------------
    x = emb_v[SOS_token:SOS_token + 1, :]                  # decoder_input = SOS embedding
    h = h_dec0
    score_rows, idx_rows = [], []

    for _ in range(max_len):
        # fused GRU: one (1,2H)x(2H,4*128) dot; slabs = [r | z | n_x | n_h]
        xh = jnp.concatenate([x, h], axis=1)                             # (1, 2H)
        g = jnp.dot(xh, wd, preferred_element_type=jnp.float32) + bd     # (1, 4*128)
        r = jax.nn.sigmoid(g[:, 0:H])
        z = jax.nn.sigmoid(g[:, LANE:LANE + H])
        n = jnp.tanh(g[:, 2 * LANE:2 * LANE + H] + r * g[:, 3 * LANE:3 * LANE + H])
        rnn_out = (1.0 - z) * n + z * h                                  # (1, H)

        # Luong "dot" attention over the valid encoder positions.
        sc = lax.dot_general(rnn_out, enc, (((1,), (1,)), ((), ())),
                             preferred_element_type=jnp.float32)         # (1, S)
        sc = jnp.where(pos < L, sc, NEG_INF)
        sc = sc - jnp.max(sc, axis=1, keepdims=True)
        e = jnp.exp(sc)
        attn = e / jnp.sum(e, axis=1, keepdims=True)
        context = jnp.dot(attn, enc, preferred_element_type=jnp.float32)  # (1, H)

        # fused concat layer: one (1,2H)x(2H,H) dot
        cat = jnp.concatenate([rnn_out, context], axis=1)
        concat_out = jnp.tanh(
            jnp.dot(cat, wc, preferred_element_type=jnp.float32) + bc)    # (1, H)

        logits = (jnp.dot(concat_out, wo, preferred_element_type=jnp.float32)
                  + bo)                                                   # (1, V_PAD)
        logits = jnp.where(vocab_ids < V, logits, NEG_INF)                # mask pad lanes

        # torch.max(softmax(logits), dim=1) without a full-vocab softmax:
        mx = jnp.max(logits, axis=1, keepdims=True)                       # (1, 1)
        sumexp = jnp.sum(jnp.exp(logits - mx), axis=1, keepdims=True)
        word_score = pl.reciprocal(sumexp, approx=True)                   # max softmax prob
        idx = jnp.min(jnp.where(logits == mx, vocab_ids, V_PAD),
                      axis=1, keepdims=True)                              # (1, 1) int32

        score_rows.append(word_score)
        idx_rows.append(idx)

        # next decoder input: embedding gather as a one-hot matmul (data-dependent)
        onehot = (vocab_ids == idx).astype(jnp.float32)                   # (1, V_PAD)
        x = jnp.dot(onehot, emb_v, preferred_element_type=jnp.float32)
        h = rnn_out

    # Two unmasked full-tile stores instead of per-step masked row stores.
    pad_rows = t_pad - max_len
    if pad_rows:
        score_rows += [jnp.zeros((1, 1), jnp.float32)] * pad_rows
        idx_rows += [jnp.zeros((1, 1), jnp.int32)] * pad_rows
    score_col = jnp.concatenate(score_rows, axis=0)                       # (t_pad, 1)
    idx_col = jnp.concatenate(idx_rows, axis=0)                           # (t_pad, 1)
    score_ref[...] = jnp.broadcast_to(score_col, (t_pad, V_PAD))
    idx_ref[...] = jnp.broadcast_to(idx_col, (t_pad, V_PAD))


# ----------------------------------------------------------------------------
# Wrappers.
# ----------------------------------------------------------------------------
def greedy_decode_device(input_seq, input_lengths, max_length, params):
    t_pad = max(8, -(-max_length // 8) * 8)                # sublane-aligned output slab
    kernel = functools.partial(greedy_kernel, max_len=max_length, t_pad=t_pad)
    scores, idxs = pl.pallas_call(
        kernel,
        out_shape=(jax.ShapeDtypeStruct((t_pad, V_PAD), jnp.float32),
                   jax.ShapeDtypeStruct((t_pad, V_PAD), jnp.int32)),
        in_specs=[_SMEM, _SMEM] + [_VMEM] * 15,
        out_specs=(_VMEM, _VMEM),
    )(input_seq.astype(jnp.int32), input_lengths.astype(jnp.int32),
      params["emb"],
      params["wx_f"], params["wh_f"], params["bx_f"], params["bh_f"],
      params["wx_b"], params["wh_b"], params["bx_b"], params["bh_b"],
      params["w_dec"], params["b_dec"],
      params["wc"], params["bc"], params["wo"], params["bo"])
    return scores, idxs


def greedy_search_decode(input_seq, input_lengths, max_length, params, idx2word):
    scores_d, idxs_d = greedy_decode_device(input_seq, input_lengths, max_length, params)
    scores_h, idxs_h = jax.device_get((scores_d, idxs_d))  # single D2H transfer
    # TODO(synk): EOS early-break and voc.idx2word string lookup stay on host; the
    # kernel decodes all max_length steps and the host trims at the first EOS,
    # which matches the PyTorch loop exactly.
    all_words, all_scores = [], []
    for t in range(max_length):
        word_idx = int(idxs_h[t, 0])
        if word_idx == EOS_token:
            break
        all_words.append(idx2word[word_idx])
        all_scores.append(float(scores_h[t, 0]))
    return all_words, all_scores


# ----------------------------------------------------------------------------
# Deterministic parameter init (gate-per-128-lane-slab / fused layouts).
# ----------------------------------------------------------------------------
def init_params(key):
    ks = jax.random.split(key, 18)
    u = lambda k, shape: jax.random.uniform(k, shape, jnp.float32, -0.2, 0.2)

    def gru_slabs(kw, kh, kbx, kbh):
        """Encoder layout: gate g lives at lane offset 128*g (r|z|n)."""
        wx_raw, wh_raw = u(kw, (H, 3 * H)), u(kh, (H, 3 * H))
        bx_raw, bh_raw = u(kbx, (1, 3 * H)), u(kbh, (1, 3 * H))
        wx = jnp.zeros((H, 3 * LANE), jnp.float32)
        wh = jnp.zeros((H, 3 * LANE), jnp.float32)
        bx = jnp.zeros((1, 3 * LANE), jnp.float32)
        bh = jnp.zeros((1, 3 * LANE), jnp.float32)
        for g in range(3):
            wx = wx.at[:, g * LANE:g * LANE + H].set(wx_raw[:, g * H:(g + 1) * H])
            wh = wh.at[:, g * LANE:g * LANE + H].set(wh_raw[:, g * H:(g + 1) * H])
            bx = bx.at[:, g * LANE:g * LANE + H].set(bx_raw[:, g * H:(g + 1) * H])
            bh = bh.at[:, g * LANE:g * LANE + H].set(bh_raw[:, g * H:(g + 1) * H])
        return wx, wh, bx, bh

    def gru_fused(kw, kh, kbx, kbh):
        """Decoder layout: rows [x | h], lane slabs [r | z | n_x | n_h]."""
        wx_raw, wh_raw = u(kw, (H, 3 * H)), u(kh, (H, 3 * H))
        bx_raw, bh_raw = u(kbx, (1, 3 * H)), u(kbh, (1, 3 * H))
        w = jnp.zeros((2 * H, 4 * LANE), jnp.float32)
        b = jnp.zeros((1, 4 * LANE), jnp.float32)
        for g, off in ((0, 0), (1, LANE)):                 # r, z: x+h summed
            w = w.at[:H, off:off + H].set(wx_raw[:, g * H:(g + 1) * H])
            w = w.at[H:, off:off + H].set(wh_raw[:, g * H:(g + 1) * H])
            b = b.at[:, off:off + H].set(bx_raw[:, g * H:(g + 1) * H]
                                         + bh_raw[:, g * H:(g + 1) * H])
        w = w.at[:H, 2 * LANE:2 * LANE + H].set(wx_raw[:, 2 * H:3 * H])   # n_x
        b = b.at[:, 2 * LANE:2 * LANE + H].set(bx_raw[:, 2 * H:3 * H])
        w = w.at[H:, 3 * LANE:3 * LANE + H].set(wh_raw[:, 2 * H:3 * H])   # n_h
        b = b.at[:, 3 * LANE:3 * LANE + H].set(bh_raw[:, 2 * H:3 * H])
        return w, b

    emb = jnp.zeros((V_PAD, H), jnp.float32).at[:V, :].set(u(ks[0], (V, H)))
    wx_f, wh_f, bx_f, bh_f = gru_slabs(ks[1], ks[2], ks[3], ks[4])
    wx_b, wh_b, bx_b, bh_b = gru_slabs(ks[5], ks[6], ks[7], ks[8])
    w_dec, b_dec = gru_fused(ks[9], ks[10], ks[11], ks[12])
    wc = jnp.concatenate([u(ks[13], (H, H)), u(ks[14], (H, H))], axis=0)  # (2H, H)
    bc = u(ks[15], (1, H))
    wo = jnp.zeros((H, V_PAD), jnp.float32).at[:, :V].set(u(ks[16], (H, V)))
    bo = jnp.full((1, V_PAD), NEG_INF, jnp.float32).at[:, :V].set(u(ks[17], (1, V)))
    return {
        "emb": emb,
        "wx_f": wx_f, "wh_f": wh_f, "bx_f": bx_f, "bh_f": bh_f,
        "wx_b": wx_b, "wh_b": wh_b, "bx_b": bx_b, "bh_b": bh_b,
        "w_dec": w_dec, "b_dec": b_dec,
        "wc": wc, "bc": bc,
        "wo": wo, "bo": bo,
    }


if __name__ == "__main__":
    key = jax.random.PRNGKey(0)
    pkey, skey = jax.random.split(key)
    params = init_params(pkey)

    # voc.idx2word
    idx2word = ["<pad>", "<sos>", "<eos>"] + [f"word{i}" for i in range(3, V)]

    # inputs: (S,) token ids (batch=1), input_lengths (device array), max length
    input_seq = jax.random.randint(skey, (S,), 3, V, dtype=jnp.int32)
    input_lengths = jnp.array([S], dtype=jnp.int32)
    max_length = 8

    # run the fused kernel once and block on its result
    scores_d, idxs_d = greedy_decode_device(input_seq, input_lengths, max_length, params)
    jax.block_until_ready((scores_d, idxs_d))

    # full greedy search: one kernel dispatch, one device_get, host-side EOS trim
    words, scores = greedy_search_decode(input_seq, input_lengths, max_length,
                                         params, idx2word)
    print("KERNEL_OK")
</pallas_src>

<mosaic_0001>
module attributes {stable_mosaic.version = 11 : i64} {
  func.func @greedy_kernel(%arg0: memref<8xi32, #tpu.memory_space<smem>>, %arg1: memref<1xi32, #tpu.memory_space<smem>>, %arg2: memref<128x32xf32, #tpu.memory_space<vmem>>, %arg3: memref<32x384xf32, #tpu.memory_space<vmem>>, %arg4: memref<32x384xf32, #tpu.memory_space<vmem>>, %arg5: memref<1x384xf32, #tpu.memory_space<vmem>>, %arg6: memref<1x384xf32, #tpu.memory_space<vmem>>, %arg7: memref<32x384xf32, #tpu.memory_space<vmem>>, %arg8: memref<32x384xf32, #tpu.memory_space<vmem>>, %arg9: memref<1x384xf32, #tpu.memory_space<vmem>>, %arg10: memref<1x384xf32, #tpu.memory_space<vmem>>, %arg11: memref<64x512xf32, #tpu.memory_space<vmem>>, %arg12: memref<1x512xf32, #tpu.memory_space<vmem>>, %arg13: memref<64x32xf32, #tpu.memory_space<vmem>>, %arg14: memref<1x32xf32, #tpu.memory_space<vmem>>, %arg15: memref<32x128xf32, #tpu.memory_space<vmem>>, %arg16: memref<1x128xf32, #tpu.memory_space<vmem>>, %arg17: memref<8x128xf32, #tpu.memory_space<vmem>>, %arg18: memref<8x128xi32, #tpu.memory_space<vmem>>) attributes {dimension_semantics = [], scalar_prefetch = 0 : i64, scratch_operands = 0 : i64, tpu.core_type = #tpu.core_type<tc>} {
    %c0 = arith.constant 0 : index
    %0 = memref.load %arg1[%c0] : memref<1xi32, #tpu.memory_space<smem>>
    %c0_0 = arith.constant 0 : index
    %c0_1 = arith.constant 0 : index
    %1 = vector.load %arg2[%c0_0, %c0_1] : memref<128x32xf32, #tpu.memory_space<vmem>>, vector<128x32xf32>
    %c0_2 = arith.constant 0 : index
    %c0_3 = arith.constant 0 : index
    %2 = vector.load %arg4[%c0_2, %c0_3] : memref<32x384xf32, #tpu.memory_space<vmem>>, vector<32x384xf32>
    %c0_4 = arith.constant 0 : index
    %c0_5 = arith.constant 0 : index
    %3 = vector.load %arg6[%c0_4, %c0_5] : memref<1x384xf32, #tpu.memory_space<vmem>>, vector<1x384xf32>
    %c0_6 = arith.constant 0 : index
    %c0_7 = arith.constant 0 : index
    %4 = vector.load %arg8[%c0_6, %c0_7] : memref<32x384xf32, #tpu.memory_space<vmem>>, vector<32x384xf32>
    %c0_8 = arith.constant 0 : index
    %c0_9 = arith.constant 0 : index
    %5 = vector.load %arg10[%c0_8, %c0_9] : memref<1x384xf32, #tpu.memory_space<vmem>>, vector<1x384xf32>
    %c0_10 = arith.constant 0 : index
    %c0_11 = arith.constant 0 : index
    %6 = vector.load %arg11[%c0_10, %c0_11] : memref<64x512xf32, #tpu.memory_space<vmem>>, vector<64x512xf32>
    %c0_12 = arith.constant 0 : index
    %c0_13 = arith.constant 0 : index
    %7 = vector.load %arg12[%c0_12, %c0_13] : memref<1x512xf32, #tpu.memory_space<vmem>>, vector<1x512xf32>
    %c0_14 = arith.constant 0 : index
    %c0_15 = arith.constant 0 : index
    %8 = vector.load %arg13[%c0_14, %c0_15] : memref<64x32xf32, #tpu.memory_space<vmem>>, vector<64x32xf32>
    %c0_16 = arith.constant 0 : index
    %c0_17 = arith.constant 0 : index
    %9 = vector.load %arg14[%c0_16, %c0_17] : memref<1x32xf32, #tpu.memory_space<vmem>>, vector<1x32xf32>
    %c0_18 = arith.constant 0 : index
    %c0_19 = arith.constant 0 : index
    %10 = vector.load %arg15[%c0_18, %c0_19] : memref<32x128xf32, #tpu.memory_space<vmem>>, vector<32x128xf32>
    %c0_20 = arith.constant 0 : index
    %c0_21 = arith.constant 0 : index
    %11 = vector.load %arg16[%c0_20, %c0_21] : memref<1x128xf32, #tpu.memory_space<vmem>>, vector<1x128xf32>
    %12 = tpu.iota {dimensions = array<i32: 1>} : vector<1x8xi32>
    %13 = tpu.iota {dimensions = array<i32: 1>} : vector<1x128xi32>
    %c0_22 = arith.constant 0 : index
    %14 = memref.load %arg0[%c0_22] : memref<8xi32, #tpu.memory_space<smem>>
    %15 = arith.index_cast %14 : i32 to index
    %c0_23 = arith.constant 0 : index
    %16 = vector.load %arg2[%15, %c0_23] : memref<128x32xf32, #tpu.memory_space<vmem>>, vector<1x32xf32>
    %c1 = arith.constant 1 : index
    %17 = memref.load %arg0[%c1] : memref<8xi32, #tpu.memory_space<smem>>
    %18 = arith.index_cast %17 : i32 to index
    %c0_24 = arith.constant 0 : index
    %19 = vector.load %arg2[%18, %c0_24] : memref<128x32xf32, #tpu.memory_space<vmem>>, vector<1x32xf32>
    %c2 = arith.constant 2 : index
    %20 = memref.load %arg0[%c2] : memref<8xi32, #tpu.memory_space<smem>>
    %21 = arith.index_cast %20 : i32 to index
    %c0_25 = arith.constant 0 : index
    %22 = vector.load %arg2[%21, %c0_25] : memref<128x32xf32, #tpu.memory_space<vmem>>, vector<1x32xf32>
    %c3 = arith.constant 3 : index
    %23 = memref.load %arg0[%c3] : memref<8xi32, #tpu.memory_space<smem>>
    %24 = arith.index_cast %23 : i32 to index
    %c0_26 = arith.constant 0 : index
    %25 = vector.load %arg2[%24, %c0_26] : memref<128x32xf32, #tpu.memory_space<vmem>>, vector<1x32xf32>
    %c4 = arith.constant 4 : index
    %26 = memref.load %arg0[%c4] : memref<8xi32, #tpu.memory_space<smem>>
    %27 = arith.index_cast %26 : i32 to index
    %c0_27 = arith.constant 0 : index
    %28 = vector.load %arg2[%27, %c0_27] : memref<128x32xf32, #tpu.memory_space<vmem>>, vector<1x32xf32>
    %c5 = arith.constant 5 : index
    %29 = memref.load %arg0[%c5] : memref<8xi32, #tpu.memory_space<smem>>
    %30 = arith.index_cast %29 : i32 to index
    %c0_28 = arith.constant 0 : index
    %31 = vector.load %arg2[%30, %c0_28] : memref<128x32xf32, #tpu.memory_space<vmem>>, vector<1x32xf32>
    %c6 = arith.constant 6 : index
    %32 = memref.load %arg0[%c6] : memref<8xi32, #tpu.memory_space<smem>>
    %33 = arith.index_cast %32 : i32 to index
    %c0_29 = arith.constant 0 : index
    %34 = vector.load %arg2[%33, %c0_29] : memref<128x32xf32, #tpu.memory_space<vmem>>, vector<1x32xf32>
    %c7 = arith.constant 7 : index
    %35 = memref.load %arg0[%c7] : memref<8xi32, #tpu.memory_space<smem>>
    %36 = arith.index_cast %35 : i32 to index
    %c0_30 = arith.constant 0 : index
    %37 = vector.load %arg2[%36, %c0_30] : memref<128x32xf32, #tpu.memory_space<vmem>>, vector<1x32xf32>
    %38 = tpu.concatenate %16, %19, %22, %25, %28, %31, %34, %37 in 0 : vector<1x32xf32>, vector<1x32xf32>, vector<1x32xf32>, vector<1x32xf32>, vector<1x32xf32>, vector<1x32xf32>, vector<1x32xf32>, vector<1x32xf32> -> vector<8x32xf32>
    %c0_31 = arith.constant 0 : index
    %c0_32 = arith.constant 0 : index
    %39 = vector.load %arg3[%c0_31, %c0_32] : memref<32x384xf32, #tpu.memory_space<vmem>>, vector<32x384xf32>
    %cst = arith.constant dense<0.000000e+00> : vector<8x384xf32>
    %40 = tpu.matmul %38, %39, %cst {dimension_numbers = #tpu.dot_dimension_numbers<[1], [0], [0], [1], [0, 0, 1, 1], [], []>} : vector<8x32xf32>, vector<32x384xf32>, vector<8x384xf32> -> vector<8x384xf32>
    %c0_33 = arith.constant 0 : index
    %c0_34 = arith.constant 0 : index
    %41 = vector.load %arg5[%c0_33, %c0_34] : memref<1x384xf32, #tpu.memory_space<vmem>>, vector<1x384xf32>
    %42 = vector.broadcast %41 : vector<1x384xf32> to vector<8x384xf32>
    %43 = arith.addf %40, %42 : vector<8x384xf32>
    %c0_35 = arith.constant 0 : index
    %c0_36 = arith.constant 0 : index
    %44 = vector.load %arg7[%c0_35, %c0_36] : memref<32x384xf32, #tpu.memory_space<vmem>>, vector<32x384xf32>
    %cst_37 = arith.constant dense<0.000000e+00> : vector<8x384xf32>
    %45 = tpu.matmul %38, %44, %cst_37 {dimension_numbers = #tpu.dot_dimension_numbers<[1], [0], [0], [1], [0, 0, 1, 1], [], []>} : vector<8x32xf32>, vector<32x384xf32>, vector<8x384xf32> -> vector<8x384xf32>
    %c0_38 = arith.constant 0 : index
    %c0_39 = arith.constant 0 : index
    %46 = vector.load %arg9[%c0_38, %c0_39] : memref<1x384xf32, #tpu.memory_space<vmem>>, vector<1x384xf32>
    %47 = vector.broadcast %46 : vector<1x384xf32> to vector<8x384xf32>
    %48 = arith.addf %45, %47 : vector<8x384xf32>
    %cst_40 = arith.constant 0.000000e+00 : f32
    %49 = vector.broadcast %cst_40 : f32 to vector<1x32xf32>
    %50 = vector.extract_strided_slice %43 {offsets = [0, 0], sizes = [1, 384], strides = [1, 1]} : vector<8x384xf32> to vector<1x384xf32>
    %cst_41 = arith.constant dense<0.000000e+00> : vector<1x384xf32>
    %51 = tpu.matmul %49, %2, %cst_41 {dimension_numbers = #tpu.dot_dimension_numbers<[1], [0], [0], [1], [0, 0, 1, 1], [], []>} : vector<1x32xf32>, vector<32x384xf32>, vector<1x384xf32> -> vector<1x384xf32>
    %52 = arith.addf %51, %3 : vector<1x384xf32>
    %53 = arith.addf %50, %52 : vector<1x384xf32>
    %54 = vector.extract_strided_slice %53 {offsets = [0, 0], sizes = [1, 32], strides = [1, 1]} : vector<1x384xf32> to vector<1x32xf32>
    %55 = arith.negf %54 : vector<1x32xf32>
    %56 = math.exp %55 : vector<1x32xf32>
    %cst_42 = arith.constant 1.000000e+00 : f32
    %57 = vector.broadcast %cst_42 : f32 to vector<1x32xf32>
    %58 = arith.addf %57, %56 : vector<1x32xf32>
    %59 = arith.divf %57, %58 : vector<1x32xf32>
    %60 = vector.extract_strided_slice %53 {offsets = [0, 128], sizes = [1, 32], strides = [1, 1]} : vector<1x384xf32> to vector<1x32xf32>
    %61 = arith.negf %60 : vector<1x32xf32>
    %62 = math.exp %61 : vector<1x32xf32>
    %cst_43 = arith.constant 1.000000e+00 : f32
    %63 = vector.broadcast %cst_43 : f32 to vector<1x32xf32>
    %64 = arith.addf %63, %62 : vector<1x32xf32>
    %65 = arith.divf %63, %64 : vector<1x32xf32>
    %66 = vector.extract_strided_slice %50 {offsets = [0, 256], sizes = [1, 32], strides = [1, 1]} : vector<1x384xf32> to vector<1x32xf32>
    %67 = vector.extract_strided_slice %52 {offsets = [0, 256], sizes = [1, 32], strides = [1, 1]} : vector<1x384xf32> to vector<1x32xf32>
    %68 = arith.mulf %59, %67 : vector<1x32xf32>
    %69 = arith.addf %66, %68 : vector<1x32xf32>
    %70 = math.tanh %69 : vector<1x32xf32>
    %cst_44 = arith.constant 1.000000e+00 : f32
    %71 = vector.broadcast %cst_44 : f32 to vector<1x32xf32>
    %72 = arith.subf %71, %65 : vector<1x32xf32>
    %73 = arith.mulf %72, %70 : vector<1x32xf32>
    %74 = arith.mulf %65, %49 : vector<1x32xf32>
    %75 = arith.addf %73, %74 : vector<1x32xf32>
    %c0_i32 = arith.constant 0 : i32
    %76 = arith.cmpi sgt, %0, %c0_i32 : i32
    %77 = arith.extui %76 : i1 to i32
    %78 = arith.sitofp %77 : i32 to f32
    %79 = vector.broadcast %78 : f32 to vector<1x32xf32>
    %80 = arith.mulf %79, %75 : vector<1x32xf32>
    %cst_45 = arith.constant 1.000000e+00 : f32
    %81 = arith.subf %cst_45, %78 : f32
    %82 = vector.broadcast %81 : f32 to vector<1x32xf32>
    %83 = arith.mulf %82, %49 : vector<1x32xf32>
    %84 = arith.addf %80, %83 : vector<1x32xf32>
    %85 = vector.broadcast %78 : f32 to vector<1x32xf32>
    %86 = arith.mulf %85, %84 : vector<1x32xf32>
    %87 = vector.extract_strided_slice %43 {offsets = [1, 0], sizes = [1, 384], strides = [1, 1]} : vector<8x384xf32> to vector<1x384xf32>
    %cst_46 = arith.constant dense<0.000000e+00> : vector<1x384xf32>
    %88 = tpu.matmul %84, %2, %cst_46 {dimension_numbers = #tpu.dot_dimension_numbers<[1], [0], [0], [1], [0, 0, 1, 1], [], []>} : vector<1x32xf32>, vector<32x384xf32>, vector<1x384xf32> -> vector<1x384xf32>
    %89 = arith.addf %88, %3 : vector<1x384xf32>
    %90 = arith.addf %87, %89 : vector<1x384xf32>
    %91 = vector.extract_strided_slice %90 {offsets = [0, 0], sizes = [1, 32], strides = [1, 1]} : vector<1x384xf32> to vector<1x32xf32>
    %92 = arith.negf %91 : vector<1x32xf32>
    %93 = math.exp %92 : vector<1x32xf32>
    %cst_47 = arith.constant 1.000000e+00 : f32
    %94 = vector.broadcast %cst_47 : f32 to vector<1x32xf32>
    %95 = arith.addf %94, %93 : vector<1x32xf32>
    %96 = arith.divf %94, %95 : vector<1x32xf32>
    %97 = vector.extract_strided_slice %90 {offsets = [0, 128], sizes = [1, 32], strides = [1, 1]} : vector<1x384xf32> to vector<1x32xf32>
    %98 = arith.negf %97 : vector<1x32xf32>
    %99 = math.exp %98 : vector<1x32xf32>
    %cst_48 = arith.constant 1.000000e+00 : f32
    %100 = vector.broadcast %cst_48 : f32 to vector<1x32xf32>
    %101 = arith.addf %100, %99 : vector<1x32xf32>
    %102 = arith.divf %100, %101 : vector<1x32xf32>
    %103 = vector.extract_strided_slice %87 {offsets = [0, 256], sizes = [1, 32], strides = [1, 1]} : vector<1x384xf32> to vector<1x32xf32>
    %104 = vector.extract_strided_slice %89 {offsets = [0, 256], sizes = [1, 32], strides = [1, 1]} : vector<1x384xf32> to vector<1x32xf32>
    %105 = arith.mulf %96, %104 : vector<1x32xf32>
    %106 = arith.addf %103, %105 : vector<1x32xf32>
    %107 = math.tanh %106 : vector<1x32xf32>
    %cst_49 = arith.constant 1.000000e+00 : f32
    %108 = vector.broadcast %cst_49 : f32 to vector<1x32xf32>
    %109 = arith.subf %108, %102 : vector<1x32xf32>
    %110 = arith.mulf %109, %107 : vector<1x32xf32>
    %111 = arith.mulf %102, %84 : vector<1x32xf32>
    %112 = arith.addf %110, %111 : vector<1x32xf32>
    %c1_i32 = arith.constant 1 : i32
    %113 = arith.cmpi sgt, %0, %c1_i32 : i32
    %114 = arith.extui %113 : i1 to i32
    %115 = arith.sitofp %114 : i32 to f32
    %116 = vector.broadcast %115 : f32 to vector<1x32xf32>
    %117 = arith.mulf %116, %112 : vector<1x32xf32>
    %cst_50 = arith.constant 1.000000e+00 : f32
    %118 = arith.subf %cst_50, %115 : f32
    %119 = vector.broadcast %118 : f32 to vector<1x32xf32>
    %120 = arith.mulf %119, %84 : vector<1x32xf32>
    %121 = arith.addf %117, %120 : vector<1x32xf32>
    %122 = vector.broadcast %115 : f32 to vector<1x32xf32>
    %123 = arith.mulf %122, %121 : vector<1x32xf32>
    %124 = vector.extract_strided_slice %43 {offsets = [2, 0], sizes = [1, 384], strides = [1, 1]} : vector<8x384xf32> to vector<1x384xf32>
    %cst_51 = arith.constant dense<0.000000e+00> : vector<1x384xf32>
    %125 = tpu.matmul %121, %2, %cst_51 {dimension_numbers = #tpu.dot_dimension_numbers<[1], [0], [0], [1], [0, 0, 1, 1], [], []>} : vector<1x32xf32>, vector<32x384xf32>, vector<1x384xf32> -> vector<1x384xf32>
    %126 = arith.addf %125, %3 : vector<1x384xf32>
    %127 = arith.addf %124, %126 : vector<1x384xf32>
    %128 = vector.extract_strided_slice %127 {offsets = [0, 0], sizes = [1, 32], strides = [1, 1]} : vector<1x384xf32> to vector<1x32xf32>
    %129 = arith.negf %128 : vector<1x32xf32>
    %130 = math.exp %129 : vector<1x32xf32>
    %cst_52 = arith.constant 1.000000e+00 : f32
    %131 = vector.broadcast %cst_52 : f32 to vector<1x32xf32>
    %132 = arith.addf %131, %130 : vector<1x32xf32>
    %133 = arith.divf %131, %132 : vector<1x32xf32>
    %134 = vector.extract_strided_slice %127 {offsets = [0, 128], sizes = [1, 32], strides = [1, 1]} : vector<1x384xf32> to vector<1x32xf32>
    %135 = arith.negf %134 : vector<1x32xf32>
    %136 = math.exp %135 : vector<1x32xf32>
    %cst_53 = arith.constant 1.000000e+00 : f32
    %137 = vector.broadcast %cst_53 : f32 to vector<1x32xf32>
    %138 = arith.addf %137, %136 : vector<1x32xf32>
    %139 = arith.divf %137, %138 : vector<1x32xf32>
    %140 = vector.extract_strided_slice %124 {offsets = [0, 256], sizes = [1, 32], strides = [1, 1]} : vector<1x384xf32> to vector<1x32xf32>
    %141 = vector.extract_strided_slice %126 {offsets = [0, 256], sizes = [1, 32], strides = [1, 1]} : vector<1x384xf32> to vector<1x32xf32>
    %142 = arith.mulf %133, %141 : vector<1x32xf32>
    %143 = arith.addf %140, %142 : vector<1x32xf32>
    %144 = math.tanh %143 : vector<1x32xf32>
    %cst_54 = arith.constant 1.000000e+00 : f32
    %145 = vector.broadcast %cst_54 : f32 to vector<1x32xf32>
    %146 = arith.subf %145, %139 : vector<1x32xf32>
    %147 = arith.mulf %146, %144 : vector<1x32xf32>
    %148 = arith.mulf %139, %121 : vector<1x32xf32>
    %149 = arith.addf %147, %148 : vector<1x32xf32>
    %c2_i32 = arith.constant 2 : i32
    %150 = arith.cmpi sgt, %0, %c2_i32 : i32
    %151 = arith.extui %150 : i1 to i32
    %152 = arith.sitofp %151 : i32 to f32
    %153 = vector.broadcast %152 : f32 to vector<1x32xf32>
    %154 = arith.mulf %153, %149 : vector<1x32xf32>
    %cst_55 = arith.constant 1.000000e+00 : f32
    %155 = arith.subf %cst_55, %152 : f32
    %156 = vector.broadcast %155 : f32 to vector<1x32xf32>
    %157 = arith.mulf %156, %121 : vector<1x32xf32>
    %158 = arith.addf %154, %157 : vector<1x32xf32>
    %159 = vector.broadcast %152 : f32 to vector<1x32xf32>
    %160 = arith.mulf %159, %158 : vector<1x32xf32>
    %161 = vector.extract_strided_slice %43 {offsets = [3, 0], sizes = [1, 384], strides = [1, 1]} : vector<8x384xf32> to vector<1x384xf32>
    %cst_56 = arith.constant dense<0.000000e+00> : vector<1x384xf32>
    %162 = tpu.matmul %158, %2, %cst_56 {dimension_numbers = #tpu.dot_dimension_numbers<[1], [0], [0], [1], [0, 0, 1, 1], [], []>} : vector<1x32xf32>, vector<32x384xf32>, vector<1x384xf32> -> vector<1x384xf32>
    %163 = arith.addf %162, %3 : vector<1x384xf32>
    %164 = arith.addf %161, %163 : vector<1x384xf32>
    %165 = vector.extract_strided_slice %164 {offsets = [0, 0], sizes = [1, 32], strides = [1, 1]} : vector<1x384xf32> to vector<1x32xf32>
    %166 = arith.negf %165 : vector<1x32xf32>
    %167 = math.exp %166 : vector<1x32xf32>
    %cst_57 = arith.constant 1.000000e+00 : f32
    %168 = vector.broadcast %cst_57 : f32 to vector<1x32xf32>
    %169 = arith.addf %168, %167 : vector<1x32xf32>
    %170 = arith.divf %168, %169 : vector<1x32xf32>
    %171 = vector.extract_strided_slice %164 {offsets = [0, 128], sizes = [1, 32], strides = [1, 1]} : vector<1x384xf32> to vector<1x32xf32>
    %172 = arith.negf %171 : vector<1x32xf32>
    %173 = math.exp %172 : vector<1x32xf32>
    %cst_58 = arith.constant 1.000000e+00 : f32
    %174 = vector.broadcast %cst_58 : f32 to vector<1x32xf32>
    %175 = arith.addf %174, %173 : vector<1x32xf32>
    %176 = arith.divf %174, %175 : vector<1x32xf32>
    %177 = vector.extract_strided_slice %161 {offsets = [0, 256], sizes = [1, 32], strides = [1, 1]} : vector<1x384xf32> to vector<1x32xf32>
    %178 = vector.extract_strided_slice %163 {offsets = [0, 256], sizes = [1, 32], strides = [1, 1]} : vector<1x384xf32> to vector<1x32xf32>
    %179 = arith.mulf %170, %178 : vector<1x32xf32>
    %180 = arith.addf %177, %179 : vector<1x32xf32>
    %181 = math.tanh %180 : vector<1x32xf32>
    %cst_59 = arith.constant 1.000000e+00 : f32
    %182 = vector.broadcast %cst_59 : f32 to vector<1x32xf32>
    %183 = arith.subf %182, %176 : vector<1x32xf32>
    %184 = arith.mulf %183, %181 : vector<1x32xf32>
    %185 = arith.mulf %176, %158 : vector<1x32xf32>
    %186 = arith.addf %184, %185 : vector<1x32xf32>
    %c3_i32 = arith.constant 3 : i32
    %187 = arith.cmpi sgt, %0, %c3_i32 : i32
    %188 = arith.extui %187 : i1 to i32
    %189 = arith.sitofp %188 : i32 to f32
    %190 = vector.broadcast %189 : f32 to vector<1x32xf32>
    %191 = arith.mulf %190, %186 : vector<1x32xf32>
    %cst_60 = arith.constant 1.000000e+00 : f32
    %192 = arith.subf %cst_60, %189 : f32
    %193 = vector.broadcast %192 : f32 to vector<1x32xf32>
    %194 = arith.mulf %193, %158 : vector<1x32xf32>
    %195 = arith.addf %191, %194 : vector<1x32xf32>
    %196 = vector.broadcast %189 : f32 to vector<1x32xf32>
    %197 = arith.mulf %196, %195 : vector<1x32xf32>
    %198 = vector.extract_strided_slice %43 {offsets = [4, 0], sizes = [1, 384], strides = [1, 1]} : vector<8x384xf32> to vector<1x384xf32>
    %cst_61 = arith.constant dense<0.000000e+00> : vector<1x384xf32>
    %199 = tpu.matmul %195, %2, %cst_61 {dimension_numbers = #tpu.dot_dimension_numbers<[1], [0], [0], [1], [0, 0, 1, 1], [], []>} : vector<1x32xf32>, vector<32x384xf32>, vector<1x384xf32> -> vector<1x384xf32>
    %200 = arith.addf %199, %3 : vector<1x384xf32>
    %201 = arith.addf %198, %200 : vector<1x384xf32>
    %202 = vector.extract_strided_slice %201 {offsets = [0, 0], sizes = [1, 32], strides = [1, 1]} : vector<1x384xf32> to vector<1x32xf32>
    %203 = arith.negf %202 : vector<1x32xf32>
    %204 = math.exp %203 : vector<1x32xf32>
    %cst_62 = arith.constant 1.000000e+00 : f32
    %205 = vector.broadcast %cst_62 : f32 to vector<1x32xf32>
    %206 = arith.addf %205, %204 : vector<1x32xf32>
    %207 = arith.divf %205, %206 : vector<1x32xf32>
    %208 = vector.extract_strided_slice %201 {offsets = [0, 128], sizes = [1, 32], strides = [1, 1]} : vector<1x384xf32> to vector<1x32xf32>
    %209 = arith.negf %208 : vector<1x32xf32>
    %210 = math.exp %209 : vector<1x32xf32>
    %cst_63 = arith.constant 1.000000e+00 : f32
    %211 = vector.broadcast %cst_63 : f32 to vector<1x32xf32>
    %212 = arith.addf %211, %210 : vector<1x32xf32>
    %213 = arith.divf %211, %212 : vector<1x32xf32>
    %214 = vector.extract_strided_slice %198 {offsets = [0, 256], sizes = [1, 32], strides = [1, 1]} : vector<1x384xf32> to vector<1x32xf32>
    %215 = vector.extract_strided_slice %200 {offsets = [0, 256], sizes = [1, 32], strides = [1, 1]} : vector<1x384xf32> to vector<1x32xf32>
    %216 = arith.mulf %207, %215 : vector<1x32xf32>
    %217 = arith.addf %214, %216 : vector<1x32xf32>
    %218 = math.tanh %217 : vector<1x32xf32>
    %cst_64 = arith.constant 1.000000e+00 : f32
    %219 = vector.broadcast %cst_64 : f32 to vector<1x32xf32>
    %220 = arith.subf %219, %213 : vector<1x32xf32>
    %221 = arith.mulf %220, %218 : vector<1x32xf32>
    %222 = arith.mulf %213, %195 : vector<1x32xf32>
    %223 = arith.addf %221, %222 : vector<1x32xf32>
    %c4_i32 = arith.constant 4 : i32
    %224 = arith.cmpi sgt, %0, %c4_i32 : i32
    %225 = arith.extui %224 : i1 to i32
    %226 = arith.sitofp %225 : i32 to f32
    %227 = vector.broadcast %226 : f32 to vector<1x32xf32>
    %228 = arith.mulf %227, %223 : vector<1x32xf32>
    %cst_65 = arith.constant 1.000000e+00 : f32
    %229 = arith.subf %cst_65, %226 : f32
    %230 = vector.broadcast %229 : f32 to vector<1x32xf32>
    %231 = arith.mulf %230, %195 : vector<1x32xf32>
    %232 = arith.addf %228, %231 : vector<1x32xf32>
    %233 = vector.broadcast %226 : f32 to vector<1x32xf32>
    %234 = arith.mulf %233, %232 : vector<1x32xf32>
    %235 = vector.extract_strided_slice %43 {offsets = [5, 0], sizes = [1, 384], strides = [1, 1]} : vector<8x384xf32> to vector<1x384xf32>
    %cst_66 = arith.constant dense<0.000000e+00> : vector<1x384xf32>
    %236 = tpu.matmul %232, %2, %cst_66 {dimension_numbers = #tpu.dot_dimension_numbers<[1], [0], [0], [1], [0, 0, 1, 1], [], []>} : vector<1x32xf32>, vector<32x384xf32>, vector<1x384xf32> -> vector<1x384xf32>
    %237 = arith.addf %236, %3 : vector<1x384xf32>
    %238 = arith.addf %235, %237 : vector<1x384xf32>
    %239 = vector.extract_strided_slice %238 {offsets = [0, 0], sizes = [1, 32], strides = [1, 1]} : vector<1x384xf32> to vector<1x32xf32>
    %240 = arith.negf %239 : vector<1x32xf32>
    %241 = math.exp %240 : vector<1x32xf32>
    %cst_67 = arith.constant 1.000000e+00 : f32
    %242 = vector.broadcast %cst_67 : f32 to vector<1x32xf32>
    %243 = arith.addf %242, %241 : vector<1x32xf32>
    %244 = arith.divf %242, %243 : vector<1x32xf32>
    %245 = vector.extract_strided_slice %238 {offsets = [0, 128], sizes = [1, 32], strides = [1, 1]} : vector<1x384xf32> to vector<1x32xf32>
    %246 = arith.negf %245 : vector<1x32xf32>
    %247 = math.exp %246 : vector<1x32xf32>
    %cst_68 = arith.constant 1.000000e+00 : f32
    %248 = vector.broadcast %cst_68 : f32 to vector<1x32xf32>
    %249 = arith.addf %248, %247 : vector<1x32xf32>
    %250 = arith.divf %248, %249 : vector<1x32xf32>
    %251 = vector.extract_strided_slice %235 {offsets = [0, 256], sizes = [1, 32], strides = [1, 1]} : vector<1x384xf32> to vector<1x32xf32>
    %252 = vector.extract_strided_slice %237 {offsets = [0, 256], sizes = [1, 32], strides = [1, 1]} : vector<1x384xf32> to vector<1x32xf32>
    %253 = arith.mulf %244, %252 : vector<1x32xf32>
    %254 = arith.addf %251, %253 : vector<1x32xf32>
    %255 = math.tanh %254 : vector<1x32xf32>
    %cst_69 = arith.constant 1.000000e+00 : f32
    %256 = vector.broadcast %cst_69 : f32 to vector<1x32xf32>
    %257 = arith.subf %256, %250 : vector<1x32xf32>
    %258 = arith.mulf %257, %255 : vector<1x32xf32>
    %259 = arith.mulf %250, %232 : vector<1x32xf32>
    %260 = arith.addf %258, %259 : vector<1x32xf32>
    %c5_i32 = arith.constant 5 : i32
    %261 = arith.cmpi sgt, %0, %c5_i32 : i32
    %262 = arith.extui %261 : i1 to i32
    %263 = arith.sitofp %262 : i32 to f32
    %264 = vector.broadcast %263 : f32 to vector<1x32xf32>
    %265 = arith.mulf %264, %260 : vector<1x32xf32>
    %cst_70 = arith.constant 1.000000e+00 : f32
    %266 = arith.subf %cst_70, %263 : f32
    %267 = vector.broadcast %266 : f32 to vector<1x32xf32>
    %268 = arith.mulf %267, %232 : vector<1x32xf32>
    %269 = arith.addf %265, %268 : vector<1x32xf32>
    %270 = vector.broadcast %263 : f32 to vector<1x32xf32>
    %271 = arith.mulf %270, %269 : vector<1x32xf32>
    %272 = vector.extract_strided_slice %43 {offsets = [6, 0], sizes = [1, 384], strides = [1, 1]} : vector<8x384xf32> to vector<1x384xf32>
    %cst_71 = arith.constant dense<0.000000e+00> : vector<1x384xf32>
    %273 = tpu.matmul %269, %2, %cst_71 {dimension_numbers = #tpu.dot_dimension_numbers<[1], [0], [0], [1], [0, 0, 1, 1], [], []>} : vector<1x32xf32>, vector<32x384xf32>, vector<1x384xf32> -> vector<1x384xf32>
    %274 = arith.addf %273, %3 : vector<1x384xf32>
    %275 = arith.addf %272, %274 : vector<1x384xf32>
    %276 = vector.extract_strided_slice %275 {offsets = [0, 0], sizes = [1, 32], strides = [1, 1]} : vector<1x384xf32> to vector<1x32xf32>
    %277 = arith.negf %276 : vector<1x32xf32>
    %278 = math.exp %277 : vector<1x32xf32>
    %cst_72 = arith.constant 1.000000e+00 : f32
    %279 = vector.broadcast %cst_72 : f32 to vector<1x32xf32>
    %280 = arith.addf %279, %278 : vector<1x32xf32>
    %281 = arith.divf %279, %280 : vector<1x32xf32>
    %282 = vector.extract_strided_slice %275 {offsets = [0, 128], sizes = [1, 32], strides = [1, 1]} : vector<1x384xf32> to vector<1x32xf32>
    %283 = arith.negf %282 : vector<1x32xf32>
    %284 = math.exp %283 : vector<1x32xf32>
    %cst_73 = arith.constant 1.000000e+00 : f32
    %285 = vector.broadcast %cst_73 : f32 to vector<1x32xf32>
    %286 = arith.addf %285, %284 : vector<1x32xf32>
    %287 = arith.divf %285, %286 : vector<1x32xf32>
    %288 = vector.extract_strided_slice %272 {offsets = [0, 256], sizes = [1, 32], strides = [1, 1]} : vector<1x384xf32> to vector<1x32xf32>
    %289 = vector.extract_strided_slice %274 {offsets = [0, 256], sizes = [1, 32], strides = [1, 1]} : vector<1x384xf32> to vector<1x32xf32>
    %290 = arith.mulf %281, %289 : vector<1x32xf32>
    %291 = arith.addf %288, %290 : vector<1x32xf32>
    %292 = math.tanh %291 : vector<1x32xf32>
    %cst_74 = arith.constant 1.000000e+00 : f32
    %293 = vector.broadcast %cst_74 : f32 to vector<1x32xf32>
    %294 = arith.subf %293, %287 : vector<1x32xf32>
    %295 = arith.mulf %294, %292 : vector<1x32xf32>
    %296 = arith.mulf %287, %269 : vector<1x32xf32>
    %297 = arith.addf %295, %296 : vector<1x32xf32>
    %c6_i32 = arith.constant 6 : i32
    %298 = arith.cmpi sgt, %0, %c6_i32 : i32
    %299 = arith.extui %298 : i1 to i32
    %300 = arith.sitofp %299 : i32 to f32
    %301 = vector.broadcast %300 : f32 to vector<1x32xf32>
    %302 = arith.mulf %301, %297 : vector<1x32xf32>
    %cst_75 = arith.constant 1.000000e+00 : f32
    %303 = arith.subf %cst_75, %300 : f32
    %304 = vector.broadcast %303 : f32 to vector<1x32xf32>
    %305 = arith.mulf %304, %269 : vector<1x32xf32>
    %306 = arith.addf %302, %305 : vector<1x32xf32>
    %307 = vector.broadcast %300 : f32 to vector<1x32xf32>
    %308 = arith.mulf %307, %306 : vector<1x32xf32>
    %309 = vector.extract_strided_slice %43 {offsets = [7, 0], sizes = [1, 384], strides = [1, 1]} : vector<8x384xf32> to vector<1x384xf32>
    %cst_76 = arith.constant dense<0.000000e+00> : vector<1x384xf32>
    %310 = tpu.matmul %306, %2, %cst_76 {dimension_numbers = #tpu.dot_dimension_numbers<[1], [0], [0], [1], [0, 0, 1, 1], [], []>} : vector<1x32xf32>, vector<32x384xf32>, vector<1x384xf32> -> vector<1x384xf32>
    %311 = arith.addf %310, %3 : vector<1x384xf32>
    %312 = arith.addf %309, %311 : vector<1x384xf32>
    %313 = vector.extract_strided_slice %312 {offsets = [0, 0], sizes = [1, 32], strides = [1, 1]} : vector<1x384xf32> to vector<1x32xf32>
    %314 = arith.negf %313 : vector<1x32xf32>
    %315 = math.exp %314 : vector<1x32xf32>
    %cst_77 = arith.constant 1.000000e+00 : f32
    %316 = vector.broadcast %cst_77 : f32 to vector<1x32xf32>
    %317 = arith.addf %316, %315 : vector<1x32xf32>
    %318 = arith.divf %316, %317 : vector<1x32xf32>
    %319 = vector.extract_strided_slice %312 {offsets = [0, 128], sizes = [1, 32], strides = [1, 1]} : vector<1x384xf32> to vector<1x32xf32>
    %320 = arith.negf %319 : vector<1x32xf32>
    %321 = math.exp %320 : vector<1x32xf32>
    %cst_78 = arith.constant 1.000000e+00 : f32
    %322 = vector.broadcast %cst_78 : f32 to vector<1x32xf32>
    %323 = arith.addf %322, %321 : vector<1x32xf32>
    %324 = arith.divf %322, %323 : vector<1x32xf32>
    %325 = vector.extract_strided_slice %309 {offsets = [0, 256], sizes = [1, 32], strides = [1, 1]} : vector<1x384xf32> to vector<1x32xf32>
    %326 = vector.extract_strided_slice %311 {offsets = [0, 256], sizes = [1, 32], strides = [1, 1]} : vector<1x384xf32> to vector<1x32xf32>
    %327 = arith.mulf %318, %326 : vector<1x32xf32>
    %328 = arith.addf %325, %327 : vector<1x32xf32>
    %329 = math.tanh %328 : vector<1x32xf32>
    %cst_79 = arith.constant 1.000000e+00 : f32
    %330 = vector.broadcast %cst_79 : f32 to vector<1x32xf32>
    %331 = arith.subf %330, %324 : vector<1x32xf32>
    %332 = arith.mulf %331, %329 : vector<1x32xf32>
    %333 = arith.mulf %324, %306 : vector<1x32xf32>
    %334 = arith.addf %332, %333 : vector<1x32xf32>
    %c7_i32 = arith.constant 7 : i32
    %335 = arith.cmpi sgt, %0, %c7_i32 : i32
    %336 = arith.extui %335 : i1 to i32
    %337 = arith.sitofp %336 : i32 to f32
    %338 = vector.broadcast %337 : f32 to vector<1x32xf32>
    %339 = arith.mulf %338, %334 : vector<1x32xf32>
    %cst_80 = arith.constant 1.000000e+00 : f32
    %340 = arith.subf %cst_80, %337 : f32
    %341 = vector.broadcast %340 : f32 to vector<1x32xf32>
    %342 = arith.mulf %341, %306 : vector<1x32xf32>
    %343 = arith.addf %339, %342 : vector<1x32xf32>
    %344 = vector.broadcast %337 : f32 to vector<1x32xf32>
    %345 = arith.mulf %344, %343 : vector<1x32xf32>
    %346 = vector.extract_strided_slice %48 {offsets = [7, 0], sizes = [1, 384], strides = [1, 1]} : vector<8x384xf32> to vector<1x384xf32>
    %cst_81 = arith.constant dense<0.000000e+00> : vector<1x384xf32>
    %347 = tpu.matmul %49, %4, %cst_81 {dimension_numbers = #tpu.dot_dimension_numbers<[1], [0], [0], [1], [0, 0, 1, 1], [], []>} : vector<1x32xf32>, vector<32x384xf32>, vector<1x384xf32> -> vector<1x384xf32>
    %348 = arith.addf %347, %5 : vector<1x384xf32>
    %349 = arith.addf %346, %348 : vector<1x384xf32>
    %350 = vector.extract_strided_slice %349 {offsets = [0, 0], sizes = [1, 32], strides = [1, 1]} : vector<1x384xf32> to vector<1x32xf32>
    %351 = arith.negf %350 : vector<1x32xf32>
    %352 = math.exp %351 : vector<1x32xf32>
    %cst_82 = arith.constant 1.000000e+00 : f32
    %353 = vector.broadcast %cst_82 : f32 to vector<1x32xf32>
    %354 = arith.addf %353, %352 : vector<1x32xf32>
    %355 = arith.divf %353, %354 : vector<1x32xf32>
    %356 = vector.extract_strided_slice %349 {offsets = [0, 128], sizes = [1, 32], strides = [1, 1]} : vector<1x384xf32> to vector<1x32xf32>
    %357 = arith.negf %356 : vector<1x32xf32>
    %358 = math.exp %357 : vector<1x32xf32>
    %cst_83 = arith.constant 1.000000e+00 : f32
    %359 = vector.broadcast %cst_83 : f32 to vector<1x32xf32>
    %360 = arith.addf %359, %358 : vector<1x32xf32>
    %361 = arith.divf %359, %360 : vector<1x32xf32>
    %362 = vector.extract_strided_slice %346 {offsets = [0, 256], sizes = [1, 32], strides = [1, 1]} : vector<1x384xf32> to vector<1x32xf32>
    %363 = vector.extract_strided_slice %348 {offsets = [0, 256], sizes = [1, 32], strides = [1, 1]} : vector<1x384xf32> to vector<1x32xf32>
    %364 = arith.mulf %355, %363 : vector<1x32xf32>
    %365 = arith.addf %362, %364 : vector<1x32xf32>
    %366 = math.tanh %365 : vector<1x32xf32>
    %cst_84 = arith.constant 1.000000e+00 : f32
    %367 = vector.broadcast %cst_84 : f32 to vector<1x32xf32>
    %368 = arith.subf %367, %361 : vector<1x32xf32>
    %369 = arith.mulf %368, %366 : vector<1x32xf32>
    %370 = arith.mulf %361, %49 : vector<1x32xf32>
    %371 = arith.addf %369, %370 : vector<1x32xf32>
    %c7_i32_85 = arith.constant 7 : i32
    %372 = arith.cmpi sgt, %0, %c7_i32_85 : i32
    %373 = arith.extui %372 : i1 to i32
    %374 = arith.sitofp %373 : i32 to f32
    %375 = vector.broadcast %374 : f32 to vector<1x32xf32>
    %376 = arith.mulf %375, %371 : vector<1x32xf32>
    %cst_86 = arith.constant 1.000000e+00 : f32
    %377 = arith.subf %cst_86, %374 : f32
    %378 = vector.broadcast %377 : f32 to vector<1x32xf32>
    %379 = arith.mulf %378, %49 : vector<1x32xf32>
    %380 = arith.addf %376, %379 : vector<1x32xf32>
    %381 = vector.broadcast %374 : f32 to vector<1x32xf32>
    %382 = arith.mulf %381, %380 : vector<1x32xf32>
    %383 = vector.extract_strided_slice %48 {offsets = [6, 0], sizes = [1, 384], strides = [1, 1]} : vector<8x384xf32> to vector<1x384xf32>
    %cst_87 = arith.constant dense<0.000000e+00> : vector<1x384xf32>
    %384 = tpu.matmul %380, %4, %cst_87 {dimension_numbers = #tpu.dot_dimension_numbers<[1], [0], [0], [1], [0, 0, 1, 1], [], []>} : vector<1x32xf32>, vector<32x384xf32>, vector<1x384xf32> -> vector<1x384xf32>
    %385 = arith.addf %384, %5 : vector<1x384xf32>
    %386 = arith.addf %383, %385 : vector<1x384xf32>
    %387 = vector.extract_strided_slice %386 {offsets = [0, 0], sizes = [1, 32], strides = [1, 1]} : vector<1x384xf32> to vector<1x32xf32>
    %388 = arith.negf %387 : vector<1x32xf32>
    %389 = math.exp %388 : vector<1x32xf32>
    %cst_88 = arith.constant 1.000000e+00 : f32
    %390 = vector.broadcast %cst_88 : f32 to vector<1x32xf32>
    %391 = arith.addf %390, %389 : vector<1x32xf32>
    %392 = arith.divf %390, %391 : vector<1x32xf32>
    %393 = vector.extract_strided_slice %386 {offsets = [0, 128], sizes = [1, 32], strides = [1, 1]} : vector<1x384xf32> to vector<1x32xf32>
    %394 = arith.negf %393 : vector<1x32xf32>
    %395 = math.exp %394 : vector<1x32xf32>
    %cst_89 = arith.constant 1.000000e+00 : f32
    %396 = vector.broadcast %cst_89 : f32 to vector<1x32xf32>
    %397 = arith.addf %396, %395 : vector<1x32xf32>
    %398 = arith.divf %396, %397 : vector<1x32xf32>
    %399 = vector.extract_strided_slice %383 {offsets = [0, 256], sizes = [1, 32], strides = [1, 1]} : vector<1x384xf32> to vector<1x32xf32>
    %400 = vector.extract_strided_slice %385 {offsets = [0, 256], sizes = [1, 32], strides = [1, 1]} : vector<1x384xf32> to vector<1x32xf32>
    %401 = arith.mulf %392, %400 : vector<1x32xf32>
    %402 = arith.addf %399, %401 : vector<1x32xf32>
    %403 = math.tanh %402 : vector<1x32xf32>
    %cst_90 = arith.constant 1.000000e+00 : f32
    %404 = vector.broadcast %cst_90 : f32 to vector<1x32xf32>
    %405 = arith.subf %404, %398 : vector<1x32xf32>
    %406 = arith.mulf %405, %403 : vector<1x32xf32>
    %407 = arith.mulf %398, %380 : vector<1x32xf32>
    %408 = arith.addf %406, %407 : vector<1x32xf32>
    %c6_i32_91 = arith.constant 6 : i32
    %409 = arith.cmpi sgt, %0, %c6_i32_91 : i32
    %410 = arith.extui %409 : i1 to i32
    %411 = arith.sitofp %410 : i32 to f32
    %412 = vector.broadcast %411 : f32 to vector<1x32xf32>
    %413 = arith.mulf %412, %408 : vector<1x32xf32>
    %cst_92 = arith.constant 1.000000e+00 : f32
    %414 = arith.subf %cst_92, %411 : f32
    %415 = vector.broadcast %414 : f32 to vector<1x32xf32>
    %416 = arith.mulf %415, %380 : vector<1x32xf32>
    %417 = arith.addf %413, %416 : vector<1x32xf32>
    %418 = vector.broadcast %411 : f32 to vector<1x32xf32>
    %419 = arith.mulf %418, %417 : vector<1x32xf32>
    %420 = vector.extract_strided_slice %48 {offsets = [5, 0], sizes = [1, 384], strides = [1, 1]} : vector<8x384xf32> to vector<1x384xf32>
    %cst_93 = arith.constant dense<0.000000e+00> : vector<1x384xf32>
    %421 = tpu.matmul %417, %4, %cst_93 {dimension_numbers = #tpu.dot_dimension_numbers<[1], [0], [0], [1], [0, 0, 1, 1], [], []>} : vector<1x32xf32>, vector<32x384xf32>, vector<1x384xf32> -> vector<1x384xf32>
    %422 = arith.addf %421, %5 : vector<1x384xf32>
    %423 = arith.addf %420, %422 : vector<1x384xf32>
    %424 = vector.extract_strided_slice %423 {offsets = [0, 0], sizes = [1, 32], strides = [1, 1]} : vector<1x384xf32> to vector<1x32xf32>
    %425 = arith.negf %424 : vector<1x32xf32>
    %426 = math.exp %425 : vector<1x32xf32>
    %cst_94 = arith.constant 1.000000e+00 : f32
    %427 = vector.broadcast %cst_94 : f32 to vector<1x32xf32>
    %428 = arith.addf %427, %426 : vector<1x32xf32>
    %429 = arith.divf %427, %428 : vector<1x32xf32>
    %430 = vector.extract_strided_slice %423 {offsets = [0, 128], sizes = [1, 32], strides = [1, 1]} : vector<1x384xf32> to vector<1x32xf32>
    %431 = arith.negf %430 : vector<1x32xf32>
    %432 = math.exp %431 : vector<1x32xf32>
    %cst_95 = arith.constant 1.000000e+00 : f32
    %433 = vector.broadcast %cst_95 : f32 to vector<1x32xf32>
    %434 = arith.addf %433, %432 : vector<1x32xf32>
    %435 = arith.divf %433, %434 : vector<1x32xf32>
    %436 = vector.extract_strided_slice %420 {offsets = [0, 256], sizes = [1, 32], strides = [1, 1]} : vector<1x384xf32> to vector<1x32xf32>
    %437 = vector.extract_strided_slice %422 {offsets = [0, 256], sizes = [1, 32], strides = [1, 1]} : vector<1x384xf32> to vector<1x32xf32>
    %438 = arith.mulf %429, %437 : vector<1x32xf32>
    %439 = arith.addf %436, %438 : vector<1x32xf32>
    %440 = math.tanh %439 : vector<1x32xf32>
    %cst_96 = arith.constant 1.000000e+00 : f32
    %441 = vector.broadcast %cst_96 : f32 to vector<1x32xf32>
    %442 = arith.subf %441, %435 : vector<1x32xf32>
    %443 = arith.mulf %442, %440 : vector<1x32xf32>
    %444 = arith.mulf %435, %417 : vector<1x32xf32>
    %445 = arith.addf %443, %444 : vector<1x32xf32>
    %c5_i32_97 = arith.constant 5 : i32
    %446 = arith.cmpi sgt, %0, %c5_i32_97 : i32
    %447 = arith.extui %446 : i1 to i32
    %448 = arith.sitofp %447 : i32 to f32
    %449 = vector.broadcast %448 : f32 to vector<1x32xf32>
    %450 = arith.mulf %449, %445 : vector<1x32xf32>
    %cst_98 = arith.constant 1.000000e+00 : f32
    %451 = arith.subf %cst_98, %448 : f32
    %452 = vector.broadcast %451 : f32 to vector<1x32xf32>
    %453 = arith.mulf %452, %417 : vector<1x32xf32>
    %454 = arith.addf %450, %453 : vector<1x32xf32>
    %455 = vector.broadcast %448 : f32 to vector<1x32xf32>
    %456 = arith.mulf %455, %454 : vector<1x32xf32>
    %457 = vector.extract_strided_slice %48 {offsets = [4, 0], sizes = [1, 384], strides = [1, 1]} : vector<8x384xf32> to vector<1x384xf32>
    %cst_99 = arith.constant dense<0.000000e+00> : vector<1x384xf32>
    %458 = tpu.matmul %454, %4, %cst_99 {dimension_numbers = #tpu.dot_dimension_numbers<[1], [0], [0], [1], [0, 0, 1, 1], [], []>} : vector<1x32xf32>, vector<32x384xf32>, vector<1x384xf32> -> vector<1x384xf32>
    %459 = arith.addf %458, %5 : vector<1x384xf32>
    %460 = arith.addf %457, %459 : vector<1x384xf32>
    %461 = vector.extract_strided_slice %460 {offsets = [0, 0], sizes = [1, 32], strides = [1, 1]} : vector<1x384xf32> to vector<1x32xf32>
    %462 = arith.negf %461 : vector<1x32xf32>
    %463 = math.exp %462 : vector<1x32xf32>
    %cst_100 = arith.constant 1.000000e+00 : f32
    %464 = vector.broadcast %cst_100 : f32 to vector<1x32xf32>
    %465 = arith.addf %464, %463 : vector<1x32xf32>
    %466 = arith.divf %464, %465 : vector<1x32xf32>
    %467 = vector.extract_strided_slice %460 {offsets = [0, 128], sizes = [1, 32], strides = [1, 1]} : vector<1x384xf32> to vector<1x32xf32>
    %468 = arith.negf %467 : vector<1x32xf32>
    %469 = math.exp %468 : vector<1x32xf32>
    %cst_101 = arith.constant 1.000000e+00 : f32
    %470 = vector.broadcast %cst_101 : f32 to vector<1x32xf32>
    %471 = arith.addf %470, %469 : vector<1x32xf32>
    %472 = arith.divf %470, %471 : vector<1x32xf32>
    %473 = vector.extract_strided_slice %457 {offsets = [0, 256], sizes = [1, 32], strides = [1, 1]} : vector<1x384xf32> to vector<1x32xf32>
    %474 = vector.extract_strided_slice %459 {offsets = [0, 256], sizes = [1, 32], strides = [1, 1]} : vector<1x384xf32> to vector<1x32xf32>
    %475 = arith.mulf %466, %474 : vector<1x32xf32>
    %476 = arith.addf %473, %475 : vector<1x32xf32>
    %477 = math.tanh %476 : vector<1x32xf32>
    %cst_102 = arith.constant 1.000000e+00 : f32
    %478 = vector.broadcast %cst_102 : f32 to vector<1x32xf32>
    %479 = arith.subf %478, %472 : vector<1x32xf32>
    %480 = arith.mulf %479, %477 : vector<1x32xf32>
    %481 = arith.mulf %472, %454 : vector<1x32xf32>
    %482 = arith.addf %480, %481 : vector<1x32xf32>
    %c4_i32_103 = arith.constant 4 : i32
    %483 = arith.cmpi sgt, %0, %c4_i32_103 : i32
    %484 = arith.extui %483 : i1 to i32
    %485 = arith.sitofp %484 : i32 to f32
    %486 = vector.broadcast %485 : f32 to vector<1x32xf32>
    %487 = arith.mulf %486, %482 : vector<1x32xf32>
    %cst_104 = arith.constant 1.000000e+00 : f32
    %488 = arith.subf %cst_104, %485 : f32
    %489 = vector.broadcast %488 : f32 to vector<1x32xf32>
    %490 = arith.mulf %489, %454 : vector<1x32xf32>
    %491 = arith.addf %487, %490 : vector<1x32xf32>
    %492 = vector.broadcast %485 : f32 to vector<1x32xf32>
    %493 = arith.mulf %492, %491 : vector<1x32xf32>
    %494 = vector.extract_strided_slice %48 {offsets = [3, 0], sizes = [1, 384], strides = [1, 1]} : vector<8x384xf32> to vector<1x384xf32>
    %cst_105 = arith.constant dense<0.000000e+00> : vector<1x384xf32>
    %495 = tpu.matmul %491, %4, %cst_105 {dimension_numbers = #tpu.dot_dimension_numbers<[1], [0], [0], [1], [0, 0, 1, 1], [], []>} : vector<1x32xf32>, vector<32x384xf32>, vector<1x384xf32> -> vector<1x384xf32>
    %496 = arith.addf %495, %5 : vector<1x384xf32>
    %497 = arith.addf %494, %496 : vector<1x384xf32>
    %498 = vector.extract_strided_slice %497 {offsets = [0, 0], sizes = [1, 32], strides = [1, 1]} : vector<1x384xf32> to vector<1x32xf32>
    %499 = arith.negf %498 : vector<1x32xf32>
    %500 = math.exp %499 : vector<1x32xf32>
    %cst_106 = arith.constant 1.000000e+00 : f32
    %501 = vector.broadcast %cst_106 : f32 to vector<1x32xf32>
    %502 = arith.addf %501, %500 : vector<1x32xf32>
    %503 = arith.divf %501, %502 : vector<1x32xf32>
    %504 = vector.extract_strided_slice %497 {offsets = [0, 128], sizes = [1, 32], strides = [1, 1]} : vector<1x384xf32> to vector<1x32xf32>
    %505 = arith.negf %504 : vector<1x32xf32>
    %506 = math.exp %505 : vector<1x32xf32>
    %cst_107 = arith.constant 1.000000e+00 : f32
    %507 = vector.broadcast %cst_107 : f32 to vector<1x32xf32>
    %508 = arith.addf %507, %506 : vector<1x32xf32>
    %509 = arith.divf %507, %508 : vector<1x32xf32>
    %510 = vector.extract_strided_slice %494 {offsets = [0, 256], sizes = [1, 32], strides = [1, 1]} : vector<1x384xf32> to vector<1x32xf32>
    %511 = vector.extract_strided_slice %496 {offsets = [0, 256], sizes = [1, 32], strides = [1, 1]} : vector<1x384xf32> to vector<1x32xf32>
    %512 = arith.mulf %503, %511 : vector<1x32xf32>
    %513 = arith.addf %510, %512 : vector<1x32xf32>
    %514 = math.tanh %513 : vector<1x32xf32>
    %cst_108 = arith.constant 1.000000e+00 : f32
    %515 = vector.broadcast %cst_108 : f32 to vector<1x32xf32>
    %516 = arith.subf %515, %509 : vector<1x32xf32>
    %517 = arith.mulf %516, %514 : vector<1x32xf32>
    %518 = arith.mulf %509, %491 : vector<1x32xf32>
    %519 = arith.addf %517, %518 : vector<1x32xf32>
    %c3_i32_109 = arith.constant 3 : i32
    %520 = arith.cmpi sgt, %0, %c3_i32_109 : i32
    %521 = arith.extui %520 : i1 to i32
    %522 = arith.sitofp %521 : i32 to f32
    %523 = vector.broadcast %522 : f32 to vector<1x32xf32>
    %524 = arith.mulf %523, %519 : vector<1x32xf32>
    %cst_110 = arith.constant 1.000000e+00 : f32
    %525 = arith.subf %cst_110, %522 : f32
    %526 = vector.broadcast %525 : f32 to vector<1x32xf32>
    %527 = arith.mulf %526, %491 : vector<1x32xf32>
    %528 = arith.addf %524, %527 : vector<1x32xf32>
    %529 = vector.broadcast %522 : f32 to vector<1x32xf32>
    %530 = arith.mulf %529, %528 : vector<1x32xf32>
    %531 = vector.extract_strided_slice %48 {offsets = [2, 0], sizes = [1, 384], strides = [1, 1]} : vector<8x384xf32> to vector<1x384xf32>
    %cst_111 = arith.constant dense<0.000000e+00> : vector<1x384xf32>
    %532 = tpu.matmul %528, %4, %cst_111 {dimension_numbers = #tpu.dot_dimension_numbers<[1], [0], [0], [1], [0, 0, 1, 1], [], []>} : vector<1x32xf32>, vector<32x384xf32>, vector<1x384xf32> -> vector<1x384xf32>
    %533 = arith.addf %532, %5 : vector<1x384xf32>
    %534 = arith.addf %531, %533 : vector<1x384xf32>
    %535 = vector.extract_strided_slice %534 {offsets = [0, 0], sizes = [1, 32], strides = [1, 1]} : vector<1x384xf32> to vector<1x32xf32>
    %536 = arith.negf %535 : vector<1x32xf32>
    %537 = math.exp %536 : vector<1x32xf32>
    %cst_112 = arith.constant 1.000000e+00 : f32
    %538 = vector.broadcast %cst_112 : f32 to vector<1x32xf32>
    %539 = arith.addf %538, %537 : vector<1x32xf32>
    %540 = arith.divf %538, %539 : vector<1x32xf32>
    %541 = vector.extract_strided_slice %534 {offsets = [0, 128], sizes = [1, 32], strides = [1, 1]} : vector<1x384xf32> to vector<1x32xf32>
    %542 = arith.negf %541 : vector<1x32xf32>
    %543 = math.exp %542 : vector<1x32xf32>
    %cst_113 = arith.constant 1.000000e+00 : f32
    %544 = vector.broadcast %cst_113 : f32 to vector<1x32xf32>
    %545 = arith.addf %544, %543 : vector<1x32xf32>
    %546 = arith.divf %544, %545 : vector<1x32xf32>
    %547 = vector.extract_strided_slice %531 {offsets = [0, 256], sizes = [1, 32], strides = [1, 1]} : vector<1x384xf32> to vector<1x32xf32>
    %548 = vector.extract_strided_slice %533 {offsets = [0, 256], sizes = [1, 32], strides = [1, 1]} : vector<1x384xf32> to vector<1x32xf32>
    %549 = arith.mulf %540, %548 : vector<1x32xf32>
    %550 = arith.addf %547, %549 : vector<1x32xf32>
    %551 = math.tanh %550 : vector<1x32xf32>
    %cst_114 = arith.constant 1.000000e+00 : f32
    %552 = vector.broadcast %cst_114 : f32 to vector<1x32xf32>
    %553 = arith.subf %552, %546 : vector<1x32xf32>
    %554 = arith.mulf %553, %551 : vector<1x32xf32>
    %555 = arith.mulf %546, %528 : vector<1x32xf32>
    %556 = arith.addf %554, %555 : vector<1x32xf32>
    %c2_i32_115 = arith.constant 2 : i32
    %557 = arith.cmpi sgt, %0, %c2_i32_115 : i32
    %558 = arith.extui %557 : i1 to i32
    %559 = arith.sitofp %558 : i32 to f32
    %560 = vector.broadcast %559 : f32 to vector<1x32xf32>
    %561 = arith.mulf %560, %556 : vector<1x32xf32>
    %cst_116 = arith.constant 1.000000e+00 : f32
    %562 = arith.subf %cst_116, %559 : f32
    %563 = vector.broadcast %562 : f32 to vector<1x32xf32>
    %564 = arith.mulf %563, %528 : vector<1x32xf32>
    %565 = arith.addf %561, %564 : vector<1x32xf32>
    %566 = vector.broadcast %559 : f32 to vector<1x32xf32>
    %567 = arith.mulf %566, %565 : vector<1x32xf32>
    %568 = vector.extract_strided_slice %48 {offsets = [1, 0], sizes = [1, 384], strides = [1, 1]} : vector<8x384xf32> to vector<1x384xf32>
    %cst_117 = arith.constant dense<0.000000e+00> : vector<1x384xf32>
    %569 = tpu.matmul %565, %4, %cst_117 {dimension_numbers = #tpu.dot_dimension_numbers<[1], [0], [0], [1], [0, 0, 1, 1], [], []>} : vector<1x32xf32>, vector<32x384xf32>, vector<1x384xf32> -> vector<1x384xf32>
    %570 = arith.addf %569, %5 : vector<1x384xf32>
    %571 = arith.addf %568, %570 : vector<1x384xf32>
    %572 = vector.extract_strided_slice %571 {offsets = [0, 0], sizes = [1, 32], strides = [1, 1]} : vector<1x384xf32> to vector<1x32xf32>
    %573 = arith.negf %572 : vector<1x32xf32>
    %574 = math.exp %573 : vector<1x32xf32>
    %cst_118 = arith.constant 1.000000e+00 : f32
    %575 = vector.broadcast %cst_118 : f32 to vector<1x32xf32>
    %576 = arith.addf %575, %574 : vector<1x32xf32>
    %577 = arith.divf %575, %576 : vector<1x32xf32>
    %578 = vector.extract_strided_slice %571 {offsets = [0, 128], sizes = [1, 32], strides = [1, 1]} : vector<1x384xf32> to vector<1x32xf32>
    %579 = arith.negf %578 : vector<1x32xf32>
    %580 = math.exp %579 : vector<1x32xf32>
    %cst_119 = arith.constant 1.000000e+00 : f32
    %581 = vector.broadcast %cst_119 : f32 to vector<1x32xf32>
    %582 = arith.addf %581, %580 : vector<1x32xf32>
    %583 = arith.divf %581, %582 : vector<1x32xf32>
    %584 = vector.extract_strided_slice %568 {offsets = [0, 256], sizes = [1, 32], strides = [1, 1]} : vector<1x384xf32> to vector<1x32xf32>
    %585 = vector.extract_strided_slice %570 {offsets = [0, 256], sizes = [1, 32], strides = [1, 1]} : vector<1x384xf32> to vector<1x32xf32>
    %586 = arith.mulf %577, %585 : vector<1x32xf32>
    %587 = arith.addf %584, %586 : vector<1x32xf32>
    %588 = math.tanh %587 : vector<1x32xf32>
    %cst_120 = arith.constant 1.000000e+00 : f32
    %589 = vector.broadcast %cst_120 : f32 to vector<1x32xf32>
    %590 = arith.subf %589, %583 : vector<1x32xf32>
    %591 = arith.mulf %590, %588 : vector<1x32xf32>
    %592 = arith.mulf %583, %565 : vector<1x32xf32>
    %593 = arith.addf %591, %592 : vector<1x32xf32>
    %c1_i32_121 = arith.constant 1 : i32
    %594 = arith.cmpi sgt, %0, %c1_i32_121 : i32
    %595 = arith.extui %594 : i1 to i32
    %596 = arith.sitofp %595 : i32 to f32
    %597 = vector.broadcast %596 : f32 to vector<1x32xf32>
    %598 = arith.mulf %597, %593 : vector<1x32xf32>
    %cst_122 = arith.constant 1.000000e+00 : f32
    %599 = arith.subf %cst_122, %596 : f32
    %600 = vector.broadcast %599 : f32 to vector<1x32xf32>
    %601 = arith.mulf %600, %565 : vector<1x32xf32>
    %602 = arith.addf %598, %601 : vector<1x32xf32>
    %603 = vector.broadcast %596 : f32 to vector<1x32xf32>
    %604 = arith.mulf %603, %602 : vector<1x32xf32>
    %605 = vector.extract_strided_slice %48 {offsets = [0, 0], sizes = [1, 384], strides = [1, 1]} : vector<8x384xf32> to vector<1x384xf32>
    %cst_123 = arith.constant dense<0.000000e+00> : vector<1x384xf32>
    %606 = tpu.matmul %602, %4, %cst_123 {dimension_numbers = #tpu.dot_dimension_numbers<[1], [0], [0], [1], [0, 0, 1, 1], [], []>} : vector<1x32xf32>, vector<32x384xf32>, vector<1x384xf32> -> vector<1x384xf32>
    %607 = arith.addf %606, %5 : vector<1x384xf32>
    %608 = arith.addf %605, %607 : vector<1x384xf32>
    %609 = vector.extract_strided_slice %608 {offsets = [0, 0], sizes = [1, 32], strides = [1, 1]} : vector<1x384xf32> to vector<1x32xf32>
    %610 = arith.negf %609 : vector<1x32xf32>
    %611 = math.exp %610 : vector<1x32xf32>
    %cst_124 = arith.constant 1.000000e+00 : f32
    %612 = vector.broadcast %cst_124 : f32 to vector<1x32xf32>
    %613 = arith.addf %612, %611 : vector<1x32xf32>
    %614 = arith.divf %612, %613 : vector<1x32xf32>
    %615 = vector.extract_strided_slice %608 {offsets = [0, 128], sizes = [1, 32], strides = [1, 1]} : vector<1x384xf32> to vector<1x32xf32>
    %616 = arith.negf %615 : vector<1x32xf32>
    %617 = math.exp %616 : vector<1x32xf32>
    %cst_125 = arith.constant 1.000000e+00 : f32
    %618 = vector.broadcast %cst_125 : f32 to vector<1x32xf32>
    %619 = arith.addf %618, %617 : vector<1x32xf32>
    %620 = arith.divf %618, %619 : vector<1x32xf32>
    %621 = vector.extract_strided_slice %605 {offsets = [0, 256], sizes = [1, 32], strides = [1, 1]} : vector<1x384xf32> to vector<1x32xf32>
    %622 = vector.extract_strided_slice %607 {offsets = [0, 256], sizes = [1, 32], strides = [1, 1]} : vector<1x384xf32> to vector<1x32xf32>
    %623 = arith.mulf %614, %622 : vector<1x32xf32>
    %624 = arith.addf %621, %623 : vector<1x32xf32>
    %625 = math.tanh %624 : vector<1x32xf32>
    %cst_126 = arith.constant 1.000000e+00 : f32
    %626 = vector.broadcast %cst_126 : f32 to vector<1x32xf32>
    %627 = arith.subf %626, %620 : vector<1x32xf32>
    %628 = arith.mulf %627, %625 : vector<1x32xf32>
    %629 = arith.mulf %620, %602 : vector<1x32xf32>
    %630 = arith.addf %628, %629 : vector<1x32xf32>
    %c0_i32_127 = arith.constant 0 : i32
    %631 = arith.cmpi sgt, %0, %c0_i32_127 : i32
    %632 = arith.extui %631 : i1 to i32
    %633 = arith.sitofp %632 : i32 to f32
    %634 = vector.broadcast %633 : f32 to vector<1x32xf32>
    %635 = arith.mulf %634, %630 : vector<1x32xf32>
    %cst_128 = arith.constant 1.000000e+00 : f32
    %636 = arith.subf %cst_128, %633 : f32
    %637 = vector.broadcast %636 : f32 to vector<1x32xf32>
    %638 = arith.mulf %637, %602 : vector<1x32xf32>
    %639 = arith.addf %635, %638 : vector<1x32xf32>
    %640 = vector.broadcast %633 : f32 to vector<1x32xf32>
    %641 = arith.mulf %640, %639 : vector<1x32xf32>
    %642 = tpu.concatenate %86, %123, %160, %197, %234, %271, %308, %345 in 0 : vector<1x32xf32>, vector<1x32xf32>, vector<1x32xf32>, vector<1x32xf32>, vector<1x32xf32>, vector<1x32xf32>, vector<1x32xf32>, vector<1x32xf32> -> vector<8x32xf32>
    %643 = tpu.concatenate %641, %604, %567, %530, %493, %456, %419, %382 in 0 : vector<1x32xf32>, vector<1x32xf32>, vector<1x32xf32>, vector<1x32xf32>, vector<1x32xf32>, vector<1x32xf32>, vector<1x32xf32>, vector<1x32xf32> -> vector<8x32xf32>
    %644 = arith.addf %642, %643 : vector<8x32xf32>
    %645 = vector.extract_strided_slice %1 {offsets = [1, 0], sizes = [1, 32], strides = [1, 1]} : vector<128x32xf32> to vector<1x32xf32>
    %646 = tpu.concatenate %645, %343 in 1 : vector<1x32xf32>, vector<1x32xf32> -> vector<1x64xf32>
    %cst_129 = arith.constant dense<0.000000e+00> : vector<1x512xf32>
    %647 = tpu.matmul %646, %6, %cst_129 {dimension_numbers = #tpu.dot_dimension_numbers<[1], [0], [0], [1], [0, 0, 1, 1], [], []>} : vector<1x64xf32>, vector<64x512xf32>, vector<1x512xf32> -> vector<1x512xf32>
    %648 = arith.addf %647, %7 : vector<1x512xf32>
    %649 = vector.extract_strided_slice %648 {offsets = [0, 0], sizes = [1, 32], strides = [1, 1]} : vector<1x512xf32> to vector<1x32xf32>
    %650 = arith.negf %649 : vector<1x32xf32>
    %651 = math.exp %650 : vector<1x32xf32>
    %cst_130 = arith.constant 1.000000e+00 : f32
    %652 = vector.broadcast %cst_130 : f32 to vector<1x32xf32>
    %653 = arith.addf %652, %651 : vector<1x32xf32>
    %654 = arith.divf %652, %653 : vector<1x32xf32>
    %655 = vector.extract_strided_slice %648 {offsets = [0, 128], sizes = [1, 32], strides = [1, 1]} : vector<1x512xf32> to vector<1x32xf32>
    %656 = arith.negf %655 : vector<1x32xf32>
    %657 = math.exp %656 : vector<1x32xf32>
    %cst_131 = arith.constant 1.000000e+00 : f32
    %658 = vector.broadcast %cst_131 : f32 to vector<1x32xf32>
    %659 = arith.addf %658, %657 : vector<1x32xf32>
    %660 = arith.divf %658, %659 : vector<1x32xf32>
    %661 = vector.extract_strided_slice %648 {offsets = [0, 256], sizes = [1, 32], strides = [1, 1]} : vector<1x512xf32> to vector<1x32xf32>
    %662 = vector.extract_strided_slice %648 {offsets = [0, 384], sizes = [1, 32], strides = [1, 1]} : vector<1x512xf32> to vector<1x32xf32>
    %663 = arith.mulf %654, %662 : vector<1x32xf32>
    %664 = arith.addf %661, %663 : vector<1x32xf32>
    %665 = math.tanh %664 : vector<1x32xf32>
    %cst_132 = arith.constant 1.000000e+00 : f32
    %666 = vector.broadcast %cst_132 : f32 to vector<1x32xf32>
    %667 = arith.subf %666, %660 : vector<1x32xf32>
    %668 = arith.mulf %667, %665 : vector<1x32xf32>
    %669 = arith.mulf %660, %343 : vector<1x32xf32>
    %670 = arith.addf %668, %669 : vector<1x32xf32>
    %cst_133 = arith.constant dense<0.000000e+00> : vector<1x8xf32>
    %671 = tpu.matmul %670, %644, %cst_133 {dimension_numbers = #tpu.dot_dimension_numbers<[1], [1], [0], [0], [0, 0, 1, 0], [], []>} : vector<1x32xf32>, vector<8x32xf32>, vector<1x8xf32> -> vector<1x8xf32>
    %672 = vector.broadcast %0 : i32 to vector<1x8xi32>
    %673 = arith.cmpi slt, %12, %672 : vector<1x8xi32>
    %cst_134 = arith.constant -1.000000e+30 : f32
    %674 = vector.broadcast %cst_134 : f32 to vector<1x8xf32>
    %675 = arith.select %673, %671, %674 : vector<1x8xi1>, vector<1x8xf32>
    %cst_135 = arith.constant dense<0xFF800000> : vector<1xf32>
    %676 = vector.multi_reduction <maximumf>, %675, %cst_135 [1] : vector<1x8xf32> to vector<1xf32>
    %677 = vector.shape_cast %676 : vector<1xf32> to vector<1x1xf32>
    %678 = vector.broadcast %677 : vector<1x1xf32> to vector<1x8xf32>
    %679 = arith.subf %675, %678 : vector<1x8xf32>
    %680 = math.exp %679 : vector<1x8xf32>
    %cst_136 = arith.constant dense<0.000000e+00> : vector<1xf32>
    %681 = vector.multi_reduction <add>, %680, %cst_136 [1] : vector<1x8xf32> to vector<1xf32>
    %682 = vector.shape_cast %681 : vector<1xf32> to vector<1x1xf32>
    %683 = vector.broadcast %682 : vector<1x1xf32> to vector<1x8xf32>
    %684 = arith.divf %680, %683 : vector<1x8xf32>
    %cst_137 = arith.constant dense<0.000000e+00> : vector<1x32xf32>
    %685 = tpu.matmul %684, %644, %cst_137 {dimension_numbers = #tpu.dot_dimension_numbers<[1], [0], [0], [1], [0, 0, 1, 1], [], []>} : vector<1x8xf32>, vector<8x32xf32>, vector<1x32xf32> -> vector<1x32xf32>
    %686 = tpu.concatenate %670, %685 in 1 : vector<1x32xf32>, vector<1x32xf32> -> vector<1x64xf32>
    %cst_138 = arith.constant dense<0.000000e+00> : vector<1x32xf32>
    %687 = tpu.matmul %686, %8, %cst_138 {dimension_numbers = #tpu.dot_dimension_numbers<[1], [0], [0], [1], [0, 0, 1, 1], [], []>} : vector<1x64xf32>, vector<64x32xf32>, vector<1x32xf32> -> vector<1x32xf32>
    %688 = arith.addf %687, %9 : vector<1x32xf32>
    %689 = math.tanh %688 : vector<1x32xf32>
    %cst_139 = arith.constant dense<0.000000e+00> : vector<1x128xf32>
    %690 = tpu.matmul %689, %10, %cst_139 {dimension_numbers = #tpu.dot_dimension_numbers<[1], [0], [0], [1], [0, 0, 1, 1], [], []>} : vector<1x32xf32>, vector<32x128xf32>, vector<1x128xf32> -> vector<1x128xf32>
    %691 = arith.addf %690, %11 : vector<1x128xf32>
    %c64_i32 = arith.constant 64 : i32
    %692 = vector.broadcast %c64_i32 : i32 to vector<1x128xi32>
    %693 = arith.cmpi slt, %13, %692 : vector<1x128xi32>
    %cst_140 = arith.constant -1.000000e+30 : f32
    %694 = vector.broadcast %cst_140 : f32 to vector<1x128xf32>
    %695 = arith.select %693, %691, %694 : vector<1x128xi1>, vector<1x128xf32>
    %cst_141 = arith.constant dense<0xFF800000> : vector<1xf32>
    %696 = vector.multi_reduction <maximumf>, %695, %cst_141 [1] : vector<1x128xf32> to vector<1xf32>
    %697 = vector.shape_cast %696 : vector<1xf32> to vector<1x1xf32>
    %698 = vector.broadcast %697 : vector<1x1xf32> to vector<1x128xf32>
    %699 = arith.subf %695, %698 : vector<1x128xf32>
    %700 = math.exp %699 : vector<1x128xf32>
    %cst_142 = arith.constant dense<0.000000e+00> : vector<1xf32>
    %701 = vector.multi_reduction <add>, %700, %cst_142 [1] : vector<1x128xf32> to vector<1xf32>
    %702 = vector.shape_cast %701 : vector<1xf32> to vector<1x1xf32>
    %703 = tpu.reciprocal %702 {approx = true} : vector<1x1xf32> -> vector<1x1xf32>
    %704 = vector.broadcast %697 : vector<1x1xf32> to vector<1x128xf32>
    %705 = arith.cmpf oeq, %695, %704 : vector<1x128xf32>
    %c128_i32 = arith.constant 128 : i32
    %706 = vector.broadcast %c128_i32 : i32 to vector<1x128xi32>
    %707 = arith.select %705, %13, %706 : vector<1x128xi1>, vector<1x128xi32>
    %cst_143 = arith.constant dense<2147483647> : vector<1xi32>
    %708 = vector.multi_reduction <minsi>, %707, %cst_143 [1] : vector<1x128xi32> to vector<1xi32>
    %709 = vector.shape_cast %708 : vector<1xi32> to vector<1x1xi32>
    %710 = vector.broadcast %709 : vector<1x1xi32> to vector<1x128xi32>
    %711 = arith.cmpi eq, %13, %710 : vector<1x128xi32>
    %712 = arith.extui %711 : vector<1x128xi1> to vector<1x128xi32>
    %713 = arith.sitofp %712 : vector<1x128xi32> to vector<1x128xf32>
    %cst_144 = arith.constant dense<0.000000e+00> : vector<1x32xf32>
    %714 = tpu.matmul %713, %1, %cst_144 {dimension_numbers = #tpu.dot_dimension_numbers<[1], [0], [0], [1], [0, 0, 1, 1], [], []>} : vector<1x128xf32>, vector<128x32xf32>, vector<1x32xf32> -> vector<1x32xf32>
    %715 = tpu.concatenate %714, %670 in 1 : vector<1x32xf32>, vector<1x32xf32> -> vector<1x64xf32>
    %cst_145 = arith.constant dense<0.000000e+00> : vector<1x512xf32>
    %716 = tpu.matmul %715, %6, %cst_145 {dimension_numbers = #tpu.dot_dimension_numbers<[1], [0], [0], [1], [0, 0, 1, 1], [], []>} : vector<1x64xf32>, vector<64x512xf32>, vector<1x512xf32> -> vector<1x512xf32>
    %717 = arith.addf %716, %7 : vector<1x512xf32>
    %718 = vector.extract_strided_slice %717 {offsets = [0, 0], sizes = [1, 32], strides = [1, 1]} : vector<1x512xf32> to vector<1x32xf32>
    %719 = arith.negf %718 : vector<1x32xf32>
    %720 = math.exp %719 : vector<1x32xf32>
    %cst_146 = arith.constant 1.000000e+00 : f32
    %721 = vector.broadcast %cst_146 : f32 to vector<1x32xf32>
    %722 = arith.addf %721, %720 : vector<1x32xf32>
    %723 = arith.divf %721, %722 : vector<1x32xf32>
    %724 = vector.extract_strided_slice %717 {offsets = [0, 128], sizes = [1, 32], strides = [1, 1]} : vector<1x512xf32> to vector<1x32xf32>
    %725 = arith.negf %724 : vector<1x32xf32>
    %726 = math.exp %725 : vector<1x32xf32>
    %cst_147 = arith.constant 1.000000e+00 : f32
    %727 = vector.broadcast %cst_147 : f32 to vector<1x32xf32>
    %728 = arith.addf %727, %726 : vector<1x32xf32>
    %729 = arith.divf %727, %728 : vector<1x32xf32>
    %730 = vector.extract_strided_slice %717 {offsets = [0, 256], sizes = [1, 32], strides = [1, 1]} : vector<1x512xf32> to vector<1x32xf32>
    %731 = vector.extract_strided_slice %717 {offsets = [0, 384], sizes = [1, 32], strides = [1, 1]} : vector<1x512xf32> to vector<1x32xf32>
    %732 = arith.mulf %723, %731 : vector<1x32xf32>
    %733 = arith.addf %730, %732 : vector<1x32xf32>
    %734 = math.tanh %733 : vector<1x32xf32>
    %cst_148 = arith.constant 1.000000e+00 : f32
    %735 = vector.broadcast %cst_148 : f32 to vector<1x32xf32>
    %736 = arith.subf %735, %729 : vector<1x32xf32>
    %737 = arith.mulf %736, %734 : vector<1x32xf32>
    %738 = arith.mulf %729, %670 : vector<1x32xf32>
    %739 = arith.addf %737, %738 : vector<1x32xf32>
    %cst_149 = arith.constant dense<0.000000e+00> : vector<1x8xf32>
    %740 = tpu.matmul %739, %644, %cst_149 {dimension_numbers = #tpu.dot_dimension_numbers<[1], [1], [0], [0], [0, 0, 1, 0], [], []>} : vector<1x32xf32>, vector<8x32xf32>, vector<1x8xf32> -> vector<1x8xf32>
    %741 = vector.broadcast %0 : i32 to vector<1x8xi32>
    %742 = arith.cmpi slt, %12, %741 : vector<1x8xi32>
    %cst_150 = arith.constant -1.000000e+30 : f32
    %743 = vector.broadcast %cst_150 : f32 to vector<1x8xf32>
    %744 = arith.select %742, %740, %743 : vector<1x8xi1>, vector<1x8xf32>
    %cst_151 = arith.constant dense<0xFF800000> : vector<1xf32>
    %745 = vector.multi_reduction <maximumf>, %744, %cst_151 [1] : vector<1x8xf32> to vector<1xf32>
    %746 = vector.shape_cast %745 : vector<1xf32> to vector<1x1xf32>
    %747 = vector.broadcast %746 : vector<1x1xf32> to vector<1x8xf32>
    %748 = arith.subf %744, %747 : vector<1x8xf32>
    %749 = math.exp %748 : vector<1x8xf32>
    %cst_152 = arith.constant dense<0.000000e+00> : vector<1xf32>
    %750 = vector.multi_reduction <add>, %749, %cst_152 [1] : vector<1x8xf32> to vector<1xf32>
    %751 = vector.shape_cast %750 : vector<1xf32> to vector<1x1xf32>
    %752 = vector.broadcast %751 : vector<1x1xf32> to vector<1x8xf32>
    %753 = arith.divf %749, %752 : vector<1x8xf32>
    %cst_153 = arith.constant dense<0.000000e+00> : vector<1x32xf32>
    %754 = tpu.matmul %753, %644, %cst_153 {dimension_numbers = #tpu.dot_dimension_numbers<[1], [0], [0], [1], [0, 0, 1, 1], [], []>} : vector<1x8xf32>, vector<8x32xf32>, vector<1x32xf32> -> vector<1x32xf32>
    %755 = tpu.concatenate %739, %754 in 1 : vector<1x32xf32>, vector<1x32xf32> -> vector<1x64xf32>
    %cst_154 = arith.constant dense<0.000000e+00> : vector<1x32xf32>
    %756 = tpu.matmul %755, %8, %cst_154 {dimension_numbers = #tpu.dot_dimension_numbers<[1], [0], [0], [1], [0, 0, 1, 1], [], []>} : vector<1x64xf32>, vector<64x32xf32>, vector<1x32xf32> -> vector<1x32xf32>
    %757 = arith.addf %756, %9 : vector<1x32xf32>
    %758 = math.tanh %757 : vector<1x32xf32>
    %cst_155 = arith.constant dense<0.000000e+00> : vector<1x128xf32>
    %759 = tpu.matmul %758, %10, %cst_155 {dimension_numbers = #tpu.dot_dimension_numbers<[1], [0], [0], [1], [0, 0, 1, 1], [], []>} : vector<1x32xf32>, vector<32x128xf32>, vector<1x128xf32> -> vector<1x128xf32>
    %760 = arith.addf %759, %11 : vector<1x128xf32>
    %c64_i32_156 = arith.constant 64 : i32
    %761 = vector.broadcast %c64_i32_156 : i32 to vector<1x128xi32>
    %762 = arith.cmpi slt, %13, %761 : vector<1x128xi32>
    %cst_157 = arith.constant -1.000000e+30 : f32
    %763 = vector.broadcast %cst_157 : f32 to vector<1x128xf32>
    %764 = arith.select %762, %760, %763 : vector<1x128xi1>, vector<1x128xf32>
    %cst_158 = arith.constant dense<0xFF800000> : vector<1xf32>
    %765 = vector.multi_reduction <maximumf>, %764, %cst_158 [1] : vector<1x128xf32> to vector<1xf32>
    %766 = vector.shape_cast %765 : vector<1xf32> to vector<1x1xf32>
    %767 = vector.broadcast %766 : vector<1x1xf32> to vector<1x128xf32>
    %768 = arith.subf %764, %767 : vector<1x128xf32>
    %769 = math.exp %768 : vector<1x128xf32>
    %cst_159 = arith.constant dense<0.000000e+00> : vector<1xf32>
    %770 = vector.multi_reduction <add>, %769, %cst_159 [1] : vector<1x128xf32> to vector<1xf32>
    %771 = vector.shape_cast %770 : vector<1xf32> to vector<1x1xf32>
    %772 = tpu.reciprocal %771 {approx = true} : vector<1x1xf32> -> vector<1x1xf32>
    %773 = vector.broadcast %766 : vector<1x1xf32> to vector<1x128xf32>
    %774 = arith.cmpf oeq, %764, %773 : vector<1x128xf32>
    %c128_i32_160 = arith.constant 128 : i32
    %775 = vector.broadcast %c128_i32_160 : i32 to vector<1x128xi32>
    %776 = arith.select %774, %13, %775 : vector<1x128xi1>, vector<1x128xi32>
    %cst_161 = arith.constant dense<2147483647> : vector<1xi32>
    %777 = vector.multi_reduction <minsi>, %776, %cst_161 [1] : vector<1x128xi32> to vector<1xi32>
    %778 = vector.shape_cast %777 : vector<1xi32> to vector<1x1xi32>
    %779 = vector.broadcast %778 : vector<1x1xi32> to vector<1x128xi32>
    %780 = arith.cmpi eq, %13, %779 : vector<1x128xi32>
    %781 = arith.extui %780 : vector<1x128xi1> to vector<1x128xi32>
    %782 = arith.sitofp %781 : vector<1x128xi32> to vector<1x128xf32>
    %cst_162 = arith.constant dense<0.000000e+00> : vector<1x32xf32>
    %783 = tpu.matmul %782, %1, %cst_162 {dimension_numbers = #tpu.dot_dimension_numbers<[1], [0], [0], [1], [0, 0, 1, 1], [], []>} : vector<1x128xf32>, vector<128x32xf32>, vector<1x32xf32> -> vector<1x32xf32>
    %784 = tpu.concatenate %783, %739 in 1 : vector<1x32xf32>, vector<1x32xf32> -> vector<1x64xf32>
    %cst_163 = arith.constant dense<0.000000e+00> : vector<1x512xf32>
    %785 = tpu.matmul %784, %6, %cst_163 {dimension_numbers = #tpu.dot_dimension_numbers<[1], [0], [0], [1], [0, 0, 1, 1], [], []>} : vector<1x64xf32>, vector<64x512xf32>, vector<1x512xf32> -> vector<1x512xf32>
    %786 = arith.addf %785, %7 : vector<1x512xf32>
    %787 = vector.extract_strided_slice %786 {offsets = [0, 0], sizes = [1, 32], strides = [1, 1]} : vector<1x512xf32> to vector<1x32xf32>
    %788 = arith.negf %787 : vector<1x32xf32>
    %789 = math.exp %788 : vector<1x32xf32>
    %cst_164 = arith.constant 1.000000e+00 : f32
    %790 = vector.broadcast %cst_164 : f32 to vector<1x32xf32>
    %791 = arith.addf %790, %789 : vector<1x32xf32>
    %792 = arith.divf %790, %791 : vector<1x32xf32>
    %793 = vector.extract_strided_slice %786 {offsets = [0, 128], sizes = [1, 32], strides = [1, 1]} : vector<1x512xf32> to vector<1x32xf32>
    %794 = arith.negf %793 : vector<1x32xf32>
    %795 = math.exp %794 : vector<1x32xf32>
    %cst_165 = arith.constant 1.000000e+00 : f32
    %796 = vector.broadcast %cst_165 : f32 to vector<1x32xf32>
    %797 = arith.addf %796, %795 : vector<1x32xf32>
    %798 = arith.divf %796, %797 : vector<1x32xf32>
    %799 = vector.extract_strided_slice %786 {offsets = [0, 256], sizes = [1, 32], strides = [1, 1]} : vector<1x512xf32> to vector<1x32xf32>
    %800 = vector.extract_strided_slice %786 {offsets = [0, 384], sizes = [1, 32], strides = [1, 1]} : vector<1x512xf32> to vector<1x32xf32>
    %801 = arith.mulf %792, %800 : vector<1x32xf32>
    %802 = arith.addf %799, %801 : vector<1x32xf32>
    %803 = math.tanh %802 : vector<1x32xf32>
    %cst_166 = arith.constant 1.000000e+00 : f32
    %804 = vector.broadcast %cst_166 : f32 to vector<1x32xf32>
    %805 = arith.subf %804, %798 : vector<1x32xf32>
    %806 = arith.mulf %805, %803 : vector<1x32xf32>
    %807 = arith.mulf %798, %739 : vector<1x32xf32>
    %808 = arith.addf %806, %807 : vector<1x32xf32>
    %cst_167 = arith.constant dense<0.000000e+00> : vector<1x8xf32>
    %809 = tpu.matmul %808, %644, %cst_167 {dimension_numbers = #tpu.dot_dimension_numbers<[1], [1], [0], [0], [0, 0, 1, 0], [], []>} : vector<1x32xf32>, vector<8x32xf32>, vector<1x8xf32> -> vector<1x8xf32>
    %810 = vector.broadcast %0 : i32 to vector<1x8xi32>
    %811 = arith.cmpi slt, %12, %810 : vector<1x8xi32>
    %cst_168 = arith.constant -1.000000e+30 : f32
    %812 = vector.broadcast %cst_168 : f32 to vector<1x8xf32>
    %813 = arith.select %811, %809, %812 : vector<1x8xi1>, vector<1x8xf32>
    %cst_169 = arith.constant dense<0xFF800000> : vector<1xf32>
    %814 = vector.multi_reduction <maximumf>, %813, %cst_169 [1] : vector<1x8xf32> to vector<1xf32>
    %815 = vector.shape_cast %814 : vector<1xf32> to vector<1x1xf32>
    %816 = vector.broadcast %815 : vector<1x1xf32> to vector<1x8xf32>
    %817 = arith.subf %813, %816 : vector<1x8xf32>
    %818 = math.exp %817 : vector<1x8xf32>
    %cst_170 = arith.constant dense<0.000000e+00> : vector<1xf32>
    %819 = vector.multi_reduction <add>, %818, %cst_170 [1] : vector<1x8xf32> to vector<1xf32>
    %820 = vector.shape_cast %819 : vector<1xf32> to vector<1x1xf32>
    %821 = vector.broadcast %820 : vector<1x1xf32> to vector<1x8xf32>
    %822 = arith.divf %818, %821 : vector<1x8xf32>
    %cst_171 = arith.constant dense<0.000000e+00> : vector<1x32xf32>
    %823 = tpu.matmul %822, %644, %cst_171 {dimension_numbers = #tpu.dot_dimension_numbers<[1], [0], [0], [1], [0, 0, 1, 1], [], []>} : vector<1x8xf32>, vector<8x32xf32>, vector<1x32xf32> -> vector<1x32xf32>
    %824 = tpu.concatenate %808, %823 in 1 : vector<1x32xf32>, vector<1x32xf32> -> vector<1x64xf32>
    %cst_172 = arith.constant dense<0.000000e+00> : vector<1x32xf32>
    %825 = tpu.matmul %824, %8, %cst_172 {dimension_numbers = #tpu.dot_dimension_numbers<[1], [0], [0], [1], [0, 0, 1, 1], [], []>} : vector<1x64xf32>, vector<64x32xf32>, vector<1x32xf32> -> vector<1x32xf32>
    %826 = arith.addf %825, %9 : vector<1x32xf32>
    %827 = math.tanh %826 : vector<1x32xf32>
    %cst_173 = arith.constant dense<0.000000e+00> : vector<1x128xf32>
    %828 = tpu.matmul %827, %10, %cst_173 {dimension_numbers = #tpu.dot_dimension_numbers<[1], [0], [0], [1], [0, 0, 1, 1], [], []>} : vector<1x32xf32>, vector<32x128xf32>, vector<1x128xf32> -> vector<1x128xf32>
    %829 = arith.addf %828, %11 : vector<1x128xf32>
    %c64_i32_174 = arith.constant 64 : i32
    %830 = vector.broadcast %c64_i32_174 : i32 to vector<1x128xi32>
    %831 = arith.cmpi slt, %13, %830 : vector<1x128xi32>
    %cst_175 = arith.constant -1.000000e+30 : f32
    %832 = vector.broadcast %cst_175 : f32 to vector<1x128xf32>
    %833 = arith.select %831, %829, %832 : vector<1x128xi1>, vector<1x128xf32>
    %cst_176 = arith.constant dense<0xFF800000> : vector<1xf32>
    %834 = vector.multi_reduction <maximumf>, %833, %cst_176 [1] : vector<1x128xf32> to vector<1xf32>
    %835 = vector.shape_cast %834 : vector<1xf32> to vector<1x1xf32>
    %836 = vector.broadcast %835 : vector<1x1xf32> to vector<1x128xf32>
    %837 = arith.subf %833, %836 : vector<1x128xf32>
    %838 = math.exp %837 : vector<1x128xf32>
    %cst_177 = arith.constant dense<0.000000e+00> : vector<1xf32>
    %839 = vector.multi_reduction <add>, %838, %cst_177 [1] : vector<1x128xf32> to vector<1xf32>
    %840 = vector.shape_cast %839 : vector<1xf32> to vector<1x1xf32>
    %841 = tpu.reciprocal %840 {approx = true} : vector<1x1xf32> -> vector<1x1xf32>
    %842 = vector.broadcast %835 : vector<1x1xf32> to vector<1x128xf32>
    %843 = arith.cmpf oeq, %833, %842 : vector<1x128xf32>
    %c128_i32_178 = arith.constant 128 : i32
    %844 = vector.broadcast %c128_i32_178 : i32 to vector<1x128xi32>
    %845 = arith.select %843, %13, %844 : vector<1x128xi1>, vector<1x128xi32>
    %cst_179 = arith.constant dense<2147483647> : vector<1xi32>
    %846 = vector.multi_reduction <minsi>, %845, %cst_179 [1] : vector<1x128xi32> to vector<1xi32>
    %847 = vector.shape_cast %846 : vector<1xi32> to vector<1x1xi32>
    %848 = vector.broadcast %847 : vector<1x1xi32> to vector<1x128xi32>
    %849 = arith.cmpi eq, %13, %848 : vector<1x128xi32>
    %850 = arith.extui %849 : vector<1x128xi1> to vector<1x128xi32>
    %851 = arith.sitofp %850 : vector<1x128xi32> to vector<1x128xf32>
    %cst_180 = arith.constant dense<0.000000e+00> : vector<1x32xf32>
    %852 = tpu.matmul %851, %1, %cst_180 {dimension_numbers = #tpu.dot_dimension_numbers<[1], [0], [0], [1], [0, 0, 1, 1], [], []>} : vector<1x128xf32>, vector<128x32xf32>, vector<1x32xf32> -> vector<1x32xf32>
    %853 = tpu.concatenate %852, %808 in 1 : vector<1x32xf32>, vector<1x32xf32> -> vector<1x64xf32>
    %cst_181 = arith.constant dense<0.000000e+00> : vector<1x512xf32>
    %854 = tpu.matmul %853, %6, %cst_181 {dimension_numbers = #tpu.dot_dimension_numbers<[1], [0], [0], [1], [0, 0, 1, 1], [], []>} : vector<1x64xf32>, vector<64x512xf32>, vector<1x512xf32> -> vector<1x512xf32>
    %855 = arith.addf %854, %7 : vector<1x512xf32>
    %856 = vector.extract_strided_slice %855 {offsets = [0, 0], sizes = [1, 32], strides = [1, 1]} : vector<1x512xf32> to vector<1x32xf32>
    %857 = arith.negf %856 : vector<1x32xf32>
    %858 = math.exp %857 : vector<1x32xf32>
    %cst_182 = arith.constant 1.000000e+00 : f32
    %859 = vector.broadcast %cst_182 : f32 to vector<1x32xf32>
    %860 = arith.addf %859, %858 : vector<1x32xf32>
    %861 = arith.divf %859, %860 : vector<1x32xf32>
    %862 = vector.extract_strided_slice %855 {offsets = [0, 128], sizes = [1, 32], strides = [1, 1]} : vector<1x512xf32> to vector<1x32xf32>
    %863 = arith.negf %862 : vector<1x32xf32>
    %864 = math.exp %863 : vector<1x32xf32>
    %cst_183 = arith.constant 1.000000e+00 : f32
    %865 = vector.broadcast %cst_183 : f32 to vector<1x32xf32>
    %866 = arith.addf %865, %864 : vector<1x32xf32>
    %867 = arith.divf %865, %866 : vector<1x32xf32>
    %868 = vector.extract_strided_slice %855 {offsets = [0, 256], sizes = [1, 32], strides = [1, 1]} : vector<1x512xf32> to vector<1x32xf32>
    %869 = vector.extract_strided_slice %855 {offsets = [0, 384], sizes = [1, 32], strides = [1, 1]} : vector<1x512xf32> to vector<1x32xf32>
    %870 = arith.mulf %861, %869 : vector<1x32xf32>
    %871 = arith.addf %868, %870 : vector<1x32xf32>
    %872 = math.tanh %871 : vector<1x32xf32>
    %cst_184 = arith.constant 1.000000e+00 : f32
    %873 = vector.broadcast %cst_184 : f32 to vector<1x32xf32>
    %874 = arith.subf %873, %867 : vector<1x32xf32>
    %875 = arith.mulf %874, %872 : vector<1x32xf32>
    %876 = arith.mulf %867, %808 : vector<1x32xf32>
    %877 = arith.addf %875, %876 : vector<1x32xf32>
    %cst_185 = arith.constant dense<0.000000e+00> : vector<1x8xf32>
    %878 = tpu.matmul %877, %644, %cst_185 {dimension_numbers = #tpu.dot_dimension_numbers<[1], [1], [0], [0], [0, 0, 1, 0], [], []>} : vector<1x32xf32>, vector<8x32xf32>, vector<1x8xf32> -> vector<1x8xf32>
    %879 = vector.broadcast %0 : i32 to vector<1x8xi32>
    %880 = arith.cmpi slt, %12, %879 : vector<1x8xi32>
    %cst_186 = arith.constant -1.000000e+30 : f32
    %881 = vector.broadcast %cst_186 : f32 to vector<1x8xf32>
    %882 = arith.select %880, %878, %881 : vector<1x8xi1>, vector<1x8xf32>
    %cst_187 = arith.constant dense<0xFF800000> : vector<1xf32>
    %883 = vector.multi_reduction <maximumf>, %882, %cst_187 [1] : vector<1x8xf32> to vector<1xf32>
    %884 = vector.shape_cast %883 : vector<1xf32> to vector<1x1xf32>
    %885 = vector.broadcast %884 : vector<1x1xf32> to vector<1x8xf32>
    %886 = arith.subf %882, %885 : vector<1x8xf32>
    %887 = math.exp %886 : vector<1x8xf32>
    %cst_188 = arith.constant dense<0.000000e+00> : vector<1xf32>
    %888 = vector.multi_reduction <add>, %887, %cst_188 [1] : vector<1x8xf32> to vector<1xf32>
    %889 = vector.shape_cast %888 : vector<1xf32> to vector<1x1xf32>
    %890 = vector.broadcast %889 : vector<1x1xf32> to vector<1x8xf32>
    %891 = arith.divf %887, %890 : vector<1x8xf32>
    %cst_189 = arith.constant dense<0.000000e+00> : vector<1x32xf32>
    %892 = tpu.matmul %891, %644, %cst_189 {dimension_numbers = #tpu.dot_dimension_numbers<[1], [0], [0], [1], [0, 0, 1, 1], [], []>} : vector<1x8xf32>, vector<8x32xf32>, vector<1x32xf32> -> vector<1x32xf32>
    %893 = tpu.concatenate %877, %892 in 1 : vector<1x32xf32>, vector<1x32xf32> -> vector<1x64xf32>
    %cst_190 = arith.constant dense<0.000000e+00> : vector<1x32xf32>
    %894 = tpu.matmul %893, %8, %cst_190 {dimension_numbers = #tpu.dot_dimension_numbers<[1], [0], [0], [1], [0, 0, 1, 1], [], []>} : vector<1x64xf32>, vector<64x32xf32>, vector<1x32xf32> -> vector<1x32xf32>
    %895 = arith.addf %894, %9 : vector<1x32xf32>
    %896 = math.tanh %895 : vector<1x32xf32>
    %cst_191 = arith.constant dense<0.000000e+00> : vector<1x128xf32>
    %897 = tpu.matmul %896, %10, %cst_191 {dimension_numbers = #tpu.dot_dimension_numbers<[1], [0], [0], [1], [0, 0, 1, 1], [], []>} : vector<1x32xf32>, vector<32x128xf32>, vector<1x128xf32> -> vector<1x128xf32>
    %898 = arith.addf %897, %11 : vector<1x128xf32>
    %c64_i32_192 = arith.constant 64 : i32
    %899 = vector.broadcast %c64_i32_192 : i32 to vector<1x128xi32>
    %900 = arith.cmpi slt, %13, %899 : vector<1x128xi32>
    %cst_193 = arith.constant -1.000000e+30 : f32
    %901 = vector.broadcast %cst_193 : f32 to vector<1x128xf32>
    %902 = arith.select %900, %898, %901 : vector<1x128xi1>, vector<1x128xf32>
    %cst_194 = arith.constant dense<0xFF800000> : vector<1xf32>
    %903 = vector.multi_reduction <maximumf>, %902, %cst_194 [1] : vector<1x128xf32> to vector<1xf32>
    %904 = vector.shape_cast %903 : vector<1xf32> to vector<1x1xf32>
    %905 = vector.broadcast %904 : vector<1x1xf32> to vector<1x128xf32>
    %906 = arith.subf %902, %905 : vector<1x128xf32>
    %907 = math.exp %906 : vector<1x128xf32>
    %cst_195 = arith.constant dense<0.000000e+00> : vector<1xf32>
    %908 = vector.multi_reduction <add>, %907, %cst_195 [1] : vector<1x128xf32> to vector<1xf32>
    %909 = vector.shape_cast %908 : vector<1xf32> to vector<1x1xf32>
    %910 = tpu.reciprocal %909 {approx = true} : vector<1x1xf32> -> vector<1x1xf32>
    %911 = vector.broadcast %904 : vector<1x1xf32> to vector<1x128xf32>
    %912 = arith.cmpf oeq, %902, %911 : vector<1x128xf32>
    %c128_i32_196 = arith.constant 128 : i32
    %913 = vector.broadcast %c128_i32_196 : i32 to vector<1x128xi32>
    %914 = arith.select %912, %13, %913 : vector<1x128xi1>, vector<1x128xi32>
    %cst_197 = arith.constant dense<2147483647> : vector<1xi32>
    %915 = vector.multi_reduction <minsi>, %914, %cst_197 [1] : vector<1x128xi32> to vector<1xi32>
    %916 = vector.shape_cast %915 : vector<1xi32> to vector<1x1xi32>
    %917 = vector.broadcast %916 : vector<1x1xi32> to vector<1x128xi32>
    %918 = arith.cmpi eq, %13, %917 : vector<1x128xi32>
    %919 = arith.extui %918 : vector<1x128xi1> to vector<1x128xi32>
    %920 = arith.sitofp %919 : vector<1x128xi32> to vector<1x128xf32>
    %cst_198 = arith.constant dense<0.000000e+00> : vector<1x32xf32>
    %921 = tpu.matmul %920, %1, %cst_198 {dimension_numbers = #tpu.dot_dimension_numbers<[1], [0], [0], [1], [0, 0, 1, 1], [], []>} : vector<1x128xf32>, vector<128x32xf32>, vector<1x32xf32> -> vector<1x32xf32>
    %922 = tpu.concatenate %921, %877 in 1 : vector<1x32xf32>, vector<1x32xf32> -> vector<1x64xf32>
    %cst_199 = arith.constant dense<0.000000e+00> : vector<1x512xf32>
    %923 = tpu.matmul %922, %6, %cst_199 {dimension_numbers = #tpu.dot_dimension_numbers<[1], [0], [0], [1], [0, 0, 1, 1], [], []>} : vector<1x64xf32>, vector<64x512xf32>, vector<1x512xf32> -> vector<1x512xf32>
    %924 = arith.addf %923, %7 : vector<1x512xf32>
    %925 = vector.extract_strided_slice %924 {offsets = [0, 0], sizes = [1, 32], strides = [1, 1]} : vector<1x512xf32> to vector<1x32xf32>
    %926 = arith.negf %925 : vector<1x32xf32>
    %927 = math.exp %926 : vector<1x32xf32>
    %cst_200 = arith.constant 1.000000e+00 : f32
    %928 = vector.broadcast %cst_200 : f32 to vector<1x32xf32>
    %929 = arith.addf %928, %927 : vector<1x32xf32>
    %930 = arith.divf %928, %929 : vector<1x32xf32>
    %931 = vector.extract_strided_slice %924 {offsets = [0, 128], sizes = [1, 32], strides = [1, 1]} : vector<1x512xf32> to vector<1x32xf32>
    %932 = arith.negf %931 : vector<1x32xf32>
    %933 = math.exp %932 : vector<1x32xf32>
    %cst_201 = arith.constant 1.000000e+00 : f32
    %934 = vector.broadcast %cst_201 : f32 to vector<1x32xf32>
    %935 = arith.addf %934, %933 : vector<1x32xf32>
    %936 = arith.divf %934, %935 : vector<1x32xf32>
    %937 = vector.extract_strided_slice %924 {offsets = [0, 256], sizes = [1, 32], strides = [1, 1]} : vector<1x512xf32> to vector<1x32xf32>
    %938 = vector.extract_strided_slice %924 {offsets = [0, 384], sizes = [1, 32], strides = [1, 1]} : vector<1x512xf32> to vector<1x32xf32>
    %939 = arith.mulf %930, %938 : vector<1x32xf32>
    %940 = arith.addf %937, %939 : vector<1x32xf32>
    %941 = math.tanh %940 : vector<1x32xf32>
    %cst_202 = arith.constant 1.000000e+00 : f32
    %942 = vector.broadcast %cst_202 : f32 to vector<1x32xf32>
    %943 = arith.subf %942, %936 : vector<1x32xf32>
    %944 = arith.mulf %943, %941 : vector<1x32xf32>
    %945 = arith.mulf %936, %877 : vector<1x32xf32>
    %946 = arith.addf %944, %945 : vector<1x32xf32>
    %cst_203 = arith.constant dense<0.000000e+00> : vector<1x8xf32>
    %947 = tpu.matmul %946, %644, %cst_203 {dimension_numbers = #tpu.dot_dimension_numbers<[1], [1], [0], [0], [0, 0, 1, 0], [], []>} : vector<1x32xf32>, vector<8x32xf32>, vector<1x8xf32> -> vector<1x8xf32>
    %948 = vector.broadcast %0 : i32 to vector<1x8xi32>
    %949 = arith.cmpi slt, %12, %948 : vector<1x8xi32>
    %cst_204 = arith.constant -1.000000e+30 : f32
    %950 = vector.broadcast %cst_204 : f32 to vector<1x8xf32>
    %951 = arith.select %949, %947, %950 : vector<1x8xi1>, vector<1x8xf32>
    %cst_205 = arith.constant dense<0xFF800000> : vector<1xf32>
    %952 = vector.multi_reduction <maximumf>, %951, %cst_205 [1] : vector<1x8xf32> to vector<1xf32>
    %953 = vector.shape_cast %952 : vector<1xf32> to vector<1x1xf32>
    %954 = vector.broadcast %953 : vector<1x1xf32> to vector<1x8xf32>
    %955 = arith.subf %951, %954 : vector<1x8xf32>
    %956 = math.exp %955 : vector<1x8xf32>
    %cst_206 = arith.constant dense<0.000000e+00> : vector<1xf32>
    %957 = vector.multi_reduction <add>, %956, %cst_206 [1] : vector<1x8xf32> to vector<1xf32>
    %958 = vector.shape_cast %957 : vector<1xf32> to vector<1x1xf32>
    %959 = vector.broadcast %958 : vector<1x1xf32> to vector<1x8xf32>
    %960 = arith.divf %956, %959 : vector<1x8xf32>
    %cst_207 = arith.constant dense<0.000000e+00> : vector<1x32xf32>
    %961 = tpu.matmul %960, %644, %cst_207 {dimension_numbers = #tpu.dot_dimension_numbers<[1], [0], [0], [1], [0, 0, 1, 1], [], []>} : vector<1x8xf32>, vector<8x32xf32>, vector<1x32xf32> -> vector<1x32xf32>
    %962 = tpu.concatenate %946, %961 in 1 : vector<1x32xf32>, vector<1x32xf32> -> vector<1x64xf32>
    %cst_208 = arith.constant dense<0.000000e+00> : vector<1x32xf32>
    %963 = tpu.matmul %962, %8, %cst_208 {dimension_numbers = #tpu.dot_dimension_numbers<[1], [0], [0], [1], [0, 0, 1, 1], [], []>} : vector<1x64xf32>, vector<64x32xf32>, vector<1x32xf32> -> vector<1x32xf32>
    %964 = arith.addf %963, %9 : vector<1x32xf32>
    %965 = math.tanh %964 : vector<1x32xf32>
    %cst_209 = arith.constant dense<0.000000e+00> : vector<1x128xf32>
    %966 = tpu.matmul %965, %10, %cst_209 {dimension_numbers = #tpu.dot_dimension_numbers<[1], [0], [0], [1], [0, 0, 1, 1], [], []>} : vector<1x32xf32>, vector<32x128xf32>, vector<1x128xf32> -> vector<1x128xf32>
    %967 = arith.addf %966, %11 : vector<1x128xf32>
    %c64_i32_210 = arith.constant 64 : i32
    %968 = vector.broadcast %c64_i32_210 : i32 to vector<1x128xi32>
    %969 = arith.cmpi slt, %13, %968 : vector<1x128xi32>
    %cst_211 = arith.constant -1.000000e+30 : f32
    %970 = vector.broadcast %cst_211 : f32 to vector<1x128xf32>
    %971 = arith.select %969, %967, %970 : vector<1x128xi1>, vector<1x128xf32>
    %cst_212 = arith.constant dense<0xFF800000> : vector<1xf32>
    %972 = vector.multi_reduction <maximumf>, %971, %cst_212 [1] : vector<1x128xf32> to vector<1xf32>
    %973 = vector.shape_cast %972 : vector<1xf32> to vector<1x1xf32>
    %974 = vector.broadcast %973 : vector<1x1xf32> to vector<1x128xf32>
    %975 = arith.subf %971, %974 : vector<1x128xf32>
    %976 = math.exp %975 : vector<1x128xf32>
    %cst_213 = arith.constant dense<0.000000e+00> : vector<1xf32>
    %977 = vector.multi_reduction <add>, %976, %cst_213 [1] : vector<1x128xf32> to vector<1xf32>
    %978 = vector.shape_cast %977 : vector<1xf32> to vector<1x1xf32>
    %979 = tpu.reciprocal %978 {approx = true} : vector<1x1xf32> -> vector<1x1xf32>
    %980 = vector.broadcast %973 : vector<1x1xf32> to vector<1x128xf32>
    %981 = arith.cmpf oeq, %971, %980 : vector<1x128xf32>
    %c128_i32_214 = arith.constant 128 : i32
    %982 = vector.broadcast %c128_i32_214 : i32 to vector<1x128xi32>
    %983 = arith.select %981, %13, %982 : vector<1x128xi1>, vector<1x128xi32>
    %cst_215 = arith.constant dense<2147483647> : vector<1xi32>
    %984 = vector.multi_reduction <minsi>, %983, %cst_215 [1] : vector<1x128xi32> to vector<1xi32>
    %985 = vector.shape_cast %984 : vector<1xi32> to vector<1x1xi32>
    %986 = vector.broadcast %985 : vector<1x1xi32> to vector<1x128xi32>
    %987 = arith.cmpi eq, %13, %986 : vector<1x128xi32>
    %988 = arith.extui %987 : vector<1x128xi1> to vector<1x128xi32>
    %989 = arith.sitofp %988 : vector<1x128xi32> to vector<1x128xf32>
    %cst_216 = arith.constant dense<0.000000e+00> : vector<1x32xf32>
    %990 = tpu.matmul %989, %1, %cst_216 {dimension_numbers = #tpu.dot_dimension_numbers<[1], [0], [0], [1], [0, 0, 1, 1], [], []>} : vector<1x128xf32>, vector<128x32xf32>, vector<1x32xf32> -> vector<1x32xf32>
    %991 = tpu.concatenate %990, %946 in 1 : vector<1x32xf32>, vector<1x32xf32> -> vector<1x64xf32>
    %cst_217 = arith.constant dense<0.000000e+00> : vector<1x512xf32>
    %992 = tpu.matmul %991, %6, %cst_217 {dimension_numbers = #tpu.dot_dimension_numbers<[1], [0], [0], [1], [0, 0, 1, 1], [], []>} : vector<1x64xf32>, vector<64x512xf32>, vector<1x512xf32> -> vector<1x512xf32>
    %993 = arith.addf %992, %7 : vector<1x512xf32>
    %994 = vector.extract_strided_slice %993 {offsets = [0, 0], sizes = [1, 32], strides = [1, 1]} : vector<1x512xf32> to vector<1x32xf32>
    %995 = arith.negf %994 : vector<1x32xf32>
    %996 = math.exp %995 : vector<1x32xf32>
    %cst_218 = arith.constant 1.000000e+00 : f32
    %997 = vector.broadcast %cst_218 : f32 to vector<1x32xf32>
    %998 = arith.addf %997, %996 : vector<1x32xf32>
    %999 = arith.divf %997, %998 : vector<1x32xf32>
    %1000 = vector.extract_strided_slice %993 {offsets = [0, 128], sizes = [1, 32], strides = [1, 1]} : vector<1x512xf32> to vector<1x32xf32>
    %1001 = arith.negf %1000 : vector<1x32xf32>
    %1002 = math.exp %1001 : vector<1x32xf32>
    %cst_219 = arith.constant 1.000000e+00 : f32
    %1003 = vector.broadcast %cst_219 : f32 to vector<1x32xf32>
    %1004 = arith.addf %1003, %1002 : vector<1x32xf32>
    %1005 = arith.divf %1003, %1004 : vector<1x32xf32>
    %1006 = vector.extract_strided_slice %993 {offsets = [0, 256], sizes = [1, 32], strides = [1, 1]} : vector<1x512xf32> to vector<1x32xf32>
    %1007 = vector.extract_strided_slice %993 {offsets = [0, 384], sizes = [1, 32], strides = [1, 1]} : vector<1x512xf32> to vector<1x32xf32>
    %1008 = arith.mulf %999, %1007 : vector<1x32xf32>
    %1009 = arith.addf %1006, %1008 : vector<1x32xf32>
    %1010 = math.tanh %1009 : vector<1x32xf32>
    %cst_220 = arith.constant 1.000000e+00 : f32
    %1011 = vector.broadcast %cst_220 : f32 to vector<1x32xf32>
    %1012 = arith.subf %1011, %1005 : vector<1x32xf32>
    %1013 = arith.mulf %1012, %1010 : vector<1x32xf32>
    %1014 = arith.mulf %1005, %946 : vector<1x32xf32>
    %1015 = arith.addf %1013, %1014 : vector<1x32xf32>
    %cst_221 = arith.constant dense<0.000000e+00> : vector<1x8xf32>
    %1016 = tpu.matmul %1015, %644, %cst_221 {dimension_numbers = #tpu.dot_dimension_numbers<[1], [1], [0], [0], [0, 0, 1, 0], [], []>} : vector<1x32xf32>, vector<8x32xf32>, vector<1x8xf32> -> vector<1x8xf32>
    %1017 = vector.broadcast %0 : i32 to vector<1x8xi32>
    %1018 = arith.cmpi slt, %12, %1017 : vector<1x8xi32>
    %cst_222 = arith.constant -1.000000e+30 : f32
    %1019 = vector.broadcast %cst_222 : f32 to vector<1x8xf32>
    %1020 = arith.select %1018, %1016, %1019 : vector<1x8xi1>, vector<1x8xf32>
    %cst_223 = arith.constant dense<0xFF800000> : vector<1xf32>
    %1021 = vector.multi_reduction <maximumf>, %1020, %cst_223 [1] : vector<1x8xf32> to vector<1xf32>
    %1022 = vector.shape_cast %1021 : vector<1xf32> to vector<1x1xf32>
    %1023 = vector.broadcast %1022 : vector<1x1xf32> to vector<1x8xf32>
    %1024 = arith.subf %1020, %1023 : vector<1x8xf32>
    %1025 = math.exp %1024 : vector<1x8xf32>
    %cst_224 = arith.constant dense<0.000000e+00> : vector<1xf32>
    %1026 = vector.multi_reduction <add>, %1025, %cst_224 [1] : vector<1x8xf32> to vector<1xf32>
    %1027 = vector.shape_cast %1026 : vector<1xf32> to vector<1x1xf32>
    %1028 = vector.broadcast %1027 : vector<1x1xf32> to vector<1x8xf32>
    %1029 = arith.divf %1025, %1028 : vector<1x8xf32>
    %cst_225 = arith.constant dense<0.000000e+00> : vector<1x32xf32>
    %1030 = tpu.matmul %1029, %644, %cst_225 {dimension_numbers = #tpu.dot_dimension_numbers<[1], [0], [0], [1], [0, 0, 1, 1], [], []>} : vector<1x8xf32>, vector<8x32xf32>, vector<1x32xf32> -> vector<1x32xf32>
    %1031 = tpu.concatenate %1015, %1030 in 1 : vector<1x32xf32>, vector<1x32xf32> -> vector<1x64xf32>
    %cst_226 = arith.constant dense<0.000000e+00> : vector<1x32xf32>
    %1032 = tpu.matmul %1031, %8, %cst_226 {dimension_numbers = #tpu.dot_dimension_numbers<[1], [0], [0], [1], [0, 0, 1, 1], [], []>} : vector<1x64xf32>, vector<64x32xf32>, vector<1x32xf32> -> vector<1x32xf32>
    %1033 = arith.addf %1032, %9 : vector<1x32xf32>
    %1034 = math.tanh %1033 : vector<1x32xf32>
    %cst_227 = arith.constant dense<0.000000e+00> : vector<1x128xf32>
    %1035 = tpu.matmul %1034, %10, %cst_227 {dimension_numbers = #tpu.dot_dimension_numbers<[1], [0], [0], [1], [0, 0, 1, 1], [], []>} : vector<1x32xf32>, vector<32x128xf32>, vector<1x128xf32> -> vector<1x128xf32>
    %1036 = arith.addf %1035, %11 : vector<1x128xf32>
    %c64_i32_228 = arith.constant 64 : i32
    %1037 = vector.broadcast %c64_i32_228 : i32 to vector<1x128xi32>
    %1038 = arith.cmpi slt, %13, %1037 : vector<1x128xi32>
    %cst_229 = arith.constant -1.000000e+30 : f32
    %1039 = vector.broadcast %cst_229 : f32 to vector<1x128xf32>
    %1040 = arith.select %1038, %1036, %1039 : vector<1x128xi1>, vector<1x128xf32>
    %cst_230 = arith.constant dense<0xFF800000> : vector<1xf32>
    %1041 = vector.multi_reduction <maximumf>, %1040, %cst_230 [1] : vector<1x128xf32> to vector<1xf32>
    %1042 = vector.shape_cast %1041 : vector<1xf32> to vector<1x1xf32>
    %1043 = vector.broadcast %1042 : vector<1x1xf32> to vector<1x128xf32>
    %1044 = arith.subf %1040, %1043 : vector<1x128xf32>
    %1045 = math.exp %1044 : vector<1x128xf32>
    %cst_231 = arith.constant dense<0.000000e+00> : vector<1xf32>
    %1046 = vector.multi_reduction <add>, %1045, %cst_231 [1] : vector<1x128xf32> to vector<1xf32>
    %1047 = vector.shape_cast %1046 : vector<1xf32> to vector<1x1xf32>
    %1048 = tpu.reciprocal %1047 {approx = true} : vector<1x1xf32> -> vector<1x1xf32>
    %1049 = vector.broadcast %1042 : vector<1x1xf32> to vector<1x128xf32>
    %1050 = arith.cmpf oeq, %1040, %1049 : vector<1x128xf32>
    %c128_i32_232 = arith.constant 128 : i32
    %1051 = vector.broadcast %c128_i32_232 : i32 to vector<1x128xi32>
    %1052 = arith.select %1050, %13, %1051 : vector<1x128xi1>, vector<1x128xi32>
    %cst_233 = arith.constant dense<2147483647> : vector<1xi32>
    %1053 = vector.multi_reduction <minsi>, %1052, %cst_233 [1] : vector<1x128xi32> to vector<1xi32>
    %1054 = vector.shape_cast %1053 : vector<1xi32> to vector<1x1xi32>
    %1055 = vector.broadcast %1054 : vector<1x1xi32> to vector<1x128xi32>
    %1056 = arith.cmpi eq, %13, %1055 : vector<1x128xi32>
    %1057 = arith.extui %1056 : vector<1x128xi1> to vector<1x128xi32>
    %1058 = arith.sitofp %1057 : vector<1x128xi32> to vector<1x128xf32>
    %cst_234 = arith.constant dense<0.000000e+00> : vector<1x32xf32>
    %1059 = tpu.matmul %1058, %1, %cst_234 {dimension_numbers = #tpu.dot_dimension_numbers<[1], [0], [0], [1], [0, 0, 1, 1], [], []>} : vector<1x128xf32>, vector<128x32xf32>, vector<1x32xf32> -> vector<1x32xf32>
    %1060 = tpu.concatenate %1059, %1015 in 1 : vector<1x32xf32>, vector<1x32xf32> -> vector<1x64xf32>
    %cst_235 = arith.constant dense<0.000000e+00> : vector<1x512xf32>
    %1061 = tpu.matmul %1060, %6, %cst_235 {dimension_numbers = #tpu.dot_dimension_numbers<[1], [0], [0], [1], [0, 0, 1, 1], [], []>} : vector<1x64xf32>, vector<64x512xf32>, vector<1x512xf32> -> vector<1x512xf32>
    %1062 = arith.addf %1061, %7 : vector<1x512xf32>
    %1063 = vector.extract_strided_slice %1062 {offsets = [0, 0], sizes = [1, 32], strides = [1, 1]} : vector<1x512xf32> to vector<1x32xf32>
    %1064 = arith.negf %1063 : vector<1x32xf32>
    %1065 = math.exp %1064 : vector<1x32xf32>
    %cst_236 = arith.constant 1.000000e+00 : f32
    %1066 = vector.broadcast %cst_236 : f32 to vector<1x32xf32>
    %1067 = arith.addf %1066, %1065 : vector<1x32xf32>
    %1068 = arith.divf %1066, %1067 : vector<1x32xf32>
    %1069 = vector.extract_strided_slice %1062 {offsets = [0, 128], sizes = [1, 32], strides = [1, 1]} : vector<1x512xf32> to vector<1x32xf32>
    %1070 = arith.negf %1069 : vector<1x32xf32>
    %1071 = math.exp %1070 : vector<1x32xf32>
    %cst_237 = arith.constant 1.000000e+00 : f32
    %1072 = vector.broadcast %cst_237 : f32 to vector<1x32xf32>
    %1073 = arith.addf %1072, %1071 : vector<1x32xf32>
    %1074 = arith.divf %1072, %1073 : vector<1x32xf32>
    %1075 = vector.extract_strided_slice %1062 {offsets = [0, 256], sizes = [1, 32], strides = [1, 1]} : vector<1x512xf32> to vector<1x32xf32>
    %1076 = vector.extract_strided_slice %1062 {offsets = [0, 384], sizes = [1, 32], strides = [1, 1]} : vector<1x512xf32> to vector<1x32xf32>
    %1077 = arith.mulf %1068, %1076 : vector<1x32xf32>
    %1078 = arith.addf %1075, %1077 : vector<1x32xf32>
    %1079 = math.tanh %1078 : vector<1x32xf32>
    %cst_238 = arith.constant 1.000000e+00 : f32
    %1080 = vector.broadcast %cst_238 : f32 to vector<1x32xf32>
    %1081 = arith.subf %1080, %1074 : vector<1x32xf32>
    %1082 = arith.mulf %1081, %1079 : vector<1x32xf32>
    %1083 = arith.mulf %1074, %1015 : vector<1x32xf32>
    %1084 = arith.addf %1082, %1083 : vector<1x32xf32>
    %cst_239 = arith.constant dense<0.000000e+00> : vector<1x8xf32>
    %1085 = tpu.matmul %1084, %644, %cst_239 {dimension_numbers = #tpu.dot_dimension_numbers<[1], [1], [0], [0], [0, 0, 1, 0], [], []>} : vector<1x32xf32>, vector<8x32xf32>, vector<1x8xf32> -> vector<1x8xf32>
    %1086 = vector.broadcast %0 : i32 to vector<1x8xi32>
    %1087 = arith.cmpi slt, %12, %1086 : vector<1x8xi32>
    %cst_240 = arith.constant -1.000000e+30 : f32
    %1088 = vector.broadcast %cst_240 : f32 to vector<1x8xf32>
    %1089 = arith.select %1087, %1085, %1088 : vector<1x8xi1>, vector<1x8xf32>
    %cst_241 = arith.constant dense<0xFF800000> : vector<1xf32>
    %1090 = vector.multi_reduction <maximumf>, %1089, %cst_241 [1] : vector<1x8xf32> to vector<1xf32>
    %1091 = vector.shape_cast %1090 : vector<1xf32> to vector<1x1xf32>
    %1092 = vector.broadcast %1091 : vector<1x1xf32> to vector<1x8xf32>
    %1093 = arith.subf %1089, %1092 : vector<1x8xf32>
    %1094 = math.exp %1093 : vector<1x8xf32>
    %cst_242 = arith.constant dense<0.000000e+00> : vector<1xf32>
    %1095 = vector.multi_reduction <add>, %1094, %cst_242 [1] : vector<1x8xf32> to vector<1xf32>
    %1096 = vector.shape_cast %1095 : vector<1xf32> to vector<1x1xf32>
    %1097 = vector.broadcast %1096 : vector<1x1xf32> to vector<1x8xf32>
    %1098 = arith.divf %1094, %1097 : vector<1x8xf32>
    %cst_243 = arith.constant dense<0.000000e+00> : vector<1x32xf32>
    %1099 = tpu.matmul %1098, %644, %cst_243 {dimension_numbers = #tpu.dot_dimension_numbers<[1], [0], [0], [1], [0, 0, 1, 1], [], []>} : vector<1x8xf32>, vector<8x32xf32>, vector<1x32xf32> -> vector<1x32xf32>
    %1100 = tpu.concatenate %1084, %1099 in 1 : vector<1x32xf32>, vector<1x32xf32> -> vector<1x64xf32>
    %cst_244 = arith.constant dense<0.000000e+00> : vector<1x32xf32>
    %1101 = tpu.matmul %1100, %8, %cst_244 {dimension_numbers = #tpu.dot_dimension_numbers<[1], [0], [0], [1], [0, 0, 1, 1], [], []>} : vector<1x64xf32>, vector<64x32xf32>, vector<1x32xf32> -> vector<1x32xf32>
    %1102 = arith.addf %1101, %9 : vector<1x32xf32>
    %1103 = math.tanh %1102 : vector<1x32xf32>
    %cst_245 = arith.constant dense<0.000000e+00> : vector<1x128xf32>
    %1104 = tpu.matmul %1103, %10, %cst_245 {dimension_numbers = #tpu.dot_dimension_numbers<[1], [0], [0], [1], [0, 0, 1, 1], [], []>} : vector<1x32xf32>, vector<32x128xf32>, vector<1x128xf32> -> vector<1x128xf32>
    %1105 = arith.addf %1104, %11 : vector<1x128xf32>
    %c64_i32_246 = arith.constant 64 : i32
    %1106 = vector.broadcast %c64_i32_246 : i32 to vector<1x128xi32>
    %1107 = arith.cmpi slt, %13, %1106 : vector<1x128xi32>
    %cst_247 = arith.constant -1.000000e+30 : f32
    %1108 = vector.broadcast %cst_247 : f32 to vector<1x128xf32>
    %1109 = arith.select %1107, %1105, %1108 : vector<1x128xi1>, vector<1x128xf32>
    %cst_248 = arith.constant dense<0xFF800000> : vector<1xf32>
    %1110 = vector.multi_reduction <maximumf>, %1109, %cst_248 [1] : vector<1x128xf32> to vector<1xf32>
    %1111 = vector.shape_cast %1110 : vector<1xf32> to vector<1x1xf32>
    %1112 = vector.broadcast %1111 : vector<1x1xf32> to vector<1x128xf32>
    %1113 = arith.subf %1109, %1112 : vector<1x128xf32>
    %1114 = math.exp %1113 : vector<1x128xf32>
    %cst_249 = arith.constant dense<0.000000e+00> : vector<1xf32>
    %1115 = vector.multi_reduction <add>, %1114, %cst_249 [1] : vector<1x128xf32> to vector<1xf32>
    %1116 = vector.shape_cast %1115 : vector<1xf32> to vector<1x1xf32>
    %1117 = tpu.reciprocal %1116 {approx = true} : vector<1x1xf32> -> vector<1x1xf32>
    %1118 = vector.broadcast %1111 : vector<1x1xf32> to vector<1x128xf32>
    %1119 = arith.cmpf oeq, %1109, %1118 : vector<1x128xf32>
    %c128_i32_250 = arith.constant 128 : i32
    %1120 = vector.broadcast %c128_i32_250 : i32 to vector<1x128xi32>
    %1121 = arith.select %1119, %13, %1120 : vector<1x128xi1>, vector<1x128xi32>
    %cst_251 = arith.constant dense<2147483647> : vector<1xi32>
    %1122 = vector.multi_reduction <minsi>, %1121, %cst_251 [1] : vector<1x128xi32> to vector<1xi32>
    %1123 = vector.shape_cast %1122 : vector<1xi32> to vector<1x1xi32>
    %1124 = vector.broadcast %1123 : vector<1x1xi32> to vector<1x128xi32>
    %1125 = arith.cmpi eq, %13, %1124 : vector<1x128xi32>
    %1126 = arith.extui %1125 : vector<1x128xi1> to vector<1x128xi32>
    %1127 = arith.sitofp %1126 : vector<1x128xi32> to vector<1x128xf32>
    %cst_252 = arith.constant dense<0.000000e+00> : vector<1x32xf32>
    %1128 = tpu.matmul %1127, %1, %cst_252 {dimension_numbers = #tpu.dot_dimension_numbers<[1], [0], [0], [1], [0, 0, 1, 1], [], []>} : vector<1x128xf32>, vector<128x32xf32>, vector<1x32xf32> -> vector<1x32xf32>
    %1129 = tpu.concatenate %1128, %1084 in 1 : vector<1x32xf32>, vector<1x32xf32> -> vector<1x64xf32>
    %cst_253 = arith.constant dense<0.000000e+00> : vector<1x512xf32>
    %1130 = tpu.matmul %1129, %6, %cst_253 {dimension_numbers = #tpu.dot_dimension_numbers<[1], [0], [0], [1], [0, 0, 1, 1], [], []>} : vector<1x64xf32>, vector<64x512xf32>, vector<1x512xf32> -> vector<1x512xf32>
    %1131 = arith.addf %1130, %7 : vector<1x512xf32>
    %1132 = vector.extract_strided_slice %1131 {offsets = [0, 0], sizes = [1, 32], strides = [1, 1]} : vector<1x512xf32> to vector<1x32xf32>
    %1133 = arith.negf %1132 : vector<1x32xf32>
    %1134 = math.exp %1133 : vector<1x32xf32>
    %cst_254 = arith.constant 1.000000e+00 : f32
    %1135 = vector.broadcast %cst_254 : f32 to vector<1x32xf32>
    %1136 = arith.addf %1135, %1134 : vector<1x32xf32>
    %1137 = arith.divf %1135, %1136 : vector<1x32xf32>
    %1138 = vector.extract_strided_slice %1131 {offsets = [0, 128], sizes = [1, 32], strides = [1, 1]} : vector<1x512xf32> to vector<1x32xf32>
    %1139 = arith.negf %1138 : vector<1x32xf32>
    %1140 = math.exp %1139 : vector<1x32xf32>
    %cst_255 = arith.constant 1.000000e+00 : f32
    %1141 = vector.broadcast %cst_255 : f32 to vector<1x32xf32>
    %1142 = arith.addf %1141, %1140 : vector<1x32xf32>
    %1143 = arith.divf %1141, %1142 : vector<1x32xf32>
    %1144 = vector.extract_strided_slice %1131 {offsets = [0, 256], sizes = [1, 32], strides = [1, 1]} : vector<1x512xf32> to vector<1x32xf32>
    %1145 = vector.extract_strided_slice %1131 {offsets = [0, 384], sizes = [1, 32], strides = [1, 1]} : vector<1x512xf32> to vector<1x32xf32>
    %1146 = arith.mulf %1137, %1145 : vector<1x32xf32>
    %1147 = arith.addf %1144, %1146 : vector<1x32xf32>
    %1148 = math.tanh %1147 : vector<1x32xf32>
    %cst_256 = arith.constant 1.000000e+00 : f32
    %1149 = vector.broadcast %cst_256 : f32 to vector<1x32xf32>
    %1150 = arith.subf %1149, %1143 : vector<1x32xf32>
    %1151 = arith.mulf %1150, %1148 : vector<1x32xf32>
    %1152 = arith.mulf %1143, %1084 : vector<1x32xf32>
    %1153 = arith.addf %1151, %1152 : vector<1x32xf32>
    %cst_257 = arith.constant dense<0.000000e+00> : vector<1x8xf32>
    %1154 = tpu.matmul %1153, %644, %cst_257 {dimension_numbers = #tpu.dot_dimension_numbers<[1], [1], [0], [0], [0, 0, 1, 0], [], []>} : vector<1x32xf32>, vector<8x32xf32>, vector<1x8xf32> -> vector<1x8xf32>
    %1155 = vector.broadcast %0 : i32 to vector<1x8xi32>
    %1156 = arith.cmpi slt, %12, %1155 : vector<1x8xi32>
    %cst_258 = arith.constant -1.000000e+30 : f32
    %1157 = vector.broadcast %cst_258 : f32 to vector<1x8xf32>
    %1158 = arith.select %1156, %1154, %1157 : vector<1x8xi1>, vector<1x8xf32>
    %cst_259 = arith.constant dense<0xFF800000> : vector<1xf32>
    %1159 = vector.multi_reduction <maximumf>, %1158, %cst_259 [1] : vector<1x8xf32> to vector<1xf32>
    %1160 = vector.shape_cast %1159 : vector<1xf32> to vector<1x1xf32>
    %1161 = vector.broadcast %1160 : vector<1x1xf32> to vector<1x8xf32>
    %1162 = arith.subf %1158, %1161 : vector<1x8xf32>
    %1163 = math.exp %1162 : vector<1x8xf32>
    %cst_260 = arith.constant dense<0.000000e+00> : vector<1xf32>
    %1164 = vector.multi_reduction <add>, %1163, %cst_260 [1] : vector<1x8xf32> to vector<1xf32>
    %1165 = vector.shape_cast %1164 : vector<1xf32> to vector<1x1xf32>
    %1166 = vector.broadcast %1165 : vector<1x1xf32> to vector<1x8xf32>
    %1167 = arith.divf %1163, %1166 : vector<1x8xf32>
    %cst_261 = arith.constant dense<0.000000e+00> : vector<1x32xf32>
    %1168 = tpu.matmul %1167, %644, %cst_261 {dimension_numbers = #tpu.dot_dimension_numbers<[1], [0], [0], [1], [0, 0, 1, 1], [], []>} : vector<1x8xf32>, vector<8x32xf32>, vector<1x32xf32> -> vector<1x32xf32>
    %1169 = tpu.concatenate %1153, %1168 in 1 : vector<1x32xf32>, vector<1x32xf32> -> vector<1x64xf32>
    %cst_262 = arith.constant dense<0.000000e+00> : vector<1x32xf32>
    %1170 = tpu.matmul %1169, %8, %cst_262 {dimension_numbers = #tpu.dot_dimension_numbers<[1], [0], [0], [1], [0, 0, 1, 1], [], []>} : vector<1x64xf32>, vector<64x32xf32>, vector<1x32xf32> -> vector<1x32xf32>
    %1171 = arith.addf %1170, %9 : vector<1x32xf32>
    %1172 = math.tanh %1171 : vector<1x32xf32>
    %cst_263 = arith.constant dense<0.000000e+00> : vector<1x128xf32>
    %1173 = tpu.matmul %1172, %10, %cst_263 {dimension_numbers = #tpu.dot_dimension_numbers<[1], [0], [0], [1], [0, 0, 1, 1], [], []>} : vector<1x32xf32>, vector<32x128xf32>, vector<1x128xf32> -> vector<1x128xf32>
    %1174 = arith.addf %1173, %11 : vector<1x128xf32>
    %c64_i32_264 = arith.constant 64 : i32
    %1175 = vector.broadcast %c64_i32_264 : i32 to vector<1x128xi32>
    %1176 = arith.cmpi slt, %13, %1175 : vector<1x128xi32>
    %cst_265 = arith.constant -1.000000e+30 : f32
    %1177 = vector.broadcast %cst_265 : f32 to vector<1x128xf32>
    %1178 = arith.select %1176, %1174, %1177 : vector<1x128xi1>, vector<1x128xf32>
    %cst_266 = arith.constant dense<0xFF800000> : vector<1xf32>
    %1179 = vector.multi_reduction <maximumf>, %1178, %cst_266 [1] : vector<1x128xf32> to vector<1xf32>
    %1180 = vector.shape_cast %1179 : vector<1xf32> to vector<1x1xf32>
    %1181 = vector.broadcast %1180 : vector<1x1xf32> to vector<1x128xf32>
    %1182 = arith.subf %1178, %1181 : vector<1x128xf32>
    %1183 = math.exp %1182 : vector<1x128xf32>
    %cst_267 = arith.constant dense<0.000000e+00> : vector<1xf32>
    %1184 = vector.multi_reduction <add>, %1183, %cst_267 [1] : vector<1x128xf32> to vector<1xf32>
    %1185 = vector.shape_cast %1184 : vector<1xf32> to vector<1x1xf32>
    %1186 = tpu.reciprocal %1185 {approx = true} : vector<1x1xf32> -> vector<1x1xf32>
    %1187 = vector.broadcast %1180 : vector<1x1xf32> to vector<1x128xf32>
    %1188 = arith.cmpf oeq, %1178, %1187 : vector<1x128xf32>
    %c128_i32_268 = arith.constant 128 : i32
    %1189 = vector.broadcast %c128_i32_268 : i32 to vector<1x128xi32>
    %1190 = arith.select %1188, %13, %1189 : vector<1x128xi1>, vector<1x128xi32>
    %cst_269 = arith.constant dense<2147483647> : vector<1xi32>
    %1191 = vector.multi_reduction <minsi>, %1190, %cst_269 [1] : vector<1x128xi32> to vector<1xi32>
    %1192 = vector.shape_cast %1191 : vector<1xi32> to vector<1x1xi32>
    %1193 = tpu.concatenate %703, %772, %841, %910, %979, %1048, %1117, %1186 in 0 : vector<1x1xf32>, vector<1x1xf32>, vector<1x1xf32>, vector<1x1xf32>, vector<1x1xf32>, vector<1x1xf32>, vector<1x1xf32>, vector<1x1xf32> -> vector<8x1xf32>
    %1194 = tpu.concatenate %709, %778, %847, %916, %985, %1054, %1123, %1192 in 0 : vector<1x1xi32>, vector<1x1xi32>, vector<1x1xi32>, vector<1x1xi32>, vector<1x1xi32>, vector<1x1xi32>, vector<1x1xi32>, vector<1x1xi32> -> vector<8x1xi32>
    %1195 = vector.shape_cast %1193 : vector<8x1xf32> to vector<8x1xf32>
    %1196 = vector.broadcast %1195 : vector<8x1xf32> to vector<8x128xf32>
    %c0_270 = arith.constant 0 : index
    %c0_271 = arith.constant 0 : index
    %1197 = vector.load %arg17[%c0_270, %c0_271] : memref<8x128xf32, #tpu.memory_space<vmem>>, vector<8x128xf32>
    tpu.vector_store %arg17[%c0_270, %c0_271], %1196 {strides = array<i32>} : memref<8x128xf32, #tpu.memory_space<vmem>>, vector<8x128xf32>,
    %1198 = vector.shape_cast %1194 : vector<8x1xi32> to vector<8x1xi32>
    %1199 = vector.broadcast %1198 : vector<8x1xi32> to vector<8x128xi32>
    %c0_272 = arith.constant 0 : index
    %c0_273 = arith.constant 0 : index
    %1200 = vector.load %arg18[%c0_272, %c0_273] : memref<8x128xi32, #tpu.memory_space<vmem>>, vector<8x128xi32>
    tpu.vector_store %arg18[%c0_272, %c0_273], %1199 {strides = array<i32>} : memref<8x128xi32, #tpu.memory_space<vmem>>, vector<8x128xi32>,
    return
  }
}

</mosaic_0001>

<llo_original>
// kernel: tpu_custom_call.1
$region0: #{tpu_custom_call.1}
  #allocation0 [shape = 'u32[]', space=smem, size = 0x4, offset = 0x4, fixed_abs, tag = 'smem constant byte address 0x4 - core index']
  #allocation1 [shape = 'u32[144,128]{1,0:T(1,128)}', space=vmem, size = 0x12000, scoped, tag = 'internal scratch']
  #allocation2 [shape = 's32[1]{0:T(128)S(6)}', space=smem, size = 0x200, scoped, tag = 'scoped memory for tpu_custom_call.1']
  %s0 = inlined_call_operand.vmem [shape: s32[8], index: 0, kind: input, shape index: {}]
  %s1 = inlined_call_operand.<no memory space> [shape: s32[1], index: 1, kind: input, shape index: {}]
  %s2 = inlined_call_operand.vmem [shape: f32[128,32], index: 2, kind: input, shape index: {}]
  %s3 = inlined_call_operand.hbm [shape: f32[32,384], index: 3, kind: input, shape index: {}]
  %s4 = inlined_call_operand.hbm [shape: f32[32,384], index: 4, kind: input, shape index: {}]
  %s5 = inlined_call_operand.vmem [shape: f32[1,384], index: 5, kind: input, shape index: {}]
  %s6 = inlined_call_operand.hbm [shape: f32[1,384], index: 6, kind: input, shape index: {}]
  %s7 = inlined_call_operand.hbm [shape: f32[32,384], index: 7, kind: input, shape index: {}]
  %s8 = inlined_call_operand.hbm [shape: f32[32,384], index: 8, kind: input, shape index: {}]
  %s9 = inlined_call_operand.hbm [shape: f32[1,384], index: 9, kind: input, shape index: {}]
  %s10 = inlined_call_operand.hbm [shape: f32[1,384], index: 10, kind: input, shape index: {}]
  %s11 = inlined_call_operand.vmem [shape: f32[64,512], index: 11, kind: input, shape index: {}]
  %s12 = inlined_call_operand.vmem [shape: f32[1,512], index: 12, kind: input, shape index: {}]
  %s13 = inlined_call_operand.vmem [shape: f32[64,32], index: 13, kind: input, shape index: {}]
  %s14 = inlined_call_operand.vmem [shape: f32[1,32], index: 14, kind: input, shape index: {}]
  %s15 = inlined_call_operand.vmem [shape: f32[32,128], index: 15, kind: input, shape index: {}]
  %s16 = inlined_call_operand.vmem [shape: f32[1,128], index: 16, kind: input, shape index: {}]
  %s17 = inlined_call_operand.hbm [shape: f32[8,128], index: 17, kind: output, shape index: {0}]
  %s18 = inlined_call_operand.hbm [shape: s32[8,128], index: 18, kind: output, shape index: {1}]
  %19 = xla_tuple %s17, %s18
  %s20 = sld [smem:[#allocation0]]
  $region118: #{tpu_custom_call.1} parent=0
    _
  %s22 = ssub.s32 1, %s20
  %s23 = scalar_select 0, %s22, %s20
  %24 = sst [smem:[#allocation2]] %s1
  $region1: #{tpu_custom_call.1} parent=0
    #allocation3 [shape = 'u8[512]{0}', space=smem, size = 0x200, scoped, tag = 'input window, operand 0, single buffered']
    #allocation4 [shape = 's32[1]{0}', space=sflag, size = 0x4, scoped, tag = 'scoped memory for tpu_custom_call.1']
    #allocation5 [shape = 's32[1]{0}', space=sflag, size = 0x4, scoped, tag = 'scoped memory for tpu_custom_call.1']
    #allocation6 [shape = 's32[1]{0}', space=sflag, size = 0x4, scoped, tag = 'scoped memory for tpu_custom_call.1']
    #allocation7 [shape = 'u8[49152]{0}', space=vmem, size = 0xc000, scoped, tag = 'input window, operand 3, single buffered']
    #allocation8 [shape = 'u8[49152]{0}', space=vmem, size = 0xc000, scoped, tag = 'input window, operand 4, single buffered']
    #allocation9 [shape = 's32[1]{0}', space=sflag, size = 0x4, scoped, tag = 'scoped memory for tpu_custom_call.1']
    #allocation10 [shape = 'u8[1536]{0}', space=vmem, size = 0x800, scoped, tag = 'input window, operand 6, single buffered']
    #allocation11 [shape = 'u8[49152]{0}', space=vmem, size = 0xc000, scoped, tag = 'input window, operand 7, single buffered']
    #allocation12 [shape = 's32[1]{0}', space=sflag, size = 0x4, scoped, tag = 'scoped memory for tpu_custom_call.1']
    #allocation13 [shape = 'u8[49152]{0}', space=vmem, size = 0xc000, scoped, tag = 'input window, operand 8, single buffered']
    #allocation14 [shape = 'u8[1536]{0}', space=vmem, size = 0x800, scoped, tag = 'input window, operand 9, single buffered']
    #allocation15 [shape = 's32[1]{0}', space=sflag, size = 0x4, scoped, tag = 'scoped memory for tpu_custom_call.1']
    #allocation16 [shape = 'u8[1536]{0}', space=vmem, size = 0x800, scoped, tag = 'input window, operand 10, single buffered']
    #allocation17 [shape = 'u8[4096]{0}', space=vmem, size = 0x1000, scoped, tag = 'output window, operand 0, single buffered']
    #allocation18 [shape = 'u8[4096]{0}', space=vmem, size = 0x1000, scoped, tag = 'output window, operand 1, single buffered']
    #allocation19 [shape = 's32[1]{0}', space=sflag, size = 0x4, scoped, tag = 'scoped memory for tpu_custom_call.1']
    %25 = vsyncpa [#allocation6], 0
    %26 = vsyncpa [#allocation4], 0
    %27 = vsyncpa [#allocation9], 0
    %28 = vsyncpa [#allocation12], 0
    %29 = vsyncpa [#allocation15], 0
    %30 = vsyncpa [#allocation5], 0
    %31 = vsyncpa [#allocation19], 0
    // Predicated region
    $region2: #{tpu_custom_call.1} parent=1 // pred_check
      _
    $region3: #{tpu_custom_call.1} parent=1 // pred_check_branch
      %33 = sbr.rel (0) target = $region5
    $region4: #{tpu_custom_call.1} parent=1 // pred_region
      %s35 = ssub.s32 16, 16
      %36 = vsyncadd [#allocation6], %s35
      %s38 = sshll.u32 %s0, 4
      %s39 = int_to_ptr.vmem [resolvable:$true] %s38
      %41 = dma.vmem_to_smem %s39, 16, [#allocation3], [#allocation6]
    $region5: #{tpu_custom_call.1} parent=1 // pred_fallthru
      _
    // Predicated region
    $region6: #{tpu_custom_call.1} parent=1 // pred_check
      _
    $region7: #{tpu_custom_call.1} parent=1 // pred_check_branch
      %43 = sbr.rel (0) target = $region9
    $region8: #{tpu_custom_call.1} parent=1 // pred_region
      _
    $region9: #{tpu_custom_call.1} parent=1 // pred_fallthru
      _
    // Predicated region
    $region10: #{tpu_custom_call.1} parent=1 // pred_check
      _
    $region11: #{tpu_custom_call.1} parent=1 // pred_check_branch
      %45 = sbr.rel (0) target = $region13
    $region12: #{tpu_custom_call.1} parent=1 // pred_region
      _
    $region13: #{tpu_custom_call.1} parent=1 // pred_fallthru
      _
    // Predicated region
    $region14: #{tpu_custom_call.1} parent=1 // pred_check
      _
    $region15: #{tpu_custom_call.1} parent=1 // pred_check_branch
      %47 = sbr.rel (0) target = $region17
    $region16: #{tpu_custom_call.1} parent=1 // pred_region
      %s49 = ssub.s32 1536, 1536
      %50 = vsyncadd [#allocation4], %s49
      %s51 = sshll.u32 [#allocation7], 4
      %s52 = int_to_ptr.vmem [resolvable:$true] %s51
      %57 = dma.hbm_to_vmem [thread:$0]  %s3, 1536, %s52, [#allocation4], 384, 384, 24
    $region17: #{tpu_custom_call.1} parent=1 // pred_fallthru
      _
    // Predicated region
    $region18: #{tpu_custom_call.1} parent=1 // pred_check
      _
    $region19: #{tpu_custom_call.1} parent=1 // pred_check_branch
      %59 = sbr.rel (0) target = $region21
    $region20: #{tpu_custom_call.1} parent=1 // pred_region
      %s61 = ssub.s32 1536, 1536
      %62 = vsyncadd [#allocation9], %s61
      %s63 = sshll.u32 [#allocation8], 4
      %s64 = int_to_ptr.vmem [resolvable:$true] %s63
      %69 = dma.hbm_to_vmem [thread:$0]  %s4, 1536, %s64, [#allocation9], 384, 384, 24
    $region21: #{tpu_custom_call.1} parent=1 // pred_fallthru
      _
    // Predicated region
    $region22: #{tpu_custom_call.1} parent=1 // pred_check
      _
    $region23: #{tpu_custom_call.1} parent=1 // pred_check_branch
      %71 = sbr.rel (0) target = $region25
    $region24: #{tpu_custom_call.1} parent=1 // pred_region
      _
    $region25: #{tpu_custom_call.1} parent=1 // pred_fallthru
      _
    // Predicated region
    $region26: #{tpu_custom_call.1} parent=1 // pred_check
      _
    $region27: #{tpu_custom_call.1} parent=1 // pred_check_branch
      %73 = sbr.rel (0) target = $region29
    $region28: #{tpu_custom_call.1} parent=1 // pred_region
      %s75 = ssub.s32 48, 48
      %76 = vsyncadd [#allocation9], %s75
      %s78 = sshll.u32 [#allocation10], 4
      %s79 = int_to_ptr.vmem [resolvable:$true] %s78
      %81 = dma.hbm_to_vmem [thread:$0]  %s6, 48, %s79, [#allocation9]
    $region29: #{tpu_custom_call.1} parent=1 // pred_fallthru
      _
    // Predicated region
    $region30: #{tpu_custom_call.1} parent=1 // pred_check
      _
    $region31: #{tpu_custom_call.1} parent=1 // pred_check_branch
      %83 = sbr.rel (0) target = $region33
    $region32: #{tpu_custom_call.1} parent=1 // pred_region
      %s85 = ssub.s32 1536, 1536
      %86 = vsyncadd [#allocation12], %s85
      %s87 = sshll.u32 [#allocation11], 4
      %s88 = int_to_ptr.vmem [resolvable:$true] %s87
      %93 = dma.hbm_to_vmem [thread:$0]  %s7, 1536, %s88, [#allocation12], 384, 384, 24
    $region33: #{tpu_custom_call.1} parent=1 // pred_fallthru
      _
    // Predicated region
    $region34: #{tpu_custom_call.1} parent=1 // pred_check
      _
    $region35: #{tpu_custom_call.1} parent=1 // pred_check_branch
      %95 = sbr.rel (0) target = $region37
    $region36: #{tpu_custom_call.1} parent=1 // pred_region
      %s97 = ssub.s32 1536, 1536
      %98 = vsyncadd [#allocation12], %s97
      %s99 = sshll.u32 [#allocation13], 4
      %s100 = int_to_ptr.vmem [resolvable:$true] %s99
      %105 = dma.hbm_to_vmem [thread:$0]  %s8, 1536, %s100, [#allocation12], 384, 384, 24
    $region37: #{tpu_custom_call.1} parent=1 // pred_fallthru
      _
    // Predicated region
    $region38: #{tpu_custom_call.1} parent=1 // pred_check
      _
    $region39: #{tpu_custom_call.1} parent=1 // pred_check_branch
      %107 = sbr.rel (0) target = $region41
    $region40: #{tpu_custom_call.1} parent=1 // pred_region
      %s109 = ssub.s32 48, 48
      %110 = vsyncadd [#allocation15], %s109
      %s112 = sshll.u32 [#allocation14], 4
      %s113 = int_to_ptr.vmem [resolvable:$true] %s112
      %115 = dma.hbm_to_vmem [thread:$0]  %s9, 48, %s113, [#allocation15]
    $region41: #{tpu_custom_call.1} parent=1 // pred_fallthru
      _
    // Predicated region
    $region42: #{tpu_custom_call.1} parent=1 // pred_check
      _
    $region43: #{tpu_custom_call.1} parent=1 // pred_check_branch
      %117 = sbr.rel (0) target = $region45
    $region44: #{tpu_custom_call.1} parent=1 // pred_region
      %s119 = ssub.s32 48, 48
      %120 = vsyncadd [#allocation15], %s119
      %s122 = sshll.u32 [#allocation16], 4
      %s123 = int_to_ptr.vmem [resolvable:$true] %s122
      %125 = dma.hbm_to_vmem [thread:$0]  %s10, 48, %s123, [#allocation15]
    $region45: #{tpu_custom_call.1} parent=1 // pred_fallthru
      _
    // Predicated region
    $region46: #{tpu_custom_call.1} parent=1 // pred_check
      _
    $region47: #{tpu_custom_call.1} parent=1 // pred_check_branch
      %127 = sbr.rel (0) target = $region49
    $region48: #{tpu_custom_call.1} parent=1 // pred_region
      _
    $region49: #{tpu_custom_call.1} parent=1 // pred_fallthru
      _
    // Predicated region
    $region50: #{tpu_custom_call.1} parent=1 // pred_check
      _
    $region51: #{tpu_custom_call.1} parent=1 // pred_check_branch
      %129 = sbr.rel (0) target = $region53
    $region52: #{tpu_custom_call.1} parent=1 // pred_region
      _
    $region53: #{tpu_custom_call.1} parent=1 // pred_fallthru
      _
    // Predicated region
    $region54: #{tpu_custom_call.1} parent=1 // pred_check
      _
    $region55: #{tpu_custom_call.1} parent=1 // pred_check_branch
      %131 = sbr.rel (0) target = $region57
    $region56: #{tpu_custom_call.1} parent=1 // pred_region
      _
    $region57: #{tpu_custom_call.1} parent=1 // pred_fallthru
      _
    // Predicated region
    $region58: #{tpu_custom_call.1} parent=1 // pred_check
      _
    $region59: #{tpu_custom_call.1} parent=1 // pred_check_branch
      %133 = sbr.rel (0) target = $region61
    $region60: #{tpu_custom_call.1} parent=1 // pred_region
      _
    $region61: #{tpu_custom_call.1} parent=1 // pred_fallthru
      _
    // Predicated region
    $region62: #{tpu_custom_call.1} parent=1 // pred_check
      _
    $region63: #{tpu_custom_call.1} parent=1 // pred_check_branch
      %135 = sbr.rel (0) target = $region65
    $region64: #{tpu_custom_call.1} parent=1 // pred_region
      _
    $region65: #{tpu_custom_call.1} parent=1 // pred_fallthru
      _
    // Predicated region
    $region66: #{tpu_custom_call.1} parent=1 // pred_check
      _
    $region67: #{tpu_custom_call.1} parent=1 // pred_check_branch
      %137 = sbr.rel (0) target = $region69
    $region68: #{tpu_custom_call.1} parent=1 // pred_region
      _
    $region69: #{tpu_custom_call.1} parent=1 // pred_fallthru
      _
    // Predicated region
    $region70: #{tpu_custom_call.1} parent=1 // pred_check
      _
    $region71: #{tpu_custom_call.1} parent=1 // pred_check_branch
      %139 = sbr.rel (0) target = $region73
    $region72: #{tpu_custom_call.1} parent=1 // pred_region
      %140 = dma.done [#allocation6], 16
    $region73: #{tpu_custom_call.1} parent=1 // pred_fallthru
      _
    // Predicated region
    $region74: #{tpu_custom_call.1} parent=1 // pred_check
      _
    $region75: #{tpu_custom_call.1} parent=1 // pred_check_branch
      %142 = sbr.rel (0) target = $region77
    $region76: #{tpu_custom_call.1} parent=1 // pred_region
      %143 = dma.done [#allocation4], 1536
    $region77: #{tpu_custom_call.1} parent=1 // pred_fallthru
      _
    // Predicated region
    $region78: #{tpu_custom_call.1} parent=1 // pred_check
      _
    $region79: #{tpu_custom_call.1} parent=1 // pred_check_branch
      %145 = sbr.rel (0) target = $region81
    $region80: #{tpu_custom_call.1} parent=1 // pred_region
      %146 = dma.done [#allocation9], 1536
    $region81: #{tpu_custom_call.1} parent=1 // pred_fallthru
      _
    // Predicated region
    $region82: #{tpu_custom_call.1} parent=1 // pred_check
      _
    $region83: #{tpu_custom_call.1} parent=1 // pred_check_branch
      %148 = sbr.rel (0) target = $region85
    $region84: #{tpu_custom_call.1} parent=1 // pred_region
      %149 = dma.done [#allocation9], 48
    $region85: #{tpu_custom_call.1} parent=1 // pred_fallthru
      _
    // Predicated region
    $region86: #{tpu_custom_call.1} parent=1 // pred_check
      _
    $region87: #{tpu_custom_call.1} parent=1 // pred_check_branch
      %151 = sbr.rel (0) target = $region89
    $region88: #{tpu_custom_call.1} parent=1 // pred_region
      %152 = dma.done [#allocation12], 1536
    $region89: #{tpu_custom_call.1} parent=1 // pred_fallthru
      _
    // Predicated region
    $region90: #{tpu_custom_call.1} parent=1 // pred_check
      _
    $region91: #{tpu_custom_call.1} parent=1 // pred_check_branch
      %154 = sbr.rel (0) target = $region93
    $region92: #{tpu_custom_call.1} parent=1 // pred_region
      %155 = dma.done [#allocation12], 1536
    $region93: #{tpu_custom_call.1} parent=1 // pred_fallthru
      _
    // Predicated region
    $region94: #{tpu_custom_call.1} parent=1 // pred_check
      _
    $region95: #{tpu_custom_call.1} parent=1 // pred_check_branch
      %157 = sbr.rel (0) target = $region97
    $region96: #{tpu_custom_call.1} parent=1 // pred_region
      %158 = dma.done [#allocation15], 48
    $region97: #{tpu_custom_call.1} parent=1 // pred_fallthru
      _
    // Predicated region
    $region98: #{tpu_custom_call.1} parent=1 // pred_check
      _
    $region99: #{tpu_custom_call.1} parent=1 // pred_check_branch
      %160 = sbr.rel (0) target = $region101
    $region100: #{tpu_custom_call.1} parent=1 // pred_region
      %161 = dma.done [#allocation15], 48
    $region101: #{tpu_custom_call.1} parent=1 // pred_fallthru
      _
    %162 = sfence
    %s163 = sld [smem:[#allocation2]]
    %v164 = vld [vmem:[%s2] sm:$0xff]
    %v165 = vld [vmem:[%s2 + $0x8] sm:$0xff]
    %v166 = vld [vmem:[%s2 + $0x10] sm:$0xff]
    %v167 = vld [vmem:[%s2 + $0x18] sm:$0xff]
    %v168 = vld [vmem:[%s2 + $0x20] sm:$0xff]
    %v169 = vld [vmem:[%s2 + $0x28] sm:$0xff]
    %v170 = vld [vmem:[%s2 + $0x30] sm:$0xff]
    %v171 = vld [vmem:[%s2 + $0x38] sm:$0xff]
    %v172 = vld [vmem:[%s2 + $0x40] sm:$0xff]
    %v173 = vld [vmem:[%s2 + $0x48] sm:$0xff]
    %v174 = vld [vmem:[%s2 + $0x50] sm:$0xff]
    %v175 = vld [vmem:[%s2 + $0x58] sm:$0xff]
    %v176 = vld [vmem:[%s2 + $0x60] sm:$0xff]
    %v177 = vld [vmem:[%s2 + $0x68] sm:$0xff]
    %v178 = vld [vmem:[%s2 + $0x70] sm:$0xff]
    %v179 = vld [vmem:[%s2 + $0x78] sm:$0xff]
    %v180 = vld [vmem:[#allocation8] sm:$0xff]
    %v181 = vld [vmem:[#allocation8 + $0x8] sm:$0xff]
    %v182 = vld [vmem:[#allocation8 + $0x10] sm:$0xff]
    %v183 = vld [vmem:[#allocation8 + $0x18] sm:$0xff]
    %v184 = vld [vmem:[#allocation8 + $0x20] sm:$0xff]
    %v185 = vld [vmem:[#allocation8 + $0x28] sm:$0xff]
    %v186 = vld [vmem:[#allocation8 + $0x30] sm:$0xff]
    %v187 = vld [vmem:[#allocation8 + $0x38] sm:$0xff]
    %v188 = vld [vmem:[#allocation8 + $0x40] sm:$0xff]
    %v189 = vld [vmem:[#allocation8 + $0x48] sm:$0xff]
    %v190 = vld [vmem:[#allocation8 + $0x50] sm:$0xff]
    %v191 = vld [vmem:[#allocation8 + $0x58] sm:$0xff]
    %v192 = vld [vmem:[#allocation10] sm:$0x7]
    %v193 = vld [vmem:[#allocation13] sm:$0xff]
    %v194 = vld [vmem:[#allocation13 + $0x8] sm:$0xff]
    %v195 = vld [vmem:[#allocation13 + $0x10] sm:$0xff]
    %v196 = vld [vmem:[#allocation13 + $0x18] sm:$0xff]
    %v197 = vld [vmem:[#allocation13 + $0x20] sm:$0xff]
    %v198 = vld [vmem:[#allocation13 + $0x28] sm:$0xff]
    %v199 = vld [vmem:[#allocation13 + $0x30] sm:$0xff]
    %v200 = vld [vmem:[#allocation13 + $0x38] sm:$0xff]
    %v201 = vld [vmem:[#allocation13 + $0x40] sm:$0xff]
    %v202 = vld [vmem:[#allocation13 + $0x48] sm:$0xff]
    %v203 = vld [vmem:[#allocation13 + $0x50] sm:$0xff]
    %v204 = vld [vmem:[#allocation13 + $0x58] sm:$0xff]
    %v205 = vld [vmem:[#allocation16] sm:$0x7]
    %v206 = vld [vmem:[%s11] sm:$0xff]
    %v207 = vld [vmem:[%s11 + $0x8] sm:$0xff]
    %v208 = vld [vmem:[%s11 + $0x10] sm:$0xff]
    %v209 = vld [vmem:[%s11 + $0x18] sm:$0xff]
    %v210 = vld [vmem:[%s11 + $0x20] sm:$0xff]
    %v211 = vld [vmem:[%s11 + $0x28] sm:$0xff]
    %v212 = vld [vmem:[%s11 + $0x30] sm:$0xff]
    %v213 = vld [vmem:[%s11 + $0x38] sm:$0xff]
    %v214 = vld [vmem:[%s11 + $0x40] sm:$0xff]
    %v215 = vld [vmem:[%s11 + $0x48] sm:$0xff]
    %v216 = vld [vmem:[%s11 + $0x50] sm:$0xff]
    %v217 = vld [vmem:[%s11 + $0x58] sm:$0xff]
    %v218 = vld [vmem:[%s11 + $0x60] sm:$0xff]
    %v219 = vld [vmem:[%s11 + $0x68] sm:$0xff]
    %v220 = vld [vmem:[%s11 + $0x70] sm:$0xff]
    %v221 = vld [vmem:[%s11 + $0x78] sm:$0xff]
    %v222 = vld [vmem:[%s11 + $0x80] sm:$0xff]
    %v223 = vld [vmem:[%s11 + $0x88] sm:$0xff]
    %v224 = vld [vmem:[%s11 + $0x90] sm:$0xff]
    %v225 = vld [vmem:[%s11 + $0x98] sm:$0xff]
    %v226 = vld [vmem:[%s11 + $0xa0] sm:$0xff]
    %v227 = vld [vmem:[%s11 + $0xa8] sm:$0xff]
    %v228 = vld [vmem:[%s11 + $0xb0] sm:$0xff]
    %v229 = vld [vmem:[%s11 + $0xb8] sm:$0xff]
    %v230 = vld [vmem:[%s11 + $0xc0] sm:$0xff]
    %v231 = vld [vmem:[%s11 + $0xc8] sm:$0xff]
    %v232 = vld [vmem:[%s11 + $0xd0] sm:$0xff]
    %v233 = vld [vmem:[%s11 + $0xd8] sm:$0xff]
    %v234 = vld [vmem:[%s11 + $0xe0] sm:$0xff]
    %v235 = vld [vmem:[%s11 + $0xe8] sm:$0xff]
    %v236 = vld [vmem:[%s11 + $0xf0] sm:$0xff]
    %v237 = vld [vmem:[%s11 + $0xf8] sm:$0xff]
    %v238 = vld [vmem:[%s12] sm:$0xf]
    %v239 = vld [vmem:[%s13] sm:$0xff]
    %v240 = vld [vmem:[%s13 + $0x8] sm:$0xff]
    %v241 = vld [vmem:[%s13 + $0x10] sm:$0xff]
    %v242 = vld [vmem:[%s13 + $0x18] sm:$0xff]
    %v243 = vld [vmem:[%s13 + $0x20] sm:$0xff]
    %v244 = vld [vmem:[%s13 + $0x28] sm:$0xff]
    %v245 = vld [vmem:[%s13 + $0x30] sm:$0xff]
    %v246 = vld [vmem:[%s13 + $0x38] sm:$0xff]
    %v247 = vld [vmem:[%s14] sm:$0x1]
    %v248 = vld [vmem:[%s15] sm:$0xff]
    %v249 = vld [vmem:[%s15 + $0x8] sm:$0xff]
    %v250 = vld [vmem:[%s15 + $0x10] sm:$0xff]
    %v251 = vld [vmem:[%s15 + $0x18] sm:$0xff]
    %v252 = vld [vmem:[%s16] sm:$0x1]
    %v253 = vlaneseq
    %v254 = vand.u32 %v253, 127
    %s255 = sld [smem:[#allocation3]]
    %s256 = scalar_lea.vmem %s2, %s255
    %v257 = vld [vmem:[%s256] sm:$0x1]
    %s258 = sld [smem:[#allocation3 + $0x1]]
    %s259 = scalar_lea.vmem %s2, %s258
    %v260 = vld [vmem:[%s259] sm:$0x1]
    %s261 = sld [smem:[#allocation3 + $0x2]]
    %s262 = scalar_lea.vmem %s2, %s261
    %v263 = vld [vmem:[%s262] sm:$0x1]
    %s264 = sld [smem:[#allocation3 + $0x3]]
    %s265 = scalar_lea.vmem %s2, %s264
    %v266 = vld [vmem:[%s265] sm:$0x1]
    %s267 = sld [smem:[#allocation3 + $0x4]]
    %s268 = scalar_lea.vmem %s2, %s267
    %v269 = vld [vmem:[%s268] sm:$0x1]
    %s270 = sld [smem:[#allocation3 + $0x5]]
    %s271 = scalar_lea.vmem %s2, %s270
    %v272 = vld [vmem:[%s271] sm:$0x1]
    %s273 = sld [smem:[#allocation3 + $0x6]]
    %s274 = scalar_lea.vmem %s2, %s273
    %v275 = vld [vmem:[%s274] sm:$0x1]
    %s276 = sld [smem:[#allocation3 + $0x7]]
    %s277 = scalar_lea.vmem %s2, %s276
    %v278 = vld [vmem:[%s277] sm:$0x1]
    %v280 = vrot.slane %v260, 7
    %v283 = vrot.slane %v263, 6
    %v286 = vrot.slane %v266, 5
    %v289 = vrot.slane %v269, 4
    %v292 = vrot.slane %v272, 3
    %v295 = vrot.slane %v275, 2
    %v298 = vrot.slane %v278, 1
    %vm300 = vcmask 1040384
    %v301 = vsel %vm300, %v257, %v280
    %vm302 = vcmask 1041408
    %v303 = vsel %vm302, %v301, %v283
    %vm304 = vcmask 1042432
    %v305 = vsel %vm304, %v303, %v286
    %vm306 = vcmask 1043456
    %v307 = vsel %vm306, %v305, %v289
    %vm308 = vcmask 1044480
    %v309 = vsel %vm308, %v307, %v292
    %vm310 = vcmask 1045504
    %v311 = vsel %vm310, %v309, %v295
    %vm312 = vcmask 1046528
    %v313 = vsel %vm312, %v311, %v298
    %v314 = vld [vmem:[#allocation7] sm:$0xff]
    %v315 = vld [vmem:[#allocation7 + $0x8] sm:$0xff]
    %v316 = vld [vmem:[#allocation7 + $0x10] sm:$0xff]
    %v317 = vld [vmem:[#allocation7 + $0x18] sm:$0xff]
    %v318 = vld [vmem:[#allocation7 + $0x20] sm:$0xff]
    %v319 = vld [vmem:[#allocation7 + $0x28] sm:$0xff]
    %v320 = vld [vmem:[#allocation7 + $0x30] sm:$0xff]
    %v321 = vld [vmem:[#allocation7 + $0x38] sm:$0xff]
    %v322 = vld [vmem:[#allocation7 + $0x40] sm:$0xff]
    %v323 = vld [vmem:[#allocation7 + $0x48] sm:$0xff]
    %v324 = vld [vmem:[#allocation7 + $0x50] sm:$0xff]
    %v325 = vld [vmem:[#allocation7 + $0x58] sm:$0xff]
    %v326 = vld [vmem:[%s5] sm:$0x7]
    %v328 = vlaneseq
    %v329 = vshrl.u32 %v328, 7
    %v330 = vsub.s32 0, %v329
    %v331 = vrot.slane %v326, %v330
    %v332 = vlaneseq
    %v333 = vshrl.u32 %v332, 7
    %v334 = vsub.s32 1, %v333
    %v335 = vrot.slane %v326, %v334
    %v336 = vlaneseq
    %v337 = vshrl.u32 %v336, 7
    %v338 = vsub.s32 2, %v337
    %v339 = vrot.slane %v326, %v338
    %vm343 = vcmask 261120
    %v345 = vsel %vm343, %v313, 0
    %347 = vmatprep.subr.mxu0 %v315
    %348 = vmatpush1.msra.mxu0 %v314
    %349 = vmatprep.subr.mxu0 %v318
    %350 = vmatpush1.msra.mxu0 %v317
    %351 = vmatprep.subr.mxu0 %v321
    %352 = vmatpush1.msra.mxu0 %v320
    %353 = vmatprep.subr.mxu0 %v324
    %354 = vmatpush1.msra.mxu0 %v323
    %355 = vmatprep.subr.mxu0 0.0
    %356 = vmatpush1.msra.mxu0 0.0
    %357 = vmatprep.subr.mxu0 0.0
    %358 = vmatpush1.msra.mxu0 0.0
    %359 = vmatprep.subr.mxu0 0.0
    %360 = vmatpush1.msra.mxu0 0.0
    %361 = vmatprep.subr.mxu0 0.0
    %362 = vmatpush1.msra.mxu0 0.0
    %363 = vmatprep.subr.mxu0 0.0
    %364 = vmatpush1.msra.mxu0 0.0
    %365 = vmatprep.subr.mxu0 0.0
    %366 = vmatpush1.msra.mxu0 0.0
    %367 = vmatprep.subr.mxu0 0.0
    %368 = vmatpush1.msra.mxu0 0.0
    %369 = vmatprep.subr.mxu0 0.0
    %370 = vmatpush1.msra.mxu0 0.0
    %371 = vmatprep.subr.mxu0 0.0
    %372 = vmatpush1.msra.mxu0 0.0
    %373 = vmatprep.subr.mxu0 0.0
    %374 = vmatpush1.msra.mxu0 0.0
    %375 = vmatprep.subr.mxu0 0.0
    %376 = vmatpush1.msra.mxu0 0.0
    %377 = vmatprep.subr.mxu0 0.0
    %378 = vmatpush1.msra.mxu0 0.0
    %379 = vmatprep.subr.mxu0 0.0
    %380 = vmatpush1.msra.mxu0 0.0
    %381 = vmatprep.subr.mxu0 0.0
    %382 = vmatpush1.msra.mxu0 0.0
    %383 = vmatprep.subr.mxu0 0.0
    %384 = vmatpush1.msra.mxu0 0.0
    %385 = vmatprep.subr.mxu0 0.0
    %386 = vmatpush1.msra.mxu0 0.0
    %387 = vmatprep.subr.mxu0 0.0
    %388 = vmatpush1.msra.mxu0 0.0
    %389 = vmatprep.subr.mxu0 0.0
    %390 = vmatpush1.msra.mxu0 0.0
    %391 = vmatprep.subr.mxu0 0.0
    %392 = vmatpush1.msra.mxu0 0.0
    %393 = vmatprep.subr.mxu0 0.0
    %394 = vmatpush1.msra.mxu0 0.0
    %395 = vmatprep.subr.mxu0 0.0
    %396 = vmatpush1.msra.mxu0 0.0
    %397 = vmatprep.subr.mxu0 0.0
    %398 = vmatpush1.msra.mxu0 0.0
    %399 = vmatprep.subr.mxu0 0.0
    %400 = vmatpush1.msra.mxu0 0.0
    %401 = vmatprep.subr.mxu0 0.0
    %402 = vmatpush1.msra.mxu0 0.0
    %403 = vmatprep.subr.mxu0 0.0
    %404 = vmatpush1.msra.mxu0 0.0
    %405 = vmatprep.subr.mxu0 0.0
    %406 = vmatpush1.msra.mxu0 0.0
    %407 = vmatprep.subr.mxu0 0.0
    %408 = vmatpush1.msra.mxu0 0.0
    %409 = vmatprep.subr.mxu0 0.0
    %410 = vmatpush1.msra.mxu0 0.0
    %411 = vmatprep.mubr.f32.mxu0 0.0
    %412 = vmatmul.mubr.f32.gmra.mrb[0].mxu0 %v345
    %v413 = vpop.f32.mrb[0].mxu0
    %v414 = vadd.f32 %v331, %v413
    %v415 = vpop.f32.mrb[0].mxu0
    %v416 = vadd.f32 %v335, %v415
    %417 = vdwg.mxu0
    %418 = vmatprep.subr.mxu0 0.0
    %419 = vmatpush1.msra.mxu0 %v316
    %420 = vmatprep.subr.mxu0 0.0
    %421 = vmatpush1.msra.mxu0 %v319
    %422 = vmatprep.subr.mxu0 0.0
    %423 = vmatpush1.msra.mxu0 %v322
    %424 = vmatprep.subr.mxu0 0.0
    %425 = vmatpush1.msra.mxu0 %v325
    %426 = vmatprep.subr.mxu0 0.0
    %427 = vmatpush1.msra.mxu0 0.0
    %428 = vmatprep.subr.mxu0 0.0
    %429 = vmatpush1.msra.mxu0 0.0
    %430 = vmatprep.subr.mxu0 0.0
    %431 = vmatpush1.msra.mxu0 0.0
    %432 = vmatprep.subr.mxu0 0.0
    %433 = vmatpush1.msra.mxu0 0.0
    %434 = vmatprep.subr.mxu0 0.0
    %435 = vmatpush1.msra.mxu0 0.0
    %436 = vmatprep.subr.mxu0 0.0
    %437 = vmatpush1.msra.mxu0 0.0
    %438 = vmatprep.subr.mxu0 0.0
    %439 = vmatpush1.msra.mxu0 0.0
    %440 = vmatprep.subr.mxu0 0.0
    %441 = vmatpush1.msra.mxu0 0.0
    %442 = vmatprep.subr.mxu0 0.0
    %443 = vmatpush1.msra.mxu0 0.0
    %444 = vmatprep.subr.mxu0 0.0
    %445 = vmatpush1.msra.mxu0 0.0
    %446 = vmatprep.subr.mxu0 0.0
    %447 = vmatpush1.msra.mxu0 0.0
    %448 = vmatprep.subr.mxu0 0.0
    %449 = vmatpush1.msra.mxu0 0.0
    %450 = vmatprep.subr.mxu0 0.0
    %451 = vmatpush1.msra.mxu0 0.0
    %452 = vmatprep.subr.mxu0 0.0
    %453 = vmatpush1.msra.mxu0 0.0
    %454 = vmatprep.subr.mxu0 0.0
    %455 = vmatpush1.msra.mxu0 0.0
    %456 = vmatprep.subr.mxu0 0.0
    %457 = vmatpush1.msra.mxu0 0.0
    %458 = vmatprep.subr.mxu0 0.0
    %459 = vmatpush1.msra.mxu0 0.0
    %460 = vmatprep.subr.mxu0 0.0
    %461 = vmatpush1.msra.mxu0 0.0
    %462 = vmatprep.subr.mxu0 0.0
    %463 = vmatpush1.msra.mxu0 0.0
    %464 = vmatprep.subr.mxu0 0.0
    %465 = vmatpush1.msra.mxu0 0.0
    %466 = vmatprep.subr.mxu0 0.0
    %467 = vmatpush1.msra.mxu0 0.0
    %468 = vmatprep.subr.mxu0 0.0
    %469 = vmatpush1.msra.mxu0 0.0
    %470 = vmatprep.subr.mxu0 0.0
    %471 = vmatpush1.msra.mxu0 0.0
    %472 = vmatprep.subr.mxu0 0.0
    %473 = vmatpush1.msra.mxu0 0.0
    %474 = vmatprep.subr.mxu0 0.0
    %475 = vmatpush1.msra.mxu0 0.0
    %476 = vmatprep.subr.mxu0 0.0
    %477 = vmatpush1.msra.mxu0 0.0
    %478 = vmatprep.subr.mxu0 0.0
    %479 = vmatpush1.msra.mxu0 0.0
    %480 = vmatprep.subr.mxu0 0.0
    %481 = vmatpush1.msra.mxu0 0.0
    %482 = vmatprep.mubr.f32.mxu0 0.0
    %483 = vmatmul.mubr.f32.gmra.mrb[0].mxu0 %v345
    %v484 = vpop.f32.mrb[0].mxu0
    %v485 = vadd.f32 %v339, %v484
    %v486 = vpop.f32.mrb[0].mxu0
    %487 = vdwg.mxu0
    %v488 = vld [vmem:[#allocation11] sm:$0xff]
    %v489 = vld [vmem:[#allocation11 + $0x8] sm:$0xff]
    %v490 = vld [vmem:[#allocation11 + $0x10] sm:$0xff]
    %v491 = vld [vmem:[#allocation11 + $0x18] sm:$0xff]
    %v492 = vld [vmem:[#allocation11 + $0x20] sm:$0xff]
    %v493 = vld [vmem:[#allocation11 + $0x28] sm:$0xff]
    %v494 = vld [vmem:[#allocation11 + $0x30] sm:$0xff]
    %v495 = vld [vmem:[#allocation11 + $0x38] sm:$0xff]
    %v496 = vld [vmem:[#allocation11 + $0x40] sm:$0xff]
    %v497 = vld [vmem:[#allocation11 + $0x48] sm:$0xff]
    %v498 = vld [vmem:[#allocation11 + $0x50] sm:$0xff]
    %v499 = vld [vmem:[#allocation11 + $0x58] sm:$0xff]
    %v500 = vld [vmem:[#allocation14] sm:$0x7]
    %v502 = vlaneseq
    %v503 = vshrl.u32 %v502, 7
    %v504 = vsub.s32 0, %v503
    %v505 = vrot.slane %v500, %v504
    %v506 = vlaneseq
    %v507 = vshrl.u32 %v506, 7
    %v508 = vsub.s32 1, %v507
    %v509 = vrot.slane %v500, %v508
    %v510 = vlaneseq
    %v511 = vshrl.u32 %v510, 7
    %v512 = vsub.s32 2, %v511
    %v513 = vrot.slane %v500, %v512
    %517 = vmatprep.subr.mxu0 %v489
    %518 = vmatpush1.msra.mxu0 %v488
    %519 = vmatprep.subr.mxu0 %v492
    %520 = vmatpush1.msra.mxu0 %v491
    %521 = vmatprep.subr.mxu0 %v495
    %522 = vmatpush1.msra.mxu0 %v494
    %523 = vmatprep.subr.mxu0 %v498
    %524 = vmatpush1.msra.mxu0 %v497
    %525 = vmatprep.subr.mxu0 0.0
    %526 = vmatpush1.msra.mxu0 0.0
    %527 = vmatprep.subr.mxu0 0.0
    %528 = vmatpush1.msra.mxu0 0.0
    %529 = vmatprep.subr.mxu0 0.0
    %530 = vmatpush1.msra.mxu0 0.0
    %531 = vmatprep.subr.mxu0 0.0
    %532 = vmatpush1.msra.mxu0 0.0
    %533 = vmatprep.subr.mxu0 0.0
    %534 = vmatpush1.msra.mxu0 0.0
    %535 = vmatprep.subr.mxu0 0.0
    %536 = vmatpush1.msra.mxu0 0.0
    %537 = vmatprep.subr.mxu0 0.0
    %538 = vmatpush1.msra.mxu0 0.0
    %539 = vmatprep.subr.mxu0 0.0
    %540 = vmatpush1.msra.mxu0 0.0
    %541 = vmatprep.subr.mxu0 0.0
    %542 = vmatpush1.msra.mxu0 0.0
    %543 = vmatprep.subr.mxu0 0.0
    %544 = vmatpush1.msra.mxu0 0.0
    %545 = vmatprep.subr.mxu0 0.0
    %546 = vmatpush1.msra.mxu0 0.0
    %547 = vmatprep.subr.mxu0 0.0
    %548 = vmatpush1.msra.mxu0 0.0
    %549 = vmatprep.subr.mxu0 0.0
    %550 = vmatpush1.msra.mxu0 0.0
    %551 = vmatprep.subr.mxu0 0.0
    %552 = vmatpush1.msra.mxu0 0.0
    %553 = vmatprep.subr.mxu0 0.0
    %554 = vmatpush1.msra.mxu0 0.0
    %555 = vmatprep.subr.mxu0 0.0
    %556 = vmatpush1.msra.mxu0 0.0
    %557 = vmatprep.subr.mxu0 0.0
    %558 = vmatpush1.msra.mxu0 0.0
    %559 = vmatprep.subr.mxu0 0.0
    %560 = vmatpush1.msra.mxu0 0.0
    %561 = vmatprep.subr.mxu0 0.0
    %562 = vmatpush1.msra.mxu0 0.0
    %563 = vmatprep.subr.mxu0 0.0
    %564 = vmatpush1.msra.mxu0 0.0
    %565 = vmatprep.subr.mxu0 0.0
    %566 = vmatpush1.msra.mxu0 0.0
    %567 = vmatprep.subr.mxu0 0.0
    %568 = vmatpush1.msra.mxu0 0.0
    %569 = vmatprep.subr.mxu0 0.0
    %570 = vmatpush1.msra.mxu0 0.0
    %571 = vmatprep.subr.mxu0 0.0
    %572 = vmatpush1.msra.mxu0 0.0
    %573 = vmatprep.subr.mxu0 0.0
    %574 = vmatpush1.msra.mxu0 0.0
    %575 = vmatprep.subr.mxu0 0.0
    %576 = vmatpush1.msra.mxu0 0.0
    %577 = vmatprep.subr.mxu0 0.0
    %578 = vmatpush1.msra.mxu0 0.0
    %579 = vmatprep.subr.mxu0 0.0
    %580 = vmatpush1.msra.mxu0 0.0
    %581 = vmatprep.mubr.f32.mxu0 0.0
    %582 = vmatmul.mubr.f32.gmra.mrb[0].mxu0 %v345
    %v583 = vpop.f32.mrb[0].mxu0
    %v584 = vadd.f32 %v505, %v583
    %v585 = vpop.f32.mrb[0].mxu0
    %v586 = vadd.f32 %v509, %v585
    %587 = vdwg.mxu0
    %588 = vmatprep.subr.mxu0 0.0
    %589 = vmatpush1.msra.mxu0 %v490
    %590 = vmatprep.subr.mxu0 0.0
    %591 = vmatpush1.msra.mxu0 %v493
    %592 = vmatprep.subr.mxu0 0.0
    %593 = vmatpush1.msra.mxu0 %v496
    %594 = vmatprep.subr.mxu0 0.0
    %595 = vmatpush1.msra.mxu0 %v499
    %596 = vmatprep.subr.mxu0 0.0
    %597 = vmatpush1.msra.mxu0 0.0
    %598 = vmatprep.subr.mxu0 0.0
    %599 = vmatpush1.msra.mxu0 0.0
    %600 = vmatprep.subr.mxu0 0.0
    %601 = vmatpush1.msra.mxu0 0.0
    %602 = vmatprep.subr.mxu0 0.0
    %603 = vmatpush1.msra.mxu0 0.0
    %604 = vmatprep.subr.mxu0 0.0
    %605 = vmatpush1.msra.mxu0 0.0
    %606 = vmatprep.subr.mxu0 0.0
    %607 = vmatpush1.msra.mxu0 0.0
    %608 = vmatprep.subr.mxu0 0.0
    %609 = vmatpush1.msra.mxu0 0.0
    %610 = vmatprep.subr.mxu0 0.0
    %611 = vmatpush1.msra.mxu0 0.0
    %612 = vmatprep.subr.mxu0 0.0
    %613 = vmatpush1.msra.mxu0 0.0
    %614 = vmatprep.subr.mxu0 0.0
    %615 = vmatpush1.msra.mxu0 0.0
    %616 = vmatprep.subr.mxu0 0.0
    %617 = vmatpush1.msra.mxu0 0.0
    %618 = vmatprep.subr.mxu0 0.0
    %619 = vmatpush1.msra.mxu0 0.0
    %620 = vmatprep.subr.mxu0 0.0
    %621 = vmatpush1.msra.mxu0 0.0
    %622 = vmatprep.subr.mxu0 0.0
    %623 = vmatpush1.msra.mxu0 0.0
    %624 = vmatprep.subr.mxu0 0.0
    %625 = vmatpush1.msra.mxu0 0.0
    %626 = vmatprep.subr.mxu0 0.0
    %627 = vmatpush1.msra.mxu0 0.0
    %628 = vmatprep.subr.mxu0 0.0
    %629 = vmatpush1.msra.mxu0 0.0
    %630 = vmatprep.subr.mxu0 0.0
    %631 = vmatpush1.msra.mxu0 0.0
    %632 = vmatprep.subr.mxu0 0.0
    %633 = vmatpush1.msra.mxu0 0.0
    %634 = vmatprep.subr.mxu0 0.0
    %635 = vmatpush1.msra.mxu0 0.0
    %636 = vmatprep.subr.mxu0 0.0
    %637 = vmatpush1.msra.mxu0 0.0
    %638 = vmatprep.subr.mxu0 0.0
    %639 = vmatpush1.msra.mxu0 0.0
    %640 = vmatprep.subr.mxu0 0.0
    %641 = vmatpush1.msra.mxu0 0.0
    %642 = vmatprep.subr.mxu0 0.0
    %643 = vmatpush1.msra.mxu0 0.0
    %644 = vmatprep.subr.mxu0 0.0
    %645 = vmatpush1.msra.mxu0 0.0
    %646 = vmatprep.subr.mxu0 0.0
    %647 = vmatpush1.msra.mxu0 0.0
    %648 = vmatprep.subr.mxu0 0.0
    %649 = vmatpush1.msra.mxu0 0.0
    %650 = vmatprep.subr.mxu0 0.0
    %651 = vmatpush1.msra.mxu0 0.0
    %652 = vmatprep.mubr.f32.mxu0 0.0
    %653 = vmatmul.mubr.f32.gmra.mrb[0].mxu0 %v345
    %v654 = vpop.f32.mrb[0].mxu0
    %v655 = vadd.f32 %v513, %v654
    %v656 = vpop.f32.mrb[0].mxu0
    %657 = vdwg.mxu0
    %v659 = vlaneseq
    %v660 = vshrl.u32 %v659, 7
    %v661 = vsub.s32 0, %v660
    %v662 = vrot.slane %v192, %v661
    %v663 = vlaneseq
    %v664 = vshrl.u32 %v663, 7
    %v665 = vsub.s32 1, %v664
    %v666 = vrot.slane %v192, %v665
    %v667 = vlaneseq
    %v668 = vshrl.u32 %v667, 7
    %v669 = vsub.s32 2, %v668
    %v670 = vrot.slane %v192, %v669
    %v675 = vsel %vm343, 0.0, 0
    %677 = vmatprep.subr.mxu0 %v181
    %678 = vmatpush1.msra.mxu0 %v180
    %679 = vmatprep.subr.mxu0 %v184
    %680 = vmatpush1.msra.mxu0 %v183
    %681 = vmatprep.subr.mxu0 %v187
    %682 = vmatpush1.msra.mxu0 %v186
    %683 = vmatprep.subr.mxu0 %v190
    %684 = vmatpush1.msra.mxu0 %v189
    %685 = vmatprep.subr.mxu0 0.0
    %686 = vmatpush1.msra.mxu0 0.0
    %687 = vmatprep.subr.mxu0 0.0
    %688 = vmatpush1.msra.mxu0 0.0
    %689 = vmatprep.subr.mxu0 0.0
    %690 = vmatpush1.msra.mxu0 0.0
    %691 = vmatprep.subr.mxu0 0.0
    %692 = vmatpush1.msra.mxu0 0.0
    %693 = vmatprep.subr.mxu0 0.0
    %694 = vmatpush1.msra.mxu0 0.0
    %695 = vmatprep.subr.mxu0 0.0
    %696 = vmatpush1.msra.mxu0 0.0
    %697 = vmatprep.subr.mxu0 0.0
    %698 = vmatpush1.msra.mxu0 0.0
    %699 = vmatprep.subr.mxu0 0.0
    %700 = vmatpush1.msra.mxu0 0.0
    %701 = vmatprep.subr.mxu0 0.0
    %702 = vmatpush1.msra.mxu0 0.0
    %703 = vmatprep.subr.mxu0 0.0
    %704 = vmatpush1.msra.mxu0 0.0
    %705 = vmatprep.subr.mxu0 0.0
    %706 = vmatpush1.msra.mxu0 0.0
    %707 = vmatprep.subr.mxu0 0.0
    %708 = vmatpush1.msra.mxu0 0.0
    %709 = vmatprep.subr.mxu0 0.0
    %710 = vmatpush1.msra.mxu0 0.0
    %711 = vmatprep.subr.mxu0 0.0
    %712 = vmatpush1.msra.mxu0 0.0
    %713 = vmatprep.subr.mxu0 0.0
    %714 = vmatpush1.msra.mxu0 0.0
    %715 = vmatprep.subr.mxu0 0.0
    %716 = vmatpush1.msra.mxu0 0.0
    %717 = vmatprep.subr.mxu0 0.0
    %718 = vmatpush1.msra.mxu0 0.0
    %719 = vmatprep.subr.mxu0 0.0
    %720 = vmatpush1.msra.mxu0 0.0
    %721 = vmatprep.subr.mxu0 0.0
    %722 = vmatpush1.msra.mxu0 0.0
    %723 = vmatprep.subr.mxu0 0.0
    %724 = vmatpush1.msra.mxu0 0.0
    %725 = vmatprep.subr.mxu0 0.0
    %726 = vmatpush1.msra.mxu0 0.0
    %727 = vmatprep.subr.mxu0 0.0
    %728 = vmatpush1.msra.mxu0 0.0
    %729 = vmatprep.subr.mxu0 0.0
    %730 = vmatpush1.msra.mxu0 0.0
    %731 = vmatprep.subr.mxu0 0.0
    %732 = vmatpush1.msra.mxu0 0.0
    %733 = vmatprep.subr.mxu0 0.0
    %734 = vmatpush1.msra.mxu0 0.0
    %735 = vmatprep.subr.mxu0 0.0
    %736 = vmatpush1.msra.mxu0 0.0
    %737 = vmatprep.subr.mxu0 0.0
    %738 = vmatpush1.msra.mxu0 0.0
    %739 = vmatprep.subr.mxu0 0.0
    %740 = vmatpush1.msra.mxu0 0.0
    %741 = vmatprep.mubr.f32.mxu0 0.0
    %742 = vmatmul.mubr.f32.gmra.mrb[0].mxu0 %v675
    %v743 = vpop.f32.mrb[0].mxu0
    %v744 = vadd.f32 %v662, %v743
    %v745 = vpop.f32.mrb[0].mxu0
    %v746 = vadd.f32 %v666, %v745
    %747 = vdwg.mxu0
    %748 = vmatprep.subr.mxu0 0.0
    %749 = vmatpush1.msra.mxu0 %v182
    %750 = vmatprep.subr.mxu0 0.0
    %751 = vmatpush1.msra.mxu0 %v185
    %752 = vmatprep.subr.mxu0 0.0
    %753 = vmatpush1.msra.mxu0 %v188
    %754 = vmatprep.subr.mxu0 0.0
    %755 = vmatpush1.msra.mxu0 %v191
    %756 = vmatprep.subr.mxu0 0.0
    %757 = vmatpush1.msra.mxu0 0.0
    %758 = vmatprep.subr.mxu0 0.0
    %759 = vmatpush1.msra.mxu0 0.0
    %760 = vmatprep.subr.mxu0 0.0
    %761 = vmatpush1.msra.mxu0 0.0
    %762 = vmatprep.subr.mxu0 0.0
    %763 = vmatpush1.msra.mxu0 0.0
    %764 = vmatprep.subr.mxu0 0.0
    %765 = vmatpush1.msra.mxu0 0.0
    %766 = vmatprep.subr.mxu0 0.0
    %767 = vmatpush1.msra.mxu0 0.0
    %768 = vmatprep.subr.mxu0 0.0
    %769 = vmatpush1.msra.mxu0 0.0
    %770 = vmatprep.subr.mxu0 0.0
    %771 = vmatpush1.msra.mxu0 0.0
    %772 = vmatprep.subr.mxu0 0.0
    %773 = vmatpush1.msra.mxu0 0.0
    %774 = vmatprep.subr.mxu0 0.0
    %775 = vmatpush1.msra.mxu0 0.0
    %776 = vmatprep.subr.mxu0 0.0
    %777 = vmatpush1.msra.mxu0 0.0
    %778 = vmatprep.subr.mxu0 0.0
    %779 = vmatpush1.msra.mxu0 0.0
    %780 = vmatprep.subr.mxu0 0.0
    %781 = vmatpush1.msra.mxu0 0.0
    %782 = vmatprep.subr.mxu0 0.0
    %783 = vmatpush1.msra.mxu0 0.0
    %784 = vmatprep.subr.mxu0 0.0
    %785 = vmatpush1.msra.mxu0 0.0
    %786 = vmatprep.subr.mxu0 0.0
    %787 = vmatpush1.msra.mxu0 0.0
    %788 = vmatprep.subr.mxu0 0.0
    %789 = vmatpush1.msra.mxu0 0.0
    %790 = vmatprep.subr.mxu0 0.0
    %791 = vmatpush1.msra.mxu0 0.0
    %792 = vmatprep.subr.mxu0 0.0
    %793 = vmatpush1.msra.mxu0 0.0
    %794 = vmatprep.subr.mxu0 0.0
    %795 = vmatpush1.msra.mxu0 0.0
    %796 = vmatprep.subr.mxu0 0.0
    %797 = vmatpush1.msra.mxu0 0.0
    %798 = vmatprep.subr.mxu0 0.0
    %799 = vmatpush1.msra.mxu0 0.0
    %800 = vmatprep.subr.mxu0 0.0
    %801 = vmatpush1.msra.mxu0 0.0
    %802 = vmatprep.subr.mxu0 0.0
    %803 = vmatpush1.msra.mxu0 0.0
    %804 = vmatprep.subr.mxu0 0.0
    %805 = vmatpush1.msra.mxu0 0.0
    %806 = vmatprep.subr.mxu0 0.0
    %807 = vmatpush1.msra.mxu0 0.0
    %808 = vmatprep.subr.mxu0 0.0
    %809 = vmatpush1.msra.mxu0 0.0
    %810 = vmatprep.subr.mxu0 0.0
    %811 = vmatpush1.msra.mxu0 0.0
    %812 = vmatprep.mubr.f32.mxu0 0.0
    %813 = vmatmul.mubr.f32.gmra.mrb[0].mxu0 %v675
    %v814 = vpop.f32.mrb[0].mxu0
    %v815 = vadd.f32 %v670, %v814
    %v816 = vpop.f32.mrb[0].mxu0
    %817 = vdwg.mxu0
    %v818 = vadd.f32 %v414, %v744
    %v819 = vadd.f32 %v416, %v746
    %v820 = vxor.u32 %v818, 2147483648
    %v821 = vmul.f32 %v820, 1.442695
    %v822 = vpow.pop %v821
    %v823 = vadd.f32 %v822, 1.0
    %v824 = vrcp.pop %v823
    %v825 = vmul.f32 1.0, %v824
    %v826 = vxor.u32 %v819, 2147483648
    %v827 = vmul.f32 %v826, 1.442695
    %v828 = vpow.pop %v827
    %v829 = vadd.f32 %v828, 1.0
    %v830 = vrcp.pop %v829
    %v831 = vmul.f32 1.0, %v830
    %v832 = vmul.f32 %v825, %v815
    %v833 = vadd.f32 %v485, %v832
    %v834 = vtanh.pop %v833
    %v835 = vsub.f32 1.0, %v831
    %v836 = vmul.f32 %v835, %v834
    %v837 = vmul.f32 %v831, 0.0
    %v838 = vadd.f32 %v836, %v837
    %p839 = scmp.gt.s32.totalorder %s163, 0
    %s840 = scalar_select %p839, 1, 0
    %s841 = scvt.s32.f32 %s840
    %v842 = vstv %s841
    %v843 = vmul.f32 %v842, %v838
    %s844 = ssub.f32 1.0, %s841
    %v845 = vstv %s844
    %v846 = vmul.f32 %v845, 0.0
    %v847 = vadd.f32 %v843, %v846
    %v848 = vmul.f32 %v842, %v847
    %v850 = vsel %vm343, %v847, 0
    %852 = vmatprep.subr.mxu0 %v181
    %853 = vmatpush1.msra.mxu0 %v180
    %854 = vmatprep.subr.mxu0 %v184
    %855 = vmatpush1.msra.mxu0 %v183
    %856 = vmatprep.subr.mxu0 %v187
    %857 = vmatpush1.msra.mxu0 %v186
    %858 = vmatprep.subr.mxu0 %v190
    %859 = vmatpush1.msra.mxu0 %v189
    %860 = vmatprep.subr.mxu0 0.0
    %861 = vmatpush1.msra.mxu0 0.0
    %862 = vmatprep.subr.mxu0 0.0
    %863 = vmatpush1.msra.mxu0 0.0
    %864 = vmatprep.subr.mxu0 0.0
    %865 = vmatpush1.msra.mxu0 0.0
    %866 = vmatprep.subr.mxu0 0.0
    %867 = vmatpush1.msra.mxu0 0.0
    %868 = vmatprep.subr.mxu0 0.0
    %869 = vmatpush1.msra.mxu0 0.0
    %870 = vmatprep.subr.mxu0 0.0
    %871 = vmatpush1.msra.mxu0 0.0
    %872 = vmatprep.subr.mxu0 0.0
    %873 = vmatpush1.msra.mxu0 0.0
    %874 = vmatprep.subr.mxu0 0.0
    %875 = vmatpush1.msra.mxu0 0.0
    %876 = vmatprep.subr.mxu0 0.0
    %877 = vmatpush1.msra.mxu0 0.0
    %878 = vmatprep.subr.mxu0 0.0
    %879 = vmatpush1.msra.mxu0 0.0
    %880 = vmatprep.subr.mxu0 0.0
    %881 = vmatpush1.msra.mxu0 0.0
    %882 = vmatprep.subr.mxu0 0.0
    %883 = vmatpush1.msra.mxu0 0.0
    %884 = vmatprep.subr.mxu0 0.0
    %885 = vmatpush1.msra.mxu0 0.0
    %886 = vmatprep.subr.mxu0 0.0
    %887 = vmatpush1.msra.mxu0 0.0
    %888 = vmatprep.subr.mxu0 0.0
    %889 = vmatpush1.msra.mxu0 0.0
    %890 = vmatprep.subr.mxu0 0.0
    %891 = vmatpush1.msra.mxu0 0.0
    %892 = vmatprep.subr.mxu0 0.0
    %893 = vmatpush1.msra.mxu0 0.0
    %894 = vmatprep.subr.mxu0 0.0
    %895 = vmatpush1.msra.mxu0 0.0
    %896 = vmatprep.subr.mxu0 0.0
    %897 = vmatpush1.msra.mxu0 0.0
    %898 = vmatprep.subr.mxu0 0.0
    %899 = vmatpush1.msra.mxu0 0.0
    %900 = vmatprep.subr.mxu0 0.0
    %901 = vmatpush1.msra.mxu0 0.0
    %902 = vmatprep.subr.mxu0 0.0
    %903 = vmatpush1.msra.mxu0 0.0
    %904 = vmatprep.subr.mxu0 0.0
    %905 = vmatpush1.msra.mxu0 0.0
    %906 = vmatprep.subr.mxu0 0.0
    %907 = vmatpush1.msra.mxu0 0.0
    %908 = vmatprep.subr.mxu0 0.0
    %909 = vmatpush1.msra.mxu0 0.0
    %910 = vmatprep.subr.mxu0 0.0
    %911 = vmatpush1.msra.mxu0 0.0
    %912 = vmatprep.subr.mxu0 0.0
    %913 = vmatpush1.msra.mxu0 0.0
    %914 = vmatprep.subr.mxu0 0.0
    %915 = vmatpush1.msra.mxu0 0.0
    %916 = vmatprep.mubr.f32.mxu0 0.0
    %917 = vmatmul.mubr.f32.gmra.mrb[0].mxu0 %v850
    %v918 = vpop.f32.mrb[0].mxu0
    %v919 = vadd.f32 %v662, %v918
    %v920 = vpop.f32.mrb[0].mxu0
    %v921 = vadd.f32 %v666, %v920
    %922 = vdwg.mxu0
    %923 = vmatprep.subr.mxu0 0.0
    %924 = vmatpush1.msra.mxu0 %v182
    %925 = vmatprep.subr.mxu0 0.0
    %926 = vmatpush1.msra.mxu0 %v185
    %927 = vmatprep.subr.mxu0 0.0
    %928 = vmatpush1.msra.mxu0 %v188
    %929 = vmatprep.subr.mxu0 0.0
    %930 = vmatpush1.msra.mxu0 %v191
    %931 = vmatprep.subr.mxu0 0.0
    %932 = vmatpush1.msra.mxu0 0.0
    %933 = vmatprep.subr.mxu0 0.0
    %934 = vmatpush1.msra.mxu0 0.0
    %935 = vmatprep.subr.mxu0 0.0
    %936 = vmatpush1.msra.mxu0 0.0
    %937 = vmatprep.subr.mxu0 0.0
    %938 = vmatpush1.msra.mxu0 0.0
    %939 = vmatprep.subr.mxu0 0.0
    %940 = vmatpush1.msra.mxu0 0.0
    %941 = vmatprep.subr.mxu0 0.0
    %942 = vmatpush1.msra.mxu0 0.0
    %943 = vmatprep.subr.mxu0 0.0
    %944 = vmatpush1.msra.mxu0 0.0
    %945 = vmatprep.subr.mxu0 0.0
    %946 = vmatpush1.msra.mxu0 0.0
    %947 = vmatprep.subr.mxu0 0.0
    %948 = vmatpush1.msra.mxu0 0.0
    %949 = vmatprep.subr.mxu0 0.0
    %950 = vmatpush1.msra.mxu0 0.0
    %951 = vmatprep.subr.mxu0 0.0
    %952 = vmatpush1.msra.mxu0 0.0
    %953 = vmatprep.subr.mxu0 0.0
    %954 = vmatpush1.msra.mxu0 0.0
    %955 = vmatprep.subr.mxu0 0.0
    %956 = vmatpush1.msra.mxu0 0.0
    %957 = vmatprep.subr.mxu0 0.0
    %958 = vmatpush1.msra.mxu0 0.0
    %959 = vmatprep.subr.mxu0 0.0
    %960 = vmatpush1.msra.mxu0 0.0
    %961 = vmatprep.subr.mxu0 0.0
    %962 = vmatpush1.msra.mxu0 0.0
    %963 = vmatprep.subr.mxu0 0.0
    %964 = vmatpush1.msra.mxu0 0.0
    %965 = vmatprep.subr.mxu0 0.0
    %966 = vmatpush1.msra.mxu0 0.0
    %967 = vmatprep.subr.mxu0 0.0
    %968 = vmatpush1.msra.mxu0 0.0
    %969 = vmatprep.subr.mxu0 0.0
    %970 = vmatpush1.msra.mxu0 0.0
    %971 = vmatprep.subr.mxu0 0.0
    %972 = vmatpush1.msra.mxu0 0.0
    %973 = vmatprep.subr.mxu0 0.0
    %974 = vmatpush1.msra.mxu0 0.0
    %975 = vmatprep.subr.mxu0 0.0
    %976 = vmatpush1.msra.mxu0 0.0
    %977 = vmatprep.subr.mxu0 0.0
    %978 = vmatpush1.msra.mxu0 0.0
    %979 = vmatprep.subr.mxu0 0.0
    %980 = vmatpush1.msra.mxu0 0.0
    %981 = vmatprep.subr.mxu0 0.0
    %982 = vmatpush1.msra.mxu0 0.0
    %983 = vmatprep.subr.mxu0 0.0
    %984 = vmatpush1.msra.mxu0 0.0
    %985 = vmatprep.subr.mxu0 0.0
    %986 = vmatpush1.msra.mxu0 0.0
    %987 = vmatprep.mubr.f32.mxu0 0.0
    %988 = vmatmul.mubr.f32.gmra.mrb[0].mxu0 %v850
    %v989 = vpop.f32.mrb[0].mxu0
    %v990 = vadd.f32 %v670, %v989
    %v991 = vpop.f32.mrb[0].mxu0
    %992 = vdwg.mxu0
    %v995 = vrot.slane %v919, 7
    %v996 = vrot.slane %v921, 7
    %v999 = vadd.f32 %v414, %v995
    %v1000 = vadd.f32 %v416, %v996
    %v1001 = vxor.u32 %v999, 2147483648
    %v1002 = vmul.f32 %v1001, 1.442695
    %v1003 = vpow.pop %v1002
    %v1004 = vadd.f32 %v1003, 1.0
    %v1005 = vrcp.pop %v1004
    %v1006 = vmul.f32 1.0, %v1005
    %v1007 = vxor.u32 %v1000, 2147483648
    %v1008 = vmul.f32 %v1007, 1.442695
    %v1009 = vpow.pop %v1008
    %v1010 = vadd.f32 %v1009, 1.0
    %v1011 = vrcp.pop %v1010
    %v1012 = vmul.f32 1.0, %v1011
    %v1014 = vrot.slane %v990, 7
    %v1016 = vmul.f32 %v1006, %v1014
    %v1017 = vadd.f32 %v485, %v1016
    %v1018 = vtanh.pop %v1017
    %v1019 = vsub.f32 1.0, %v1012
    %v1020 = vmul.f32 %v1019, %v1018
    %v1021 = vrot.slane %v847, 7
    %v1023 = vmul.f32 %v1012, %v1021
    %v1024 = vadd.f32 %v1020, %v1023
    %p1025 = scmp.gt.s32.totalorder %s163, 1
    %s1026 = scalar_select %p1025, 1, 0
    %s1027 = scvt.s32.f32 %s1026
    %v1028 = vstv %s1027
    %v1029 = vmul.f32 %v1028, %v1024
    %s1030 = ssub.f32 1.0, %s1027
    %v1031 = vstv %s1030
    %v1032 = vmul.f32 %v1031, %v847
    %v1034 = vrot.slane %v1032, 7
    %v1036 = vadd.f32 %v1029, %v1034
    %v1037 = vmul.f32 %v1028, %v1036
    %v1039 = vrot.slane %v1036, 1
    %v1040 = vsel %vm343, %v1039, 0
    %1042 = vmatprep.subr.mxu0 %v181
    %1043 = vmatpush1.msra.mxu0 %v180
    %1044 = vmatprep.subr.mxu0 %v184
    %1045 = vmatpush1.msra.mxu0 %v183
    %1046 = vmatprep.subr.mxu0 %v187
    %1047 = vmatpush1.msra.mxu0 %v186
    %1048 = vmatprep.subr.mxu0 %v190
    %1049 = vmatpush1.msra.mxu0 %v189
    %1050 = vmatprep.subr.mxu0 0.0
    %1051 = vmatpush1.msra.mxu0 0.0
    %1052 = vmatprep.subr.mxu0 0.0
    %1053 = vmatpush1.msra.mxu0 0.0
    %1054 = vmatprep.subr.mxu0 0.0
    %1055 = vmatpush1.msra.mxu0 0.0
    %1056 = vmatprep.subr.mxu0 0.0
    %1057 = vmatpush1.msra.mxu0 0.0
    %1058 = vmatprep.subr.mxu0 0.0
    %1059 = vmatpush1.msra.mxu0 0.0
    %1060 = vmatprep.subr.mxu0 0.0
    %1061 = vmatpush1.msra.mxu0 0.0
    %1062 = vmatprep.subr.mxu0 0.0
    %1063 = vmatpush1.msra.mxu0 0.0
    %1064 = vmatprep.subr.mxu0 0.0
    %1065 = vmatpush1.msra.mxu0 0.0
    %1066 = vmatprep.subr.mxu0 0.0
    %1067 = vmatpush1.msra.mxu0 0.0
    %1068 = vmatprep.subr.mxu0 0.0
    %1069 = vmatpush1.msra.mxu0 0.0
    %1070 = vmatprep.subr.mxu0 0.0
    %1071 = vmatpush1.msra.mxu0 0.0
    %1072 = vmatprep.subr.mxu0 0.0
    %1073 = vmatpush1.msra.mxu0 0.0
    %1074 = vmatprep.subr.mxu0 0.0
    %1075 = vmatpush1.msra.mxu0 0.0
    %1076 = vmatprep.subr.mxu0 0.0
    %1077 = vmatpush1.msra.mxu0 0.0
    %1078 = vmatprep.subr.mxu0 0.0
    %1079 = vmatpush1.msra.mxu0 0.0
    %1080 = vmatprep.subr.mxu0 0.0
    %1081 = vmatpush1.msra.mxu0 0.0
    %1082 = vmatprep.subr.mxu0 0.0
    %1083 = vmatpush1.msra.mxu0 0.0
    %1084 = vmatprep.subr.mxu0 0.0
    %1085 = vmatpush1.msra.mxu0 0.0
    %1086 = vmatprep.subr.mxu0 0.0
    %1087 = vmatpush1.msra.mxu0 0.0
    %1088 = vmatprep.subr.mxu0 0.0
    %1089 = vmatpush1.msra.mxu0 0.0
    %1090 = vmatprep.subr.mxu0 0.0
    %1091 = vmatpush1.msra.mxu0 0.0
    %1092 = vmatprep.subr.mxu0 0.0
    %1093 = vmatpush1.msra.mxu0 0.0
    %1094 = vmatprep.subr.mxu0 0.0
    %1095 = vmatpush1.msra.mxu0 0.0
    %1096 = vmatprep.subr.mxu0 0.0
    %1097 = vmatpush1.msra.mxu0 0.0
    %1098 = vmatprep.subr.mxu0 0.0
    %1099 = vmatpush1.msra.mxu0 0.0
    %1100 = vmatprep.subr.mxu0 0.0
    %1101 = vmatpush1.msra.mxu0 0.0
    %1102 = vmatprep.subr.mxu0 0.0
    %1103 = vmatpush1.msra.mxu0 0.0
    %1104 = vmatprep.subr.mxu0 0.0
    %1105 = vmatpush1.msra.mxu0 0.0
    %1106 = vmatprep.mubr.f32.mxu0 0.0
    %1107 = vmatmul.mubr.f32.gmra.mrb[0].mxu0 %v1040
    %v1108 = vpop.f32.mrb[0].mxu0
    %v1109 = vadd.f32 %v662, %v1108
    %v1110 = vpop.f32.mrb[0].mxu0
    %v1111 = vadd.f32 %v666, %v1110
    %1112 = vdwg.mxu0
    %1113 = vmatprep.subr.mxu0 0.0
    %1114 = vmatpush1.msra.mxu0 %v182
    %1115 = vmatprep.subr.mxu0 0.0
    %1116 = vmatpush1.msra.mxu0 %v185
    %1117 = vmatprep.subr.mxu0 0.0
    %1118 = vmatpush1.msra.mxu0 %v188
    %1119 = vmatprep.subr.mxu0 0.0
    %1120 = vmatpush1.msra.mxu0 %v191
    %1121 = vmatprep.subr.mxu0 0.0
    %1122 = vmatpush1.msra.mxu0 0.0
    %1123 = vmatprep.subr.mxu0 0.0
    %1124 = vmatpush1.msra.mxu0 0.0
    %1125 = vmatprep.subr.mxu0 0.0
    %1126 = vmatpush1.msra.mxu0 0.0
    %1127 = vmatprep.subr.mxu0 0.0
    %1128 = vmatpush1.msra.mxu0 0.0
    %1129 = vmatprep.subr.mxu0 0.0
    %1130 = vmatpush1.msra.mxu0 0.0
    %1131 = vmatprep.subr.mxu0 0.0
    %1132 = vmatpush1.msra.mxu0 0.0
    %1133 = vmatprep.subr.mxu0 0.0
    %1134 = vmatpush1.msra.mxu0 0.0
    %1135 = vmatprep.subr.mxu0 0.0
    %1136 = vmatpush1.msra.mxu0 0.0
    %1137 = vmatprep.subr.mxu0 0.0
    %1138 = vmatpush1.msra.mxu0 0.0
    %1139 = vmatprep.subr.mxu0 0.0
    %1140 = vmatpush1.msra.mxu0 0.0
    %1141 = vmatprep.subr.mxu0 0.0
    %1142 = vmatpush1.msra.mxu0 0.0
    %1143 = vmatprep.subr.mxu0 0.0
    %1144 = vmatpush1.msra.mxu0 0.0
    %1145 = vmatprep.subr.mxu0 0.0
    %1146 = vmatpush1.msra.mxu0 0.0
    %1147 = vmatprep.subr.mxu0 0.0
    %1148 = vmatpush1.msra.mxu0 0.0
    %1149 = vmatprep.subr.mxu0 0.0
    %1150 = vmatpush1.msra.mxu0 0.0
    %1151 = vmatprep.subr.mxu0 0.0
    %1152 = vmatpush1.msra.mxu0 0.0
    %1153 = vmatprep.subr.mxu0 0.0
    %1154 = vmatpush1.msra.mxu0 0.0
    %1155 = vmatprep.subr.mxu0 0.0
    %1156 = vmatpush1.msra.mxu0 0.0
    %1157 = vmatprep.subr.mxu0 0.0
    %1158 = vmatpush1.msra.mxu0 0.0
    %1159 = vmatprep.subr.mxu0 0.0
    %1160 = vmatpush1.msra.mxu0 0.0
    %1161 = vmatprep.subr.mxu0 0.0
    %1162 = vmatpush1.msra.mxu0 0.0
    %1163 = vmatprep.subr.mxu0 0.0
    %1164 = vmatpush1.msra.mxu0 0.0
    %1165 = vmatprep.subr.mxu0 0.0
    %1166 = vmatpush1.msra.mxu0 0.0
    %1167 = vmatprep.subr.mxu0 0.0
    %1168 = vmatpush1.msra.mxu0 0.0
    %1169 = vmatprep.subr.mxu0 0.0
    %1170 = vmatpush1.msra.mxu0 0.0
    %1171 = vmatprep.subr.mxu0 0.0
    %1172 = vmatpush1.msra.mxu0 0.0
    %1173 = vmatprep.subr.mxu0 0.0
    %1174 = vmatpush1.msra.mxu0 0.0
    %1175 = vmatprep.subr.mxu0 0.0
    %1176 = vmatpush1.msra.mxu0 0.0
    %1177 = vmatprep.mubr.f32.mxu0 0.0
    %1178 = vmatmul.mubr.f32.gmra.mrb[0].mxu0 %v1040
    %v1179 = vpop.f32.mrb[0].mxu0
    %v1180 = vadd.f32 %v670, %v1179
    %v1181 = vpop.f32.mrb[0].mxu0
    %1182 = vdwg.mxu0
    %v1185 = vrot.slane %v1109, 6
    %v1186 = vrot.slane %v1111, 6
    %v1189 = vadd.f32 %v414, %v1185
    %v1190 = vadd.f32 %v416, %v1186
    %v1191 = vxor.u32 %v1189, 2147483648
    %v1192 = vmul.f32 %v1191, 1.442695
    %v1193 = vpow.pop %v1192
    %v1194 = vadd.f32 %v1193, 1.0
    %v1195 = vrcp.pop %v1194
    %v1196 = vmul.f32 1.0, %v1195
    %v1197 = vxor.u32 %v1190, 2147483648
    %v1198 = vmul.f32 %v1197, 1.442695
    %v1199 = vpow.pop %v1198
    %v1200 = vadd.f32 %v1199, 1.0
    %v1201 = vrcp.pop %v1200
    %v1202 = vmul.f32 1.0, %v1201
    %v1204 = vrot.slane %v1180, 6
    %v1206 = vmul.f32 %v1196, %v1204
    %v1207 = vadd.f32 %v485, %v1206
    %v1208 = vtanh.pop %v1207
    %v1209 = vsub.f32 1.0, %v1202
    %v1210 = vmul.f32 %v1209, %v1208
    %v1211 = vrot.slane %v1036, 7
    %v1213 = vmul.f32 %v1202, %v1211
    %v1214 = vadd.f32 %v1210, %v1213
    %p1215 = scmp.gt.s32.totalorder %s163, 2
    %s1216 = scalar_select %p1215, 1, 0
    %s1217 = scvt.s32.f32 %s1216
    %v1218 = vstv %s1217
    %v1219 = vmul.f32 %v1218, %v1214
    %s1220 = ssub.f32 1.0, %s1217
    %v1221 = vstv %s1220
    %v1222 = vmul.f32 %v1221, %v1036
    %v1224 = vrot.slane %v1222, 7
    %v1226 = vadd.f32 %v1219, %v1224
    %v1227 = vmul.f32 %v1218, %v1226
    %v1229 = vrot.slane %v1226, 2
    %v1230 = vsel %vm343, %v1229, 0
    %1232 = vmatprep.subr.mxu0 %v181
    %1233 = vmatpush1.msra.mxu0 %v180
    %1234 = vmatprep.subr.mxu0 %v184
    %1235 = vmatpush1.msra.mxu0 %v183
    %1236 = vmatprep.subr.mxu0 %v187
    %1237 = vmatpush1.msra.mxu0 %v186
    %1238 = vmatprep.subr.mxu0 %v190
    %1239 = vmatpush1.msra.mxu0 %v189
    %1240 = vmatprep.subr.mxu0 0.0
    %1241 = vmatpush1.msra.mxu0 0.0
    %1242 = vmatprep.subr.mxu0 0.0
    %1243 = vmatpush1.msra.mxu0 0.0
    %1244 = vmatprep.subr.mxu0 0.0
    %1245 = vmatpush1.msra.mxu0 0.0
    %1246 = vmatprep.subr.mxu0 0.0
    %1247 = vmatpush1.msra.mxu0 0.0
    %1248 = vmatprep.subr.mxu0 0.0
    %1249 = vmatpush1.msra.mxu0 0.0
    %1250 = vmatprep.subr.mxu0 0.0
    %1251 = vmatpush1.msra.mxu0 0.0
    %1252 = vmatprep.subr.mxu0 0.0
    %1253 = vmatpush1.msra.mxu0 0.0
    %1254 = vmatprep.subr.mxu0 0.0
    %1255 = vmatpush1.msra.mxu0 0.0
    %1256 = vmatprep.subr.mxu0 0.0
    %1257 = vmatpush1.msra.mxu0 0.0
    %1258 = vmatprep.subr.mxu0 0.0
    %1259 = vmatpush1.msra.mxu0 0.0
    %1260 = vmatprep.subr.mxu0 0.0
    %1261 = vmatpush1.msra.mxu0 0.0
    %1262 = vmatprep.subr.mxu0 0.0
    %1263 = vmatpush1.msra.mxu0 0.0
    %1264 = vmatprep.subr.mxu0 0.0
    %1265 = vmatpush1.msra.mxu0 0.0
    %1266 = vmatprep.subr.mxu0 0.0
    %1267 = vmatpush1.msra.mxu0 0.0
    %1268 = vmatprep.subr.mxu0 0.0
    %1269 = vmatpush1.msra.mxu0 0.0
    %1270 = vmatprep.subr.mxu0 0.0
    %1271 = vmatpush1.msra.mxu0 0.0
    %1272 = vmatprep.subr.mxu0 0.0
    %1273 = vmatpush1.msra.mxu0 0.0
    %1274 = vmatprep.subr.mxu0 0.0
    %1275 = vmatpush1.msra.mxu0 0.0
    %1276 = vmatprep.subr.mxu0 0.0
    %1277 = vmatpush1.msra.mxu0 0.0
    %1278 = vmatprep.subr.mxu0 0.0
    %1279 = vmatpush1.msra.mxu0 0.0
    %1280 = vmatprep.subr.mxu0 0.0
    %1281 = vmatpush1.msra.mxu0 0.0
    %1282 = vmatprep.subr.mxu0 0.0
    %1283 = vmatpush1.msra.mxu0 0.0
    %1284 = vmatprep.subr.mxu0 0.0
    %1285 = vmatpush1.msra.mxu0 0.0
    %1286 = vmatprep.subr.mxu0 0.0
    %1287 = vmatpush1.msra.mxu0 0.0
    %1288 = vmatprep.subr.mxu0 0.0
    %1289 = vmatpush1.msra.mxu0 0.0
    %1290 = vmatprep.subr.mxu0 0.0
    %1291 = vmatpush1.msra.mxu0 0.0
    %1292 = vmatprep.subr.mxu0 0.0
    %1293 = vmatpush1.msra.mxu0 0.0
    %1294 = vmatprep.subr.mxu0 0.0
    %1295 = vmatpush1.msra.mxu0 0.0
    %1296 = vmatprep.mubr.f32.mxu0 0.0
    %1297 = vmatmul.mubr.f32.gmra.mrb[0].mxu0 %v1230
    %v1298 = vpop.f32.mrb[0].mxu0
    %v1299 = vadd.f32 %v662, %v1298
    %v1300 = vpop.f32.mrb[0].mxu0
    %v1301 = vadd.f32 %v666, %v1300
    %1302 = vdwg.mxu0
    %1303 = vmatprep.subr.mxu0 0.0
    %1304 = vmatpush1.msra.mxu0 %v182
    %1305 = vmatprep.subr.mxu0 0.0
    %1306 = vmatpush1.msra.mxu0 %v185
    %1307 = vmatprep.subr.mxu0 0.0
    %1308 = vmatpush1.msra.mxu0 %v188
    %1309 = vmatprep.subr.mxu0 0.0
    %1310 = vmatpush1.msra.mxu0 %v191
    %1311 = vmatprep.subr.mxu0 0.0
    %1312 = vmatpush1.msra.mxu0 0.0
    %1313 = vmatprep.subr.mxu0 0.0
    %1314 = vmatpush1.msra.mxu0 0.0
    %1315 = vmatprep.subr.mxu0 0.0
    %1316 = vmatpush1.msra.mxu0 0.0
    %1317 = vmatprep.subr.mxu0 0.0
    %1318 = vmatpush1.msra.mxu0 0.0
    %1319 = vmatprep.subr.mxu0 0.0
    %1320 = vmatpush1.msra.mxu0 0.0
    %1321 = vmatprep.subr.mxu0 0.0
    %1322 = vmatpush1.msra.mxu0 0.0
    %1323 = vmatprep.subr.mxu0 0.0
    %1324 = vmatpush1.msra.mxu0 0.0
    %1325 = vmatprep.subr.mxu0 0.0
    %1326 = vmatpush1.msra.mxu0 0.0
    %1327 = vmatprep.subr.mxu0 0.0
    %1328 = vmatpush1.msra.mxu0 0.0
    %1329 = vmatprep.subr.mxu0 0.0
    %1330 = vmatpush1.msra.mxu0 0.0
    %1331 = vmatprep.subr.mxu0 0.0
    %1332 = vmatpush1.msra.mxu0 0.0
    %1333 = vmatprep.subr.mxu0 0.0
    %1334 = vmatpush1.msra.mxu0 0.0
    %1335 = vmatprep.subr.mxu0 0.0
    %1336 = vmatpush1.msra.mxu0 0.0
    %1337 = vmatprep.subr.mxu0 0.0
    %1338 = vmatpush1.msra.mxu0 0.0
    %1339 = vmatprep.subr.mxu0 0.0
    %1340 = vmatpush1.msra.mxu0 0.0
    %1341 = vmatprep.subr.mxu0 0.0
    %1342 = vmatpush1.msra.mxu0 0.0
    %1343 = vmatprep.subr.mxu0 0.0
    %1344 = vmatpush1.msra.mxu0 0.0
    %1345 = vmatprep.subr.mxu0 0.0
    %1346 = vmatpush1.msra.mxu0 0.0
    %1347 = vmatprep.subr.mxu0 0.0
    %1348 = vmatpush1.msra.mxu0 0.0
    %1349 = vmatprep.subr.mxu0 0.0
    %1350 = vmatpush1.msra.mxu0 0.0
    %1351 = vmatprep.subr.mxu0 0.0
    %1352 = vmatpush1.msra.mxu0 0.0
    %1353 = vmatprep.subr.mxu0 0.0
    %1354 = vmatpush1.msra.mxu0 0.0
    %1355 = vmatprep.subr.mxu0 0.0
    %1356 = vmatpush1.msra.mxu0 0.0
    %1357 = vmatprep.subr.mxu0 0.0
    %1358 = vmatpush1.msra.mxu0 0.0
    %1359 = vmatprep.subr.mxu0 0.0
    %1360 = vmatpush1.msra.mxu0 0.0
    %1361 = vmatprep.subr.mxu0 0.0
    %1362 = vmatpush1.msra.mxu0 0.0
    %1363 = vmatprep.subr.mxu0 0.0
    %1364 = vmatpush1.msra.mxu0 0.0
    %1365 = vmatprep.subr.mxu0 0.0
    %1366 = vmatpush1.msra.mxu0 0.0
    %1367 = vmatprep.mubr.f32.mxu0 0.0
    %1368 = vmatmul.mubr.f32.gmra.mrb[0].mxu0 %v1230
    %v1369 = vpop.f32.mrb[0].mxu0
    %v1370 = vadd.f32 %v670, %v1369
    %v1371 = vpop.f32.mrb[0].mxu0
    %1372 = vdwg.mxu0
    %v1375 = vrot.slane %v1299, 5
    %v1376 = vrot.slane %v1301, 5
    %v1379 = vadd.f32 %v414, %v1375
    %v1380 = vadd.f32 %v416, %v1376
    %v1381 = vxor.u32 %v1379, 2147483648
    %v1382 = vmul.f32 %v1381, 1.442695
    %v1383 = vpow.pop %v1382
    %v1384 = vadd.f32 %v1383, 1.0
    %v1385 = vrcp.pop %v1384
    %v1386 = vmul.f32 1.0, %v1385
    %v1387 = vxor.u32 %v1380, 2147483648
    %v1388 = vmul.f32 %v1387, 1.442695
    %v1389 = vpow.pop %v1388
    %v1390 = vadd.f32 %v1389, 1.0
    %v1391 = vrcp.pop %v1390
    %v1392 = vmul.f32 1.0, %v1391
    %v1394 = vrot.slane %v1370, 5
    %v1396 = vmul.f32 %v1386, %v1394
    %v1397 = vadd.f32 %v485, %v1396
    %v1398 = vtanh.pop %v1397
    %v1399 = vsub.f32 1.0, %v1392
    %v1400 = vmul.f32 %v1399, %v1398
    %v1401 = vrot.slane %v1226, 7
    %v1403 = vmul.f32 %v1392, %v1401
    %v1404 = vadd.f32 %v1400, %v1403
    %p1405 = scmp.gt.s32.totalorder %s163, 3
    %s1406 = scalar_select %p1405, 1, 0
    %s1407 = scvt.s32.f32 %s1406
    %v1408 = vstv %s1407
    %v1409 = vmul.f32 %v1408, %v1404
    %s1410 = ssub.f32 1.0, %s1407
    %v1411 = vstv %s1410
    %v1412 = vmul.f32 %v1411, %v1226
    %v1414 = vrot.slane %v1412, 7
    %v1416 = vadd.f32 %v1409, %v1414
    %v1417 = vmul.f32 %v1408, %v1416
    %v1419 = vrot.slane %v1416, 3
    %v1420 = vsel %vm343, %v1419, 0
    %1422 = vmatprep.subr.mxu0 %v181
    %1423 = vmatpush1.msra.mxu0 %v180
    %1424 = vmatprep.subr.mxu0 %v184
    %1425 = vmatpush1.msra.mxu0 %v183
    %1426 = vmatprep.subr.mxu0 %v187
    %1427 = vmatpush1.msra.mxu0 %v186
    %1428 = vmatprep.subr.mxu0 %v190
    %1429 = vmatpush1.msra.mxu0 %v189
    %1430 = vmatprep.subr.mxu0 0.0
    %1431 = vmatpush1.msra.mxu0 0.0
    %1432 = vmatprep.subr.mxu0 0.0
    %1433 = vmatpush1.msra.mxu0 0.0
    %1434 = vmatprep.subr.mxu0 0.0
    %1435 = vmatpush1.msra.mxu0 0.0
    %1436 = vmatprep.subr.mxu0 0.0
    %1437 = vmatpush1.msra.mxu0 0.0
    %1438 = vmatprep.subr.mxu0 0.0
    %1439 = vmatpush1.msra.mxu0 0.0
    %1440 = vmatprep.subr.mxu0 0.0
    %1441 = vmatpush1.msra.mxu0 0.0
    %1442 = vmatprep.subr.mxu0 0.0
    %1443 = vmatpush1.msra.mxu0 0.0
    %1444 = vmatprep.subr.mxu0 0.0
    %1445 = vmatpush1.msra.mxu0 0.0
    %1446 = vmatprep.subr.mxu0 0.0
    %1447 = vmatpush1.msra.mxu0 0.0
    %1448 = vmatprep.subr.mxu0 0.0
    %1449 = vmatpush1.msra.mxu0 0.0
    %1450 = vmatprep.subr.mxu0 0.0
    %1451 = vmatpush1.msra.mxu0 0.0
    %1452 = vmatprep.subr.mxu0 0.0
    %1453 = vmatpush1.msra.mxu0 0.0
    %1454 = vmatprep.subr.mxu0 0.0
    %1455 = vmatpush1.msra.mxu0 0.0
    %1456 = vmatprep.subr.mxu0 0.0
    %1457 = vmatpush1.msra.mxu0 0.0
    %1458 = vmatprep.subr.mxu0 0.0
    %1459 = vmatpush1.msra.mxu0 0.0
    %1460 = vmatprep.subr.mxu0 0.0
    %1461 = vmatpush1.msra.mxu0 0.0
    %1462 = vmatprep.subr.mxu0 0.0
    %1463 = vmatpush1.msra.mxu0 0.0
    %1464 = vmatprep.subr.mxu0 0.0
    %1465 = vmatpush1.msra.mxu0 0.0
    %1466 = vmatprep.subr.mxu0 0.0
    %1467 = vmatpush1.msra.mxu0 0.0
    %1468 = vmatprep.subr.mxu0 0.0
    %1469 = vmatpush1.msra.mxu0 0.0
    %1470 = vmatprep.subr.mxu0 0.0
    %1471 = vmatpush1.msra.mxu0 0.0
    %1472 = vmatprep.subr.mxu0 0.0
    %1473 = vmatpush1.msra.mxu0 0.0
    %1474 = vmatprep.subr.mxu0 0.0
    %1475 = vmatpush1.msra.mxu0 0.0
    %1476 = vmatprep.subr.mxu0 0.0
    %1477 = vmatpush1.msra.mxu0 0.0
    %1478 = vmatprep.subr.mxu0 0.0
    %1479 = vmatpush1.msra.mxu0 0.0
    %1480 = vmatprep.subr.mxu0 0.0
    %1481 = vmatpush1.msra.mxu0 0.0
    %1482 = vmatprep.subr.mxu0 0.0
    %1483 = vmatpush1.msra.mxu0 0.0
    %1484 = vmatprep.subr.mxu0 0.0
    %1485 = vmatpush1.msra.mxu0 0.0
    %1486 = vmatprep.mubr.f32.mxu0 0.0
    %1487 = vmatmul.mubr.f32.gmra.mrb[0].mxu0 %v1420
    %v1488 = vpop.f32.mrb[0].mxu0
    %v1489 = vadd.f32 %v662, %v1488
    %v1490 = vpop.f32.mrb[0].mxu0
    %v1491 = vadd.f32 %v666, %v1490
    %1492 = vdwg.mxu0
    %1493 = vmatprep.subr.mxu0 0.0
    %1494 = vmatpush1.msra.mxu0 %v182
    %1495 = vmatprep.subr.mxu0 0.0
    %1496 = vmatpush1.msra.mxu0 %v185
    %1497 = vmatprep.subr.mxu0 0.0
    %1498 = vmatpush1.msra.mxu0 %v188
    %1499 = vmatprep.subr.mxu0 0.0
    %1500 = vmatpush1.msra.mxu0 %v191
    %1501 = vmatprep.subr.mxu0 0.0
    %1502 = vmatpush1.msra.mxu0 0.0
    %1503 = vmatprep.subr.mxu0 0.0
    %1504 = vmatpush1.msra.mxu0 0.0
    %1505 = vmatprep.subr.mxu0 0.0
    %1506 = vmatpush1.msra.mxu0 0.0
    %1507 = vmatprep.subr.mxu0 0.0
    %1508 = vmatpush1.msra.mxu0 0.0
    %1509 = vmatprep.subr.mxu0 0.0
    %1510 = vmatpush1.msra.mxu0 0.0
    %1511 = vmatprep.subr.mxu0 0.0
    %1512 = vmatpush1.msra.mxu0 0.0
    %1513 = vmatprep.subr.mxu0 0.0
    %1514 = vmatpush1.msra.mxu0 0.0
    %1515 = vmatprep.subr.mxu0 0.0
    %1516 = vmatpush1.msra.mxu0 0.0
    %1517 = vmatprep.subr.mxu0 0.0
    %1518 = vmatpush1.msra.mxu0 0.0
    %1519 = vmatprep.subr.mxu0 0.0
    %1520 = vmatpush1.msra.mxu0 0.0
    %1521 = vmatprep.subr.mxu0 0.0
    %1522 = vmatpush1.msra.mxu0 0.0
    %1523 = vmatprep.subr.mxu0 0.0
    %1524 = vmatpush1.msra.mxu0 0.0
    %1525 = vmatprep.subr.mxu0 0.0
    %1526 = vmatpush1.msra.mxu0 0.0
    %1527 = vmatprep.subr.mxu0 0.0
    %1528 = vmatpush1.msra.mxu0 0.0
    %1529 = vmatprep.subr.mxu0 0.0
    %1530 = vmatpush1.msra.mxu0 0.0
    %1531 = vmatprep.subr.mxu0 0.0
    %1532 = vmatpush1.msra.mxu0 0.0
    %1533 = vmatprep.subr.mxu0 0.0
    %1534 = vmatpush1.msra.mxu0 0.0
    %1535 = vmatprep.subr.mxu0 0.0
    %1536 = vmatpush1.msra.mxu0 0.0
    %1537 = vmatprep.subr.mxu0 0.0
    %1538 = vmatpush1.msra.mxu0 0.0
    %1539 = vmatprep.subr.mxu0 0.0
    %1540 = vmatpush1.msra.mxu0 0.0
    %1541 = vmatprep.subr.mxu0 0.0
    %1542 = vmatpush1.msra.mxu0 0.0
    %1543 = vmatprep.subr.mxu0 0.0
    %1544 = vmatpush1.msra.mxu0 0.0
    %1545 = vmatprep.subr.mxu0 0.0
    %1546 = vmatpush1.msra.mxu0 0.0
    %1547 = vmatprep.subr.mxu0 0.0
    %1548 = vmatpush1.msra.mxu0 0.0
    %1549 = vmatprep.subr.mxu0 0.0
    %1550 = vmatpush1.msra.mxu0 0.0
    %1551 = vmatprep.subr.mxu0 0.0
    %1552 = vmatpush1.msra.mxu0 0.0
    %1553 = vmatprep.subr.mxu0 0.0
    %1554 = vmatpush1.msra.mxu0 0.0
    %1555 = vmatprep.subr.mxu0 0.0
    %1556 = vmatpush1.msra.mxu0 0.0
    %1557 = vmatprep.mubr.f32.mxu0 0.0
    %1558 = vmatmul.mubr.f32.gmra.mrb[0].mxu0 %v1420
    %v1559 = vpop.f32.mrb[0].mxu0
    %v1560 = vadd.f32 %v670, %v1559
    %v1561 = vpop.f32.mrb[0].mxu0
    %1562 = vdwg.mxu0
    %v1565 = vrot.slane %v1489, 4
    %v1566 = vrot.slane %v1491, 4
    %v1569 = vadd.f32 %v414, %v1565
    %v1570 = vadd.f32 %v416, %v1566
    %v1571 = vxor.u32 %v1569, 2147483648
    %v1572 = vmul.f32 %v1571, 1.442695
    %v1573 = vpow.pop %v1572
    %v1574 = vadd.f32 %v1573, 1.0
    %v1575 = vrcp.pop %v1574
    %v1576 = vmul.f32 1.0, %v1575
    %v1577 = vxor.u32 %v1570, 2147483648
    %v1578 = vmul.f32 %v1577, 1.442695
    %v1579 = vpow.pop %v1578
    %v1580 = vadd.f32 %v1579, 1.0
    %v1581 = vrcp.pop %v1580
    %v1582 = vmul.f32 1.0, %v1581
    %v1584 = vrot.slane %v1560, 4
    %v1586 = vmul.f32 %v1576, %v1584
    %v1587 = vadd.f32 %v485, %v1586
    %v1588 = vtanh.pop %v1587
    %v1589 = vsub.f32 1.0, %v1582
    %v1590 = vmul.f32 %v1589, %v1588
    %v1591 = vrot.slane %v1416, 7
    %v1593 = vmul.f32 %v1582, %v1591
    %v1594 = vadd.f32 %v1590, %v1593
    %p1595 = scmp.gt.s32.totalorder %s163, 4
    %s1596 = scalar_select %p1595, 1, 0
    %s1597 = scvt.s32.f32 %s1596
    %v1598 = vstv %s1597
    %v1599 = vmul.f32 %v1598, %v1594
    %s1600 = ssub.f32 1.0, %s1597
    %v1601 = vstv %s1600
    %v1602 = vmul.f32 %v1601, %v1416
    %v1604 = vrot.slane %v1602, 7
    %v1606 = vadd.f32 %v1599, %v1604
    %v1607 = vmul.f32 %v1598, %v1606
    %v1609 = vrot.slane %v1606, 4
    %v1610 = vsel %vm343, %v1609, 0
    %1612 = vmatprep.subr.mxu0 %v181
    %1613 = vmatpush1.msra.mxu0 %v180
    %1614 = vmatprep.subr.mxu0 %v184
    %1615 = vmatpush1.msra.mxu0 %v183
    %1616 = vmatprep.subr.mxu0 %v187
    %1617 = vmatpush1.msra.mxu0 %v186
    %1618 = vmatprep.subr.mxu0 %v190
    %1619 = vmatpush1.msra.mxu0 %v189
    %1620 = vmatprep.subr.mxu0 0.0
    %1621 = vmatpush1.msra.mxu0 0.0
    %1622 = vmatprep.subr.mxu0 0.0
    %1623 = vmatpush1.msra.mxu0 0.0
    %1624 = vmatprep.subr.mxu0 0.0
    %1625 = vmatpush1.msra.mxu0 0.0
    %1626 = vmatprep.subr.mxu0 0.0
    %1627 = vmatpush1.msra.mxu0 0.0
    %1628 = vmatprep.subr.mxu0 0.0
    %1629 = vmatpush1.msra.mxu0 0.0
    %1630 = vmatprep.subr.mxu0 0.0
    %1631 = vmatpush1.msra.mxu0 0.0
    %1632 = vmatprep.subr.mxu0 0.0
    %1633 = vmatpush1.msra.mxu0 0.0
    %1634 = vmatprep.subr.mxu0 0.0
    %1635 = vmatpush1.msra.mxu0 0.0
    %1636 = vmatprep.subr.mxu0 0.0
    %1637 = vmatpush1.msra.mxu0 0.0
    %1638 = vmatprep.subr.mxu0 0.0
    %1639 = vmatpush1.msra.mxu0 0.0
    %1640 = vmatprep.subr.mxu0 0.0
    %1641 = vmatpush1.msra.mxu0 0.0
    %1642 = vmatprep.subr.mxu0 0.0
    %1643 = vmatpush1.msra.mxu0 0.0
    %1644 = vmatprep.subr.mxu0 0.0
    %1645 = vmatpush1.msra.mxu0 0.0
    %1646 = vmatprep.subr.mxu0 0.0
    %1647 = vmatpush1.msra.mxu0 0.0
    %1648 = vmatprep.subr.mxu0 0.0
    %1649 = vmatpush1.msra.mxu0 0.0
    %1650 = vmatprep.subr.mxu0 0.0
    %1651 = vmatpush1.msra.mxu0 0.0
    %1652 = vmatprep.subr.mxu0 0.0
    %1653 = vmatpush1.msra.mxu0 0.0
    %1654 = vmatprep.subr.mxu0 0.0
    %1655 = vmatpush1.msra.mxu0 0.0
    %1656 = vmatprep.subr.mxu0 0.0
    %1657 = vmatpush1.msra.mxu0 0.0
    %1658 = vmatprep.subr.mxu0 0.0
    %1659 = vmatpush1.msra.mxu0 0.0
    %1660 = vmatprep.subr.mxu0 0.0
    %1661 = vmatpush1.msra.mxu0 0.0
    %1662 = vmatprep.subr.mxu0 0.0
    %1663 = vmatpush1.msra.mxu0 0.0
    %1664 = vmatprep.subr.mxu0 0.0
    %1665 = vmatpush1.msra.mxu0 0.0
    %1666 = vmatprep.subr.mxu0 0.0
    %1667 = vmatpush1.msra.mxu0 0.0
    %1668 = vmatprep.subr.mxu0 0.0
    %1669 = vmatpush1.msra.mxu0 0.0
    %1670 = vmatprep.subr.mxu0 0.0
    %1671 = vmatpush1.msra.mxu0 0.0
    %1672 = vmatprep.subr.mxu0 0.0
    %1673 = vmatpush1.msra.mxu0 0.0
    %1674 = vmatprep.subr.mxu0 0.0
    %1675 = vmatpush1.msra.mxu0 0.0
    %1676 = vmatprep.mubr.f32.mxu0 0.0
    %1677 = vmatmul.mubr.f32.gmra.mrb[0].mxu0 %v1610
    %v1678 = vpop.f32.mrb[0].mxu0
    %v1679 = vadd.f32 %v662, %v1678
    %v1680 = vpop.f32.mrb[0].mxu0
    %v1681 = vadd.f32 %v666, %v1680
    %1682 = vdwg.mxu0
    %1683 = vmatprep.subr.mxu0 0.0
    %1684 = vmatpush1.msra.mxu0 %v182
    %1685 = vmatprep.subr.mxu0 0.0
    %1686 = vmatpush1.msra.mxu0 %v185
    %1687 = vmatprep.subr.mxu0 0.0
    %1688 = vmatpush1.msra.mxu0 %v188
    %1689 = vmatprep.subr.mxu0 0.0
    %1690 = vmatpush1.msra.mxu0 %v191
    %1691 = vmatprep.subr.mxu0 0.0
    %1692 = vmatpush1.msra.mxu0 0.0
    %1693 = vmatprep.subr.mxu0 0.0
    %1694 = vmatpush1.msra.mxu0 0.0
    %1695 = vmatprep.subr.mxu0 0.0
    %1696 = vmatpush1.msra.mxu0 0.0
    %1697 = vmatprep.subr.mxu0 0.0
    %1698 = vmatpush1.msra.mxu0 0.0
    %1699 = vmatprep.subr.mxu0 0.0
    %1700 = vmatpush1.msra.mxu0 0.0
    %1701 = vmatprep.subr.mxu0 0.0
    %1702 = vmatpush1.msra.mxu0 0.0
    %1703 = vmatprep.subr.mxu0 0.0
    %1704 = vmatpush1.msra.mxu0 0.0
    %1705 = vmatprep.subr.mxu0 0.0
    %1706 = vmatpush1.msra.mxu0 0.0
    %1707 = vmatprep.subr.mxu0 0.0
    %1708 = vmatpush1.msra.mxu0 0.0
    %1709 = vmatprep.subr.mxu0 0.0
    %1710 = vmatpush1.msra.mxu0 0.0
    %1711 = vmatprep.subr.mxu0 0.0
    %1712 = vmatpush1.msra.mxu0 0.0
    %1713 = vmatprep.subr.mxu0 0.0
    %1714 = vmatpush1.msra.mxu0 0.0
    %1715 = vmatprep.subr.mxu0 0.0
    %1716 = vmatpush1.msra.mxu0 0.0
    %1717 = vmatprep.subr.mxu0 0.0
    %1718 = vmatpush1.msra.mxu0 0.0
    %1719 = vmatprep.subr.mxu0 0.0
    %1720 = vmatpush1.msra.mxu0 0.0
    %1721 = vmatprep.subr.mxu0 0.0
    %1722 = vmatpush1.msra.mxu0 0.0
    %1723 = vmatprep.subr.mxu0 0.0
    %1724 = vmatpush1.msra.mxu0 0.0
    %1725 = vmatprep.subr.mxu0 0.0
    %1726 = vmatpush1.msra.mxu0 0.0
    %1727 = vmatprep.subr.mxu0 0.0
    %1728 = vmatpush1.msra.mxu0 0.0
    %1729 = vmatprep.subr.mxu0 0.0
    %1730 = vmatpush1.msra.mxu0 0.0
    %1731 = vmatprep.subr.mxu0 0.0
    %1732 = vmatpush1.msra.mxu0 0.0
    %1733 = vmatprep.subr.mxu0 0.0
    %1734 = vmatpush1.msra.mxu0 0.0
    %1735 = vmatprep.subr.mxu0 0.0
    %1736 = vmatpush1.msra.mxu0 0.0
    %1737 = vmatprep.subr.mxu0 0.0
    %1738 = vmatpush1.msra.mxu0 0.0
    %1739 = vmatprep.subr.mxu0 0.0
    %1740 = vmatpush1.msra.mxu0 0.0
    %1741 = vmatprep.subr.mxu0 0.0
    %1742 = vmatpush1.msra.mxu0 0.0
    %1743 = vmatprep.subr.mxu0 0.0
    %1744 = vmatpush1.msra.mxu0 0.0
    %1745 = vmatprep.subr.mxu0 0.0
    %1746 = vmatpush1.msra.mxu0 0.0
    %1747 = vmatprep.mubr.f32.mxu0 0.0
    %1748 = vmatmul.mubr.f32.gmra.mrb[0].mxu0 %v1610
    %v1749 = vpop.f32.mrb[0].mxu0
    %v1750 = vadd.f32 %v670, %v1749
    %v1751 = vpop.f32.mrb[0].mxu0
    %1752 = vdwg.mxu0
    %v1755 = vrot.slane %v1679, 3
    %v1756 = vrot.slane %v1681, 3
    %v1759 = vadd.f32 %v414, %v1755
    %v1760 = vadd.f32 %v416, %v1756
    %v1761 = vxor.u32 %v1759, 2147483648
    %v1762 = vmul.f32 %v1761, 1.442695
    %v1763 = vpow.pop %v1762
    %v1764 = vadd.f32 %v1763, 1.0
    %v1765 = vrcp.pop %v1764
    %v1766 = vmul.f32 1.0, %v1765
    %v1767 = vxor.u32 %v1760, 2147483648
    %v1768 = vmul.f32 %v1767, 1.442695
    %v1769 = vpow.pop %v1768
    %v1770 = vadd.f32 %v1769, 1.0
    %v1771 = vrcp.pop %v1770
    %v1772 = vmul.f32 1.0, %v1771
    %v1774 = vrot.slane %v1750, 3
    %v1776 = vmul.f32 %v1766, %v1774
    %v1777 = vadd.f32 %v485, %v1776
    %v1778 = vtanh.pop %v1777
    %v1779 = vsub.f32 1.0, %v1772
    %v1780 = vmul.f32 %v1779, %v1778
    %v1781 = vrot.slane %v1606, 7
    %v1783 = vmul.f32 %v1772, %v1781
    %v1784 = vadd.f32 %v1780, %v1783
    %p1785 = scmp.gt.s32.totalorder %s163, 5
    %s1786 = scalar_select %p1785, 1, 0
    %s1787 = scvt.s32.f32 %s1786
    %v1788 = vstv %s1787
    %v1789 = vmul.f32 %v1788, %v1784
    %s1790 = ssub.f32 1.0, %s1787
    %v1791 = vstv %s1790
    %v1792 = vmul.f32 %v1791, %v1606
    %v1794 = vrot.slane %v1792, 7
    %v1796 = vadd.f32 %v1789, %v1794
    %v1797 = vmul.f32 %v1788, %v1796
    %v1799 = vrot.slane %v1796, 5
    %v1800 = vsel %vm343, %v1799, 0
    %1802 = vmatprep.subr.mxu0 %v181
    %1803 = vmatpush1.msra.mxu0 %v180
    %1804 = vmatprep.subr.mxu0 %v184
    %1805 = vmatpush1.msra.mxu0 %v183
    %1806 = vmatprep.subr.mxu0 %v187
    %1807 = vmatpush1.msra.mxu0 %v186
    %1808 = vmatprep.subr.mxu0 %v190
    %1809 = vmatpush1.msra.mxu0 %v189
    %1810 = vmatprep.subr.mxu0 0.0
    %1811 = vmatpush1.msra.mxu0 0.0
    %1812 = vmatprep.subr.mxu0 0.0
    %1813 = vmatpush1.msra.mxu0 0.0
    %1814 = vmatprep.subr.mxu0 0.0
    %1815 = vmatpush1.msra.mxu0 0.0
    %1816 = vmatprep.subr.mxu0 0.0
    %1817 = vmatpush1.msra.mxu0 0.0
    %1818 = vmatprep.subr.mxu0 0.0
    %1819 = vmatpush1.msra.mxu0 0.0
    %1820 = vmatprep.subr.mxu0 0.0
    %1821 = vmatpush1.msra.mxu0 0.0
    %1822 = vmatprep.subr.mxu0 0.0
    %1823 = vmatpush1.msra.mxu0 0.0
    %1824 = vmatprep.subr.mxu0 0.0
    %1825 = vmatpush1.msra.mxu0 0.0
    %1826 = vmatprep.subr.mxu0 0.0
    %1827 = vmatpush1.msra.mxu0 0.0
    %1828 = vmatprep.subr.mxu0 0.0
    %1829 = vmatpush1.msra.mxu0 0.0
    %1830 = vmatprep.subr.mxu0 0.0
    %1831 = vmatpush1.msra.mxu0 0.0
    %1832 = vmatprep.subr.mxu0 0.0
    %1833 = vmatpush1.msra.mxu0 0.0
    %1834 = vmatprep.subr.mxu0 0.0
    %1835 = vmatpush1.msra.mxu0 0.0
    %1836 = vmatprep.subr.mxu0 0.0
    %1837 = vmatpush1.msra.mxu0 0.0
    %1838 = vmatprep.subr.mxu0 0.0
    %1839 = vmatpush1.msra.mxu0 0.0
    %1840 = vmatprep.subr.mxu0 0.0
    %1841 = vmatpush1.msra.mxu0 0.0
    %1842 = vmatprep.subr.mxu0 0.0
    %1843 = vmatpush1.msra.mxu0 0.0
    %1844 = vmatprep.subr.mxu0 0.0
    %1845 = vmatpush1.msra.mxu0 0.0
    %1846 = vmatprep.subr.mxu0 0.0
    %1847 = vmatpush1.msra.mxu0 0.0
    %1848 = vmatprep.subr.mxu0 0.0
    %1849 = vmatpush1.msra.mxu0 0.0
    %1850 = vmatprep.subr.mxu0 0.0
    %1851 = vmatpush1.msra.mxu0 0.0
    %1852 = vmatprep.subr.mxu0 0.0
    %1853 = vmatpush1.msra.mxu0 0.0
    %1854 = vmatprep.subr.mxu0 0.0
    %1855 = vmatpush1.msra.mxu0 0.0
    %1856 = vmatprep.subr.mxu0 0.0
    %1857 = vmatpush1.msra.mxu0 0.0
    %1858 = vmatprep.subr.mxu0 0.0
    %1859 = vmatpush1.msra.mxu0 0.0
    %1860 = vmatprep.subr.mxu0 0.0
    %1861 = vmatpush1.msra.mxu0 0.0
    %1862 = vmatprep.subr.mxu0 0.0
    %1863 = vmatpush1.msra.mxu0 0.0
    %1864 = vmatprep.subr.mxu0 0.0
    %1865 = vmatpush1.msra.mxu0 0.0
    %1866 = vmatprep.mubr.f32.mxu0 0.0
    %1867 = vmatmul.mubr.f32.gmra.mrb[0].mxu0 %v1800
    %v1868 = vpop.f32.mrb[0].mxu0
    %v1869 = vadd.f32 %v662, %v1868
    %v1870 = vpop.f32.mrb[0].mxu0
    %v1871 = vadd.f32 %v666, %v1870
    %1872 = vdwg.mxu0
    %1873 = vmatprep.subr.mxu0 0.0
    %1874 = vmatpush1.msra.mxu0 %v182
    %1875 = vmatprep.subr.mxu0 0.0
    %1876 = vmatpush1.msra.mxu0 %v185
    %1877 = vmatprep.subr.mxu0 0.0
    %1878 = vmatpush1.msra.mxu0 %v188
    %1879 = vmatprep.subr.mxu0 0.0
    %1880 = vmatpush1.msra.mxu0 %v191
    %1881 = vmatprep.subr.mxu0 0.0
    %1882 = vmatpush1.msra.mxu0 0.0
    %1883 = vmatprep.subr.mxu0 0.0
    %1884 = vmatpush1.msra.mxu0 0.0
    %1885 = vmatprep.subr.mxu0 0.0
    %1886 = vmatpush1.msra.mxu0 0.0
    %1887 = vmatprep.subr.mxu0 0.0
    %1888 = vmatpush1.msra.mxu0 0.0
    %1889 = vmatprep.subr.mxu0 0.0
    %1890 = vmatpush1.msra.mxu0 0.0
    %1891 = vmatprep.subr.mxu0 0.0
    %1892 = vmatpush1.msra.mxu0 0.0
    %1893 = vmatprep.subr.mxu0 0.0
    %1894 = vmatpush1.msra.mxu0 0.0
    %1895 = vmatprep.subr.mxu0 0.0
    %1896 = vmatpush1.msra.mxu0 0.0
    %1897 = vmatprep.subr.mxu0 0.0
    %1898 = vmatpush1.msra.mxu0 0.0
    %1899 = vmatprep.subr.mxu0 0.0
    %1900 = vmatpush1.msra.mxu0 0.0
    %1901 = vmatprep.subr.mxu0 0.0
    %1902 = vmatpush1.msra.mxu0 0.0
    %1903 = vmatprep.subr.mxu0 0.0
    %1904 = vmatpush1.msra.mxu0 0.0
    %1905 = vmatprep.subr.mxu0 0.0
    %1906 = vmatpush1.msra.mxu0 0.0
    %1907 = vmatprep.subr.mxu0 0.0
    %1908 = vmatpush1.msra.mxu0 0.0
    %1909 = vmatprep.subr.mxu0 0.0
    %1910 = vmatpush1.msra.mxu0 0.0
    %1911 = vmatprep.subr.mxu0 0.0
    %1912 = vmatpush1.msra.mxu0 0.0
    %1913 = vmatprep.subr.mxu0 0.0
    %1914 = vmatpush1.msra.mxu0 0.0
    %1915 = vmatprep.subr.mxu0 0.0
    %1916 = vmatpush1.msra.mxu0 0.0
    %1917 = vmatprep.subr.mxu0 0.0
    %1918 = vmatpush1.msra.mxu0 0.0
    %1919 = vmatprep.subr.mxu0 0.0
    %1920 = vmatpush1.msra.mxu0 0.0
    %1921 = vmatprep.subr.mxu0 0.0
    %1922 = vmatpush1.msra.mxu0 0.0
    %1923 = vmatprep.subr.mxu0 0.0
    %1924 = vmatpush1.msra.mxu0 0.0
    %1925 = vmatprep.subr.mxu0 0.0
    %1926 = vmatpush1.msra.mxu0 0.0
    %1927 = vmatprep.subr.mxu0 0.0
    %1928 = vmatpush1.msra.mxu0 0.0
    %1929 = vmatprep.subr.mxu0 0.0
    %1930 = vmatpush1.msra.mxu0 0.0
    %1931 = vmatprep.subr.mxu0 0.0
    %1932 = vmatpush1.msra.mxu0 0.0
    %1933 = vmatprep.subr.mxu0 0.0
    %1934 = vmatpush1.msra.mxu0 0.0
    %1935 = vmatprep.subr.mxu0 0.0
    %1936 = vmatpush1.msra.mxu0 0.0
    %1937 = vmatprep.mubr.f32.mxu0 0.0
    %1938 = vmatmul.mubr.f32.gmra.mrb[0].mxu0 %v1800
    %v1939 = vpop.f32.mrb[0].mxu0
    %v1940 = vadd.f32 %v670, %v1939
    %v1941 = vpop.f32.mrb[0].mxu0
    %1942 = vdwg.mxu0
    %v1945 = vrot.slane %v1869, 2
    %v1946 = vrot.slane %v1871, 2
    %v1949 = vadd.f32 %v414, %v1945
    %v1950 = vadd.f32 %v416, %v1946
    %v1951 = vxor.u32 %v1949, 2147483648
    %v1952 = vmul.f32 %v1951, 1.442695
    %v1953 = vpow.pop %v1952
    %v1954 = vadd.f32 %v1953, 1.0
    %v1955 = vrcp.pop %v1954
    %v1956 = vmul.f32 1.0, %v1955
    %v1957 = vxor.u32 %v1950, 2147483648
    %v1958 = vmul.f32 %v1957, 1.442695
    %v1959 = vpow.pop %v1958
    %v1960 = vadd.f32 %v1959, 1.0
    %v1961 = vrcp.pop %v1960
    %v1962 = vmul.f32 1.0, %v1961
    %v1964 = vrot.slane %v1940, 2
    %v1966 = vmul.f32 %v1956, %v1964
    %v1967 = vadd.f32 %v485, %v1966
    %v1968 = vtanh.pop %v1967
    %v1969 = vsub.f32 1.0, %v1962
    %v1970 = vmul.f32 %v1969, %v1968
    %v1971 = vrot.slane %v1796, 7
    %v1973 = vmul.f32 %v1962, %v1971
    %v1974 = vadd.f32 %v1970, %v1973
    %p1975 = scmp.gt.s32.totalorder %s163, 6
    %s1976 = scalar_select %p1975, 1, 0
    %s1977 = scvt.s32.f32 %s1976
    %v1978 = vstv %s1977
    %v1979 = vmul.f32 %v1978, %v1974
    %s1980 = ssub.f32 1.0, %s1977
    %v1981 = vstv %s1980
    %v1982 = vmul.f32 %v1981, %v1796
    %v1984 = vrot.slane %v1982, 7
    %v1986 = vadd.f32 %v1979, %v1984
    %v1987 = vmul.f32 %v1978, %v1986
    %v1989 = vrot.slane %v1986, 6
    %v1990 = vsel %vm343, %v1989, 0
    %1992 = vmatprep.subr.mxu0 %v181
    %1993 = vmatpush1.msra.mxu0 %v180
    %1994 = vmatprep.subr.mxu0 %v184
    %1995 = vmatpush1.msra.mxu0 %v183
    %1996 = vmatprep.subr.mxu0 %v187
    %1997 = vmatpush1.msra.mxu0 %v186
    %1998 = vmatprep.subr.mxu0 %v190
    %1999 = vmatpush1.msra.mxu0 %v189
    %2000 = vmatprep.subr.mxu0 0.0
    %2001 = vmatpush1.msra.mxu0 0.0
    %2002 = vmatprep.subr.mxu0 0.0
    %2003 = vmatpush1.msra.mxu0 0.0
    %2004 = vmatprep.subr.mxu0 0.0
    %2005 = vmatpush1.msra.mxu0 0.0
    %2006 = vmatprep.subr.mxu0 0.0
    %2007 = vmatpush1.msra.mxu0 0.0
    %2008 = vmatprep.subr.mxu0 0.0
    %2009 = vmatpush1.msra.mxu0 0.0
    %2010 = vmatprep.subr.mxu0 0.0
    %2011 = vmatpush1.msra.mxu0 0.0
    %2012 = vmatprep.subr.mxu0 0.0
    %2013 = vmatpush1.msra.mxu0 0.0
    %2014 = vmatprep.subr.mxu0 0.0
    %2015 = vmatpush1.msra.mxu0 0.0
    %2016 = vmatprep.subr.mxu0 0.0
    %2017 = vmatpush1.msra.mxu0 0.0
    %2018 = vmatprep.subr.mxu0 0.0
    %2019 = vmatpush1.msra.mxu0 0.0
    %2020 = vmatprep.subr.mxu0 0.0
    %2021 = vmatpush1.msra.mxu0 0.0
    %2022 = vmatprep.subr.mxu0 0.0
    %2023 = vmatpush1.msra.mxu0 0.0
    %2024 = vmatprep.subr.mxu0 0.0
    %2025 = vmatpush1.msra.mxu0 0.0
    %2026 = vmatprep.subr.mxu0 0.0
    %2027 = vmatpush1.msra.mxu0 0.0
    %2028 = vmatprep.subr.mxu0 0.0
    %2029 = vmatpush1.msra.mxu0 0.0
    %2030 = vmatprep.subr.mxu0 0.0
    %2031 = vmatpush1.msra.mxu0 0.0
    %2032 = vmatprep.subr.mxu0 0.0
    %2033 = vmatpush1.msra.mxu0 0.0
    %2034 = vmatprep.subr.mxu0 0.0
    %2035 = vmatpush1.msra.mxu0 0.0
    %2036 = vmatprep.subr.mxu0 0.0
    %2037 = vmatpush1.msra.mxu0 0.0
    %2038 = vmatprep.subr.mxu0 0.0
    %2039 = vmatpush1.msra.mxu0 0.0
    %2040 = vmatprep.subr.mxu0 0.0
    %2041 = vmatpush1.msra.mxu0 0.0
    %2042 = vmatprep.subr.mxu0 0.0
    %2043 = vmatpush1.msra.mxu0 0.0
    %2044 = vmatprep.subr.mxu0 0.0
    %2045 = vmatpush1.msra.mxu0 0.0
    %2046 = vmatprep.subr.mxu0 0.0
    %2047 = vmatpush1.msra.mxu0 0.0
    %2048 = vmatprep.subr.mxu0 0.0
    %2049 = vmatpush1.msra.mxu0 0.0
    %2050 = vmatprep.subr.mxu0 0.0
    %2051 = vmatpush1.msra.mxu0 0.0
    %2052 = vmatprep.subr.mxu0 0.0
    %2053 = vmatpush1.msra.mxu0 0.0
    %2054 = vmatprep.subr.mxu0 0.0
    %2055 = vmatpush1.msra.mxu0 0.0
    %2056 = vmatprep.mubr.f32.mxu0 0.0
    %2057 = vmatmul.mubr.f32.gmra.mrb[0].mxu0 %v1990
    %v2058 = vpop.f32.mrb[0].mxu0
    %v2059 = vadd.f32 %v662, %v2058
    %v2060 = vpop.f32.mrb[0].mxu0
    %v2061 = vadd.f32 %v666, %v2060
    %2062 = vdwg.mxu0
    %2063 = vmatprep.subr.mxu0 0.0
    %2064 = vmatpush1.msra.mxu0 %v182
    %2065 = vmatprep.subr.mxu0 0.0
    %2066 = vmatpush1.msra.mxu0 %v185
    %2067 = vmatprep.subr.mxu0 0.0
    %2068 = vmatpush1.msra.mxu0 %v188
    %2069 = vmatprep.subr.mxu0 0.0
    %2070 = vmatpush1.msra.mxu0 %v191
    %2071 = vmatprep.subr.mxu0 0.0
    %2072 = vmatpush1.msra.mxu0 0.0
    %2073 = vmatprep.subr.mxu0 0.0
    %2074 = vmatpush1.msra.mxu0 0.0
    %2075 = vmatprep.subr.mxu0 0.0
    %2076 = vmatpush1.msra.mxu0 0.0
    %2077 = vmatprep.subr.mxu0 0.0
    %2078 = vmatpush1.msra.mxu0 0.0
    %2079 = vmatprep.subr.mxu0 0.0
    %2080 = vmatpush1.msra.mxu0 0.0
    %2081 = vmatprep.subr.mxu0 0.0
    %2082 = vmatpush1.msra.mxu0 0.0
    %2083 = vmatprep.subr.mxu0 0.0
    %2084 = vmatpush1.msra.mxu0 0.0
    %2085 = vmatprep.subr.mxu0 0.0
    %2086 = vmatpush1.msra.mxu0 0.0
    %2087 = vmatprep.subr.mxu0 0.0
    %2088 = vmatpush1.msra.mxu0 0.0
    %2089 = vmatprep.subr.mxu0 0.0
    %2090 = vmatpush1.msra.mxu0 0.0
    %2091 = vmatprep.subr.mxu0 0.0
    %2092 = vmatpush1.msra.mxu0 0.0
    %2093 = vmatprep.subr.mxu0 0.0
    %2094 = vmatpush1.msra.mxu0 0.0
    %2095 = vmatprep.subr.mxu0 0.0
    %2096 = vmatpush1.msra.mxu0 0.0
    %2097 = vmatprep.subr.mxu0 0.0
    %2098 = vmatpush1.msra.mxu0 0.0
    %2099 = vmatprep.subr.mxu0 0.0
    %2100 = vmatpush1.msra.mxu0 0.0
    %2101 = vmatprep.subr.mxu0 0.0
    %2102 = vmatpush1.msra.mxu0 0.0
    %2103 = vmatprep.subr.mxu0 0.0
    %2104 = vmatpush1.msra.mxu0 0.0
    %2105 = vmatprep.subr.mxu0 0.0
    %2106 = vmatpush1.msra.mxu0 0.0
    %2107 = vmatprep.subr.mxu0 0.0
    %2108 = vmatpush1.msra.mxu0 0.0
    %2109 = vmatprep.subr.mxu0 0.0
    %2110 = vmatpush1.msra.mxu0 0.0
    %2111 = vmatprep.subr.mxu0 0.0
    %2112 = vmatpush1.msra.mxu0 0.0
    %2113 = vmatprep.subr.mxu0 0.0
    %2114 = vmatpush1.msra.mxu0 0.0
    %2115 = vmatprep.subr.mxu0 0.0
    %2116 = vmatpush1.msra.mxu0 0.0
    %2117 = vmatprep.subr.mxu0 0.0
    %2118 = vmatpush1.msra.mxu0 0.0
    %2119 = vmatprep.subr.mxu0 0.0
    %2120 = vmatpush1.msra.mxu0 0.0
    %2121 = vmatprep.subr.mxu0 0.0
    %2122 = vmatpush1.msra.mxu0 0.0
    %2123 = vmatprep.subr.mxu0 0.0
    %2124 = vmatpush1.msra.mxu0 0.0
    %2125 = vmatprep.subr.mxu0 0.0
    %2126 = vmatpush1.msra.mxu0 0.0
    %2127 = vmatprep.mubr.f32.mxu0 0.0
    %2128 = vmatmul.mubr.f32.gmra.mrb[0].mxu0 %v1990
    %v2129 = vpop.f32.mrb[0].mxu0
    %v2130 = vadd.f32 %v670, %v2129
    %v2131 = vpop.f32.mrb[0].mxu0
    %2132 = vdwg.mxu0
    %v2135 = vrot.slane %v2059, 1
    %v2136 = vrot.slane %v2061, 1
    %v2139 = vadd.f32 %v414, %v2135
    %v2140 = vadd.f32 %v416, %v2136
    %v2141 = vxor.u32 %v2139, 2147483648
    %v2142 = vmul.f32 %v2141, 1.442695
    %v2143 = vpow.pop %v2142
    %v2144 = vadd.f32 %v2143, 1.0
    %v2145 = vrcp.pop %v2144
    %v2146 = vmul.f32 1.0, %v2145
    %v2147 = vxor.u32 %v2140, 2147483648
    %v2148 = vmul.f32 %v2147, 1.442695
    %v2149 = vpow.pop %v2148
    %v2150 = vadd.f32 %v2149, 1.0
    %v2151 = vrcp.pop %v2150
    %v2152 = vmul.f32 1.0, %v2151
    %v2154 = vrot.slane %v2130, 1
    %v2156 = vmul.f32 %v2146, %v2154
    %v2157 = vadd.f32 %v485, %v2156
    %v2158 = vtanh.pop %v2157
    %v2159 = vsub.f32 1.0, %v2152
    %v2160 = vmul.f32 %v2159, %v2158
    %v2161 = vrot.slane %v1986, 7
    %v2163 = vmul.f32 %v2152, %v2161
    %v2164 = vadd.f32 %v2160, %v2163
    %p2165 = scmp.gt.s32.totalorder %s163, 7
    %s2166 = scalar_select %p2165, 1, 0
    %s2167 = scvt.s32.f32 %s2166
    %v2168 = vstv %s2167
    %v2169 = vmul.f32 %v2168, %v2164
    %s2170 = ssub.f32 1.0, %s2167
    %v2171 = vstv %s2170
    %v2172 = vmul.f32 %v2171, %v1986
    %v2174 = vrot.slane %v2172, 7
    %v2176 = vadd.f32 %v2169, %v2174
    %v2177 = vmul.f32 %v2168, %v2176
    %v2179 = vlaneseq
    %v2180 = vshrl.u32 %v2179, 7
    %v2181 = vsub.s32 0, %v2180
    %v2182 = vrot.slane %v205, %v2181
    %v2183 = vlaneseq
    %v2184 = vshrl.u32 %v2183, 7
    %v2185 = vsub.s32 1, %v2184
    %v2186 = vrot.slane %v205, %v2185
    %v2187 = vlaneseq
    %v2188 = vshrl.u32 %v2187, 7
    %v2189 = vsub.s32 2, %v2188
    %v2190 = vrot.slane %v205, %v2189
    %2194 = vmatprep.subr.mxu0 %v194
    %2195 = vmatpush1.msra.mxu0 %v193
    %2196 = vmatprep.subr.mxu0 %v197
    %2197 = vmatpush1.msra.mxu0 %v196
    %2198 = vmatprep.subr.mxu0 %v200
    %2199 = vmatpush1.msra.mxu0 %v199
    %2200 = vmatprep.subr.mxu0 %v203
    %2201 = vmatpush1.msra.mxu0 %v202
    %2202 = vmatprep.subr.mxu0 0.0
    %2203 = vmatpush1.msra.mxu0 0.0
    %2204 = vmatprep.subr.mxu0 0.0
    %2205 = vmatpush1.msra.mxu0 0.0
    %2206 = vmatprep.subr.mxu0 0.0
    %2207 = vmatpush1.msra.mxu0 0.0
    %2208 = vmatprep.subr.mxu0 0.0
    %2209 = vmatpush1.msra.mxu0 0.0
    %2210 = vmatprep.subr.mxu0 0.0
    %2211 = vmatpush1.msra.mxu0 0.0
    %2212 = vmatprep.subr.mxu0 0.0
    %2213 = vmatpush1.msra.mxu0 0.0
    %2214 = vmatprep.subr.mxu0 0.0
    %2215 = vmatpush1.msra.mxu0 0.0
    %2216 = vmatprep.subr.mxu0 0.0
    %2217 = vmatpush1.msra.mxu0 0.0
    %2218 = vmatprep.subr.mxu0 0.0
    %2219 = vmatpush1.msra.mxu0 0.0
    %2220 = vmatprep.subr.mxu0 0.0
    %2221 = vmatpush1.msra.mxu0 0.0
    %2222 = vmatprep.subr.mxu0 0.0
    %2223 = vmatpush1.msra.mxu0 0.0
    %2224 = vmatprep.subr.mxu0 0.0
    %2225 = vmatpush1.msra.mxu0 0.0
    %2226 = vmatprep.subr.mxu0 0.0
    %2227 = vmatpush1.msra.mxu0 0.0
    %2228 = vmatprep.subr.mxu0 0.0
    %2229 = vmatpush1.msra.mxu0 0.0
    %2230 = vmatprep.subr.mxu0 0.0
    %2231 = vmatpush1.msra.mxu0 0.0
    %2232 = vmatprep.subr.mxu0 0.0
    %2233 = vmatpush1.msra.mxu0 0.0
    %2234 = vmatprep.subr.mxu0 0.0
    %2235 = vmatpush1.msra.mxu0 0.0
    %2236 = vmatprep.subr.mxu0 0.0
    %2237 = vmatpush1.msra.mxu0 0.0
    %2238 = vmatprep.subr.mxu0 0.0
    %2239 = vmatpush1.msra.mxu0 0.0
    %2240 = vmatprep.subr.mxu0 0.0
    %2241 = vmatpush1.msra.mxu0 0.0
    %2242 = vmatprep.subr.mxu0 0.0
    %2243 = vmatpush1.msra.mxu0 0.0
    %2244 = vmatprep.subr.mxu0 0.0
    %2245 = vmatpush1.msra.mxu0 0.0
    %2246 = vmatprep.subr.mxu0 0.0
    %2247 = vmatpush1.msra.mxu0 0.0
    %2248 = vmatprep.subr.mxu0 0.0
    %2249 = vmatpush1.msra.mxu0 0.0
    %2250 = vmatprep.subr.mxu0 0.0
    %2251 = vmatpush1.msra.mxu0 0.0
    %2252 = vmatprep.subr.mxu0 0.0
    %2253 = vmatpush1.msra.mxu0 0.0
    %2254 = vmatprep.subr.mxu0 0.0
    %2255 = vmatpush1.msra.mxu0 0.0
    %2256 = vmatprep.subr.mxu0 0.0
    %2257 = vmatpush1.msra.mxu0 0.0
    %2258 = vmatprep.mubr.f32.mxu0 0.0
    %2259 = vmatmul.mubr.f32.gmra.mrb[0].mxu0 %v675
    %v2260 = vpop.f32.mrb[0].mxu0
    %v2261 = vadd.f32 %v2182, %v2260
    %v2262 = vpop.f32.mrb[0].mxu0
    %v2263 = vadd.f32 %v2186, %v2262
    %2264 = vdwg.mxu0
    %2265 = vmatprep.subr.mxu0 0.0
    %2266 = vmatpush1.msra.mxu0 %v195
    %2267 = vmatprep.subr.mxu0 0.0
    %2268 = vmatpush1.msra.mxu0 %v198
    %2269 = vmatprep.subr.mxu0 0.0
    %2270 = vmatpush1.msra.mxu0 %v201
    %2271 = vmatprep.subr.mxu0 0.0
    %2272 = vmatpush1.msra.mxu0 %v204
    %2273 = vmatprep.subr.mxu0 0.0
    %2274 = vmatpush1.msra.mxu0 0.0
    %2275 = vmatprep.subr.mxu0 0.0
    %2276 = vmatpush1.msra.mxu0 0.0
    %2277 = vmatprep.subr.mxu0 0.0
    %2278 = vmatpush1.msra.mxu0 0.0
    %2279 = vmatprep.subr.mxu0 0.0
    %2280 = vmatpush1.msra.mxu0 0.0
    %2281 = vmatprep.subr.mxu0 0.0
    %2282 = vmatpush1.msra.mxu0 0.0
    %2283 = vmatprep.subr.mxu0 0.0
    %2284 = vmatpush1.msra.mxu0 0.0
    %2285 = vmatprep.subr.mxu0 0.0
    %2286 = vmatpush1.msra.mxu0 0.0
    %2287 = vmatprep.subr.mxu0 0.0
    %2288 = vmatpush1.msra.mxu0 0.0
    %2289 = vmatprep.subr.mxu0 0.0
    %2290 = vmatpush1.msra.mxu0 0.0
    %2291 = vmatprep.subr.mxu0 0.0
    %2292 = vmatpush1.msra.mxu0 0.0
    %2293 = vmatprep.subr.mxu0 0.0
    %2294 = vmatpush1.msra.mxu0 0.0
    %2295 = vmatprep.subr.mxu0 0.0
    %2296 = vmatpush1.msra.mxu0 0.0
    %2297 = vmatprep.subr.mxu0 0.0
    %2298 = vmatpush1.msra.mxu0 0.0
    %2299 = vmatprep.subr.mxu0 0.0
    %2300 = vmatpush1.msra.mxu0 0.0
    %2301 = vmatprep.subr.mxu0 0.0
    %2302 = vmatpush1.msra.mxu0 0.0
    %2303 = vmatprep.subr.mxu0 0.0
    %2304 = vmatpush1.msra.mxu0 0.0
    %2305 = vmatprep.subr.mxu0 0.0
    %2306 = vmatpush1.msra.mxu0 0.0
    %2307 = vmatprep.subr.mxu0 0.0
    %2308 = vmatpush1.msra.mxu0 0.0
    %2309 = vmatprep.subr.mxu0 0.0
    %2310 = vmatpush1.msra.mxu0 0.0
    %2311 = vmatprep.subr.mxu0 0.0
    %2312 = vmatpush1.msra.mxu0 0.0
    %2313 = vmatprep.subr.mxu0 0.0
    %2314 = vmatpush1.msra.mxu0 0.0
    %2315 = vmatprep.subr.mxu0 0.0
    %2316 = vmatpush1.msra.mxu0 0.0
    %2317 = vmatprep.subr.mxu0 0.0
    %2318 = vmatpush1.msra.mxu0 0.0
    %2319 = vmatprep.subr.mxu0 0.0
    %2320 = vmatpush1.msra.mxu0 0.0
    %2321 = vmatprep.subr.mxu0 0.0
    %2322 = vmatpush1.msra.mxu0 0.0
    %2323 = vmatprep.subr.mxu0 0.0
    %2324 = vmatpush1.msra.mxu0 0.0
    %2325 = vmatprep.subr.mxu0 0.0
    %2326 = vmatpush1.msra.mxu0 0.0
    %2327 = vmatprep.subr.mxu0 0.0
    %2328 = vmatpush1.msra.mxu0 0.0
    %2329 = vmatprep.mubr.f32.mxu0 0.0
    %2330 = vmatmul.mubr.f32.gmra.mrb[0].mxu0 %v675
    %v2331 = vpop.f32.mrb[0].mxu0
    %v2332 = vadd.f32 %v2190, %v2331
    %v2333 = vpop.f32.mrb[0].mxu0
    %2334 = vdwg.mxu0
    %v2337 = vrot.slane %v2261, 1
    %v2338 = vrot.slane %v2263, 1
    %v2341 = vadd.f32 %v584, %v2337
    %v2342 = vadd.f32 %v586, %v2338
    %v2343 = vxor.u32 %v2341, 2147483648
    %v2344 = vmul.f32 %v2343, 1.442695
    %v2345 = vpow.pop %v2344
    %v2346 = vadd.f32 %v2345, 1.0
    %v2347 = vrcp.pop %v2346
    %v2348 = vmul.f32 1.0, %v2347
    %v2349 = vxor.u32 %v2342, 2147483648
    %v2350 = vmul.f32 %v2349, 1.442695
    %v2351 = vpow.pop %v2350
    %v2352 = vadd.f32 %v2351, 1.0
    %v2353 = vrcp.pop %v2352
    %v2354 = vmul.f32 1.0, %v2353
    %v2356 = vrot.slane %v2332, 1
    %v2358 = vmul.f32 %v2348, %v2356
    %v2359 = vadd.f32 %v655, %v2358
    %v2360 = vtanh.pop %v2359
    %v2361 = vsub.f32 1.0, %v2354
    %v2362 = vmul.f32 %v2361, %v2360
    %v2363 = vmul.f32 %v2354, 0.0
    %v2364 = vadd.f32 %v2362, %v2363
    %v2365 = vmul.f32 %v2168, %v2364
    %v2366 = vmul.f32 %v2171, 0.0
    %v2367 = vadd.f32 %v2365, %v2366
    %v2368 = vmul.f32 %v2168, %v2367
    %v2370 = vrot.slane %v2367, 7
    %v2371 = vsel %vm343, %v2370, 0
    %2373 = vmatprep.subr.mxu0 %v194
    %2374 = vmatpush1.msra.mxu0 %v193
    %2375 = vmatprep.subr.mxu0 %v197
    %2376 = vmatpush1.msra.mxu0 %v196
    %2377 = vmatprep.subr.mxu0 %v200
    %2378 = vmatpush1.msra.mxu0 %v199
    %2379 = vmatprep.subr.mxu0 %v203
    %2380 = vmatpush1.msra.mxu0 %v202
    %2381 = vmatprep.subr.mxu0 0.0
    %2382 = vmatpush1.msra.mxu0 0.0
    %2383 = vmatprep.subr.mxu0 0.0
    %2384 = vmatpush1.msra.mxu0 0.0
    %2385 = vmatprep.subr.mxu0 0.0
    %2386 = vmatpush1.msra.mxu0 0.0
    %2387 = vmatprep.subr.mxu0 0.0
    %2388 = vmatpush1.msra.mxu0 0.0
    %2389 = vmatprep.subr.mxu0 0.0
    %2390 = vmatpush1.msra.mxu0 0.0
    %2391 = vmatprep.subr.mxu0 0.0
    %2392 = vmatpush1.msra.mxu0 0.0
    %2393 = vmatprep.subr.mxu0 0.0
    %2394 = vmatpush1.msra.mxu0 0.0
    %2395 = vmatprep.subr.mxu0 0.0
    %2396 = vmatpush1.msra.mxu0 0.0
    %2397 = vmatprep.subr.mxu0 0.0
    %2398 = vmatpush1.msra.mxu0 0.0
    %2399 = vmatprep.subr.mxu0 0.0
    %2400 = vmatpush1.msra.mxu0 0.0
    %2401 = vmatprep.subr.mxu0 0.0
    %2402 = vmatpush1.msra.mxu0 0.0
    %2403 = vmatprep.subr.mxu0 0.0
    %2404 = vmatpush1.msra.mxu0 0.0
    %2405 = vmatprep.subr.mxu0 0.0
    %2406 = vmatpush1.msra.mxu0 0.0
    %2407 = vmatprep.subr.mxu0 0.0
    %2408 = vmatpush1.msra.mxu0 0.0
    %2409 = vmatprep.subr.mxu0 0.0
    %2410 = vmatpush1.msra.mxu0 0.0
    %2411 = vmatprep.subr.mxu0 0.0
    %2412 = vmatpush1.msra.mxu0 0.0
    %2413 = vmatprep.subr.mxu0 0.0
    %2414 = vmatpush1.msra.mxu0 0.0
    %2415 = vmatprep.subr.mxu0 0.0
    %2416 = vmatpush1.msra.mxu0 0.0
    %2417 = vmatprep.subr.mxu0 0.0
    %2418 = vmatpush1.msra.mxu0 0.0
    %2419 = vmatprep.subr.mxu0 0.0
    %2420 = vmatpush1.msra.mxu0 0.0
    %2421 = vmatprep.subr.mxu0 0.0
    %2422 = vmatpush1.msra.mxu0 0.0
    %2423 = vmatprep.subr.mxu0 0.0
    %2424 = vmatpush1.msra.mxu0 0.0
    %2425 = vmatprep.subr.mxu0 0.0
    %2426 = vmatpush1.msra.mxu0 0.0
    %2427 = vmatprep.subr.mxu0 0.0
    %2428 = vmatpush1.msra.mxu0 0.0
    %2429 = vmatprep.subr.mxu0 0.0
    %2430 = vmatpush1.msra.mxu0 0.0
    %2431 = vmatprep.subr.mxu0 0.0
    %2432 = vmatpush1.msra.mxu0 0.0
    %2433 = vmatprep.subr.mxu0 0.0
    %2434 = vmatpush1.msra.mxu0 0.0
    %2435 = vmatprep.subr.mxu0 0.0
    %2436 = vmatpush1.msra.mxu0 0.0
    %2437 = vmatprep.mubr.f32.mxu0 0.0
    %2438 = vmatmul.mubr.f32.gmra.mrb[0].mxu0 %v2371
    %v2439 = vpop.f32.mrb[0].mxu0
    %v2440 = vadd.f32 %v2182, %v2439
    %v2441 = vpop.f32.mrb[0].mxu0
    %v2442 = vadd.f32 %v2186, %v2441
    %2443 = vdwg.mxu0
    %2444 = vmatprep.subr.mxu0 0.0
    %2445 = vmatpush1.msra.mxu0 %v195
    %2446 = vmatprep.subr.mxu0 0.0
    %2447 = vmatpush1.msra.mxu0 %v198
    %2448 = vmatprep.subr.mxu0 0.0
    %2449 = vmatpush1.msra.mxu0 %v201
    %2450 = vmatprep.subr.mxu0 0.0
    %2451 = vmatpush1.msra.mxu0 %v204
    %2452 = vmatprep.subr.mxu0 0.0
    %2453 = vmatpush1.msra.mxu0 0.0
    %2454 = vmatprep.subr.mxu0 0.0
    %2455 = vmatpush1.msra.mxu0 0.0
    %2456 = vmatprep.subr.mxu0 0.0
    %2457 = vmatpush1.msra.mxu0 0.0
    %2458 = vmatprep.subr.mxu0 0.0
    %2459 = vmatpush1.msra.mxu0 0.0
    %2460 = vmatprep.subr.mxu0 0.0
    %2461 = vmatpush1.msra.mxu0 0.0
    %2462 = vmatprep.subr.mxu0 0.0
    %2463 = vmatpush1.msra.mxu0 0.0
    %2464 = vmatprep.subr.mxu0 0.0
    %2465 = vmatpush1.msra.mxu0 0.0
    %2466 = vmatprep.subr.mxu0 0.0
    %2467 = vmatpush1.msra.mxu0 0.0
    %2468 = vmatprep.subr.mxu0 0.0
    %2469 = vmatpush1.msra.mxu0 0.0
    %2470 = vmatprep.subr.mxu0 0.0
    %2471 = vmatpush1.msra.mxu0 0.0
    %2472 = vmatprep.subr.mxu0 0.0
    %2473 = vmatpush1.msra.mxu0 0.0
    %2474 = vmatprep.subr.mxu0 0.0
    %2475 = vmatpush1.msra.mxu0 0.0
    %2476 = vmatprep.subr.mxu0 0.0
    %2477 = vmatpush1.msra.mxu0 0.0
    %2478 = vmatprep.subr.mxu0 0.0
    %2479 = vmatpush1.msra.mxu0 0.0
    %2480 = vmatprep.subr.mxu0 0.0
    %2481 = vmatpush1.msra.mxu0 0.0
    %2482 = vmatprep.subr.mxu0 0.0
    %2483 = vmatpush1.msra.mxu0 0.0
    %2484 = vmatprep.subr.mxu0 0.0
    %2485 = vmatpush1.msra.mxu0 0.0
    %2486 = vmatprep.subr.mxu0 0.0
    %2487 = vmatpush1.msra.mxu0 0.0
    %2488 = vmatprep.subr.mxu0 0.0
    %2489 = vmatpush1.msra.mxu0 0.0
    %2490 = vmatprep.subr.mxu0 0.0
    %2491 = vmatpush1.msra.mxu0 0.0
    %2492 = vmatprep.subr.mxu0 0.0
    %2493 = vmatpush1.msra.mxu0 0.0
    %2494 = vmatprep.subr.mxu0 0.0
    %2495 = vmatpush1.msra.mxu0 0.0
    %2496 = vmatprep.subr.mxu0 0.0
    %2497 = vmatpush1.msra.mxu0 0.0
    %2498 = vmatprep.subr.mxu0 0.0
    %2499 = vmatpush1.msra.mxu0 0.0
    %2500 = vmatprep.subr.mxu0 0.0
    %2501 = vmatpush1.msra.mxu0 0.0
    %2502 = vmatprep.subr.mxu0 0.0
    %2503 = vmatpush1.msra.mxu0 0.0
    %2504 = vmatprep.subr.mxu0 0.0
    %2505 = vmatpush1.msra.mxu0 0.0
    %2506 = vmatprep.subr.mxu0 0.0
    %2507 = vmatpush1.msra.mxu0 0.0
    %2508 = vmatprep.mubr.f32.mxu0 0.0
    %2509 = vmatmul.mubr.f32.gmra.mrb[0].mxu0 %v2371
    %v2510 = vpop.f32.mrb[0].mxu0
    %v2511 = vadd.f32 %v2190, %v2510
    %v2512 = vpop.f32.mrb[0].mxu0
    %2513 = vdwg.mxu0
    %v2516 = vrot.slane %v2440, 2
    %v2517 = vrot.slane %v2442, 2
    %v2520 = vadd.f32 %v584, %v2516
    %v2521 = vadd.f32 %v586, %v2517
    %v2522 = vxor.u32 %v2520, 2147483648
    %v2523 = vmul.f32 %v2522, 1.442695
    %v2524 = vpow.pop %v2523
    %v2525 = vadd.f32 %v2524, 1.0
    %v2526 = vrcp.pop %v2525
    %v2527 = vmul.f32 1.0, %v2526
    %v2528 = vxor.u32 %v2521, 2147483648
    %v2529 = vmul.f32 %v2528, 1.442695
    %v2530 = vpow.pop %v2529
    %v2531 = vadd.f32 %v2530, 1.0
    %v2532 = vrcp.pop %v2531
    %v2533 = vmul.f32 1.0, %v2532
    %v2535 = vrot.slane %v2511, 2
    %v2537 = vmul.f32 %v2527, %v2535
    %v2538 = vadd.f32 %v655, %v2537
    %v2539 = vtanh.pop %v2538
    %v2540 = vsub.f32 1.0, %v2533
    %v2541 = vmul.f32 %v2540, %v2539
    %v2542 = vrot.slane %v2367, 1
    %v2544 = vmul.f32 %v2533, %v2542
    %v2545 = vadd.f32 %v2541, %v2544
    %v2546 = vmul.f32 %v1978, %v2545
    %v2547 = vmul.f32 %v1981, %v2367
    %v2549 = vrot.slane %v2547, 1
    %v2551 = vadd.f32 %v2546, %v2549
    %v2552 = vmul.f32 %v1978, %v2551
    %v2554 = vrot.slane %v2551, 6
    %v2555 = vsel %vm343, %v2554, 0
    %2557 = vmatprep.subr.mxu0 %v194
    %2558 = vmatpush1.msra.mxu0 %v193
    %2559 = vmatprep.subr.mxu0 %v197
    %2560 = vmatpush1.msra.mxu0 %v196
    %2561 = vmatprep.subr.mxu0 %v200
    %2562 = vmatpush1.msra.mxu0 %v199
    %2563 = vmatprep.subr.mxu0 %v203
    %2564 = vmatpush1.msra.mxu0 %v202
    %2565 = vmatprep.subr.mxu0 0.0
    %2566 = vmatpush1.msra.mxu0 0.0
    %2567 = vmatprep.subr.mxu0 0.0
    %2568 = vmatpush1.msra.mxu0 0.0
    %2569 = vmatprep.subr.mxu0 0.0
    %2570 = vmatpush1.msra.mxu0 0.0
    %2571 = vmatprep.subr.mxu0 0.0
    %2572 = vmatpush1.msra.mxu0 0.0
    %2573 = vmatprep.subr.mxu0 0.0
    %2574 = vmatpush1.msra.mxu0 0.0
    %2575 = vmatprep.subr.mxu0 0.0
    %2576 = vmatpush1.msra.mxu0 0.0
    %2577 = vmatprep.subr.mxu0 0.0
    %2578 = vmatpush1.msra.mxu0 0.0
    %2579 = vmatprep.subr.mxu0 0.0
    %2580 = vmatpush1.msra.mxu0 0.0
    %2581 = vmatprep.subr.mxu0 0.0
    %2582 = vmatpush1.msra.mxu0 0.0
    %2583 = vmatprep.subr.mxu0 0.0
    %2584 = vmatpush1.msra.mxu0 0.0
    %2585 = vmatprep.subr.mxu0 0.0
    %2586 = vmatpush1.msra.mxu0 0.0
    %2587 = vmatprep.subr.mxu0 0.0
    %2588 = vmatpush1.msra.mxu0 0.0
    %2589 = vmatprep.subr.mxu0 0.0
    %2590 = vmatpush1.msra.mxu0 0.0
    %2591 = vmatprep.subr.mxu0 0.0
    %2592 = vmatpush1.msra.mxu0 0.0
    %2593 = vmatprep.subr.mxu0 0.0
    %2594 = vmatpush1.msra.mxu0 0.0
    %2595 = vmatprep.subr.mxu0 0.0
    %2596 = vmatpush1.msra.mxu0 0.0
    %2597 = vmatprep.subr.mxu0 0.0
    %2598 = vmatpush1.msra.mxu0 0.0
    %2599 = vmatprep.subr.mxu0 0.0
    %2600 = vmatpush1.msra.mxu0 0.0
    %2601 = vmatprep.subr.mxu0 0.0
    %2602 = vmatpush1.msra.mxu0 0.0
    %2603 = vmatprep.subr.mxu0 0.0
    %2604 = vmatpush1.msra.mxu0 0.0
    %2605 = vmatprep.subr.mxu0 0.0
    %2606 = vmatpush1.msra.mxu0 0.0
    %2607 = vmatprep.subr.mxu0 0.0
    %2608 = vmatpush1.msra.mxu0 0.0
    %2609 = vmatprep.subr.mxu0 0.0
    %2610 = vmatpush1.msra.mxu0 0.0
    %2611 = vmatprep.subr.mxu0 0.0
    %2612 = vmatpush1.msra.mxu0 0.0
    %2613 = vmatprep.subr.mxu0 0.0
    %2614 = vmatpush1.msra.mxu0 0.0
    %2615 = vmatprep.subr.mxu0 0.0
    %2616 = vmatpush1.msra.mxu0 0.0
    %2617 = vmatprep.subr.mxu0 0.0
    %2618 = vmatpush1.msra.mxu0 0.0
    %2619 = vmatprep.subr.mxu0 0.0
    %2620 = vmatpush1.msra.mxu0 0.0
    %2621 = vmatprep.mubr.f32.mxu0 0.0
    %2622 = vmatmul.mubr.f32.gmra.mrb[0].mxu0 %v2555
    %v2623 = vpop.f32.mrb[0].mxu0
    %v2624 = vadd.f32 %v2182, %v2623
    %v2625 = vpop.f32.mrb[0].mxu0
    %v2626 = vadd.f32 %v2186, %v2625
    %2627 = vdwg.mxu0
    %2628 = vmatprep.subr.mxu0 0.0
    %2629 = vmatpush1.msra.mxu0 %v195
    %2630 = vmatprep.subr.mxu0 0.0
    %2631 = vmatpush1.msra.mxu0 %v198
    %2632 = vmatprep.subr.mxu0 0.0
    %2633 = vmatpush1.msra.mxu0 %v201
    %2634 = vmatprep.subr.mxu0 0.0
    %2635 = vmatpush1.msra.mxu0 %v204
    %2636 = vmatprep.subr.mxu0 0.0
    %2637 = vmatpush1.msra.mxu0 0.0
    %2638 = vmatprep.subr.mxu0 0.0
    %2639 = vmatpush1.msra.mxu0 0.0
    %2640 = vmatprep.subr.mxu0 0.0
    %2641 = vmatpush1.msra.mxu0 0.0
    %2642 = vmatprep.subr.mxu0 0.0
    %2643 = vmatpush1.msra.mxu0 0.0
    %2644 = vmatprep.subr.mxu0 0.0
    %2645 = vmatpush1.msra.mxu0 0.0
    %2646 = vmatprep.subr.mxu0 0.0
    %2647 = vmatpush1.msra.mxu0 0.0
    %2648 = vmatprep.subr.mxu0 0.0
    %2649 = vmatpush1.msra.mxu0 0.0
    %2650 = vmatprep.subr.mxu0 0.0
    %2651 = vmatpush1.msra.mxu0 0.0
    %2652 = vmatprep.subr.mxu0 0.0
    %2653 = vmatpush1.msra.mxu0 0.0
    %2654 = vmatprep.subr.mxu0 0.0
    %2655 = vmatpush1.msra.mxu0 0.0
    %2656 = vmatprep.subr.mxu0 0.0
    %2657 = vmatpush1.msra.mxu0 0.0
    %2658 = vmatprep.subr.mxu0 0.0
    %2659 = vmatpush1.msra.mxu0 0.0
    %2660 = vmatprep.subr.mxu0 0.0
    %2661 = vmatpush1.msra.mxu0 0.0
    %2662 = vmatprep.subr.mxu0 0.0
    %2663 = vmatpush1.msra.mxu0 0.0
    %2664 = vmatprep.subr.mxu0 0.0
    %2665 = vmatpush1.msra.mxu0 0.0
    %2666 = vmatprep.subr.mxu0 0.0
    %2667 = vmatpush1.msra.mxu0 0.0
    %2668 = vmatprep.subr.mxu0 0.0
    %2669 = vmatpush1.msra.mxu0 0.0
    %2670 = vmatprep.subr.mxu0 0.0
    %2671 = vmatpush1.msra.mxu0 0.0
    %2672 = vmatprep.subr.mxu0 0.0
    %2673 = vmatpush1.msra.mxu0 0.0
    %2674 = vmatprep.subr.mxu0 0.0
    %2675 = vmatpush1.msra.mxu0 0.0
    %2676 = vmatprep.subr.mxu0 0.0
    %2677 = vmatpush1.msra.mxu0 0.0
    %2678 = vmatprep.subr.mxu0 0.0
    %2679 = vmatpush1.msra.mxu0 0.0
    %2680 = vmatprep.subr.mxu0 0.0
    %2681 = vmatpush1.msra.mxu0 0.0
    %2682 = vmatprep.subr.mxu0 0.0
    %2683 = vmatpush1.msra.mxu0 0.0
    %2684 = vmatprep.subr.mxu0 0.0
    %2685 = vmatpush1.msra.mxu0 0.0
    %2686 = vmatprep.subr.mxu0 0.0
    %2687 = vmatpush1.msra.mxu0 0.0
    %2688 = vmatprep.subr.mxu0 0.0
    %2689 = vmatpush1.msra.mxu0 0.0
    %2690 = vmatprep.subr.mxu0 0.0
    %2691 = vmatpush1.msra.mxu0 0.0
    %2692 = vmatprep.mubr.f32.mxu0 0.0
    %2693 = vmatmul.mubr.f32.gmra.mrb[0].mxu0 %v2555
    %v2694 = vpop.f32.mrb[0].mxu0
    %v2695 = vadd.f32 %v2190, %v2694
    %v2696 = vpop.f32.mrb[0].mxu0
    %2697 = vdwg.mxu0
    %v2700 = vrot.slane %v2624, 3
    %v2701 = vrot.slane %v2626, 3
    %v2704 = vadd.f32 %v584, %v2700
    %v2705 = vadd.f32 %v586, %v2701
    %v2706 = vxor.u32 %v2704, 2147483648
    %v2707 = vmul.f32 %v2706, 1.442695
    %v2708 = vpow.pop %v2707
    %v2709 = vadd.f32 %v2708, 1.0
    %v2710 = vrcp.pop %v2709
    %v2711 = vmul.f32 1.0, %v2710
    %v2712 = vxor.u32 %v2705, 2147483648
    %v2713 = vmul.f32 %v2712, 1.442695
    %v2714 = vpow.pop %v2713
    %v2715 = vadd.f32 %v2714, 1.0
    %v2716 = vrcp.pop %v2715
    %v2717 = vmul.f32 1.0, %v2716
    %v2719 = vrot.slane %v2695, 3
    %v2721 = vmul.f32 %v2711, %v2719
    %v2722 = vadd.f32 %v655, %v2721
    %v2723 = vtanh.pop %v2722
    %v2724 = vsub.f32 1.0, %v2717
    %v2725 = vmul.f32 %v2724, %v2723
    %v2726 = vrot.slane %v2551, 1
    %v2728 = vmul.f32 %v2717, %v2726
    %v2729 = vadd.f32 %v2725, %v2728
    %v2730 = vmul.f32 %v1788, %v2729
    %v2731 = vmul.f32 %v1791, %v2551
    %v2733 = vrot.slane %v2731, 1
    %v2735 = vadd.f32 %v2730, %v2733
    %v2736 = vmul.f32 %v1788, %v2735
    %v2738 = vrot.slane %v2735, 5
    %v2739 = vsel %vm343, %v2738, 0
    %2741 = vmatprep.subr.mxu0 %v194
    %2742 = vmatpush1.msra.mxu0 %v193
    %2743 = vmatprep.subr.mxu0 %v197
    %2744 = vmatpush1.msra.mxu0 %v196
    %2745 = vmatprep.subr.mxu0 %v200
    %2746 = vmatpush1.msra.mxu0 %v199
    %2747 = vmatprep.subr.mxu0 %v203
    %2748 = vmatpush1.msra.mxu0 %v202
    %2749 = vmatprep.subr.mxu0 0.0
    %2750 = vmatpush1.msra.mxu0 0.0
    %2751 = vmatprep.subr.mxu0 0.0
    %2752 = vmatpush1.msra.mxu0 0.0
    %2753 = vmatprep.subr.mxu0 0.0
    %2754 = vmatpush1.msra.mxu0 0.0
    %2755 = vmatprep.subr.mxu0 0.0
    %2756 = vmatpush1.msra.mxu0 0.0
    %2757 = vmatprep.subr.mxu0 0.0
    %2758 = vmatpush1.msra.mxu0 0.0
    %2759 = vmatprep.subr.mxu0 0.0
    %2760 = vmatpush1.msra.mxu0 0.0
    %2761 = vmatprep.subr.mxu0 0.0
    %2762 = vmatpush1.msra.mxu0 0.0
    %2763 = vmatprep.subr.mxu0 0.0
    %2764 = vmatpush1.msra.mxu0 0.0
    %2765 = vmatprep.subr.mxu0 0.0
    %2766 = vmatpush1.msra.mxu0 0.0
    %2767 = vmatprep.subr.mxu0 0.0
    %2768 = vmatpush1.msra.mxu0 0.0
    %2769 = vmatprep.subr.mxu0 0.0
    %2770 = vmatpush1.msra.mxu0 0.0
    %2771 = vmatprep.subr.mxu0 0.0
    %2772 = vmatpush1.msra.mxu0 0.0
    %2773 = vmatprep.subr.mxu0 0.0
    %2774 = vmatpush1.msra.mxu0 0.0
    %2775 = vmatprep.subr.mxu0 0.0
    %2776 = vmatpush1.msra.mxu0 0.0
    %2777 = vmatprep.subr.mxu0 0.0
    %2778 = vmatpush1.msra.mxu0 0.0
    %2779 = vmatprep.subr.mxu0 0.0
    %2780 = vmatpush1.msra.mxu0 0.0
    %2781 = vmatprep.subr.mxu0 0.0
    %2782 = vmatpush1.msra.mxu0 0.0
    %2783 = vmatprep.subr.mxu0 0.0
    %2784 = vmatpush1.msra.mxu0 0.0
    %2785 = vmatprep.subr.mxu0 0.0
    %2786 = vmatpush1.msra.mxu0 0.0
    %2787 = vmatprep.subr.mxu0 0.0
    %2788 = vmatpush1.msra.mxu0 0.0
    %2789 = vmatprep.subr.mxu0 0.0
    %2790 = vmatpush1.msra.mxu0 0.0
    %2791 = vmatprep.subr.mxu0 0.0
    %2792 = vmatpush1.msra.mxu0 0.0
    %2793 = vmatprep.subr.mxu0 0.0
    %2794 = vmatpush1.msra.mxu0 0.0
    %2795 = vmatprep.subr.mxu0 0.0
    %2796 = vmatpush1.msra.mxu0 0.0
    %2797 = vmatprep.subr.mxu0 0.0
    %2798 = vmatpush1.msra.mxu0 0.0
    %2799 = vmatprep.subr.mxu0 0.0
    %2800 = vmatpush1.msra.mxu0 0.0
    %2801 = vmatprep.subr.mxu0 0.0
    %2802 = vmatpush1.msra.mxu0 0.0
    %2803 = vmatprep.subr.mxu0 0.0
    %2804 = vmatpush1.msra.mxu0 0.0
    %2805 = vmatprep.mubr.f32.mxu0 0.0
    %2806 = vmatmul.mubr.f32.gmra.mrb[0].mxu0 %v2739
    %v2807 = vpop.f32.mrb[0].mxu0
    %v2808 = vadd.f32 %v2182, %v2807
    %v2809 = vpop.f32.mrb[0].mxu0
    %v2810 = vadd.f32 %v2186, %v2809
    %2811 = vdwg.mxu0
    %2812 = vmatprep.subr.mxu0 0.0
    %2813 = vmatpush1.msra.mxu0 %v195
    %2814 = vmatprep.subr.mxu0 0.0
    %2815 = vmatpush1.msra.mxu0 %v198
    %2816 = vmatprep.subr.mxu0 0.0
    %2817 = vmatpush1.msra.mxu0 %v201
    %2818 = vmatprep.subr.mxu0 0.0
    %2819 = vmatpush1.msra.mxu0 %v204
    %2820 = vmatprep.subr.mxu0 0.0
    %2821 = vmatpush1.msra.mxu0 0.0
    %2822 = vmatprep.subr.mxu0 0.0
    %2823 = vmatpush1.msra.mxu0 0.0
    %2824 = vmatprep.subr.mxu0 0.0
    %2825 = vmatpush1.msra.mxu0 0.0
    %2826 = vmatprep.subr.mxu0 0.0
    %2827 = vmatpush1.msra.mxu0 0.0
    %2828 = vmatprep.subr.mxu0 0.0
    %2829 = vmatpush1.msra.mxu0 0.0
    %2830 = vmatprep.subr.mxu0 0.0
    %2831 = vmatpush1.msra.mxu0 0.0
    %2832 = vmatprep.subr.mxu0 0.0
    %2833 = vmatpush1.msra.mxu0 0.0
    %2834 = vmatprep.subr.mxu0 0.0
    %2835 = vmatpush1.msra.mxu0 0.0
    %2836 = vmatprep.subr.mxu0 0.0
    %2837 = vmatpush1.msra.mxu0 0.0
    %2838 = vmatprep.subr.mxu0 0.0
    %2839 = vmatpush1.msra.mxu0 0.0
    %2840 = vmatprep.subr.mxu0 0.0
    %2841 = vmatpush1.msra.mxu0 0.0
    %2842 = vmatprep.subr.mxu0 0.0
    %2843 = vmatpush1.msra.mxu0 0.0
    %2844 = vmatprep.subr.mxu0 0.0
    %2845 = vmatpush1.msra.mxu0 0.0
    %2846 = vmatprep.subr.mxu0 0.0
    %2847 = vmatpush1.msra.mxu0 0.0
    %2848 = vmatprep.subr.mxu0 0.0
    %2849 = vmatpush1.msra.mxu0 0.0
    %2850 = vmatprep.subr.mxu0 0.0
    %2851 = vmatpush1.msra.mxu0 0.0
    %2852 = vmatprep.subr.mxu0 0.0
    %2853 = vmatpush1.msra.mxu0 0.0
    %2854 = vmatprep.subr.mxu0 0.0
    %2855 = vmatpush1.msra.mxu0 0.0
    %2856 = vmatprep.subr.mxu0 0.0
    %2857 = vmatpush1.msra.mxu0 0.0
    %2858 = vmatprep.subr.mxu0 0.0
    %2859 = vmatpush1.msra.mxu0 0.0
    %2860 = vmatprep.subr.mxu0 0.0
    %2861 = vmatpush1.msra.mxu0 0.0
    %2862 = vmatprep.subr.mxu0 0.0
    %2863 = vmatpush1.msra.mxu0 0.0
    %2864 = vmatprep.subr.mxu0 0.0
    %2865 = vmatpush1.msra.mxu0 0.0
    %2866 = vmatprep.subr.mxu0 0.0
    %2867 = vmatpush1.msra.mxu0 0.0
    %2868 = vmatprep.subr.mxu0 0.0
    %2869 = vmatpush1.msra.mxu0 0.0
    %2870 = vmatprep.subr.mxu0 0.0
    %2871 = vmatpush1.msra.mxu0 0.0
    %2872 = vmatprep.subr.mxu0 0.0
    %2873 = vmatpush1.msra.mxu0 0.0
    %2874 = vmatprep.subr.mxu0 0.0
    %2875 = vmatpush1.msra.mxu0 0.0
    %2876 = vmatprep.mubr.f32.mxu0 0.0
    %2877 = vmatmul.mubr.f32.gmra.mrb[0].mxu0 %v2739
    %v2878 = vpop.f32.mrb[0].mxu0
    %v2879 = vadd.f32 %v2190, %v2878
    %v2880 = vpop.f32.mrb[0].mxu0
    %2881 = vdwg.mxu0
    %v2884 = vrot.slane %v2808, 4
    %v2885 = vrot.slane %v2810, 4
    %v2888 = vadd.f32 %v584, %v2884
    %v2889 = vadd.f32 %v586, %v2885
    %v2890 = vxor.u32 %v2888, 2147483648
    %v2891 = vmul.f32 %v2890, 1.442695
    %v2892 = vpow.pop %v2891
    %v2893 = vadd.f32 %v2892, 1.0
    %v2894 = vrcp.pop %v2893
    %v2895 = vmul.f32 1.0, %v2894
    %v2896 = vxor.u32 %v2889, 2147483648
    %v2897 = vmul.f32 %v2896, 1.442695
    %v2898 = vpow.pop %v2897
    %v2899 = vadd.f32 %v2898, 1.0
    %v2900 = vrcp.pop %v2899
    %v2901 = vmul.f32 1.0, %v2900
    %v2903 = vrot.slane %v2879, 4
    %v2905 = vmul.f32 %v2895, %v2903
    %v2906 = vadd.f32 %v655, %v2905
    %v2907 = vtanh.pop %v2906
    %v2908 = vsub.f32 1.0, %v2901
    %v2909 = vmul.f32 %v2908, %v2907
    %v2910 = vrot.slane %v2735, 1
    %v2912 = vmul.f32 %v2901, %v2910
    %v2913 = vadd.f32 %v2909, %v2912
    %v2914 = vmul.f32 %v1598, %v2913
    %v2915 = vmul.f32 %v1601, %v2735
    %v2917 = vrot.slane %v2915, 1
    %v2919 = vadd.f32 %v2914, %v2917
    %v2920 = vmul.f32 %v1598, %v2919
    %v2922 = vrot.slane %v2919, 4
    %v2923 = vsel %vm343, %v2922, 0
    %2925 = vmatprep.subr.mxu0 %v194
    %2926 = vmatpush1.msra.mxu0 %v193
    %2927 = vmatprep.subr.mxu0 %v197
    %2928 = vmatpush1.msra.mxu0 %v196
    %2929 = vmatprep.subr.mxu0 %v200
    %2930 = vmatpush1.msra.mxu0 %v199
    %2931 = vmatprep.subr.mxu0 %v203
    %2932 = vmatpush1.msra.mxu0 %v202
    %2933 = vmatprep.subr.mxu0 0.0
    %2934 = vmatpush1.msra.mxu0 0.0
    %2935 = vmatprep.subr.mxu0 0.0
    %2936 = vmatpush1.msra.mxu0 0.0
    %2937 = vmatprep.subr.mxu0 0.0
    %2938 = vmatpush1.msra.mxu0 0.0
    %2939 = vmatprep.subr.mxu0 0.0
    %2940 = vmatpush1.msra.mxu0 0.0
    %2941 = vmatprep.subr.mxu0 0.0
    %2942 = vmatpush1.msra.mxu0 0.0
    %2943 = vmatprep.subr.mxu0 0.0
    %2944 = vmatpush1.msra.mxu0 0.0
    %2945 = vmatprep.subr.mxu0 0.0
    %2946 = vmatpush1.msra.mxu0 0.0
    %2947 = vmatprep.subr.mxu0 0.0
    %2948 = vmatpush1.msra.mxu0 0.0
    %2949 = vmatprep.subr.mxu0 0.0
    %2950 = vmatpush1.msra.mxu0 0.0
    %2951 = vmatprep.subr.mxu0 0.0
    %2952 = vmatpush1.msra.mxu0 0.0
    %2953 = vmatprep.subr.mxu0 0.0
    %2954 = vmatpush1.msra.mxu0 0.0
    %2955 = vmatprep.subr.mxu0 0.0
    %2956 = vmatpush1.msra.mxu0 0.0
    %2957 = vmatprep.subr.mxu0 0.0
    %2958 = vmatpush1.msra.mxu0 0.0
    %2959 = vmatprep.subr.mxu0 0.0
    %2960 = vmatpush1.msra.mxu0 0.0
    %2961 = vmatprep.subr.mxu0 0.0
    %2962 = vmatpush1.msra.mxu0 0.0
    %2963 = vmatprep.subr.mxu0 0.0
    %2964 = vmatpush1.msra.mxu0 0.0
    %2965 = vmatprep.subr.mxu0 0.0
    %2966 = vmatpush1.msra.mxu0 0.0
    %2967 = vmatprep.subr.mxu0 0.0
    %2968 = vmatpush1.msra.mxu0 0.0
    %2969 = vmatprep.subr.mxu0 0.0
    %2970 = vmatpush1.msra.mxu0 0.0
    %2971 = vmatprep.subr.mxu0 0.0
    %2972 = vmatpush1.msra.mxu0 0.0
    %2973 = vmatprep.subr.mxu0 0.0
    %2974 = vmatpush1.msra.mxu0 0.0
    %2975 = vmatprep.subr.mxu0 0.0
    %2976 = vmatpush1.msra.mxu0 0.0
    %2977 = vmatprep.subr.mxu0 0.0
    %2978 = vmatpush1.msra.mxu0 0.0
    %2979 = vmatprep.subr.mxu0 0.0
    %2980 = vmatpush1.msra.mxu0 0.0
    %2981 = vmatprep.subr.mxu0 0.0
    %2982 = vmatpush1.msra.mxu0 0.0
    %2983 = vmatprep.subr.mxu0 0.0
    %2984 = vmatpush1.msra.mxu0 0.0
    %2985 = vmatprep.subr.mxu0 0.0
    %2986 = vmatpush1.msra.mxu0 0.0
    %2987 = vmatprep.subr.mxu0 0.0
    %2988 = vmatpush1.msra.mxu0 0.0
    %2989 = vmatprep.mubr.f32.mxu0 0.0
    %2990 = vmatmul.mubr.f32.gmra.mrb[0].mxu0 %v2923
    %v2991 = vpop.f32.mrb[0].mxu0
    %v2992 = vadd.f32 %v2182, %v2991
    %v2993 = vpop.f32.mrb[0].mxu0
    %v2994 = vadd.f32 %v2186, %v2993
    %2995 = vdwg.mxu0
    %2996 = vmatprep.subr.mxu0 0.0
    %2997 = vmatpush1.msra.mxu0 %v195
    %2998 = vmatprep.subr.mxu0 0.0
    %2999 = vmatpush1.msra.mxu0 %v198
    %3000 = vmatprep.subr.mxu0 0.0
    %3001 = vmatpush1.msra.mxu0 %v201
    %3002 = vmatprep.subr.mxu0 0.0
    %3003 = vmatpush1.msra.mxu0 %v204
    %3004 = vmatprep.subr.mxu0 0.0
    %3005 = vmatpush1.msra.mxu0 0.0
    %3006 = vmatprep.subr.mxu0 0.0
    %3007 = vmatpush1.msra.mxu0 0.0
    %3008 = vmatprep.subr.mxu0 0.0
    %3009 = vmatpush1.msra.mxu0 0.0
    %3010 = vmatprep.subr.mxu0 0.0
    %3011 = vmatpush1.msra.mxu0 0.0
    %3012 = vmatprep.subr.mxu0 0.0
    %3013 = vmatpush1.msra.mxu0 0.0
    %3014 = vmatprep.subr.mxu0 0.0
    %3015 = vmatpush1.msra.mxu0 0.0
    %3016 = vmatprep.subr.mxu0 0.0
    %3017 = vmatpush1.msra.mxu0 0.0
    %3018 = vmatprep.subr.mxu0 0.0
    %3019 = vmatpush1.msra.mxu0 0.0
    %3020 = vmatprep.subr.mxu0 0.0
    %3021 = vmatpush1.msra.mxu0 0.0
    %3022 = vmatprep.subr.mxu0 0.0
    %3023 = vmatpush1.msra.mxu0 0.0
    %3024 = vmatprep.subr.mxu0 0.0
    %3025 = vmatpush1.msra.mxu0 0.0
    %3026 = vmatprep.subr.mxu0 0.0
    %3027 = vmatpush1.msra.mxu0 0.0
    %3028 = vmatprep.subr.mxu0 0.0
    %3029 = vmatpush1.msra.mxu0 0.0
    %3030 = vmatprep.subr.mxu0 0.0
    %3031 = vmatpush1.msra.mxu0 0.0
    %3032 = vmatprep.subr.mxu0 0.0
    %3033 = vmatpush1.msra.mxu0 0.0
    %3034 = vmatprep.subr.mxu0 0.0
    %3035 = vmatpush1.msra.mxu0 0.0
    %3036 = vmatprep.subr.mxu0 0.0
    %3037 = vmatpush1.msra.mxu0 0.0
    %3038 = vmatprep.subr.mxu0 0.0
    %3039 = vmatpush1.msra.mxu0 0.0
    %3040 = vmatprep.subr.mxu0 0.0
    %3041 = vmatpush1.msra.mxu0 0.0
    %3042 = vmatprep.subr.mxu0 0.0
    %3043 = vmatpush1.msra.mxu0 0.0
    %3044 = vmatprep.subr.mxu0 0.0
    %3045 = vmatpush1.msra.mxu0 0.0
    %3046 = vmatprep.subr.mxu0 0.0
    %3047 = vmatpush1.msra.mxu0 0.0
    %3048 = vmatprep.subr.mxu0 0.0
    %3049 = vmatpush1.msra.mxu0 0.0
    %3050 = vmatprep.subr.mxu0 0.0
    %3051 = vmatpush1.msra.mxu0 0.0
    %3052 = vmatprep.subr.mxu0 0.0
    %3053 = vmatpush1.msra.mxu0 0.0
    %3054 = vmatprep.subr.mxu0 0.0
    %3055 = vmatpush1.msra.mxu0 0.0
    %3056 = vmatprep.subr.mxu0 0.0
    %3057 = vmatpush1.msra.mxu0 0.0
    %3058 = vmatprep.subr.mxu0 0.0
    %3059 = vmatpush1.msra.mxu0 0.0
    %3060 = vmatprep.mubr.f32.mxu0 0.0
    %3061 = vmatmul.mubr.f32.gmra.mrb[0].mxu0 %v2923
    %v3062 = vpop.f32.mrb[0].mxu0
    %v3063 = vadd.f32 %v2190, %v3062
    %v3064 = vpop.f32.mrb[0].mxu0
    %3065 = vdwg.mxu0
    %v3068 = vrot.slane %v2992, 5
    %v3069 = vrot.slane %v2994, 5
    %v3072 = vadd.f32 %v584, %v3068
    %v3073 = vadd.f32 %v586, %v3069
    %v3074 = vxor.u32 %v3072, 2147483648
    %v3075 = vmul.f32 %v3074, 1.442695
    %v3076 = vpow.pop %v3075
    %v3077 = vadd.f32 %v3076, 1.0
    %v3078 = vrcp.pop %v3077
    %v3079 = vmul.f32 1.0, %v3078
    %v3080 = vxor.u32 %v3073, 2147483648
    %v3081 = vmul.f32 %v3080, 1.442695
    %v3082 = vpow.pop %v3081
    %v3083 = vadd.f32 %v3082, 1.0
    %v3084 = vrcp.pop %v3083
    %v3085 = vmul.f32 1.0, %v3084
    %v3087 = vrot.slane %v3063, 5
    %v3089 = vmul.f32 %v3079, %v3087
    %v3090 = vadd.f32 %v655, %v3089
    %v3091 = vtanh.pop %v3090
    %v3092 = vsub.f32 1.0, %v3085
    %v3093 = vmul.f32 %v3092, %v3091
    %v3094 = vrot.slane %v2919, 1
    %v3096 = vmul.f32 %v3085, %v3094
    %v3097 = vadd.f32 %v3093, %v3096
    %v3098 = vmul.f32 %v1408, %v3097
    %v3099 = vmul.f32 %v1411, %v2919
    %v3101 = vrot.slane %v3099, 1
    %v3103 = vadd.f32 %v3098, %v3101
    %v3104 = vmul.f32 %v1408, %v3103
    %v3106 = vrot.slane %v3103, 3
    %v3107 = vsel %vm343, %v3106, 0
    %3109 = vmatprep.subr.mxu0 %v194
    %3110 = vmatpush1.msra.mxu0 %v193
    %3111 = vmatprep.subr.mxu0 %v197
    %3112 = vmatpush1.msra.mxu0 %v196
    %3113 = vmatprep.subr.mxu0 %v200
    %3114 = vmatpush1.msra.mxu0 %v199
    %3115 = vmatprep.subr.mxu0 %v203
    %3116 = vmatpush1.msra.mxu0 %v202
    %3117 = vmatprep.subr.mxu0 0.0
    %3118 = vmatpush1.msra.mxu0 0.0
    %3119 = vmatprep.subr.mxu0 0.0
    %3120 = vmatpush1.msra.mxu0 0.0
    %3121 = vmatprep.subr.mxu0 0.0
    %3122 = vmatpush1.msra.mxu0 0.0
    %3123 = vmatprep.subr.mxu0 0.0
    %3124 = vmatpush1.msra.mxu0 0.0
    %3125 = vmatprep.subr.mxu0 0.0
    %3126 = vmatpush1.msra.mxu0 0.0
    %3127 = vmatprep.subr.mxu0 0.0
    %3128 = vmatpush1.msra.mxu0 0.0
    %3129 = vmatprep.subr.mxu0 0.0
    %3130 = vmatpush1.msra.mxu0 0.0
    %3131 = vmatprep.subr.mxu0 0.0
    %3132 = vmatpush1.msra.mxu0 0.0
    %3133 = vmatprep.subr.mxu0 0.0
    %3134 = vmatpush1.msra.mxu0 0.0
    %3135 = vmatprep.subr.mxu0 0.0
    %3136 = vmatpush1.msra.mxu0 0.0
    %3137 = vmatprep.subr.mxu0 0.0
    %3138 = vmatpush1.msra.mxu0 0.0
    %3139 = vmatprep.subr.mxu0 0.0
    %3140 = vmatpush1.msra.mxu0 0.0
    %3141 = vmatprep.subr.mxu0 0.0
    %3142 = vmatpush1.msra.mxu0 0.0
    %3143 = vmatprep.subr.mxu0 0.0
    %3144 = vmatpush1.msra.mxu0 0.0
    %3145 = vmatprep.subr.mxu0 0.0
    %3146 = vmatpush1.msra.mxu0 0.0
    %3147 = vmatprep.subr.mxu0 0.0
    %3148 = vmatpush1.msra.mxu0 0.0
    %3149 = vmatprep.subr.mxu0 0.0
    %3150 = vmatpush1.msra.mxu0 0.0
    %3151 = vmatprep.subr.mxu0 0.0
    %3152 = vmatpush1.msra.mxu0 0.0
    %3153 = vmatprep.subr.mxu0 0.0
    %3154 = vmatpush1.msra.mxu0 0.0
    %3155 = vmatprep.subr.mxu0 0.0
    %3156 = vmatpush1.msra.mxu0 0.0
    %3157 = vmatprep.subr.mxu0 0.0
    %3158 = vmatpush1.msra.mxu0 0.0
    %3159 = vmatprep.subr.mxu0 0.0
    %3160 = vmatpush1.msra.mxu0 0.0
    %3161 = vmatprep.subr.mxu0 0.0
    %3162 = vmatpush1.msra.mxu0 0.0
    %3163 = vmatprep.subr.mxu0 0.0
    %3164 = vmatpush1.msra.mxu0 0.0
    %3165 = vmatprep.subr.mxu0 0.0
    %3166 = vmatpush1.msra.mxu0 0.0
    %3167 = vmatprep.subr.mxu0 0.0
    %3168 = vmatpush1.msra.mxu0 0.0
    %3169 = vmatprep.subr.mxu0 0.0
    %3170 = vmatpush1.msra.mxu0 0.0
    %3171 = vmatprep.subr.mxu0 0.0
    %3172 = vmatpush1.msra.mxu0 0.0
    %3173 = vmatprep.mubr.f32.mxu0 0.0
    %3174 = vmatmul.mubr.f32.gmra.mrb[0].mxu0 %v3107
    %v3175 = vpop.f32.mrb[0].mxu0
    %v3176 = vadd.f32 %v2182, %v3175
    %v3177 = vpop.f32.mrb[0].mxu0
    %v3178 = vadd.f32 %v2186, %v3177
    %3179 = vdwg.mxu0
    %3180 = vmatprep.subr.mxu0 0.0
    %3181 = vmatpush1.msra.mxu0 %v195
    %3182 = vmatprep.subr.mxu0 0.0
    %3183 = vmatpush1.msra.mxu0 %v198
    %3184 = vmatprep.subr.mxu0 0.0
    %3185 = vmatpush1.msra.mxu0 %v201
    %3186 = vmatprep.subr.mxu0 0.0
    %3187 = vmatpush1.msra.mxu0 %v204
    %3188 = vmatprep.subr.mxu0 0.0
    %3189 = vmatpush1.msra.mxu0 0.0
    %3190 = vmatprep.subr.mxu0 0.0
    %3191 = vmatpush1.msra.mxu0 0.0
    %3192 = vmatprep.subr.mxu0 0.0
    %3193 = vmatpush1.msra.mxu0 0.0
    %3194 = vmatprep.subr.mxu0 0.0
    %3195 = vmatpush1.msra.mxu0 0.0
    %3196 = vmatprep.subr.mxu0 0.0
    %3197 = vmatpush1.msra.mxu0 0.0
    %3198 = vmatprep.subr.mxu0 0.0
    %3199 = vmatpush1.msra.mxu0 0.0
    %3200 = vmatprep.subr.mxu0 0.0
    %3201 = vmatpush1.msra.mxu0 0.0
    %3202 = vmatprep.subr.mxu0 0.0
    %3203 = vmatpush1.msra.mxu0 0.0
    %3204 = vmatprep.subr.mxu0 0.0
    %3205 = vmatpush1.msra.mxu0 0.0
    %3206 = vmatprep.subr.mxu0 0.0
    %3207 = vmatpush1.msra.mxu0 0.0
    %3208 = vmatprep.subr.mxu0 0.0
    %3209 = vmatpush1.msra.mxu0 0.0
    %3210 = vmatprep.subr.mxu0 0.0
    %3211 = vmatpush1.msra.mxu0 0.0
    %3212 = vmatprep.subr.mxu0 0.0
    %3213 = vmatpush1.msra.mxu0 0.0
    %3214 = vmatprep.subr.mxu0 0.0
    %3215 = vmatpush1.msra.mxu0 0.0
    %3216 = vmatprep.subr.mxu0 0.0
    %3217 = vmatpush1.msra.mxu0 0.0
    %3218 = vmatprep.subr.mxu0 0.0
    %3219 = vmatpush1.msra.mxu0 0.0
    %3220 = vmatprep.subr.mxu0 0.0
    %3221 = vmatpush1.msra.mxu0 0.0
    %3222 = vmatprep.subr.mxu0 0.0
    %3223 = vmatpush1.msra.mxu0 0.0
    %3224 = vmatprep.subr.mxu0 0.0
    %3225 = vmatpush1.msra.mxu0 0.0
    %3226 = vmatprep.subr.mxu0 0.0
    %3227 = vmatpush1.msra.mxu0 0.0
    %3228 = vmatprep.subr.mxu0 0.0
    %3229 = vmatpush1.msra.mxu0 0.0
    %3230 = vmatprep.subr.mxu0 0.0
    %3231 = vmatpush1.msra.mxu0 0.0
    %3232 = vmatprep.subr.mxu0 0.0
    %3233 = vmatpush1.msra.mxu0 0.0
    %3234 = vmatprep.subr.mxu0 0.0
    %3235 = vmatpush1.msra.mxu0 0.0
    %3236 = vmatprep.subr.mxu0 0.0
    %3237 = vmatpush1.msra.mxu0 0.0
    %3238 = vmatprep.subr.mxu0 0.0
    %3239 = vmatpush1.msra.mxu0 0.0
    %3240 = vmatprep.subr.mxu0 0.0
    %3241 = vmatpush1.msra.mxu0 0.0
    %3242 = vmatprep.subr.mxu0 0.0
    %3243 = vmatpush1.msra.mxu0 0.0
    %3244 = vmatprep.mubr.f32.mxu0 0.0
    %3245 = vmatmul.mubr.f32.gmra.mrb[0].mxu0 %v3107
    %v3246 = vpop.f32.mrb[0].mxu0
    %v3247 = vadd.f32 %v2190, %v3246
    %v3248 = vpop.f32.mrb[0].mxu0
    %3249 = vdwg.mxu0
    %v3252 = vrot.slane %v3176, 6
    %v3253 = vrot.slane %v3178, 6
    %v3256 = vadd.f32 %v584, %v3252
    %v3257 = vadd.f32 %v586, %v3253
    %v3258 = vxor.u32 %v3256, 2147483648
    %v3259 = vmul.f32 %v3258, 1.442695
    %v3260 = vpow.pop %v3259
    %v3261 = vadd.f32 %v3260, 1.0
    %v3262 = vrcp.pop %v3261
    %v3263 = vmul.f32 1.0, %v3262
    %v3264 = vxor.u32 %v3257, 2147483648
    %v3265 = vmul.f32 %v3264, 1.442695
    %v3266 = vpow.pop %v3265
    %v3267 = vadd.f32 %v3266, 1.0
    %v3268 = vrcp.pop %v3267
    %v3269 = vmul.f32 1.0, %v3268
    %v3271 = vrot.slane %v3247, 6
    %v3273 = vmul.f32 %v3263, %v3271
    %v3274 = vadd.f32 %v655, %v3273
    %v3275 = vtanh.pop %v3274
    %v3276 = vsub.f32 1.0, %v3269
    %v3277 = vmul.f32 %v3276, %v3275
    %v3278 = vrot.slane %v3103, 1
    %v3280 = vmul.f32 %v3269, %v3278
    %v3281 = vadd.f32 %v3277, %v3280
    %v3282 = vmul.f32 %v1218, %v3281
    %v3283 = vmul.f32 %v1221, %v3103
    %v3285 = vrot.slane %v3283, 1
    %v3287 = vadd.f32 %v3282, %v3285
    %v3288 = vmul.f32 %v1218, %v3287
    %v3290 = vrot.slane %v3287, 2
    %v3291 = vsel %vm343, %v3290, 0
    %3293 = vmatprep.subr.mxu0 %v194
    %3294 = vmatpush1.msra.mxu0 %v193
    %3295 = vmatprep.subr.mxu0 %v197
    %3296 = vmatpush1.msra.mxu0 %v196
    %3297 = vmatprep.subr.mxu0 %v200
    %3298 = vmatpush1.msra.mxu0 %v199
    %3299 = vmatprep.subr.mxu0 %v203
    %3300 = vmatpush1.msra.mxu0 %v202
    %3301 = vmatprep.subr.mxu0 0.0
    %3302 = vmatpush1.msra.mxu0 0.0
    %3303 = vmatprep.subr.mxu0 0.0
    %3304 = vmatpush1.msra.mxu0 0.0
    %3305 = vmatprep.subr.mxu0 0.0
    %3306 = vmatpush1.msra.mxu0 0.0
    %3307 = vmatprep.subr.mxu0 0.0
    %3308 = vmatpush1.msra.mxu0 0.0
    %3309 = vmatprep.subr.mxu0 0.0
    %3310 = vmatpush1.msra.mxu0 0.0
    %3311 = vmatprep.subr.mxu0 0.0
    %3312 = vmatpush1.msra.mxu0 0.0
    %3313 = vmatprep.subr.mxu0 0.0
    %3314 = vmatpush1.msra.mxu0 0.0
    %3315 = vmatprep.subr.mxu0 0.0
    %3316 = vmatpush1.msra.mxu0 0.0
    %3317 = vmatprep.subr.mxu0 0.0
    %3318 = vmatpush1.msra.mxu0 0.0
    %3319 = vmatprep.subr.mxu0 0.0
    %3320 = vmatpush1.msra.mxu0 0.0
    %3321 = vmatprep.subr.mxu0 0.0
    %3322 = vmatpush1.msra.mxu0 0.0
    %3323 = vmatprep.subr.mxu0 0.0
    %3324 = vmatpush1.msra.mxu0 0.0
    %3325 = vmatprep.subr.mxu0 0.0
    %3326 = vmatpush1.msra.mxu0 0.0
    %3327 = vmatprep.subr.mxu0 0.0
    %3328 = vmatpush1.msra.mxu0 0.0
    %3329 = vmatprep.subr.mxu0 0.0
    %3330 = vmatpush1.msra.mxu0 0.0
    %3331 = vmatprep.subr.mxu0 0.0
    %3332 = vmatpush1.msra.mxu0 0.0
    %3333 = vmatprep.subr.mxu0 0.0
    %3334 = vmatpush1.msra.mxu0 0.0
    %3335 = vmatprep.subr.mxu0 0.0
    %3336 = vmatpush1.msra.mxu0 0.0
    %3337 = vmatprep.subr.mxu0 0.0
    %3338 = vmatpush1.msra.mxu0 0.0
    %3339 = vmatprep.subr.mxu0 0.0
    %3340 = vmatpush1.msra.mxu0 0.0
    %3341 = vmatprep.subr.mxu0 0.0
    %3342 = vmatpush1.msra.mxu0 0.0
    %3343 = vmatprep.subr.mxu0 0.0
    %3344 = vmatpush1.msra.mxu0 0.0
    %3345 = vmatprep.subr.mxu0 0.0
    %3346 = vmatpush1.msra.mxu0 0.0
    %3347 = vmatprep.subr.mxu0 0.0
    %3348 = vmatpush1.msra.mxu0 0.0
    %3349 = vmatprep.subr.mxu0 0.0
    %3350 = vmatpush1.msra.mxu0 0.0
    %3351 = vmatprep.subr.mxu0 0.0
    %3352 = vmatpush1.msra.mxu0 0.0
    %3353 = vmatprep.subr.mxu0 0.0
    %3354 = vmatpush1.msra.mxu0 0.0
    %3355 = vmatprep.subr.mxu0 0.0
    %3356 = vmatpush1.msra.mxu0 0.0
    %3357 = vmatprep.mubr.f32.mxu0 0.0
    %3358 = vmatmul.mubr.f32.gmra.mrb[0].mxu0 %v3291
    %v3359 = vpop.f32.mrb[0].mxu0
    %v3360 = vadd.f32 %v2182, %v3359
    %v3361 = vpop.f32.mrb[0].mxu0
    %v3362 = vadd.f32 %v2186, %v3361
    %3363 = vdwg.mxu0
    %3364 = vmatprep.subr.mxu0 0.0
    %3365 = vmatpush1.msra.mxu0 %v195
    %3366 = vmatprep.subr.mxu0 0.0
    %3367 = vmatpush1.msra.mxu0 %v198
    %3368 = vmatprep.subr.mxu0 0.0
    %3369 = vmatpush1.msra.mxu0 %v201
    %3370 = vmatprep.subr.mxu0 0.0
    %3371 = vmatpush1.msra.mxu0 %v204
    %3372 = vmatprep.subr.mxu0 0.0
    %3373 = vmatpush1.msra.mxu0 0.0
    %3374 = vmatprep.subr.mxu0 0.0
    %3375 = vmatpush1.msra.mxu0 0.0
    %3376 = vmatprep.subr.mxu0 0.0
    %3377 = vmatpush1.msra.mxu0 0.0
    %3378 = vmatprep.subr.mxu0 0.0
    %3379 = vmatpush1.msra.mxu0 0.0
    %3380 = vmatprep.subr.mxu0 0.0
    %3381 = vmatpush1.msra.mxu0 0.0
    %3382 = vmatprep.subr.mxu0 0.0
    %3383 = vmatpush1.msra.mxu0 0.0
    %3384 = vmatprep.subr.mxu0 0.0
    %3385 = vmatpush1.msra.mxu0 0.0
    %3386 = vmatprep.subr.mxu0 0.0
    %3387 = vmatpush1.msra.mxu0 0.0
    %3388 = vmatprep.subr.mxu0 0.0
    %3389 = vmatpush1.msra.mxu0 0.0
    %3390 = vmatprep.subr.mxu0 0.0
    %3391 = vmatpush1.msra.mxu0 0.0
    %3392 = vmatprep.subr.mxu0 0.0
    %3393 = vmatpush1.msra.mxu0 0.0
    %3394 = vmatprep.subr.mxu0 0.0
    %3395 = vmatpush1.msra.mxu0 0.0
    %3396 = vmatprep.subr.mxu0 0.0
    %3397 = vmatpush1.msra.mxu0 0.0
    %3398 = vmatprep.subr.mxu0 0.0
    %3399 = vmatpush1.msra.mxu0 0.0
    %3400 = vmatprep.subr.mxu0 0.0
    %3401 = vmatpush1.msra.mxu0 0.0
    %3402 = vmatprep.subr.mxu0 0.0
    %3403 = vmatpush1.msra.mxu0 0.0
    %3404 = vmatprep.subr.mxu0 0.0
    %3405 = vmatpush1.msra.mxu0 0.0
    %3406 = vmatprep.subr.mxu0 0.0
    %3407 = vmatpush1.msra.mxu0 0.0
    %3408 = vmatprep.subr.mxu0 0.0
    %3409 = vmatpush1.msra.mxu0 0.0
    %3410 = vmatprep.subr.mxu0 0.0
    %3411 = vmatpush1.msra.mxu0 0.0
    %3412 = vmatprep.subr.mxu0 0.0
    %3413 = vmatpush1.msra.mxu0 0.0
    %3414 = vmatprep.subr.mxu0 0.0
    %3415 = vmatpush1.msra.mxu0 0.0
    %3416 = vmatprep.subr.mxu0 0.0
    %3417 = vmatpush1.msra.mxu0 0.0
    %3418 = vmatprep.subr.mxu0 0.0
    %3419 = vmatpush1.msra.mxu0 0.0
    %3420 = vmatprep.subr.mxu0 0.0
    %3421 = vmatpush1.msra.mxu0 0.0
    %3422 = vmatprep.subr.mxu0 0.0
    %3423 = vmatpush1.msra.mxu0 0.0
    %3424 = vmatprep.subr.mxu0 0.0
    %3425 = vmatpush1.msra.mxu0 0.0
    %3426 = vmatprep.subr.mxu0 0.0
    %3427 = vmatpush1.msra.mxu0 0.0
    %3428 = vmatprep.mubr.f32.mxu0 0.0
    %3429 = vmatmul.mubr.f32.gmra.mrb[0].mxu0 %v3291
    %v3430 = vpop.f32.mrb[0].mxu0
    %v3431 = vadd.f32 %v2190, %v3430
    %v3432 = vpop.f32.mrb[0].mxu0
    %3433 = vdwg.mxu0
    %v3436 = vrot.slane %v3360, 7
    %v3437 = vrot.slane %v3362, 7
    %v3440 = vadd.f32 %v584, %v3436
    %v3441 = vadd.f32 %v586, %v3437
    %v3442 = vxor.u32 %v3440, 2147483648
    %v3443 = vmul.f32 %v3442, 1.442695
    %v3444 = vpow.pop %v3443
    %v3445 = vadd.f32 %v3444, 1.0
    %v3446 = vrcp.pop %v3445
    %v3447 = vmul.f32 1.0, %v3446
    %v3448 = vxor.u32 %v3441, 2147483648
    %v3449 = vmul.f32 %v3448, 1.442695
    %v3450 = vpow.pop %v3449
    %v3451 = vadd.f32 %v3450, 1.0
    %v3452 = vrcp.pop %v3451
    %v3453 = vmul.f32 1.0, %v3452
    %v3455 = vrot.slane %v3431, 7
    %v3457 = vmul.f32 %v3447, %v3455
    %v3458 = vadd.f32 %v655, %v3457
    %v3459 = vtanh.pop %v3458
    %v3460 = vsub.f32 1.0, %v3453
    %v3461 = vmul.f32 %v3460, %v3459
    %v3462 = vrot.slane %v3287, 1
    %v3464 = vmul.f32 %v3453, %v3462
    %v3465 = vadd.f32 %v3461, %v3464
    %v3466 = vmul.f32 %v1028, %v3465
    %v3467 = vmul.f32 %v1031, %v3287
    %v3469 = vrot.slane %v3467, 1
    %v3471 = vadd.f32 %v3466, %v3469
    %v3472 = vmul.f32 %v1028, %v3471
    %v3474 = vrot.slane %v3471, 1
    %v3475 = vsel %vm343, %v3474, 0
    %3477 = vmatprep.subr.mxu0 %v194
    %3478 = vmatpush1.msra.mxu0 %v193
    %3479 = vmatprep.subr.mxu0 %v197
    %3480 = vmatpush1.msra.mxu0 %v196
    %3481 = vmatprep.subr.mxu0 %v200
    %3482 = vmatpush1.msra.mxu0 %v199
    %3483 = vmatprep.subr.mxu0 %v203
    %3484 = vmatpush1.msra.mxu0 %v202
    %3485 = vmatprep.subr.mxu0 0.0
    %3486 = vmatpush1.msra.mxu0 0.0
    %3487 = vmatprep.subr.mxu0 0.0
    %3488 = vmatpush1.msra.mxu0 0.0
    %3489 = vmatprep.subr.mxu0 0.0
    %3490 = vmatpush1.msra.mxu0 0.0
    %3491 = vmatprep.subr.mxu0 0.0
    %3492 = vmatpush1.msra.mxu0 0.0
    %3493 = vmatprep.subr.mxu0 0.0
    %3494 = vmatpush1.msra.mxu0 0.0
    %3495 = vmatprep.subr.mxu0 0.0
    %3496 = vmatpush1.msra.mxu0 0.0
    %3497 = vmatprep.subr.mxu0 0.0
    %3498 = vmatpush1.msra.mxu0 0.0
    %3499 = vmatprep.subr.mxu0 0.0
    %3500 = vmatpush1.msra.mxu0 0.0
    %3501 = vmatprep.subr.mxu0 0.0
    %3502 = vmatpush1.msra.mxu0 0.0
    %3503 = vmatprep.subr.mxu0 0.0
    %3504 = vmatpush1.msra.mxu0 0.0
    %3505 = vmatprep.subr.mxu0 0.0
    %3506 = vmatpush1.msra.mxu0 0.0
    %3507 = vmatprep.subr.mxu0 0.0
    %3508 = vmatpush1.msra.mxu0 0.0
    %3509 = vmatprep.subr.mxu0 0.0
    %3510 = vmatpush1.msra.mxu0 0.0
    %3511 = vmatprep.subr.mxu0 0.0
    %3512 = vmatpush1.msra.mxu0 0.0
    %3513 = vmatprep.subr.mxu0 0.0
    %3514 = vmatpush1.msra.mxu0 0.0
    %3515 = vmatprep.subr.mxu0 0.0
    %3516 = vmatpush1.msra.mxu0 0.0
    %3517 = vmatprep.subr.mxu0 0.0
    %3518 = vmatpush1.msra.mxu0 0.0
    %3519 = vmatprep.subr.mxu0 0.0
    %3520 = vmatpush1.msra.mxu0 0.0
    %3521 = vmatprep.subr.mxu0 0.0
    %3522 = vmatpush1.msra.mxu0 0.0
    %3523 = vmatprep.subr.mxu0 0.0
    %3524 = vmatpush1.msra.mxu0 0.0
    %3525 = vmatprep.subr.mxu0 0.0
    %3526 = vmatpush1.msra.mxu0 0.0
    %3527 = vmatprep.subr.mxu0 0.0
    %3528 = vmatpush1.msra.mxu0 0.0
    %3529 = vmatprep.subr.mxu0 0.0
    %3530 = vmatpush1.msra.mxu0 0.0
    %3531 = vmatprep.subr.mxu0 0.0
    %3532 = vmatpush1.msra.mxu0 0.0
    %3533 = vmatprep.subr.mxu0 0.0
    %3534 = vmatpush1.msra.mxu0 0.0
    %3535 = vmatprep.subr.mxu0 0.0
    %3536 = vmatpush1.msra.mxu0 0.0
    %3537 = vmatprep.subr.mxu0 0.0
    %3538 = vmatpush1.msra.mxu0 0.0
    %3539 = vmatprep.subr.mxu0 0.0
    %3540 = vmatpush1.msra.mxu0 0.0
    %3541 = vmatprep.mubr.f32.mxu0 0.0
    %3542 = vmatmul.mubr.f32.gmra.mrb[0].mxu0 %v3475
    %v3543 = vpop.f32.mrb[0].mxu0
    %v3544 = vadd.f32 %v2182, %v3543
    %v3545 = vpop.f32.mrb[0].mxu0
    %v3546 = vadd.f32 %v2186, %v3545
    %3547 = vdwg.mxu0
    %3548 = vmatprep.subr.mxu0 0.0
    %3549 = vmatpush1.msra.mxu0 %v195
    %3550 = vmatprep.subr.mxu0 0.0
    %3551 = vmatpush1.msra.mxu0 %v198
    %3552 = vmatprep.subr.mxu0 0.0
    %3553 = vmatpush1.msra.mxu0 %v201
    %3554 = vmatprep.subr.mxu0 0.0
    %3555 = vmatpush1.msra.mxu0 %v204
    %3556 = vmatprep.subr.mxu0 0.0
    %3557 = vmatpush1.msra.mxu0 0.0
    %3558 = vmatprep.subr.mxu0 0.0
    %3559 = vmatpush1.msra.mxu0 0.0
    %3560 = vmatprep.subr.mxu0 0.0
    %3561 = vmatpush1.msra.mxu0 0.0
    %3562 = vmatprep.subr.mxu0 0.0
    %3563 = vmatpush1.msra.mxu0 0.0
    %3564 = vmatprep.subr.mxu0 0.0
    %3565 = vmatpush1.msra.mxu0 0.0
    %3566 = vmatprep.subr.mxu0 0.0
    %3567 = vmatpush1.msra.mxu0 0.0
    %3568 = vmatprep.subr.mxu0 0.0
    %3569 = vmatpush1.msra.mxu0 0.0
    %3570 = vmatprep.subr.mxu0 0.0
    %3571 = vmatpush1.msra.mxu0 0.0
    %3572 = vmatprep.subr.mxu0 0.0
    %3573 = vmatpush1.msra.mxu0 0.0
    %3574 = vmatprep.subr.mxu0 0.0
    %3575 = vmatpush1.msra.mxu0 0.0
    %3576 = vmatprep.subr.mxu0 0.0
    %3577 = vmatpush1.msra.mxu0 0.0
    %3578 = vmatprep.subr.mxu0 0.0
    %3579 = vmatpush1.msra.mxu0 0.0
    %3580 = vmatprep.subr.mxu0 0.0
    %3581 = vmatpush1.msra.mxu0 0.0
    %3582 = vmatprep.subr.mxu0 0.0
    %3583 = vmatpush1.msra.mxu0 0.0
    %3584 = vmatprep.subr.mxu0 0.0
    %3585 = vmatpush1.msra.mxu0 0.0
    %3586 = vmatprep.subr.mxu0 0.0
    %3587 = vmatpush1.msra.mxu0 0.0
    %3588 = vmatprep.subr.mxu0 0.0
    %3589 = vmatpush1.msra.mxu0 0.0
    %3590 = vmatprep.subr.mxu0 0.0
    %3591 = vmatpush1.msra.mxu0 0.0
    %3592 = vmatprep.subr.mxu0 0.0
    %3593 = vmatpush1.msra.mxu0 0.0
    %3594 = vmatprep.subr.mxu0 0.0
    %3595 = vmatpush1.msra.mxu0 0.0
    %3596 = vmatprep.subr.mxu0 0.0
    %3597 = vmatpush1.msra.mxu0 0.0
    %3598 = vmatprep.subr.mxu0 0.0
    %3599 = vmatpush1.msra.mxu0 0.0
    %3600 = vmatprep.subr.mxu0 0.0
    %3601 = vmatpush1.msra.mxu0 0.0
    %3602 = vmatprep.subr.mxu0 0.0
    %3603 = vmatpush1.msra.mxu0 0.0
    %3604 = vmatprep.subr.mxu0 0.0
    %3605 = vmatpush1.msra.mxu0 0.0
    %3606 = vmatprep.subr.mxu0 0.0
    %3607 = vmatpush1.msra.mxu0 0.0
    %3608 = vmatprep.subr.mxu0 0.0
    %3609 = vmatpush1.msra.mxu0 0.0
    %3610 = vmatprep.subr.mxu0 0.0
    %3611 = vmatpush1.msra.mxu0 0.0
    %3612 = vmatprep.mubr.f32.mxu0 0.0
    %3613 = vmatmul.mubr.f32.gmra.mrb[0].mxu0 %v3475
    %v3614 = vpop.f32.mrb[0].mxu0
    %v3615 = vadd.f32 %v2190, %v3614
    %v3616 = vpop.f32.mrb[0].mxu0
    %3617 = vdwg.mxu0
    %v3618 = vadd.f32 %v584, %v3544
    %v3619 = vadd.f32 %v586, %v3546
    %v3620 = vxor.u32 %v3618, 2147483648
    %v3621 = vmul.f32 %v3620, 1.442695
    %v3622 = vpow.pop %v3621
    %v3623 = vadd.f32 %v3622, 1.0
    %v3624 = vrcp.pop %v3623
    %v3625 = vmul.f32 1.0, %v3624
    %v3626 = vxor.u32 %v3619, 2147483648
    %v3627 = vmul.f32 %v3626, 1.442695
    %v3628 = vpow.pop %v3627
    %v3629 = vadd.f32 %v3628, 1.0
    %v3630 = vrcp.pop %v3629
    %v3631 = vmul.f32 1.0, %v3630
    %v3632 = vmul.f32 %v3625, %v3615
    %v3633 = vadd.f32 %v655, %v3632
    %v3634 = vtanh.pop %v3633
    %v3635 = vsub.f32 1.0, %v3631
    %v3636 = vmul.f32 %v3635, %v3634
    %v3638 = vmul.f32 %v3631, %v3474
    %v3639 = vadd.f32 %v3636, %v3638
    %v3640 = vmul.f32 %v842, %v3639
    %v3641 = vmul.f32 %v845, %v3471
    %v3643 = vrot.slane %v3641, 1
    %v3645 = vadd.f32 %v3640, %v3643
    %v3646 = vmul.f32 %v842, %v3645
    %v3647 = vsel %vm300, %v848, %v1037
    %v3648 = vsel %vm302, %v3647, %v1227
    %v3649 = vsel %vm304, %v3648, %v1417
    %v3650 = vsel %vm306, %v3649, %v1607
    %v3651 = vsel %vm308, %v3650, %v1797
    %v3652 = vsel %vm310, %v3651, %v1987
    %v3653 = vsel %vm312, %v3652, %v2177
    %v3654 = vsel %vm300, %v3646, %v3472
    %v3655 = vsel %vm302, %v3654, %v3288
    %v3656 = vsel %vm304, %v3655, %v3104
    %v3657 = vsel %vm306, %v3656, %v2920
    %v3658 = vsel %vm308, %v3657, %v2736
    %v3659 = vsel %vm310, %v3658, %v2552
    %v3660 = vsel %vm312, %v3659, %v2368
    %v3661 = vadd.f32 %v3653, %v3660
    %v3663 = vrot.slane %v2176, 6
    %3664 = vrot.lane.b32.xlu0 %v3663, 32
    %v3665 = vpop.permute.xlu0 %3664
    %v3667 = vsel %vm343, %v164, %v3665
    %v3669 = vrot.slane %v3667, 1
    %v3671 = vlaneseq
    %v3672 = vshrl.u32 %v3671, 7
    %v3673 = vsub.s32 0, %v3672
    %v3674 = vrot.slane %v238, %v3673
    %v3675 = vlaneseq
    %v3676 = vshrl.u32 %v3675, 7
    %v3677 = vsub.s32 1, %v3676
    %v3678 = vrot.slane %v238, %v3677
    %v3679 = vlaneseq
    %v3680 = vshrl.u32 %v3679, 7
    %v3681 = vsub.s32 2, %v3680
    %v3682 = vrot.slane %v238, %v3681
    %v3683 = vlaneseq
    %v3684 = vshrl.u32 %v3683, 7
    %v3685 = vsub.s32 3, %v3684
    %v3686 = vrot.slane %v238, %v3685
    %vm3691 = vcmask 523264
    %v3692 = vsel %vm3691, %v3669, 0
    %3694 = vmatprep.subr.mxu0 %v207
    %3695 = vmatpush1.msra.mxu0 %v206
    %3696 = vmatprep.subr.mxu0 %v211
    %3697 = vmatpush1.msra.mxu0 %v210
    %3698 = vmatprep.subr.mxu0 %v215
    %3699 = vmatpush1.msra.mxu0 %v214
    %3700 = vmatprep.subr.mxu0 %v219
    %3701 = vmatpush1.msra.mxu0 %v218
    %3702 = vmatprep.subr.mxu0 %v223
    %3703 = vmatpush1.msra.mxu0 %v222
    %3704 = vmatprep.subr.mxu0 %v227
    %3705 = vmatpush1.msra.mxu0 %v226
    %3706 = vmatprep.subr.mxu0 %v231
    %3707 = vmatpush1.msra.mxu0 %v230
    %3708 = vmatprep.subr.mxu0 %v235
    %3709 = vmatpush1.msra.mxu0 %v234
    %3710 = vmatprep.subr.mxu0 0.0
    %3711 = vmatpush1.msra.mxu0 0.0
    %3712 = vmatprep.subr.mxu0 0.0
    %3713 = vmatpush1.msra.mxu0 0.0
    %3714 = vmatprep.subr.mxu0 0.0
    %3715 = vmatpush1.msra.mxu0 0.0
    %3716 = vmatprep.subr.mxu0 0.0
    %3717 = vmatpush1.msra.mxu0 0.0
    %3718 = vmatprep.subr.mxu0 0.0
    %3719 = vmatpush1.msra.mxu0 0.0
    %3720 = vmatprep.subr.mxu0 0.0
    %3721 = vmatpush1.msra.mxu0 0.0
    %3722 = vmatprep.subr.mxu0 0.0
    %3723 = vmatpush1.msra.mxu0 0.0
    %3724 = vmatprep.subr.mxu0 0.0
    %3725 = vmatpush1.msra.mxu0 0.0
    %3726 = vmatprep.subr.mxu0 0.0
    %3727 = vmatpush1.msra.mxu0 0.0
    %3728 = vmatprep.subr.mxu0 0.0
    %3729 = vmatpush1.msra.mxu0 0.0
    %3730 = vmatprep.subr.mxu0 0.0
    %3731 = vmatpush1.msra.mxu0 0.0
    %3732 = vmatprep.subr.mxu0 0.0
    %3733 = vmatpush1.msra.mxu0 0.0
    %3734 = vmatprep.subr.mxu0 0.0
    %3735 = vmatpush1.msra.mxu0 0.0
    %3736 = vmatprep.subr.mxu0 0.0
    %3737 = vmatpush1.msra.mxu0 0.0
    %3738 = vmatprep.subr.mxu0 0.0
    %3739 = vmatpush1.msra.mxu0 0.0
    %3740 = vmatprep.subr.mxu0 0.0
    %3741 = vmatpush1.msra.mxu0 0.0
    %3742 = vmatprep.subr.mxu0 0.0
    %3743 = vmatpush1.msra.mxu0 0.0
    %3744 = vmatprep.subr.mxu0 0.0
    %3745 = vmatpush1.msra.mxu0 0.0
    %3746 = vmatprep.subr.mxu0 0.0
    %3747 = vmatpush1.msra.mxu0 0.0
    %3748 = vmatprep.subr.mxu0 0.0
    %3749 = vmatpush1.msra.mxu0 0.0
    %3750 = vmatprep.subr.mxu0 0.0
    %3751 = vmatpush1.msra.mxu0 0.0
    %3752 = vmatprep.subr.mxu0 0.0
    %3753 = vmatpush1.msra.mxu0 0.0
    %3754 = vmatprep.subr.mxu0 0.0
    %3755 = vmatpush1.msra.mxu0 0.0
    %3756 = vmatprep.subr.mxu0 0.0
    %3757 = vmatpush1.msra.mxu0 0.0
    %3758 = vmatprep.mubr.f32.mxu0 0.0
    %3759 = vmatmul.mubr.f32.gmra.mrb[0].mxu0 %v3692
    %v3760 = vpop.f32.mrb[0].mxu0
    %v3761 = vadd.f32 %v3674, %v3760
    %v3762 = vpop.f32.mrb[0].mxu0
    %v3763 = vadd.f32 %v3678, %v3762
    %3764 = vdwg.mxu0
    %3765 = vmatprep.subr.mxu0 %v209
    %3766 = vmatpush1.msra.mxu0 %v208
    %3767 = vmatprep.subr.mxu0 %v213
    %3768 = vmatpush1.msra.mxu0 %v212
    %3769 = vmatprep.subr.mxu0 %v217
    %3770 = vmatpush1.msra.mxu0 %v216
    %3771 = vmatprep.subr.mxu0 %v221
    %3772 = vmatpush1.msra.mxu0 %v220
    %3773 = vmatprep.subr.mxu0 %v225
    %3774 = vmatpush1.msra.mxu0 %v224
    %3775 = vmatprep.subr.mxu0 %v229
    %3776 = vmatpush1.msra.mxu0 %v228
    %3777 = vmatprep.subr.mxu0 %v233
    %3778 = vmatpush1.msra.mxu0 %v232
    %3779 = vmatprep.subr.mxu0 %v237
    %3780 = vmatpush1.msra.mxu0 %v236
    %3781 = vmatprep.subr.mxu0 0.0
    %3782 = vmatpush1.msra.mxu0 0.0
    %3783 = vmatprep.subr.mxu0 0.0
    %3784 = vmatpush1.msra.mxu0 0.0
    %3785 = vmatprep.subr.mxu0 0.0
    %3786 = vmatpush1.msra.mxu0 0.0
    %3787 = vmatprep.subr.mxu0 0.0
    %3788 = vmatpush1.msra.mxu0 0.0
    %3789 = vmatprep.subr.mxu0 0.0
    %3790 = vmatpush1.msra.mxu0 0.0
    %3791 = vmatprep.subr.mxu0 0.0
    %3792 = vmatpush1.msra.mxu0 0.0
    %3793 = vmatprep.subr.mxu0 0.0
    %3794 = vmatpush1.msra.mxu0 0.0
    %3795 = vmatprep.subr.mxu0 0.0
    %3796 = vmatpush1.msra.mxu0 0.0
    %3797 = vmatprep.subr.mxu0 0.0
    %3798 = vmatpush1.msra.mxu0 0.0
    %3799 = vmatprep.subr.mxu0 0.0
    %3800 = vmatpush1.msra.mxu0 0.0
    %3801 = vmatprep.subr.mxu0 0.0
    %3802 = vmatpush1.msra.mxu0 0.0
    %3803 = vmatprep.subr.mxu0 0.0
    %3804 = vmatpush1.msra.mxu0 0.0
    %3805 = vmatprep.subr.mxu0 0.0
    %3806 = vmatpush1.msra.mxu0 0.0
    %3807 = vmatprep.subr.mxu0 0.0
    %3808 = vmatpush1.msra.mxu0 0.0
    %3809 = vmatprep.subr.mxu0 0.0
    %3810 = vmatpush1.msra.mxu0 0.0
    %3811 = vmatprep.subr.mxu0 0.0
    %3812 = vmatpush1.msra.mxu0 0.0
    %3813 = vmatprep.subr.mxu0 0.0
    %3814 = vmatpush1.msra.mxu0 0.0
    %3815 = vmatprep.subr.mxu0 0.0
    %3816 = vmatpush1.msra.mxu0 0.0
    %3817 = vmatprep.subr.mxu0 0.0
    %3818 = vmatpush1.msra.mxu0 0.0
    %3819 = vmatprep.subr.mxu0 0.0
    %3820 = vmatpush1.msra.mxu0 0.0
    %3821 = vmatprep.subr.mxu0 0.0
    %3822 = vmatpush1.msra.mxu0 0.0
    %3823 = vmatprep.subr.mxu0 0.0
    %3824 = vmatpush1.msra.mxu0 0.0
    %3825 = vmatprep.subr.mxu0 0.0
    %3826 = vmatpush1.msra.mxu0 0.0
    %3827 = vmatprep.subr.mxu0 0.0
    %3828 = vmatpush1.msra.mxu0 0.0
    %3829 = vmatprep.mubr.f32.mxu0 0.0
    %3830 = vmatmul.mubr.f32.gmra.mrb[0].mxu0 %v3692
    %v3831 = vpop.f32.mrb[0].mxu0
    %v3832 = vadd.f32 %v3682, %v3831
    %v3833 = vpop.f32.mrb[0].mxu0
    %v3834 = vadd.f32 %v3686, %v3833
    %3835 = vdwg.mxu0
    %v3836 = vxor.u32 %v3761, 2147483648
    %v3837 = vmul.f32 %v3836, 1.442695
    %v3838 = vpow.pop %v3837
    %v3839 = vadd.f32 %v3838, 1.0
    %v3840 = vrcp.pop %v3839
    %v3841 = vmul.f32 1.0, %v3840
    %v3842 = vxor.u32 %v3763, 2147483648
    %v3843 = vmul.f32 %v3842, 1.442695
    %v3844 = vpow.pop %v3843
    %v3845 = vadd.f32 %v3844, 1.0
    %v3846 = vrcp.pop %v3845
    %v3847 = vmul.f32 1.0, %v3846
    %v3848 = vmul.f32 %v3841, %v3834
    %v3849 = vadd.f32 %v3832, %v3848
    %v3850 = vtanh.pop %v3849
    %v3851 = vsub.f32 1.0, %v3847
    %v3852 = vmul.f32 %v3851, %v3850
    %v3853 = vrot.slane %v2176, 7
    %v3855 = vmul.f32 %v3847, %v3853
    %v3856 = vadd.f32 %v3852, %v3855
    %v3858 = vsel %vm343, %v3856, 0
    %v3861 = vsel %vm343, %v3661, 0
    %3863 = vmatprep.subr.mxu0 0.0
    %3864 = vmatpush1.xpose.msra.mxu0 %v3861
    %3865 = vmatprep.subr.mxu0 0.0
    %3866 = vmatpush1.xpose.msra.mxu0 0.0
    %3867 = vmatprep.subr.mxu0 0.0
    %3868 = vmatpush1.xpose.msra.mxu0 0.0
    %3869 = vmatprep.subr.mxu0 0.0
    %3870 = vmatpush1.xpose.msra.mxu0 0.0
    %3871 = vmatprep.subr.mxu0 0.0
    %3872 = vmatpush1.xpose.msra.mxu0 0.0
    %3873 = vmatprep.subr.mxu0 0.0
    %3874 = vmatpush1.xpose.msra.mxu0 0.0
    %3875 = vmatprep.subr.mxu0 0.0
    %3876 = vmatpush1.xpose.msra.mxu0 0.0
    %3877 = vmatprep.subr.mxu0 0.0
    %3878 = vmatpush1.xpose.msra.mxu0 0.0
    %3879 = vmatprep.subr.mxu0 0.0
    %3880 = vmatpush1.xpose.msra.mxu0 0.0
    %3881 = vmatprep.subr.mxu0 0.0
    %3882 = vmatpush1.xpose.msra.mxu0 0.0
    %3883 = vmatprep.subr.mxu0 0.0
    %3884 = vmatpush1.xpose.msra.mxu0 0.0
    %3885 = vmatprep.subr.mxu0 0.0
    %3886 = vmatpush1.xpose.msra.mxu0 0.0
    %3887 = vmatprep.subr.mxu0 0.0
    %3888 = vmatpush1.xpose.msra.mxu0 0.0
    %3889 = vmatprep.subr.mxu0 0.0
    %3890 = vmatpush1.xpose.msra.mxu0 0.0
    %3891 = vmatprep.subr.mxu0 0.0
    %3892 = vmatpush1.xpose.msra.mxu0 0.0
    %3893 = vmatprep.subr.mxu0 0.0
    %3894 = vmatpush1.xpose.msra.mxu0 0.0
    %3895 = vmatprep.subr.mxu0 0.0
    %3896 = vmatpush1.xpose.msra.mxu0 0.0
    %3897 = vmatprep.subr.mxu0 0.0
    %3898 = vmatpush1.xpose.msra.mxu0 0.0
    %3899 = vmatprep.subr.mxu0 0.0
    %3900 = vmatpush1.xpose.msra.mxu0 0.0
    %3901 = vmatprep.subr.mxu0 0.0
    %3902 = vmatpush1.xpose.msra.mxu0 0.0
    %3903 = vmatprep.subr.mxu0 0.0
    %3904 = vmatpush1.xpose.msra.mxu0 0.0
    %3905 = vmatprep.subr.mxu0 0.0
    %3906 = vmatpush1.xpose.msra.mxu0 0.0
    %3907 = vmatprep.subr.mxu0 0.0
    %3908 = vmatpush1.xpose.msra.mxu0 0.0
    %3909 = vmatprep.subr.mxu0 0.0
    %3910 = vmatpush1.xpose.msra.mxu0 0.0
    %3911 = vmatprep.subr.mxu0 0.0
    %3912 = vmatpush1.xpose.msra.mxu0 0.0
    %3913 = vmatprep.subr.mxu0 0.0
    %3914 = vmatpush1.xpose.msra.mxu0 0.0
    %3915 = vmatprep.subr.mxu0 0.0
    %3916 = vmatpush1.xpose.msra.mxu0 0.0
    %3917 = vmatprep.subr.mxu0 0.0
    %3918 = vmatpush1.xpose.msra.mxu0 0.0
    %3919 = vmatprep.subr.mxu0 0.0
    %3920 = vmatpush1.xpose.msra.mxu0 0.0
    %3921 = vmatprep.subr.mxu0 0.0
    %3922 = vmatpush1.xpose.msra.mxu0 0.0
    %3923 = vmatprep.subr.mxu0 0.0
    %3924 = vmatpush1.xpose.msra.mxu0 0.0
    %3925 = vmatprep.subr.mxu0 0.0
    %3926 = vmatpush1.xpose.msra.mxu0 0.0
    %3927 = vmatprep.mubr.f32.mxu0 0.0
    %3928 = vmatmul.mubr.f32.gmra.mrb[0].mxu0 %v3858
    %v3929 = vpop.f32.mrb[0].mxu0
    %v3930 = vadd.f32 0.0, %v3929
    %v3931 = vpop.f32.mrb[0].mxu0
    %3932 = vdwg.mxu0
    %v3933 = vstv %s163
    %vm3934 = vcmp.lt.s32.totalorder %v254, %v3933
    %v3935 = vsel %vm3934, %v3930, -1e+30
    %vm3936 = vcmask 57344
    %v3937 = vsel %vm3936, %v3935, -inf
    %3938 = vmax.xlane.f32.xlu0 %v3937
    %v3939 = vpop.xlane.xlu0 %3938
    %v3940 = vsub.f32 %v3935, %v3939
    %v3941 = vmul.f32 %v3940, 1.442695
    %v3942 = vpow.pop %v3941
    %v3943 = vsel %vm3936, %v3942, 0.0
    %3944 = vadd.xlane.f32.xlu0 %v3943
    %v3945 = vpop.xlane.xlu0 %3944
    %v3946 = vrcp.pop %v3945
    %v3947 = vmul.f32 %v3942, %v3946
    %vm3948 = vcmask 64512
    %v3950 = vsel %vm3948, %v3947, 0
    %3952 = vmatprep.subr.mxu0 0.0
    %3953 = vmatpush1.msra.mxu0 %v3661
    %3954 = vmatprep.subr.mxu0 0.0
    %3955 = vmatpush1.msra.mxu0 0.0
    %3956 = vmatprep.subr.mxu0 0.0
    %3957 = vmatpush1.msra.mxu0 0.0
    %3958 = vmatprep.subr.mxu0 0.0
    %3959 = vmatpush1.msra.mxu0 0.0
    %3960 = vmatprep.subr.mxu0 0.0
    %3961 = vmatpush1.msra.mxu0 0.0
    %3962 = vmatprep.subr.mxu0 0.0
    %3963 = vmatpush1.msra.mxu0 0.0
    %3964 = vmatprep.subr.mxu0 0.0
    %3965 = vmatpush1.msra.mxu0 0.0
    %3966 = vmatprep.subr.mxu0 0.0
    %3967 = vmatpush1.msra.mxu0 0.0
    %3968 = vmatprep.subr.mxu0 0.0
    %3969 = vmatpush1.msra.mxu0 0.0
    %3970 = vmatprep.subr.mxu0 0.0
    %3971 = vmatpush1.msra.mxu0 0.0
    %3972 = vmatprep.subr.mxu0 0.0
    %3973 = vmatpush1.msra.mxu0 0.0
    %3974 = vmatprep.subr.mxu0 0.0
    %3975 = vmatpush1.msra.mxu0 0.0
    %3976 = vmatprep.subr.mxu0 0.0
    %3977 = vmatpush1.msra.mxu0 0.0
    %3978 = vmatprep.subr.mxu0 0.0
    %3979 = vmatpush1.msra.mxu0 0.0
    %3980 = vmatprep.subr.mxu0 0.0
    %3981 = vmatpush1.msra.mxu0 0.0
    %3982 = vmatprep.subr.mxu0 0.0
    %3983 = vmatpush1.msra.mxu0 0.0
    %3984 = vmatprep.subr.mxu0 0.0
    %3985 = vmatpush1.msra.mxu0 0.0
    %3986 = vmatprep.subr.mxu0 0.0
    %3987 = vmatpush1.msra.mxu0 0.0
    %3988 = vmatprep.subr.mxu0 0.0
    %3989 = vmatpush1.msra.mxu0 0.0
    %3990 = vmatprep.subr.mxu0 0.0
    %3991 = vmatpush1.msra.mxu0 0.0
    %3992 = vmatprep.subr.mxu0 0.0
    %3993 = vmatpush1.msra.mxu0 0.0
    %3994 = vmatprep.subr.mxu0 0.0
    %3995 = vmatpush1.msra.mxu0 0.0
    %3996 = vmatprep.subr.mxu0 0.0
    %3997 = vmatpush1.msra.mxu0 0.0
    %3998 = vmatprep.subr.mxu0 0.0
    %3999 = vmatpush1.msra.mxu0 0.0
    %4000 = vmatprep.subr.mxu0 0.0
    %4001 = vmatpush1.msra.mxu0 0.0
    %4002 = vmatprep.subr.mxu0 0.0
    %4003 = vmatpush1.msra.mxu0 0.0
    %4004 = vmatprep.subr.mxu0 0.0
    %4005 = vmatpush1.msra.mxu0 0.0
    %4006 = vmatprep.subr.mxu0 0.0
    %4007 = vmatpush1.msra.mxu0 0.0
    %4008 = vmatprep.subr.mxu0 0.0
    %4009 = vmatpush1.msra.mxu0 0.0
    %4010 = vmatprep.subr.mxu0 0.0
    %4011 = vmatpush1.msra.mxu0 0.0
    %4012 = vmatprep.subr.mxu0 0.0
    %4013 = vmatpush1.msra.mxu0 0.0
    %4014 = vmatprep.subr.mxu0 0.0
    %4015 = vmatpush1.msra.mxu0 0.0
    %4016 = vmatprep.mubr.f32.mxu0 0.0
    %4017 = vmatmul.mubr.f32.gmra.mrb[0].mxu0 %v3950
    %v4018 = vpop.f32.mrb[0].mxu0
    %v4019 = vadd.f32 0.0, %v4018
    %v4020 = vpop.f32.mrb[0].mxu0
    %4021 = vdwg.mxu0
    %4023 = vrot.lane.b32.xlu0 %v4019, 32
    %v4024 = vpop.permute.xlu0 %4023
    %v4026 = vsel %vm343, %v3856, %v4024
    %v4028 = vsel %vm3691, %v4026, 0
    %4030 = vmatprep.subr.mxu0 0.0
    %4031 = vmatpush1.msra.mxu0 %v239
    %4032 = vmatprep.subr.mxu0 0.0
    %4033 = vmatpush1.msra.mxu0 %v240
    %4034 = vmatprep.subr.mxu0 0.0
    %4035 = vmatpush1.msra.mxu0 %v241
    %4036 = vmatprep.subr.mxu0 0.0
    %4037 = vmatpush1.msra.mxu0 %v242
    %4038 = vmatprep.subr.mxu0 0.0
    %4039 = vmatpush1.msra.mxu0 %v243
    %4040 = vmatprep.subr.mxu0 0.0
    %4041 = vmatpush1.msra.mxu0 %v244
    %4042 = vmatprep.subr.mxu0 0.0
    %4043 = vmatpush1.msra.mxu0 %v245
    %4044 = vmatprep.subr.mxu0 0.0
    %4045 = vmatpush1.msra.mxu0 %v246
    %4046 = vmatprep.subr.mxu0 0.0
    %4047 = vmatpush1.msra.mxu0 0.0
    %4048 = vmatprep.subr.mxu0 0.0
    %4049 = vmatpush1.msra.mxu0 0.0
    %4050 = vmatprep.subr.mxu0 0.0
    %4051 = vmatpush1.msra.mxu0 0.0
    %4052 = vmatprep.subr.mxu0 0.0
    %4053 = vmatpush1.msra.mxu0 0.0
    %4054 = vmatprep.subr.mxu0 0.0
    %4055 = vmatpush1.msra.mxu0 0.0
    %4056 = vmatprep.subr.mxu0 0.0
    %4057 = vmatpush1.msra.mxu0 0.0
    %4058 = vmatprep.subr.mxu0 0.0
    %4059 = vmatpush1.msra.mxu0 0.0
    %4060 = vmatprep.subr.mxu0 0.0
    %4061 = vmatpush1.msra.mxu0 0.0
    %4062 = vmatprep.subr.mxu0 0.0
    %4063 = vmatpush1.msra.mxu0 0.0
    %4064 = vmatprep.subr.mxu0 0.0
    %4065 = vmatpush1.msra.mxu0 0.0
    %4066 = vmatprep.subr.mxu0 0.0
    %4067 = vmatpush1.msra.mxu0 0.0
    %4068 = vmatprep.subr.mxu0 0.0
    %4069 = vmatpush1.msra.mxu0 0.0
    %4070 = vmatprep.subr.mxu0 0.0
    %4071 = vmatpush1.msra.mxu0 0.0
    %4072 = vmatprep.subr.mxu0 0.0
    %4073 = vmatpush1.msra.mxu0 0.0
    %4074 = vmatprep.subr.mxu0 0.0
    %4075 = vmatpush1.msra.mxu0 0.0
    %4076 = vmatprep.subr.mxu0 0.0
    %4077 = vmatpush1.msra.mxu0 0.0
    %4078 = vmatprep.subr.mxu0 0.0
    %4079 = vmatpush1.msra.mxu0 0.0
    %4080 = vmatprep.subr.mxu0 0.0
    %4081 = vmatpush1.msra.mxu0 0.0
    %4082 = vmatprep.subr.mxu0 0.0
    %4083 = vmatpush1.msra.mxu0 0.0
    %4084 = vmatprep.subr.mxu0 0.0
    %4085 = vmatpush1.msra.mxu0 0.0
    %4086 = vmatprep.subr.mxu0 0.0
    %4087 = vmatpush1.msra.mxu0 0.0
    %4088 = vmatprep.subr.mxu0 0.0
    %4089 = vmatpush1.msra.mxu0 0.0
    %4090 = vmatprep.subr.mxu0 0.0
    %4091 = vmatpush1.msra.mxu0 0.0
    %4092 = vmatprep.subr.mxu0 0.0
    %4093 = vmatpush1.msra.mxu0 0.0
    %4094 = vmatprep.mubr.f32.mxu0 0.0
    %4095 = vmatmul.mubr.f32.gmra.mrb[0].mxu0 %v4028
    %v4096 = vpop.f32.mrb[0].mxu0
    %v4097 = vadd.f32 %v247, %v4096
    %v4098 = vpop.f32.mrb[0].mxu0
    %4099 = vdwg.mxu0
    %v4100 = vtanh.pop %v4097
    %v4102 = vsel %vm343, %v4100, 0
    %4104 = vmatprep.subr.mxu0 0.0
    %4105 = vmatpush1.msra.mxu0 %v248
    %4106 = vmatprep.subr.mxu0 0.0
    %4107 = vmatpush1.msra.mxu0 %v249
    %4108 = vmatprep.subr.mxu0 0.0
    %4109 = vmatpush1.msra.mxu0 %v250
    %4110 = vmatprep.subr.mxu0 0.0
    %4111 = vmatpush1.msra.mxu0 %v251
    %4112 = vmatprep.subr.mxu0 0.0
    %4113 = vmatpush1.msra.mxu0 0.0
    %4114 = vmatprep.subr.mxu0 0.0
    %4115 = vmatpush1.msra.mxu0 0.0
    %4116 = vmatprep.subr.mxu0 0.0
    %4117 = vmatpush1.msra.mxu0 0.0
    %4118 = vmatprep.subr.mxu0 0.0
    %4119 = vmatpush1.msra.mxu0 0.0
    %4120 = vmatprep.subr.mxu0 0.0
    %4121 = vmatpush1.msra.mxu0 0.0
    %4122 = vmatprep.subr.mxu0 0.0
    %4123 = vmatpush1.msra.mxu0 0.0
    %4124 = vmatprep.subr.mxu0 0.0
    %4125 = vmatpush1.msra.mxu0 0.0
    %4126 = vmatprep.subr.mxu0 0.0
    %4127 = vmatpush1.msra.mxu0 0.0
    %4128 = vmatprep.subr.mxu0 0.0
    %4129 = vmatpush1.msra.mxu0 0.0
    %4130 = vmatprep.subr.mxu0 0.0
    %4131 = vmatpush1.msra.mxu0 0.0
    %4132 = vmatprep.subr.mxu0 0.0
    %4133 = vmatpush1.msra.mxu0 0.0
    %4134 = vmatprep.subr.mxu0 0.0
    %4135 = vmatpush1.msra.mxu0 0.0
    %4136 = vmatprep.subr.mxu0 0.0
    %4137 = vmatpush1.msra.mxu0 0.0
    %4138 = vmatprep.subr.mxu0 0.0
    %4139 = vmatpush1.msra.mxu0 0.0
    %4140 = vmatprep.subr.mxu0 0.0
    %4141 = vmatpush1.msra.mxu0 0.0
    %4142 = vmatprep.subr.mxu0 0.0
    %4143 = vmatpush1.msra.mxu0 0.0
    %4144 = vmatprep.subr.mxu0 0.0
    %4145 = vmatpush1.msra.mxu0 0.0
    %4146 = vmatprep.subr.mxu0 0.0
    %4147 = vmatpush1.msra.mxu0 0.0
    %4148 = vmatprep.subr.mxu0 0.0
    %4149 = vmatpush1.msra.mxu0 0.0
    %4150 = vmatprep.subr.mxu0 0.0
    %4151 = vmatpush1.msra.mxu0 0.0
    %4152 = vmatprep.subr.mxu0 0.0
    %4153 = vmatpush1.msra.mxu0 0.0
    %4154 = vmatprep.subr.mxu0 0.0
    %4155 = vmatpush1.msra.mxu0 0.0
    %4156 = vmatprep.subr.mxu0 0.0
    %4157 = vmatpush1.msra.mxu0 0.0
    %4158 = vmatprep.subr.mxu0 0.0
    %4159 = vmatpush1.msra.mxu0 0.0
    %4160 = vmatprep.subr.mxu0 0.0
    %4161 = vmatpush1.msra.mxu0 0.0
    %4162 = vmatprep.subr.mxu0 0.0
    %4163 = vmatpush1.msra.mxu0 0.0
    %4164 = vmatprep.subr.mxu0 0.0
    %4165 = vmatpush1.msra.mxu0 0.0
    %4166 = vmatprep.subr.mxu0 0.0
    %4167 = vmatpush1.msra.mxu0 0.0
    %4168 = vmatprep.mubr.f32.mxu0 0.0
    %4169 = vmatmul.mubr.f32.gmra.mrb[0].mxu0 %v4102
    %v4170 = vpop.f32.mrb[0].mxu0
    %v4171 = vadd.f32 %v252, %v4170
    %v4172 = vpop.f32.mrb[0].mxu0
    %4173 = vdwg.mxu0
    %vm4174 = vcmp.lt.s32.totalorder %v254, 64
    %v4175 = vsel %vm4174, %v4171, -1e+30
    %v4176 = vsel %vm300, %v4175, -inf
    %4177 = vmax.xlane.f32.xlu0 %v4176
    %v4178 = vpop.xlane.xlu0 %4177
    %v4179 = vsub.f32 %v4175, %v4178
    %v4180 = vmul.f32 %v4179, 1.442695
    %v4181 = vpow.pop %v4180
    %v4182 = vsel %vm300, %v4181, 0.0
    %4183 = vadd.xlane.f32.xlu0 %v4182
    %v4184 = vpop.xlane.xlu0 %4183
    %v4185 = vrcp.pop %v4184
    %vm4186 = vcmp.eq.f32.partialorder %v4175, %v4178
    %v4187 = vsel %vm4186, %v254, 128
    %v4188 = vsel %vm300, %v4187, 2147483647
    %v4189 = vand.u32 %v4188, 65535
    %v4190 = vshra.s32 %v4188, 16
    %v4191 = vcvt.s32.f32 %v4189
    %v4192 = vcvt.s32.f32 %v4190
    %4193 = vmin.xlane.f32.xlu0 %v4192
    %v4194 = vpop.xlane.xlu0 %4193
    %vm4195 = vcmp.eq.f32.partialorder %v4192, %v4194
    %v4196 = vsel %vm4195, %v4191, inf
    %4197 = vmin.xlane.f32.xlu0 %v4196
    %v4198 = vpop.xlane.xlu0 %4197
    %v4199 = vcvt.f32.s32 %v4198
    %v4200 = vcvt.f32.s32 %v4194
    %v4201 = vshll.u32 %v4200, 16
    %v4202 = vadd.s32 %v4201, %v4199
    %vm4203 = vcmp.eq.s32.totalorder %v254, %v4202
    %v4204 = vsel %vm4203, 1, 0
    %v4205 = vcvt.s32.f32 %v4204
    %4206 = vmatprep.subr.mxu0 0.0
    %4207 = vmatpush1.msra.mxu0 %v164
    %4208 = vmatprep.subr.mxu0 0.0
    %4209 = vmatpush1.msra.mxu0 %v165
    %4210 = vmatprep.subr.mxu0 0.0
    %4211 = vmatpush1.msra.mxu0 %v166
    %4212 = vmatprep.subr.mxu0 0.0
    %4213 = vmatpush1.msra.mxu0 %v167
    %4214 = vmatprep.subr.mxu0 0.0
    %4215 = vmatpush1.msra.mxu0 %v168
    %4216 = vmatprep.subr.mxu0 0.0
    %4217 = vmatpush1.msra.mxu0 %v169
    %4218 = vmatprep.subr.mxu0 0.0
    %4219 = vmatpush1.msra.mxu0 %v170
    %4220 = vmatprep.subr.mxu0 0.0
    %4221 = vmatpush1.msra.mxu0 %v171
    %4222 = vmatprep.subr.mxu0 0.0
    %4223 = vmatpush1.msra.mxu0 %v172
    %4224 = vmatprep.subr.mxu0 0.0
    %4225 = vmatpush1.msra.mxu0 %v173
    %4226 = vmatprep.subr.mxu0 0.0
    %4227 = vmatpush1.msra.mxu0 %v174
    %4228 = vmatprep.subr.mxu0 0.0
    %4229 = vmatpush1.msra.mxu0 %v175
    %4230 = vmatprep.subr.mxu0 0.0
    %4231 = vmatpush1.msra.mxu0 %v176
    %4232 = vmatprep.subr.mxu0 0.0
    %4233 = vmatpush1.msra.mxu0 %v177
    %4234 = vmatprep.subr.mxu0 0.0
    %4235 = vmatpush1.msra.mxu0 %v178
    %4236 = vmatprep.subr.mxu0 0.0
    %4237 = vmatpush1.msra.mxu0 %v179
    %4238 = vmatprep.subr.mxu0 0.0
    %4239 = vmatpush1.msra.mxu0 0.0
    %4240 = vmatprep.subr.mxu0 0.0
    %4241 = vmatpush1.msra.mxu0 0.0
    %4242 = vmatprep.subr.mxu0 0.0
    %4243 = vmatpush1.msra.mxu0 0.0
    %4244 = vmatprep.subr.mxu0 0.0
    %4245 = vmatpush1.msra.mxu0 0.0
    %4246 = vmatprep.subr.mxu0 0.0
    %4247 = vmatpush1.msra.mxu0 0.0
    %4248 = vmatprep.subr.mxu0 0.0
    %4249 = vmatpush1.msra.mxu0 0.0
    %4250 = vmatprep.subr.mxu0 0.0
    %4251 = vmatpush1.msra.mxu0 0.0
    %4252 = vmatprep.subr.mxu0 0.0
    %4253 = vmatpush1.msra.mxu0 0.0
    %4254 = vmatprep.subr.mxu0 0.0
    %4255 = vmatpush1.msra.mxu0 0.0
    %4256 = vmatprep.subr.mxu0 0.0
    %4257 = vmatpush1.msra.mxu0 0.0
    %4258 = vmatprep.subr.mxu0 0.0
    %4259 = vmatpush1.msra.mxu0 0.0
    %4260 = vmatprep.subr.mxu0 0.0
    %4261 = vmatpush1.msra.mxu0 0.0
    %4262 = vmatprep.subr.mxu0 0.0
    %4263 = vmatpush1.msra.mxu0 0.0
    %4264 = vmatprep.subr.mxu0 0.0
    %4265 = vmatpush1.msra.mxu0 0.0
    %4266 = vmatprep.subr.mxu0 0.0
    %4267 = vmatpush1.msra.mxu0 0.0
    %4268 = vmatprep.subr.mxu0 0.0
    %4269 = vmatpush1.msra.mxu0 0.0
    %4270 = vmatprep.mubr.f32.mxu0 0.0
    %4271 = vmatmul.mubr.f32.gmra.mrb[0].mxu0 %v4205
    %v4272 = vpop.f32.mrb[0].mxu0
    %v4273 = vadd.f32 0.0, %v4272
    %v4274 = vpop.f32.mrb[0].mxu0
    %4275 = vdwg.mxu0
    %4276 = vrot.lane.b32.xlu0 %v3856, 32
    %v4277 = vpop.permute.xlu0 %4276
    %v4279 = vsel %vm343, %v4273, %v4277
    %v4281 = vsel %vm3691, %v4279, 0
    %4283 = vmatprep.subr.mxu0 %v207
    %4284 = vmatpush1.msra.mxu0 %v206
    %4285 = vmatprep.subr.mxu0 %v211
    %4286 = vmatpush1.msra.mxu0 %v210
    %4287 = vmatprep.subr.mxu0 %v215
    %4288 = vmatpush1.msra.mxu0 %v214
    %4289 = vmatprep.subr.mxu0 %v219
    %4290 = vmatpush1.msra.mxu0 %v218
    %4291 = vmatprep.subr.mxu0 %v223
    %4292 = vmatpush1.msra.mxu0 %v222
    %4293 = vmatprep.subr.mxu0 %v227
    %4294 = vmatpush1.msra.mxu0 %v226
    %4295 = vmatprep.subr.mxu0 %v231
    %4296 = vmatpush1.msra.mxu0 %v230
    %4297 = vmatprep.subr.mxu0 %v235
    %4298 = vmatpush1.msra.mxu0 %v234
    %4299 = vmatprep.subr.mxu0 0.0
    %4300 = vmatpush1.msra.mxu0 0.0
    %4301 = vmatprep.subr.mxu0 0.0
    %4302 = vmatpush1.msra.mxu0 0.0
    %4303 = vmatprep.subr.mxu0 0.0
    %4304 = vmatpush1.msra.mxu0 0.0
    %4305 = vmatprep.subr.mxu0 0.0
    %4306 = vmatpush1.msra.mxu0 0.0
    %4307 = vmatprep.subr.mxu0 0.0
    %4308 = vmatpush1.msra.mxu0 0.0
    %4309 = vmatprep.subr.mxu0 0.0
    %4310 = vmatpush1.msra.mxu0 0.0
    %4311 = vmatprep.subr.mxu0 0.0
    %4312 = vmatpush1.msra.mxu0 0.0
    %4313 = vmatprep.subr.mxu0 0.0
    %4314 = vmatpush1.msra.mxu0 0.0
    %4315 = vmatprep.subr.mxu0 0.0
    %4316 = vmatpush1.msra.mxu0 0.0
    %4317 = vmatprep.subr.mxu0 0.0
    %4318 = vmatpush1.msra.mxu0 0.0
    %4319 = vmatprep.subr.mxu0 0.0
    %4320 = vmatpush1.msra.mxu0 0.0
    %4321 = vmatprep.subr.mxu0 0.0
    %4322 = vmatpush1.msra.mxu0 0.0
    %4323 = vmatprep.subr.mxu0 0.0
    %4324 = vmatpush1.msra.mxu0 0.0
    %4325 = vmatprep.subr.mxu0 0.0
    %4326 = vmatpush1.msra.mxu0 0.0
    %4327 = vmatprep.subr.mxu0 0.0
    %4328 = vmatpush1.msra.mxu0 0.0
    %4329 = vmatprep.subr.mxu0 0.0
    %4330 = vmatpush1.msra.mxu0 0.0
    %4331 = vmatprep.subr.mxu0 0.0
    %4332 = vmatpush1.msra.mxu0 0.0
    %4333 = vmatprep.subr.mxu0 0.0
    %4334 = vmatpush1.msra.mxu0 0.0
    %4335 = vmatprep.subr.mxu0 0.0
    %4336 = vmatpush1.msra.mxu0 0.0
    %4337 = vmatprep.subr.mxu0 0.0
    %4338 = vmatpush1.msra.mxu0 0.0
    %4339 = vmatprep.subr.mxu0 0.0
    %4340 = vmatpush1.msra.mxu0 0.0
    %4341 = vmatprep.subr.mxu0 0.0
    %4342 = vmatpush1.msra.mxu0 0.0
    %4343 = vmatprep.subr.mxu0 0.0
    %4344 = vmatpush1.msra.mxu0 0.0
    %4345 = vmatprep.subr.mxu0 0.0
    %4346 = vmatpush1.msra.mxu0 0.0
    %4347 = vmatprep.mubr.f32.mxu0 0.0
    %4348 = vmatmul.mubr.f32.gmra.mrb[0].mxu0 %v4281
    %v4349 = vpop.f32.mrb[0].mxu0
    %v4350 = vadd.f32 %v3674, %v4349
    %v4351 = vpop.f32.mrb[0].mxu0
    %v4352 = vadd.f32 %v3678, %v4351
    %4353 = vdwg.mxu0
    %4354 = vmatprep.subr.mxu0 %v209
    %4355 = vmatpush1.msra.mxu0 %v208
    %4356 = vmatprep.subr.mxu0 %v213
    %4357 = vmatpush1.msra.mxu0 %v212
    %4358 = vmatprep.subr.mxu0 %v217
    %4359 = vmatpush1.msra.mxu0 %v216
    %4360 = vmatprep.subr.mxu0 %v221
    %4361 = vmatpush1.msra.mxu0 %v220
    %4362 = vmatprep.subr.mxu0 %v225
    %4363 = vmatpush1.msra.mxu0 %v224
    %4364 = vmatprep.subr.mxu0 %v229
    %4365 = vmatpush1.msra.mxu0 %v228
    %4366 = vmatprep.subr.mxu0 %v233
    %4367 = vmatpush1.msra.mxu0 %v232
    %4368 = vmatprep.subr.mxu0 %v237
    %4369 = vmatpush1.msra.mxu0 %v236
    %4370 = vmatprep.subr.mxu0 0.0
    %4371 = vmatpush1.msra.mxu0 0.0
    %4372 = vmatprep.subr.mxu0 0.0
    %4373 = vmatpush1.msra.mxu0 0.0
    %4374 = vmatprep.subr.mxu0 0.0
    %4375 = vmatpush1.msra.mxu0 0.0
    %4376 = vmatprep.subr.mxu0 0.0
    %4377 = vmatpush1.msra.mxu0 0.0
    %4378 = vmatprep.subr.mxu0 0.0
    %4379 = vmatpush1.msra.mxu0 0.0
    %4380 = vmatprep.subr.mxu0 0.0
    %4381 = vmatpush1.msra.mxu0 0.0
    %4382 = vmatprep.subr.mxu0 0.0
    %4383 = vmatpush1.msra.mxu0 0.0
    %4384 = vmatprep.subr.mxu0 0.0
    %4385 = vmatpush1.msra.mxu0 0.0
    %4386 = vmatprep.subr.mxu0 0.0
    %4387 = vmatpush1.msra.mxu0 0.0
    %4388 = vmatprep.subr.mxu0 0.0
    %4389 = vmatpush1.msra.mxu0 0.0
    %4390 = vmatprep.subr.mxu0 0.0
    %4391 = vmatpush1.msra.mxu0 0.0
    %4392 = vmatprep.subr.mxu0 0.0
    %4393 = vmatpush1.msra.mxu0 0.0
    %4394 = vmatprep.subr.mxu0 0.0
    %4395 = vmatpush1.msra.mxu0 0.0
    %4396 = vmatprep.subr.mxu0 0.0
    %4397 = vmatpush1.msra.mxu0 0.0
    %4398 = vmatprep.subr.mxu0 0.0
    %4399 = vmatpush1.msra.mxu0 0.0
    %4400 = vmatprep.subr.mxu0 0.0
    %4401 = vmatpush1.msra.mxu0 0.0
    %4402 = vmatprep.subr.mxu0 0.0
    %4403 = vmatpush1.msra.mxu0 0.0
    %4404 = vmatprep.subr.mxu0 0.0
    %4405 = vmatpush1.msra.mxu0 0.0
    %4406 = vmatprep.subr.mxu0 0.0
    %4407 = vmatpush1.msra.mxu0 0.0
    %4408 = vmatprep.subr.mxu0 0.0
    %4409 = vmatpush1.msra.mxu0 0.0
    %4410 = vmatprep.subr.mxu0 0.0
    %4411 = vmatpush1.msra.mxu0 0.0
    %4412 = vmatprep.subr.mxu0 0.0
    %4413 = vmatpush1.msra.mxu0 0.0
    %4414 = vmatprep.subr.mxu0 0.0
    %4415 = vmatpush1.msra.mxu0 0.0
    %4416 = vmatprep.subr.mxu0 0.0
    %4417 = vmatpush1.msra.mxu0 0.0
    %4418 = vmatprep.mubr.f32.mxu0 0.0
    %4419 = vmatmul.mubr.f32.gmra.mrb[0].mxu0 %v4281
    %v4420 = vpop.f32.mrb[0].mxu0
    %v4421 = vadd.f32 %v3682, %v4420
    %v4422 = vpop.f32.mrb[0].mxu0
    %v4423 = vadd.f32 %v3686, %v4422
    %4424 = vdwg.mxu0
    %v4425 = vxor.u32 %v4350, 2147483648
    %v4426 = vmul.f32 %v4425, 1.442695
    %v4427 = vpow.pop %v4426
    %v4428 = vadd.f32 %v4427, 1.0
    %v4429 = vrcp.pop %v4428
    %v4430 = vmul.f32 1.0, %v4429
    %v4431 = vxor.u32 %v4352, 2147483648
    %v4432 = vmul.f32 %v4431, 1.442695
    %v4433 = vpow.pop %v4432
    %v4434 = vadd.f32 %v4433, 1.0
    %v4435 = vrcp.pop %v4434
    %v4436 = vmul.f32 1.0, %v4435
    %v4437 = vmul.f32 %v4430, %v4423
    %v4438 = vadd.f32 %v4421, %v4437
    %v4439 = vtanh.pop %v4438
    %v4440 = vsub.f32 1.0, %v4436
    %v4441 = vmul.f32 %v4440, %v4439
    %v4442 = vmul.f32 %v4436, %v3856
    %v4443 = vadd.f32 %v4441, %v4442
    %v4445 = vsel %vm343, %v4443, 0
    %4447 = vmatprep.subr.mxu0 0.0
    %4448 = vmatpush1.xpose.msra.mxu0 %v3861
    %4449 = vmatprep.subr.mxu0 0.0
    %4450 = vmatpush1.xpose.msra.mxu0 0.0
    %4451 = vmatprep.subr.mxu0 0.0
    %4452 = vmatpush1.xpose.msra.mxu0 0.0
    %4453 = vmatprep.subr.mxu0 0.0
    %4454 = vmatpush1.xpose.msra.mxu0 0.0
    %4455 = vmatprep.subr.mxu0 0.0
    %4456 = vmatpush1.xpose.msra.mxu0 0.0
    %4457 = vmatprep.subr.mxu0 0.0
    %4458 = vmatpush1.xpose.msra.mxu0 0.0
    %4459 = vmatprep.subr.mxu0 0.0
    %4460 = vmatpush1.xpose.msra.mxu0 0.0
    %4461 = vmatprep.subr.mxu0 0.0
    %4462 = vmatpush1.xpose.msra.mxu0 0.0
    %4463 = vmatprep.subr.mxu0 0.0
    %4464 = vmatpush1.xpose.msra.mxu0 0.0
    %4465 = vmatprep.subr.mxu0 0.0
    %4466 = vmatpush1.xpose.msra.mxu0 0.0
    %4467 = vmatprep.subr.mxu0 0.0
    %4468 = vmatpush1.xpose.msra.mxu0 0.0
    %4469 = vmatprep.subr.mxu0 0.0
    %4470 = vmatpush1.xpose.msra.mxu0 0.0
    %4471 = vmatprep.subr.mxu0 0.0
    %4472 = vmatpush1.xpose.msra.mxu0 0.0
    %4473 = vmatprep.subr.mxu0 0.0
    %4474 = vmatpush1.xpose.msra.mxu0 0.0
    %4475 = vmatprep.subr.mxu0 0.0
    %4476 = vmatpush1.xpose.msra.mxu0 0.0
    %4477 = vmatprep.subr.mxu0 0.0
    %4478 = vmatpush1.xpose.msra.mxu0 0.0
    %4479 = vmatprep.subr.mxu0 0.0
    %4480 = vmatpush1.xpose.msra.mxu0 0.0
    %4481 = vmatprep.subr.mxu0 0.0
    %4482 = vmatpush1.xpose.msra.mxu0 0.0
    %4483 = vmatprep.subr.mxu0 0.0
    %4484 = vmatpush1.xpose.msra.mxu0 0.0
    %4485 = vmatprep.subr.mxu0 0.0
    %4486 = vmatpush1.xpose.msra.mxu0 0.0
    %4487 = vmatprep.subr.mxu0 0.0
    %4488 = vmatpush1.xpose.msra.mxu0 0.0
    %4489 = vmatprep.subr.mxu0 0.0
    %4490 = vmatpush1.xpose.msra.mxu0 0.0
    %4491 = vmatprep.subr.mxu0 0.0
    %4492 = vmatpush1.xpose.msra.mxu0 0.0
    %4493 = vmatprep.subr.mxu0 0.0
    %4494 = vmatpush1.xpose.msra.mxu0 0.0
    %4495 = vmatprep.subr.mxu0 0.0
    %4496 = vmatpush1.xpose.msra.mxu0 0.0
    %4497 = vmatprep.subr.mxu0 0.0
    %4498 = vmatpush1.xpose.msra.mxu0 0.0
    %4499 = vmatprep.subr.mxu0 0.0
    %4500 = vmatpush1.xpose.msra.mxu0 0.0
    %4501 = vmatprep.subr.mxu0 0.0
    %4502 = vmatpush1.xpose.msra.mxu0 0.0
    %4503 = vmatprep.subr.mxu0 0.0
    %4504 = vmatpush1.xpose.msra.mxu0 0.0
    %4505 = vmatprep.subr.mxu0 0.0
    %4506 = vmatpush1.xpose.msra.mxu0 0.0
    %4507 = vmatprep.subr.mxu0 0.0
    %4508 = vmatpush1.xpose.msra.mxu0 0.0
    %4509 = vmatprep.subr.mxu0 0.0
    %4510 = vmatpush1.xpose.msra.mxu0 0.0
    %4511 = vmatprep.mubr.f32.mxu0 0.0
    %4512 = vmatmul.mubr.f32.gmra.mrb[0].mxu0 %v4445
    %v4513 = vpop.f32.mrb[0].mxu0
    %v4514 = vadd.f32 0.0, %v4513
    %v4515 = vpop.f32.mrb[0].mxu0
    %4516 = vdwg.mxu0
    %v4517 = vsel %vm3934, %v4514, -1e+30
    %v4518 = vsel %vm3936, %v4517, -inf
    %4519 = vmax.xlane.f32.xlu0 %v4518
    %v4520 = vpop.xlane.xlu0 %4519
    %v4521 = vsub.f32 %v4517, %v4520
    %v4522 = vmul.f32 %v4521, 1.442695
    %v4523 = vpow.pop %v4522
    %v4524 = vsel %vm3936, %v4523, 0.0
    %4525 = vadd.xlane.f32.xlu0 %v4524
    %v4526 = vpop.xlane.xlu0 %4525
    %v4527 = vrcp.pop %v4526
    %v4528 = vmul.f32 %v4523, %v4527
    %v4530 = vsel %vm3948, %v4528, 0
    %4532 = vmatprep.subr.mxu0 0.0
    %4533 = vmatpush1.msra.mxu0 %v3661
    %4534 = vmatprep.subr.mxu0 0.0
    %4535 = vmatpush1.msra.mxu0 0.0
    %4536 = vmatprep.subr.mxu0 0.0
    %4537 = vmatpush1.msra.mxu0 0.0
    %4538 = vmatprep.subr.mxu0 0.0
    %4539 = vmatpush1.msra.mxu0 0.0
    %4540 = vmatprep.subr.mxu0 0.0
    %4541 = vmatpush1.msra.mxu0 0.0
    %4542 = vmatprep.subr.mxu0 0.0
    %4543 = vmatpush1.msra.mxu0 0.0
    %4544 = vmatprep.subr.mxu0 0.0
    %4545 = vmatpush1.msra.mxu0 0.0
    %4546 = vmatprep.subr.mxu0 0.0
    %4547 = vmatpush1.msra.mxu0 0.0
    %4548 = vmatprep.subr.mxu0 0.0
    %4549 = vmatpush1.msra.mxu0 0.0
    %4550 = vmatprep.subr.mxu0 0.0
    %4551 = vmatpush1.msra.mxu0 0.0
    %4552 = vmatprep.subr.mxu0 0.0
    %4553 = vmatpush1.msra.mxu0 0.0
    %4554 = vmatprep.subr.mxu0 0.0
    %4555 = vmatpush1.msra.mxu0 0.0
    %4556 = vmatprep.subr.mxu0 0.0
    %4557 = vmatpush1.msra.mxu0 0.0
    %4558 = vmatprep.subr.mxu0 0.0
    %4559 = vmatpush1.msra.mxu0 0.0
    %4560 = vmatprep.subr.mxu0 0.0
    %4561 = vmatpush1.msra.mxu0 0.0
    %4562 = vmatprep.subr.mxu0 0.0
    %4563 = vmatpush1.msra.mxu0 0.0
    %4564 = vmatprep.subr.mxu0 0.0
    %4565 = vmatpush1.msra.mxu0 0.0
    %4566 = vmatprep.subr.mxu0 0.0
    %4567 = vmatpush1.msra.mxu0 0.0
    %4568 = vmatprep.subr.mxu0 0.0
    %4569 = vmatpush1.msra.mxu0 0.0
    %4570 = vmatprep.subr.mxu0 0.0
    %4571 = vmatpush1.msra.mxu0 0.0
    %4572 = vmatprep.subr.mxu0 0.0
    %4573 = vmatpush1.msra.mxu0 0.0
    %4574 = vmatprep.subr.mxu0 0.0
    %4575 = vmatpush1.msra.mxu0 0.0
    %4576 = vmatprep.subr.mxu0 0.0
    %4577 = vmatpush1.msra.mxu0 0.0
    %4578 = vmatprep.subr.mxu0 0.0
    %4579 = vmatpush1.msra.mxu0 0.0
    %4580 = vmatprep.subr.mxu0 0.0
    %4581 = vmatpush1.msra.mxu0 0.0
    %4582 = vmatprep.subr.mxu0 0.0
    %4583 = vmatpush1.msra.mxu0 0.0
    %4584 = vmatprep.subr.mxu0 0.0
    %4585 = vmatpush1.msra.mxu0 0.0
    %4586 = vmatprep.subr.mxu0 0.0
    %4587 = vmatpush1.msra.mxu0 0.0
    %4588 = vmatprep.subr.mxu0 0.0
    %4589 = vmatpush1.msra.mxu0 0.0
    %4590 = vmatprep.subr.mxu0 0.0
    %4591 = vmatpush1.msra.mxu0 0.0
    %4592 = vmatprep.subr.mxu0 0.0
    %4593 = vmatpush1.msra.mxu0 0.0
    %4594 = vmatprep.subr.mxu0 0.0
    %4595 = vmatpush1.msra.mxu0 0.0
    %4596 = vmatprep.mubr.f32.mxu0 0.0
    %4597 = vmatmul.mubr.f32.gmra.mrb[0].mxu0 %v4530
    %v4598 = vpop.f32.mrb[0].mxu0
    %v4599 = vadd.f32 0.0, %v4598
    %v4600 = vpop.f32.mrb[0].mxu0
    %4601 = vdwg.mxu0
    %4603 = vrot.lane.b32.xlu0 %v4599, 32
    %v4604 = vpop.permute.xlu0 %4603
    %v4606 = vsel %vm343, %v4443, %v4604
    %v4608 = vsel %vm3691, %v4606, 0
    %4610 = vmatprep.subr.mxu0 0.0
    %4611 = vmatpush1.msra.mxu0 %v239
    %4612 = vmatprep.subr.mxu0 0.0
    %4613 = vmatpush1.msra.mxu0 %v240
    %4614 = vmatprep.subr.mxu0 0.0
    %4615 = vmatpush1.msra.mxu0 %v241
    %4616 = vmatprep.subr.mxu0 0.0
    %4617 = vmatpush1.msra.mxu0 %v242
    %4618 = vmatprep.subr.mxu0 0.0
    %4619 = vmatpush1.msra.mxu0 %v243
    %4620 = vmatprep.subr.mxu0 0.0
    %4621 = vmatpush1.msra.mxu0 %v244
    %4622 = vmatprep.subr.mxu0 0.0
    %4623 = vmatpush1.msra.mxu0 %v245
    %4624 = vmatprep.subr.mxu0 0.0
    %4625 = vmatpush1.msra.mxu0 %v246
    %4626 = vmatprep.subr.mxu0 0.0
    %4627 = vmatpush1.msra.mxu0 0.0
    %4628 = vmatprep.subr.mxu0 0.0
    %4629 = vmatpush1.msra.mxu0 0.0
    %4630 = vmatprep.subr.mxu0 0.0
    %4631 = vmatpush1.msra.mxu0 0.0
    %4632 = vmatprep.subr.mxu0 0.0
    %4633 = vmatpush1.msra.mxu0 0.0
    %4634 = vmatprep.subr.mxu0 0.0
    %4635 = vmatpush1.msra.mxu0 0.0
    %4636 = vmatprep.subr.mxu0 0.0
    %4637 = vmatpush1.msra.mxu0 0.0
    %4638 = vmatprep.subr.mxu0 0.0
    %4639 = vmatpush1.msra.mxu0 0.0
    %4640 = vmatprep.subr.mxu0 0.0
    %4641 = vmatpush1.msra.mxu0 0.0
    %4642 = vmatprep.subr.mxu0 0.0
    %4643 = vmatpush1.msra.mxu0 0.0
    %4644 = vmatprep.subr.mxu0 0.0
    %4645 = vmatpush1.msra.mxu0 0.0
    %4646 = vmatprep.subr.mxu0 0.0
    %4647 = vmatpush1.msra.mxu0 0.0
    %4648 = vmatprep.subr.mxu0 0.0
    %4649 = vmatpush1.msra.mxu0 0.0
    %4650 = vmatprep.subr.mxu0 0.0
    %4651 = vmatpush1.msra.mxu0 0.0
    %4652 = vmatprep.subr.mxu0 0.0
    %4653 = vmatpush1.msra.mxu0 0.0
    %4654 = vmatprep.subr.mxu0 0.0
    %4655 = vmatpush1.msra.mxu0 0.0
    %4656 = vmatprep.subr.mxu0 0.0
    %4657 = vmatpush1.msra.mxu0 0.0
    %4658 = vmatprep.subr.mxu0 0.0
    %4659 = vmatpush1.msra.mxu0 0.0
    %4660 = vmatprep.subr.mxu0 0.0
    %4661 = vmatpush1.msra.mxu0 0.0
    %4662 = vmatprep.subr.mxu0 0.0
    %4663 = vmatpush1.msra.mxu0 0.0
    %4664 = vmatprep.subr.mxu0 0.0
    %4665 = vmatpush1.msra.mxu0 0.0
    %4666 = vmatprep.subr.mxu0 0.0
    %4667 = vmatpush1.msra.mxu0 0.0
    %4668 = vmatprep.subr.mxu0 0.0
    %4669 = vmatpush1.msra.mxu0 0.0
    %4670 = vmatprep.subr.mxu0 0.0
    %4671 = vmatpush1.msra.mxu0 0.0
    %4672 = vmatprep.subr.mxu0 0.0
    %4673 = vmatpush1.msra.mxu0 0.0
    %4674 = vmatprep.mubr.f32.mxu0 0.0
    %4675 = vmatmul.mubr.f32.gmra.mrb[0].mxu0 %v4608
    %v4676 = vpop.f32.mrb[0].mxu0
    %v4677 = vadd.f32 %v247, %v4676
    %v4678 = vpop.f32.mrb[0].mxu0
    %4679 = vdwg.mxu0
    %v4680 = vtanh.pop %v4677
    %v4682 = vsel %vm343, %v4680, 0
    %4684 = vmatprep.subr.mxu0 0.0
    %4685 = vmatpush1.msra.mxu0 %v248
    %4686 = vmatprep.subr.mxu0 0.0
    %4687 = vmatpush1.msra.mxu0 %v249
    %4688 = vmatprep.subr.mxu0 0.0
    %4689 = vmatpush1.msra.mxu0 %v250
    %4690 = vmatprep.subr.mxu0 0.0
    %4691 = vmatpush1.msra.mxu0 %v251
    %4692 = vmatprep.subr.mxu0 0.0
    %4693 = vmatpush1.msra.mxu0 0.0
    %4694 = vmatprep.subr.mxu0 0.0
    %4695 = vmatpush1.msra.mxu0 0.0
    %4696 = vmatprep.subr.mxu0 0.0
    %4697 = vmatpush1.msra.mxu0 0.0
    %4698 = vmatprep.subr.mxu0 0.0
    %4699 = vmatpush1.msra.mxu0 0.0
    %4700 = vmatprep.subr.mxu0 0.0
    %4701 = vmatpush1.msra.mxu0 0.0
    %4702 = vmatprep.subr.mxu0 0.0
    %4703 = vmatpush1.msra.mxu0 0.0
    %4704 = vmatprep.subr.mxu0 0.0
    %4705 = vmatpush1.msra.mxu0 0.0
    %4706 = vmatprep.subr.mxu0 0.0
    %4707 = vmatpush1.msra.mxu0 0.0
    %4708 = vmatprep.subr.mxu0 0.0
    %4709 = vmatpush1.msra.mxu0 0.0
    %4710 = vmatprep.subr.mxu0 0.0
    %4711 = vmatpush1.msra.mxu0 0.0
    %4712 = vmatprep.subr.mxu0 0.0
    %4713 = vmatpush1.msra.mxu0 0.0
    %4714 = vmatprep.subr.mxu0 0.0
    %4715 = vmatpush1.msra.mxu0 0.0
    %4716 = vmatprep.subr.mxu0 0.0
    %4717 = vmatpush1.msra.mxu0 0.0
    %4718 = vmatprep.subr.mxu0 0.0
    %4719 = vmatpush1.msra.mxu0 0.0
    %4720 = vmatprep.subr.mxu0 0.0
    %4721 = vmatpush1.msra.mxu0 0.0
    %4722 = vmatprep.subr.mxu0 0.0
    %4723 = vmatpush1.msra.mxu0 0.0
    %4724 = vmatprep.subr.mxu0 0.0
    %4725 = vmatpush1.msra.mxu0 0.0
    %4726 = vmatprep.subr.mxu0 0.0
    %4727 = vmatpush1.msra.mxu0 0.0
    %4728 = vmatprep.subr.mxu0 0.0
    %4729 = vmatpush1.msra.mxu0 0.0
    %4730 = vmatprep.subr.mxu0 0.0
    %4731 = vmatpush1.msra.mxu0 0.0
    %4732 = vmatprep.subr.mxu0 0.0
    %4733 = vmatpush1.msra.mxu0 0.0
    %4734 = vmatprep.subr.mxu0 0.0
    %4735 = vmatpush1.msra.mxu0 0.0
    %4736 = vmatprep.subr.mxu0 0.0
    %4737 = vmatpush1.msra.mxu0 0.0
    %4738 = vmatprep.subr.mxu0 0.0
    %4739 = vmatpush1.msra.mxu0 0.0
    %4740 = vmatprep.subr.mxu0 0.0
    %4741 = vmatpush1.msra.mxu0 0.0
    %4742 = vmatprep.subr.mxu0 0.0
    %4743 = vmatpush1.msra.mxu0 0.0
    %4744 = vmatprep.subr.mxu0 0.0
    %4745 = vmatpush1.msra.mxu0 0.0
    %4746 = vmatprep.subr.mxu0 0.0
    %4747 = vmatpush1.msra.mxu0 0.0
    %4748 = vmatprep.mubr.f32.mxu0 0.0
    %4749 = vmatmul.mubr.f32.gmra.mrb[0].mxu0 %v4682
    %v4750 = vpop.f32.mrb[0].mxu0
    %v4751 = vadd.f32 %v252, %v4750
    %v4752 = vpop.f32.mrb[0].mxu0
    %4753 = vdwg.mxu0
    %v4754 = vsel %vm4174, %v4751, -1e+30
    %v4755 = vsel %vm300, %v4754, -inf
    %4756 = vmax.xlane.f32.xlu0 %v4755
    %v4757 = vpop.xlane.xlu0 %4756
    %v4758 = vsub.f32 %v4754, %v4757
    %v4759 = vmul.f32 %v4758, 1.442695
    %v4760 = vpow.pop %v4759
    %v4761 = vsel %vm300, %v4760, 0.0
    %4762 = vadd.xlane.f32.xlu0 %v4761
    %v4763 = vpop.xlane.xlu0 %4762
    %v4764 = vrcp.pop %v4763
    %vm4765 = vcmp.eq.f32.partialorder %v4754, %v4757
    %v4766 = vsel %vm4765, %v254, 128
    %v4767 = vsel %vm300, %v4766, 2147483647
    %v4768 = vand.u32 %v4767, 65535
    %v4769 = vshra.s32 %v4767, 16
    %v4770 = vcvt.s32.f32 %v4768
    %v4771 = vcvt.s32.f32 %v4769
    %4772 = vmin.xlane.f32.xlu0 %v4771
    %v4773 = vpop.xlane.xlu0 %4772
    %vm4774 = vcmp.eq.f32.partialorder %v4771, %v4773
    %v4775 = vsel %vm4774, %v4770, inf
    %4776 = vmin.xlane.f32.xlu0 %v4775
    %v4777 = vpop.xlane.xlu0 %4776
    %v4778 = vcvt.f32.s32 %v4777
    %v4779 = vcvt.f32.s32 %v4773
    %v4780 = vshll.u32 %v4779, 16
    %v4781 = vadd.s32 %v4780, %v4778
    %vm4782 = vcmp.eq.s32.totalorder %v254, %v4781
    %v4783 = vsel %vm4782, 1, 0
    %v4784 = vcvt.s32.f32 %v4783
    %4785 = vmatprep.subr.mxu0 0.0
    %4786 = vmatpush1.msra.mxu0 %v164
    %4787 = vmatprep.subr.mxu0 0.0
    %4788 = vmatpush1.msra.mxu0 %v165
    %4789 = vmatprep.subr.mxu0 0.0
    %4790 = vmatpush1.msra.mxu0 %v166
    %4791 = vmatprep.subr.mxu0 0.0
    %4792 = vmatpush1.msra.mxu0 %v167
    %4793 = vmatprep.subr.mxu0 0.0
    %4794 = vmatpush1.msra.mxu0 %v168
    %4795 = vmatprep.subr.mxu0 0.0
    %4796 = vmatpush1.msra.mxu0 %v169
    %4797 = vmatprep.subr.mxu0 0.0
    %4798 = vmatpush1.msra.mxu0 %v170
    %4799 = vmatprep.subr.mxu0 0.0
    %4800 = vmatpush1.msra.mxu0 %v171
    %4801 = vmatprep.subr.mxu0 0.0
    %4802 = vmatpush1.msra.mxu0 %v172
    %4803 = vmatprep.subr.mxu0 0.0
    %4804 = vmatpush1.msra.mxu0 %v173
    %4805 = vmatprep.subr.mxu0 0.0
    %4806 = vmatpush1.msra.mxu0 %v174
    %4807 = vmatprep.subr.mxu0 0.0
    %4808 = vmatpush1.msra.mxu0 %v175
    %4809 = vmatprep.subr.mxu0 0.0
    %4810 = vmatpush1.msra.mxu0 %v176
    %4811 = vmatprep.subr.mxu0 0.0
    %4812 = vmatpush1.msra.mxu0 %v177
    %4813 = vmatprep.subr.mxu0 0.0
    %4814 = vmatpush1.msra.mxu0 %v178
    %4815 = vmatprep.subr.mxu0 0.0
    %4816 = vmatpush1.msra.mxu0 %v179
    %4817 = vmatprep.subr.mxu0 0.0
    %4818 = vmatpush1.msra.mxu0 0.0
    %4819 = vmatprep.subr.mxu0 0.0
    %4820 = vmatpush1.msra.mxu0 0.0
    %4821 = vmatprep.subr.mxu0 0.0
    %4822 = vmatpush1.msra.mxu0 0.0
    %4823 = vmatprep.subr.mxu0 0.0
    %4824 = vmatpush1.msra.mxu0 0.0
    %4825 = vmatprep.subr.mxu0 0.0
    %4826 = vmatpush1.msra.mxu0 0.0
    %4827 = vmatprep.subr.mxu0 0.0
    %4828 = vmatpush1.msra.mxu0 0.0
    %4829 = vmatprep.subr.mxu0 0.0
    %4830 = vmatpush1.msra.mxu0 0.0
    %4831 = vmatprep.subr.mxu0 0.0
    %4832 = vmatpush1.msra.mxu0 0.0
    %4833 = vmatprep.subr.mxu0 0.0
    %4834 = vmatpush1.msra.mxu0 0.0
    %4835 = vmatprep.subr.mxu0 0.0
    %4836 = vmatpush1.msra.mxu0 0.0
    %4837 = vmatprep.subr.mxu0 0.0
    %4838 = vmatpush1.msra.mxu0 0.0
    %4839 = vmatprep.subr.mxu0 0.0
    %4840 = vmatpush1.msra.mxu0 0.0
    %4841 = vmatprep.subr.mxu0 0.0
    %4842 = vmatpush1.msra.mxu0 0.0
    %4843 = vmatprep.subr.mxu0 0.0
    %4844 = vmatpush1.msra.mxu0 0.0
    %4845 = vmatprep.subr.mxu0 0.0
    %4846 = vmatpush1.msra.mxu0 0.0
    %4847 = vmatprep.subr.mxu0 0.0
    %4848 = vmatpush1.msra.mxu0 0.0
    %4849 = vmatprep.mubr.f32.mxu0 0.0
    %4850 = vmatmul.mubr.f32.gmra.mrb[0].mxu0 %v4784
    %v4851 = vpop.f32.mrb[0].mxu0
    %v4852 = vadd.f32 0.0, %v4851
    %v4853 = vpop.f32.mrb[0].mxu0
    %4854 = vdwg.mxu0
    %4855 = vrot.lane.b32.xlu0 %v4443, 32
    %v4856 = vpop.permute.xlu0 %4855
    %v4858 = vsel %vm343, %v4852, %v4856
    %v4860 = vsel %vm3691, %v4858, 0
    %4862 = vmatprep.subr.mxu0 %v207
    %4863 = vmatpush1.msra.mxu0 %v206
    %4864 = vmatprep.subr.mxu0 %v211
    %4865 = vmatpush1.msra.mxu0 %v210
    %4866 = vmatprep.subr.mxu0 %v215
    %4867 = vmatpush1.msra.mxu0 %v214
    %4868 = vmatprep.subr.mxu0 %v219
    %4869 = vmatpush1.msra.mxu0 %v218
    %4870 = vmatprep.subr.mxu0 %v223
    %4871 = vmatpush1.msra.mxu0 %v222
    %4872 = vmatprep.subr.mxu0 %v227
    %4873 = vmatpush1.msra.mxu0 %v226
    %4874 = vmatprep.subr.mxu0 %v231
    %4875 = vmatpush1.msra.mxu0 %v230
    %4876 = vmatprep.subr.mxu0 %v235
    %4877 = vmatpush1.msra.mxu0 %v234
    %4878 = vmatprep.subr.mxu0 0.0
    %4879 = vmatpush1.msra.mxu0 0.0
    %4880 = vmatprep.subr.mxu0 0.0
    %4881 = vmatpush1.msra.mxu0 0.0
    %4882 = vmatprep.subr.mxu0 0.0
    %4883 = vmatpush1.msra.mxu0 0.0
    %4884 = vmatprep.subr.mxu0 0.0
    %4885 = vmatpush1.msra.mxu0 0.0
    %4886 = vmatprep.subr.mxu0 0.0
    %4887 = vmatpush1.msra.mxu0 0.0
    %4888 = vmatprep.subr.mxu0 0.0
    %4889 = vmatpush1.msra.mxu0 0.0
    %4890 = vmatprep.subr.mxu0 0.0
    %4891 = vmatpush1.msra.mxu0 0.0
    %4892 = vmatprep.subr.mxu0 0.0
    %4893 = vmatpush1.msra.mxu0 0.0
    %4894 = vmatprep.subr.mxu0 0.0
    %4895 = vmatpush1.msra.mxu0 0.0
    %4896 = vmatprep.subr.mxu0 0.0
    %4897 = vmatpush1.msra.mxu0 0.0
    %4898 = vmatprep.subr.mxu0 0.0
    %4899 = vmatpush1.msra.mxu0 0.0
    %4900 = vmatprep.subr.mxu0 0.0
    %4901 = vmatpush1.msra.mxu0 0.0
    %4902 = vmatprep.subr.mxu0 0.0
    %4903 = vmatpush1.msra.mxu0 0.0
    %4904 = vmatprep.subr.mxu0 0.0
    %4905 = vmatpush1.msra.mxu0 0.0
    %4906 = vmatprep.subr.mxu0 0.0
    %4907 = vmatpush1.msra.mxu0 0.0
    %4908 = vmatprep.subr.mxu0 0.0
    %4909 = vmatpush1.msra.mxu0 0.0
    %4910 = vmatprep.subr.mxu0 0.0
    %4911 = vmatpush1.msra.mxu0 0.0
    %4912 = vmatprep.subr.mxu0 0.0
    %4913 = vmatpush1.msra.mxu0 0.0
    %4914 = vmatprep.subr.mxu0 0.0
    %4915 = vmatpush1.msra.mxu0 0.0
    %4916 = vmatprep.subr.mxu0 0.0
    %4917 = vmatpush1.msra.mxu0 0.0
    %4918 = vmatprep.subr.mxu0 0.0
    %4919 = vmatpush1.msra.mxu0 0.0
    %4920 = vmatprep.subr.mxu0 0.0
    %4921 = vmatpush1.msra.mxu0 0.0
    %4922 = vmatprep.subr.mxu0 0.0
    %4923 = vmatpush1.msra.mxu0 0.0
    %4924 = vmatprep.subr.mxu0 0.0
    %4925 = vmatpush1.msra.mxu0 0.0
    %4926 = vmatprep.mubr.f32.mxu0 0.0
    %4927 = vmatmul.mubr.f32.gmra.mrb[0].mxu0 %v4860
    %v4928 = vpop.f32.mrb[0].mxu0
    %v4929 = vadd.f32 %v3674, %v4928
    %v4930 = vpop.f32.mrb[0].mxu0
    %v4931 = vadd.f32 %v3678, %v4930
    %4932 = vdwg.mxu0
    %4933 = vmatprep.subr.mxu0 %v209
    %4934 = vmatpush1.msra.mxu0 %v208
    %4935 = vmatprep.subr.mxu0 %v213
    %4936 = vmatpush1.msra.mxu0 %v212
    %4937 = vmatprep.subr.mxu0 %v217
    %4938 = vmatpush1.msra.mxu0 %v216
    %4939 = vmatprep.subr.mxu0 %v221
    %4940 = vmatpush1.msra.mxu0 %v220
    %4941 = vmatprep.subr.mxu0 %v225
    %4942 = vmatpush1.msra.mxu0 %v224
    %4943 = vmatprep.subr.mxu0 %v229
    %4944 = vmatpush1.msra.mxu0 %v228
    %4945 = vmatprep.subr.mxu0 %v233
    %4946 = vmatpush1.msra.mxu0 %v232
    %4947 = vmatprep.subr.mxu0 %v237
    %4948 = vmatpush1.msra.mxu0 %v236
    %4949 = vmatprep.subr.mxu0 0.0
    %4950 = vmatpush1.msra.mxu0 0.0
    %4951 = vmatprep.subr.mxu0 0.0
    %4952 = vmatpush1.msra.mxu0 0.0
    %4953 = vmatprep.subr.mxu0 0.0
    %4954 = vmatpush1.msra.mxu0 0.0
    %4955 = vmatprep.subr.mxu0 0.0
    %4956 = vmatpush1.msra.mxu0 0.0
    %4957 = vmatprep.subr.mxu0 0.0
    %4958 = vmatpush1.msra.mxu0 0.0
    %4959 = vmatprep.subr.mxu0 0.0
    %4960 = vmatpush1.msra.mxu0 0.0
    %4961 = vmatprep.subr.mxu0 0.0
    %4962 = vmatpush1.msra.mxu0 0.0
    %4963 = vmatprep.subr.mxu0 0.0
    %4964 = vmatpush1.msra.mxu0 0.0
    %4965 = vmatprep.subr.mxu0 0.0
    %4966 = vmatpush1.msra.mxu0 0.0
    %4967 = vmatprep.subr.mxu0 0.0
    %4968 = vmatpush1.msra.mxu0 0.0
    %4969 = vmatprep.subr.mxu0 0.0
    %4970 = vmatpush1.msra.mxu0 0.0
    %4971 = vmatprep.subr.mxu0 0.0
    %4972 = vmatpush1.msra.mxu0 0.0
    %4973 = vmatprep.subr.mxu0 0.0
    %4974 = vmatpush1.msra.mxu0 0.0
    %4975 = vmatprep.subr.mxu0 0.0
    %4976 = vmatpush1.msra.mxu0 0.0
    %4977 = vmatprep.subr.mxu0 0.0
    %4978 = vmatpush1.msra.mxu0 0.0
    %4979 = vmatprep.subr.mxu0 0.0
    %4980 = vmatpush1.msra.mxu0 0.0
    %4981 = vmatprep.subr.mxu0 0.0
    %4982 = vmatpush1.msra.mxu0 0.0
    %4983 = vmatprep.subr.mxu0 0.0
    %4984 = vmatpush1.msra.mxu0 0.0
    %4985 = vmatprep.subr.mxu0 0.0
    %4986 = vmatpush1.msra.mxu0 0.0
    %4987 = vmatprep.subr.mxu0 0.0
    %4988 = vmatpush1.msra.mxu0 0.0
    %4989 = vmatprep.subr.mxu0 0.0
    %4990 = vmatpush1.msra.mxu0 0.0
    %4991 = vmatprep.subr.mxu0 0.0
    %4992 = vmatpush1.msra.mxu0 0.0
    %4993 = vmatprep.subr.mxu0 0.0
    %4994 = vmatpush1.msra.mxu0 0.0
    %4995 = vmatprep.subr.mxu0 0.0
    %4996 = vmatpush1.msra.mxu0 0.0
    %4997 = vmatprep.mubr.f32.mxu0 0.0
    %4998 = vmatmul.mubr.f32.gmra.mrb[0].mxu0 %v4860
    %v4999 = vpop.f32.mrb[0].mxu0
    %v5000 = vadd.f32 %v3682, %v4999
    %v5001 = vpop.f32.mrb[0].mxu0
    %v5002 = vadd.f32 %v3686, %v5001
    %5003 = vdwg.mxu0
    %v5004 = vxor.u32 %v4929, 2147483648
    %v5005 = vmul.f32 %v5004, 1.442695
    %v5006 = vpow.pop %v5005
    %v5007 = vadd.f32 %v5006, 1.0
    %v5008 = vrcp.pop %v5007
    %v5009 = vmul.f32 1.0, %v5008
    %v5010 = vxor.u32 %v4931, 2147483648
    %v5011 = vmul.f32 %v5010, 1.442695
    %v5012 = vpow.pop %v5011
    %v5013 = vadd.f32 %v5012, 1.0
    %v5014 = vrcp.pop %v5013
    %v5015 = vmul.f32 1.0, %v5014
    %v5016 = vmul.f32 %v5009, %v5002
    %v5017 = vadd.f32 %v5000, %v5016
    %v5018 = vtanh.pop %v5017
    %v5019 = vsub.f32 1.0, %v5015
    %v5020 = vmul.f32 %v5019, %v5018
    %v5021 = vmul.f32 %v5015, %v4443
    %v5022 = vadd.f32 %v5020, %v5021
    %v5024 = vsel %vm343, %v5022, 0
    %5026 = vmatprep.subr.mxu0 0.0
    %5027 = vmatpush1.xpose.msra.mxu0 %v3861
    %5028 = vmatprep.subr.mxu0 0.0
    %5029 = vmatpush1.xpose.msra.mxu0 0.0
    %5030 = vmatprep.subr.mxu0 0.0
    %5031 = vmatpush1.xpose.msra.mxu0 0.0
    %5032 = vmatprep.subr.mxu0 0.0
    %5033 = vmatpush1.xpose.msra.mxu0 0.0
    %5034 = vmatprep.subr.mxu0 0.0
    %5035 = vmatpush1.xpose.msra.mxu0 0.0
    %5036 = vmatprep.subr.mxu0 0.0
    %5037 = vmatpush1.xpose.msra.mxu0 0.0
    %5038 = vmatprep.subr.mxu0 0.0
    %5039 = vmatpush1.xpose.msra.mxu0 0.0
    %5040 = vmatprep.subr.mxu0 0.0
    %5041 = vmatpush1.xpose.msra.mxu0 0.0
    %5042 = vmatprep.subr.mxu0 0.0
    %5043 = vmatpush1.xpose.msra.mxu0 0.0
    %5044 = vmatprep.subr.mxu0 0.0
    %5045 = vmatpush1.xpose.msra.mxu0 0.0
    %5046 = vmatprep.subr.mxu0 0.0
    %5047 = vmatpush1.xpose.msra.mxu0 0.0
    %5048 = vmatprep.subr.mxu0 0.0
    %5049 = vmatpush1.xpose.msra.mxu0 0.0
    %5050 = vmatprep.subr.mxu0 0.0
    %5051 = vmatpush1.xpose.msra.mxu0 0.0
    %5052 = vmatprep.subr.mxu0 0.0
    %5053 = vmatpush1.xpose.msra.mxu0 0.0
    %5054 = vmatprep.subr.mxu0 0.0
    %5055 = vmatpush1.xpose.msra.mxu0 0.0
    %5056 = vmatprep.subr.mxu0 0.0
    %5057 = vmatpush1.xpose.msra.mxu0 0.0
    %5058 = vmatprep.subr.mxu0 0.0
    %5059 = vmatpush1.xpose.msra.mxu0 0.0
    %5060 = vmatprep.subr.mxu0 0.0
    %5061 = vmatpush1.xpose.msra.mxu0 0.0
    %5062 = vmatprep.subr.mxu0 0.0
    %5063 = vmatpush1.xpose.msra.mxu0 0.0
    %5064 = vmatprep.subr.mxu0 0.0
    %5065 = vmatpush1.xpose.msra.mxu0 0.0
    %5066 = vmatprep.subr.mxu0 0.0
    %5067 = vmatpush1.xpose.msra.mxu0 0.0
    %5068 = vmatprep.subr.mxu0 0.0
    %5069 = vmatpush1.xpose.msra.mxu0 0.0
    %5070 = vmatprep.subr.mxu0 0.0
    %5071 = vmatpush1.xpose.msra.mxu0 0.0
    %5072 = vmatprep.subr.mxu0 0.0
    %5073 = vmatpush1.xpose.msra.mxu0 0.0
    %5074 = vmatprep.subr.mxu0 0.0
    %5075 = vmatpush1.xpose.msra.mxu0 0.0
    %5076 = vmatprep.subr.mxu0 0.0
    %5077 = vmatpush1.xpose.msra.mxu0 0.0
    %5078 = vmatprep.subr.mxu0 0.0
    %5079 = vmatpush1.xpose.msra.mxu0 0.0
    %5080 = vmatprep.subr.mxu0 0.0
    %5081 = vmatpush1.xpose.msra.mxu0 0.0
    %5082 = vmatprep.subr.mxu0 0.0
    %5083 = vmatpush1.xpose.msra.mxu0 0.0
    %5084 = vmatprep.subr.mxu0 0.0
    %5085 = vmatpush1.xpose.msra.mxu0 0.0
    %5086 = vmatprep.subr.mxu0 0.0
    %5087 = vmatpush1.xpose.msra.mxu0 0.0
    %5088 = vmatprep.subr.mxu0 0.0
    %5089 = vmatpush1.xpose.msra.mxu0 0.0
    %5090 = vmatprep.mubr.f32.mxu0 0.0
    %5091 = vmatmul.mubr.f32.gmra.mrb[0].mxu0 %v5024
    %v5092 = vpop.f32.mrb[0].mxu0
    %v5093 = vadd.f32 0.0, %v5092
    %v5094 = vpop.f32.mrb[0].mxu0
    %5095 = vdwg.mxu0
    %v5096 = vsel %vm3934, %v5093, -1e+30
    %v5097 = vsel %vm3936, %v5096, -inf
    %5098 = vmax.xlane.f32.xlu0 %v5097
    %v5099 = vpop.xlane.xlu0 %5098
    %v5100 = vsub.f32 %v5096, %v5099
    %v5101 = vmul.f32 %v5100, 1.442695
    %v5102 = vpow.pop %v5101
    %v5103 = vsel %vm3936, %v5102, 0.0
    %5104 = vadd.xlane.f32.xlu0 %v5103
    %v5105 = vpop.xlane.xlu0 %5104
    %v5106 = vrcp.pop %v5105
    %v5107 = vmul.f32 %v5102, %v5106
    %v5109 = vsel %vm3948, %v5107, 0
    %5111 = vmatprep.subr.mxu0 0.0
    %5112 = vmatpush1.msra.mxu0 %v3661
    %5113 = vmatprep.subr.mxu0 0.0
    %5114 = vmatpush1.msra.mxu0 0.0
    %5115 = vmatprep.subr.mxu0 0.0
    %5116 = vmatpush1.msra.mxu0 0.0
    %5117 = vmatprep.subr.mxu0 0.0
    %5118 = vmatpush1.msra.mxu0 0.0
    %5119 = vmatprep.subr.mxu0 0.0
    %5120 = vmatpush1.msra.mxu0 0.0
    %5121 = vmatprep.subr.mxu0 0.0
    %5122 = vmatpush1.msra.mxu0 0.0
    %5123 = vmatprep.subr.mxu0 0.0
    %5124 = vmatpush1.msra.mxu0 0.0
    %5125 = vmatprep.subr.mxu0 0.0
    %5126 = vmatpush1.msra.mxu0 0.0
    %5127 = vmatprep.subr.mxu0 0.0
    %5128 = vmatpush1.msra.mxu0 0.0
    %5129 = vmatprep.subr.mxu0 0.0
    %5130 = vmatpush1.msra.mxu0 0.0
    %5131 = vmatprep.subr.mxu0 0.0
    %5132 = vmatpush1.msra.mxu0 0.0
    %5133 = vmatprep.subr.mxu0 0.0
    %5134 = vmatpush1.msra.mxu0 0.0
    %5135 = vmatprep.subr.mxu0 0.0
    %5136 = vmatpush1.msra.mxu0 0.0
    %5137 = vmatprep.subr.mxu0 0.0
    %5138 = vmatpush1.msra.mxu0 0.0
    %5139 = vmatprep.subr.mxu0 0.0
    %5140 = vmatpush1.msra.mxu0 0.0
    %5141 = vmatprep.subr.mxu0 0.0
    %5142 = vmatpush1.msra.mxu0 0.0
    %5143 = vmatprep.subr.mxu0 0.0
    %5144 = vmatpush1.msra.mxu0 0.0
    %5145 = vmatprep.subr.mxu0 0.0
    %5146 = vmatpush1.msra.mxu0 0.0
    %5147 = vmatprep.subr.mxu0 0.0
    %5148 = vmatpush1.msra.mxu0 0.0
    %5149 = vmatprep.subr.mxu0 0.0
    %5150 = vmatpush1.msra.mxu0 0.0
    %5151 = vmatprep.subr.mxu0 0.0
    %5152 = vmatpush1.msra.mxu0 0.0
    %5153 = vmatprep.subr.mxu0 0.0
    %5154 = vmatpush1.msra.mxu0 0.0
    %5155 = vmatprep.subr.mxu0 0.0
    %5156 = vmatpush1.msra.mxu0 0.0
    %5157 = vmatprep.subr.mxu0 0.0
    %5158 = vmatpush1.msra.mxu0 0.0
    %5159 = vmatprep.subr.mxu0 0.0
    %5160 = vmatpush1.msra.mxu0 0.0
    %5161 = vmatprep.subr.mxu0 0.0
    %5162 = vmatpush1.msra.mxu0 0.0
    %5163 = vmatprep.subr.mxu0 0.0
    %5164 = vmatpush1.msra.mxu0 0.0
    %5165 = vmatprep.subr.mxu0 0.0
    %5166 = vmatpush1.msra.mxu0 0.0
    %5167 = vmatprep.subr.mxu0 0.0
    %5168 = vmatpush1.msra.mxu0 0.0
    %5169 = vmatprep.subr.mxu0 0.0
    %5170 = vmatpush1.msra.mxu0 0.0
    %5171 = vmatprep.subr.mxu0 0.0
    %5172 = vmatpush1.msra.mxu0 0.0
    %5173 = vmatprep.subr.mxu0 0.0
    %5174 = vmatpush1.msra.mxu0 0.0
    %5175 = vmatprep.mubr.f32.mxu0 0.0
    %5176 = vmatmul.mubr.f32.gmra.mrb[0].mxu0 %v5109
    %v5177 = vpop.f32.mrb[0].mxu0
    %v5178 = vadd.f32 0.0, %v5177
    %v5179 = vpop.f32.mrb[0].mxu0
    %5180 = vdwg.mxu0
    %5182 = vrot.lane.b32.xlu0 %v5178, 32
    %v5183 = vpop.permute.xlu0 %5182
    %v5185 = vsel %vm343, %v5022, %v5183
    %v5187 = vsel %vm3691, %v5185, 0
    %5189 = vmatprep.subr.mxu0 0.0
    %5190 = vmatpush1.msra.mxu0 %v239
    %5191 = vmatprep.subr.mxu0 0.0
    %5192 = vmatpush1.msra.mxu0 %v240
    %5193 = vmatprep.subr.mxu0 0.0
    %5194 = vmatpush1.msra.mxu0 %v241
    %5195 = vmatprep.subr.mxu0 0.0
    %5196 = vmatpush1.msra.mxu0 %v242
    %5197 = vmatprep.subr.mxu0 0.0
    %5198 = vmatpush1.msra.mxu0 %v243
    %5199 = vmatprep.subr.mxu0 0.0
    %5200 = vmatpush1.msra.mxu0 %v244
    %5201 = vmatprep.subr.mxu0 0.0
    %5202 = vmatpush1.msra.mxu0 %v245
    %5203 = vmatprep.subr.mxu0 0.0
    %5204 = vmatpush1.msra.mxu0 %v246
    %5205 = vmatprep.subr.mxu0 0.0
    %5206 = vmatpush1.msra.mxu0 0.0
    %5207 = vmatprep.subr.mxu0 0.0
    %5208 = vmatpush1.msra.mxu0 0.0
    %5209 = vmatprep.subr.mxu0 0.0
    %5210 = vmatpush1.msra.mxu0 0.0
    %5211 = vmatprep.subr.mxu0 0.0
    %5212 = vmatpush1.msra.mxu0 0.0
    %5213 = vmatprep.subr.mxu0 0.0
    %5214 = vmatpush1.msra.mxu0 0.0
    %5215 = vmatprep.subr.mxu0 0.0
    %5216 = vmatpush1.msra.mxu0 0.0
    %5217 = vmatprep.subr.mxu0 0.0
    %5218 = vmatpush1.msra.mxu0 0.0
    %5219 = vmatprep.subr.mxu0 0.0
    %5220 = vmatpush1.msra.mxu0 0.0
    %5221 = vmatprep.subr.mxu0 0.0
    %5222 = vmatpush1.msra.mxu0 0.0
    %5223 = vmatprep.subr.mxu0 0.0
    %5224 = vmatpush1.msra.mxu0 0.0
    %5225 = vmatprep.subr.mxu0 0.0
    %5226 = vmatpush1.msra.mxu0 0.0
    %5227 = vmatprep.subr.mxu0 0.0
    %5228 = vmatpush1.msra.mxu0 0.0
    %5229 = vmatprep.subr.mxu0 0.0
    %5230 = vmatpush1.msra.mxu0 0.0
    %5231 = vmatprep.subr.mxu0 0.0
    %5232 = vmatpush1.msra.mxu0 0.0
    %5233 = vmatprep.subr.mxu0 0.0
    %5234 = vmatpush1.msra.mxu0 0.0
    %5235 = vmatprep.subr.mxu0 0.0
    %5236 = vmatpush1.msra.mxu0 0.0
    %5237 = vmatprep.subr.mxu0 0.0
    %5238 = vmatpush1.msra.mxu0 0.0
    %5239 = vmatprep.subr.mxu0 0.0
    %5240 = vmatpush1.msra.mxu0 0.0
    %5241 = vmatprep.subr.mxu0 0.0
    %5242 = vmatpush1.msra.mxu0 0.0
    %5243 = vmatprep.subr.mxu0 0.0
    %5244 = vmatpush1.msra.mxu0 0.0
    %5245 = vmatprep.subr.mxu0 0.0
    %5246 = vmatpush1.msra.mxu0 0.0
    %5247 = vmatprep.subr.mxu0 0.0
    %5248 = vmatpush1.msra.mxu0 0.0
    %5249 = vmatprep.subr.mxu0 0.0
    %5250 = vmatpush1.msra.mxu0 0.0
    %5251 = vmatprep.subr.mxu0 0.0
    %5252 = vmatpush1.msra.mxu0 0.0
    %5253 = vmatprep.mubr.f32.mxu0 0.0
    %5254 = vmatmul.mubr.f32.gmra.mrb[0].mxu0 %v5187
    %v5255 = vpop.f32.mrb[0].mxu0
    %v5256 = vadd.f32 %v247, %v5255
    %v5257 = vpop.f32.mrb[0].mxu0
    %5258 = vdwg.mxu0
    %v5259 = vtanh.pop %v5256
    %v5261 = vsel %vm343, %v5259, 0
    %5263 = vmatprep.subr.mxu0 0.0
    %5264 = vmatpush1.msra.mxu0 %v248
    %5265 = vmatprep.subr.mxu0 0.0
    %5266 = vmatpush1.msra.mxu0 %v249
    %5267 = vmatprep.subr.mxu0 0.0
    %5268 = vmatpush1.msra.mxu0 %v250
    %5269 = vmatprep.subr.mxu0 0.0
    %5270 = vmatpush1.msra.mxu0 %v251
    %5271 = vmatprep.subr.mxu0 0.0
    %5272 = vmatpush1.msra.mxu0 0.0
    %5273 = vmatprep.subr.mxu0 0.0
    %5274 = vmatpush1.msra.mxu0 0.0
    %5275 = vmatprep.subr.mxu0 0.0
    %5276 = vmatpush1.msra.mxu0 0.0
    %5277 = vmatprep.subr.mxu0 0.0
    %5278 = vmatpush1.msra.mxu0 0.0
    %5279 = vmatprep.subr.mxu0 0.0
    %5280 = vmatpush1.msra.mxu0 0.0
    %5281 = vmatprep.subr.mxu0 0.0
    %5282 = vmatpush1.msra.mxu0 0.0
    %5283 = vmatprep.subr.mxu0 0.0
    %5284 = vmatpush1.msra.mxu0 0.0
    %5285 = vmatprep.subr.mxu0 0.0
    %5286 = vmatpush1.msra.mxu0 0.0
    %5287 = vmatprep.subr.mxu0 0.0
    %5288 = vmatpush1.msra.mxu0 0.0
    %5289 = vmatprep.subr.mxu0 0.0
    %5290 = vmatpush1.msra.mxu0 0.0
    %5291 = vmatprep.subr.mxu0 0.0
    %5292 = vmatpush1.msra.mxu0 0.0
    %5293 = vmatprep.subr.mxu0 0.0
    %5294 = vmatpush1.msra.mxu0 0.0
    %5295 = vmatprep.subr.mxu0 0.0
    %5296 = vmatpush1.msra.mxu0 0.0
    %5297 = vmatprep.subr.mxu0 0.0
    %5298 = vmatpush1.msra.mxu0 0.0
    %5299 = vmatprep.subr.mxu0 0.0
    %5300 = vmatpush1.msra.mxu0 0.0
    %5301 = vmatprep.subr.mxu0 0.0
    %5302 = vmatpush1.msra.mxu0 0.0
    %5303 = vmatprep.subr.mxu0 0.0
    %5304 = vmatpush1.msra.mxu0 0.0
    %5305 = vmatprep.subr.mxu0 0.0
    %5306 = vmatpush1.msra.mxu0 0.0
    %5307 = vmatprep.subr.mxu0 0.0
    %5308 = vmatpush1.msra.mxu0 0.0
    %5309 = vmatprep.subr.mxu0 0.0
    %5310 = vmatpush1.msra.mxu0 0.0
    %5311 = vmatprep.subr.mxu0 0.0
    %5312 = vmatpush1.msra.mxu0 0.0
    %5313 = vmatprep.subr.mxu0 0.0
    %5314 = vmatpush1.msra.mxu0 0.0
    %5315 = vmatprep.subr.mxu0 0.0
    %5316 = vmatpush1.msra.mxu0 0.0
    %5317 = vmatprep.subr.mxu0 0.0
    %5318 = vmatpush1.msra.mxu0 0.0
    %5319 = vmatprep.subr.mxu0 0.0
    %5320 = vmatpush1.msra.mxu0 0.0
    %5321 = vmatprep.subr.mxu0 0.0
    %5322 = vmatpush1.msra.mxu0 0.0
    %5323 = vmatprep.subr.mxu0 0.0
    %5324 = vmatpush1.msra.mxu0 0.0
    %5325 = vmatprep.subr.mxu0 0.0
    %5326 = vmatpush1.msra.mxu0 0.0
    %5327 = vmatprep.mubr.f32.mxu0 0.0
    %5328 = vmatmul.mubr.f32.gmra.mrb[0].mxu0 %v5261
    %v5329 = vpop.f32.mrb[0].mxu0
    %v5330 = vadd.f32 %v252, %v5329
    %v5331 = vpop.f32.mrb[0].mxu0
    %5332 = vdwg.mxu0
    %v5333 = vsel %vm4174, %v5330, -1e+30
    %v5334 = vsel %vm300, %v5333, -inf
    %5335 = vmax.xlane.f32.xlu0 %v5334
    %v5336 = vpop.xlane.xlu0 %5335
    %v5337 = vsub.f32 %v5333, %v5336
    %v5338 = vmul.f32 %v5337, 1.442695
    %v5339 = vpow.pop %v5338
    %v5340 = vsel %vm300, %v5339, 0.0
    %5341 = vadd.xlane.f32.xlu0 %v5340
    %v5342 = vpop.xlane.xlu0 %5341
    %v5343 = vrcp.pop %v5342
    %vm5344 = vcmp.eq.f32.partialorder %v5333, %v5336
    %v5345 = vsel %vm5344, %v254, 128
    %v5346 = vsel %vm300, %v5345, 2147483647
    %v5347 = vand.u32 %v5346, 65535
    %v5348 = vshra.s32 %v5346, 16
    %v5349 = vcvt.s32.f32 %v5347
    %v5350 = vcvt.s32.f32 %v5348
    %5351 = vmin.xlane.f32.xlu0 %v5350
    %v5352 = vpop.xlane.xlu0 %5351
    %vm5353 = vcmp.eq.f32.partialorder %v5350, %v5352
    %v5354 = vsel %vm5353, %v5349, inf
    %5355 = vmin.xlane.f32.xlu0 %v5354
    %v5356 = vpop.xlane.xlu0 %5355
    %v5357 = vcvt.f32.s32 %v5356
    %v5358 = vcvt.f32.s32 %v5352
    %v5359 = vshll.u32 %v5358, 16
    %v5360 = vadd.s32 %v5359, %v5357
    %vm5361 = vcmp.eq.s32.totalorder %v254, %v5360
    %v5362 = vsel %vm5361, 1, 0
    %v5363 = vcvt.s32.f32 %v5362
    %5364 = vmatprep.subr.mxu0 0.0
    %5365 = vmatpush1.msra.mxu0 %v164
    %5366 = vmatprep.subr.mxu0 0.0
    %5367 = vmatpush1.msra.mxu0 %v165
    %5368 = vmatprep.subr.mxu0 0.0
    %5369 = vmatpush1.msra.mxu0 %v166
    %5370 = vmatprep.subr.mxu0 0.0
    %5371 = vmatpush1.msra.mxu0 %v167
    %5372 = vmatprep.subr.mxu0 0.0
    %5373 = vmatpush1.msra.mxu0 %v168
    %5374 = vmatprep.subr.mxu0 0.0
    %5375 = vmatpush1.msra.mxu0 %v169
    %5376 = vmatprep.subr.mxu0 0.0
    %5377 = vmatpush1.msra.mxu0 %v170
    %5378 = vmatprep.subr.mxu0 0.0
    %5379 = vmatpush1.msra.mxu0 %v171
    %5380 = vmatprep.subr.mxu0 0.0
    %5381 = vmatpush1.msra.mxu0 %v172
    %5382 = vmatprep.subr.mxu0 0.0
    %5383 = vmatpush1.msra.mxu0 %v173
    %5384 = vmatprep.subr.mxu0 0.0
    %5385 = vmatpush1.msra.mxu0 %v174
    %5386 = vmatprep.subr.mxu0 0.0
    %5387 = vmatpush1.msra.mxu0 %v175
    %5388 = vmatprep.subr.mxu0 0.0
    %5389 = vmatpush1.msra.mxu0 %v176
    %5390 = vmatprep.subr.mxu0 0.0
    %5391 = vmatpush1.msra.mxu0 %v177
    %5392 = vmatprep.subr.mxu0 0.0
    %5393 = vmatpush1.msra.mxu0 %v178
    %5394 = vmatprep.subr.mxu0 0.0
    %5395 = vmatpush1.msra.mxu0 %v179
    %5396 = vmatprep.subr.mxu0 0.0
    %5397 = vmatpush1.msra.mxu0 0.0
    %5398 = vmatprep.subr.mxu0 0.0
    %5399 = vmatpush1.msra.mxu0 0.0
    %5400 = vmatprep.subr.mxu0 0.0
    %5401 = vmatpush1.msra.mxu0 0.0
    %5402 = vmatprep.subr.mxu0 0.0
    %5403 = vmatpush1.msra.mxu0 0.0
    %5404 = vmatprep.subr.mxu0 0.0
    %5405 = vmatpush1.msra.mxu0 0.0
    %5406 = vmatprep.subr.mxu0 0.0
    %5407 = vmatpush1.msra.mxu0 0.0
    %5408 = vmatprep.subr.mxu0 0.0
    %5409 = vmatpush1.msra.mxu0 0.0
    %5410 = vmatprep.subr.mxu0 0.0
    %5411 = vmatpush1.msra.mxu0 0.0
    %5412 = vmatprep.subr.mxu0 0.0
    %5413 = vmatpush1.msra.mxu0 0.0
    %5414 = vmatprep.subr.mxu0 0.0
    %5415 = vmatpush1.msra.mxu0 0.0
    %5416 = vmatprep.subr.mxu0 0.0
    %5417 = vmatpush1.msra.mxu0 0.0
    %5418 = vmatprep.subr.mxu0 0.0
    %5419 = vmatpush1.msra.mxu0 0.0
    %5420 = vmatprep.subr.mxu0 0.0
    %5421 = vmatpush1.msra.mxu0 0.0
    %5422 = vmatprep.subr.mxu0 0.0
    %5423 = vmatpush1.msra.mxu0 0.0
    %5424 = vmatprep.subr.mxu0 0.0
    %5425 = vmatpush1.msra.mxu0 0.0
    %5426 = vmatprep.subr.mxu0 0.0
    %5427 = vmatpush1.msra.mxu0 0.0
    %5428 = vmatprep.mubr.f32.mxu0 0.0
    %5429 = vmatmul.mubr.f32.gmra.mrb[0].mxu0 %v5363
    %v5430 = vpop.f32.mrb[0].mxu0
    %v5431 = vadd.f32 0.0, %v5430
    %v5432 = vpop.f32.mrb[0].mxu0
    %5433 = vdwg.mxu0
    %5434 = vrot.lane.b32.xlu0 %v5022, 32
    %v5435 = vpop.permute.xlu0 %5434
    %v5437 = vsel %vm343, %v5431, %v5435
    %v5439 = vsel %vm3691, %v5437, 0
    %5441 = vmatprep.subr.mxu0 %v207
    %5442 = vmatpush1.msra.mxu0 %v206
    %5443 = vmatprep.subr.mxu0 %v211
    %5444 = vmatpush1.msra.mxu0 %v210
    %5445 = vmatprep.subr.mxu0 %v215
    %5446 = vmatpush1.msra.mxu0 %v214
    %5447 = vmatprep.subr.mxu0 %v219
    %5448 = vmatpush1.msra.mxu0 %v218
    %5449 = vmatprep.subr.mxu0 %v223
    %5450 = vmatpush1.msra.mxu0 %v222
    %5451 = vmatprep.subr.mxu0 %v227
    %5452 = vmatpush1.msra.mxu0 %v226
    %5453 = vmatprep.subr.mxu0 %v231
    %5454 = vmatpush1.msra.mxu0 %v230
    %5455 = vmatprep.subr.mxu0 %v235
    %5456 = vmatpush1.msra.mxu0 %v234
    %5457 = vmatprep.subr.mxu0 0.0
    %5458 = vmatpush1.msra.mxu0 0.0
    %5459 = vmatprep.subr.mxu0 0.0
    %5460 = vmatpush1.msra.mxu0 0.0
    %5461 = vmatprep.subr.mxu0 0.0
    %5462 = vmatpush1.msra.mxu0 0.0
    %5463 = vmatprep.subr.mxu0 0.0
    %5464 = vmatpush1.msra.mxu0 0.0
    %5465 = vmatprep.subr.mxu0 0.0
    %5466 = vmatpush1.msra.mxu0 0.0
    %5467 = vmatprep.subr.mxu0 0.0
    %5468 = vmatpush1.msra.mxu0 0.0
    %5469 = vmatprep.subr.mxu0 0.0
    %5470 = vmatpush1.msra.mxu0 0.0
    %5471 = vmatprep.subr.mxu0 0.0
    %5472 = vmatpush1.msra.mxu0 0.0
    %5473 = vmatprep.subr.mxu0 0.0
    %5474 = vmatpush1.msra.mxu0 0.0
    %5475 = vmatprep.subr.mxu0 0.0
    %5476 = vmatpush1.msra.mxu0 0.0
    %5477 = vmatprep.subr.mxu0 0.0
    %5478 = vmatpush1.msra.mxu0 0.0
    %5479 = vmatprep.subr.mxu0 0.0
    %5480 = vmatpush1.msra.mxu0 0.0
    %5481 = vmatprep.subr.mxu0 0.0
    %5482 = vmatpush1.msra.mxu0 0.0
    %5483 = vmatprep.subr.mxu0 0.0
    %5484 = vmatpush1.msra.mxu0 0.0
    %5485 = vmatprep.subr.mxu0 0.0
    %5486 = vmatpush1.msra.mxu0 0.0
    %5487 = vmatprep.subr.mxu0 0.0
    %5488 = vmatpush1.msra.mxu0 0.0
    %5489 = vmatprep.subr.mxu0 0.0
    %5490 = vmatpush1.msra.mxu0 0.0
    %5491 = vmatprep.subr.mxu0 0.0
    %5492 = vmatpush1.msra.mxu0 0.0
    %5493 = vmatprep.subr.mxu0 0.0
    %5494 = vmatpush1.msra.mxu0 0.0
    %5495 = vmatprep.subr.mxu0 0.0
    %5496 = vmatpush1.msra.mxu0 0.0
    %5497 = vmatprep.subr.mxu0 0.0
    %5498 = vmatpush1.msra.mxu0 0.0
    %5499 = vmatprep.subr.mxu0 0.0
    %5500 = vmatpush1.msra.mxu0 0.0
    %5501 = vmatprep.subr.mxu0 0.0
    %5502 = vmatpush1.msra.mxu0 0.0
    %5503 = vmatprep.subr.mxu0 0.0
    %5504 = vmatpush1.msra.mxu0 0.0
    %5505 = vmatprep.mubr.f32.mxu0 0.0
    %5506 = vmatmul.mubr.f32.gmra.mrb[0].mxu0 %v5439
    %v5507 = vpop.f32.mrb[0].mxu0
    %v5508 = vadd.f32 %v3674, %v5507
    %v5509 = vpop.f32.mrb[0].mxu0
    %v5510 = vadd.f32 %v3678, %v5509
    %5511 = vdwg.mxu0
    %5512 = vmatprep.subr.mxu0 %v209
    %5513 = vmatpush1.msra.mxu0 %v208
    %5514 = vmatprep.subr.mxu0 %v213
    %5515 = vmatpush1.msra.mxu0 %v212
    %5516 = vmatprep.subr.mxu0 %v217
    %5517 = vmatpush1.msra.mxu0 %v216
    %5518 = vmatprep.subr.mxu0 %v221
    %5519 = vmatpush1.msra.mxu0 %v220
    %5520 = vmatprep.subr.mxu0 %v225
    %5521 = vmatpush1.msra.mxu0 %v224
    %5522 = vmatprep.subr.mxu0 %v229
    %5523 = vmatpush1.msra.mxu0 %v228
    %5524 = vmatprep.subr.mxu0 %v233
    %5525 = vmatpush1.msra.mxu0 %v232
    %5526 = vmatprep.subr.mxu0 %v237
    %5527 = vmatpush1.msra.mxu0 %v236
    %5528 = vmatprep.subr.mxu0 0.0
    %5529 = vmatpush1.msra.mxu0 0.0
    %5530 = vmatprep.subr.mxu0 0.0
    %5531 = vmatpush1.msra.mxu0 0.0
    %5532 = vmatprep.subr.mxu0 0.0
    %5533 = vmatpush1.msra.mxu0 0.0
    %5534 = vmatprep.subr.mxu0 0.0
    %5535 = vmatpush1.msra.mxu0 0.0
    %5536 = vmatprep.subr.mxu0 0.0
    %5537 = vmatpush1.msra.mxu0 0.0
    %5538 = vmatprep.subr.mxu0 0.0
    %5539 = vmatpush1.msra.mxu0 0.0
    %5540 = vmatprep.subr.mxu0 0.0
    %5541 = vmatpush1.msra.mxu0 0.0
    %5542 = vmatprep.subr.mxu0 0.0
    %5543 = vmatpush1.msra.mxu0 0.0
    %5544 = vmatprep.subr.mxu0 0.0
    %5545 = vmatpush1.msra.mxu0 0.0
    %5546 = vmatprep.subr.mxu0 0.0
    %5547 = vmatpush1.msra.mxu0 0.0
    %5548 = vmatprep.subr.mxu0 0.0
    %5549 = vmatpush1.msra.mxu0 0.0
    %5550 = vmatprep.subr.mxu0 0.0
    %5551 = vmatpush1.msra.mxu0 0.0
    %5552 = vmatprep.subr.mxu0 0.0
    %5553 = vmatpush1.msra.mxu0 0.0
    %5554 = vmatprep.subr.mxu0 0.0
    %5555 = vmatpush1.msra.mxu0 0.0
    %5556 = vmatprep.subr.mxu0 0.0
    %5557 = vmatpush1.msra.mxu0 0.0
    %5558 = vmatprep.subr.mxu0 0.0
    %5559 = vmatpush1.msra.mxu0 0.0
    %5560 = vmatprep.subr.mxu0 0.0
    %5561 = vmatpush1.msra.mxu0 0.0
    %5562 = vmatprep.subr.mxu0 0.0
    %5563 = vmatpush1.msra.mxu0 0.0
    %5564 = vmatprep.subr.mxu0 0.0
    %5565 = vmatpush1.msra.mxu0 0.0
    %5566 = vmatprep.subr.mxu0 0.0
    %5567 = vmatpush1.msra.mxu0 0.0
    %5568 = vmatprep.subr.mxu0 0.0
    %5569 = vmatpush1.msra.mxu0 0.0
    %5570 = vmatprep.subr.mxu0 0.0
    %5571 = vmatpush1.msra.mxu0 0.0
    %5572 = vmatprep.subr.mxu0 0.0
    %5573 = vmatpush1.msra.mxu0 0.0
    %5574 = vmatprep.subr.mxu0 0.0
    %5575 = vmatpush1.msra.mxu0 0.0
    %5576 = vmatprep.mubr.f32.mxu0 0.0
    %5577 = vmatmul.mubr.f32.gmra.mrb[0].mxu0 %v5439
    %v5578 = vpop.f32.mrb[0].mxu0
    %v5579 = vadd.f32 %v3682, %v5578
    %v5580 = vpop.f32.mrb[0].mxu0
    %v5581 = vadd.f32 %v3686, %v5580
    %5582 = vdwg.mxu0
    %v5583 = vxor.u32 %v5508, 2147483648
    %v5584 = vmul.f32 %v5583, 1.442695
    %v5585 = vpow.pop %v5584
    %v5586 = vadd.f32 %v5585, 1.0
    %v5587 = vrcp.pop %v5586
    %v5588 = vmul.f32 1.0, %v5587
    %v5589 = vxor.u32 %v5510, 2147483648
    %v5590 = vmul.f32 %v5589, 1.442695
    %v5591 = vpow.pop %v5590
    %v5592 = vadd.f32 %v5591, 1.0
    %v5593 = vrcp.pop %v5592
    %v5594 = vmul.f32 1.0, %v5593
    %v5595 = vmul.f32 %v5588, %v5581
    %v5596 = vadd.f32 %v5579, %v5595
    %v5597 = vtanh.pop %v5596
    %v5598 = vsub.f32 1.0, %v5594
    %v5599 = vmul.f32 %v5598, %v5597
    %v5600 = vmul.f32 %v5594, %v5022
    %v5601 = vadd.f32 %v5599, %v5600
    %v5603 = vsel %vm343, %v5601, 0
    %5605 = vmatprep.subr.mxu0 0.0
    %5606 = vmatpush1.xpose.msra.mxu0 %v3861
    %5607 = vmatprep.subr.mxu0 0.0
    %5608 = vmatpush1.xpose.msra.mxu0 0.0
    %5609 = vmatprep.subr.mxu0 0.0
    %5610 = vmatpush1.xpose.msra.mxu0 0.0
    %5611 = vmatprep.subr.mxu0 0.0
    %5612 = vmatpush1.xpose.msra.mxu0 0.0
    %5613 = vmatprep.subr.mxu0 0.0
    %5614 = vmatpush1.xpose.msra.mxu0 0.0
    %5615 = vmatprep.subr.mxu0 0.0
    %5616 = vmatpush1.xpose.msra.mxu0 0.0
    %5617 = vmatprep.subr.mxu0 0.0
    %5618 = vmatpush1.xpose.msra.mxu0 0.0
    %5619 = vmatprep.subr.mxu0 0.0
    %5620 = vmatpush1.xpose.msra.mxu0 0.0
    %5621 = vmatprep.subr.mxu0 0.0
    %5622 = vmatpush1.xpose.msra.mxu0 0.0
    %5623 = vmatprep.subr.mxu0 0.0
    %5624 = vmatpush1.xpose.msra.mxu0 0.0
    %5625 = vmatprep.subr.mxu0 0.0
    %5626 = vmatpush1.xpose.msra.mxu0 0.0
    %5627 = vmatprep.subr.mxu0 0.0
    %5628 = vmatpush1.xpose.msra.mxu0 0.0
    %5629 = vmatprep.subr.mxu0 0.0
    %5630 = vmatpush1.xpose.msra.mxu0 0.0
    %5631 = vmatprep.subr.mxu0 0.0
    %5632 = vmatpush1.xpose.msra.mxu0 0.0
    %5633 = vmatprep.subr.mxu0 0.0
    %5634 = vmatpush1.xpose.msra.mxu0 0.0
    %5635 = vmatprep.subr.mxu0 0.0
    %5636 = vmatpush1.xpose.msra.mxu0 0.0
    %5637 = vmatprep.subr.mxu0 0.0
    %5638 = vmatpush1.xpose.msra.mxu0 0.0
    %5639 = vmatprep.subr.mxu0 0.0
    %5640 = vmatpush1.xpose.msra.mxu0 0.0
    %5641 = vmatprep.subr.mxu0 0.0
    %5642 = vmatpush1.xpose.msra.mxu0 0.0
    %5643 = vmatprep.subr.mxu0 0.0
    %5644 = vmatpush1.xpose.msra.mxu0 0.0
    %5645 = vmatprep.subr.mxu0 0.0
    %5646 = vmatpush1.xpose.msra.mxu0 0.0
    %5647 = vmatprep.subr.mxu0 0.0
    %5648 = vmatpush1.xpose.msra.mxu0 0.0
    %5649 = vmatprep.subr.mxu0 0.0
    %5650 = vmatpush1.xpose.msra.mxu0 0.0
    %5651 = vmatprep.subr.mxu0 0.0
    %5652 = vmatpush1.xpose.msra.mxu0 0.0
    %5653 = vmatprep.subr.mxu0 0.0
    %5654 = vmatpush1.xpose.msra.mxu0 0.0
    %5655 = vmatprep.subr.mxu0 0.0
    %5656 = vmatpush1.xpose.msra.mxu0 0.0
    %5657 = vmatprep.subr.mxu0 0.0
    %5658 = vmatpush1.xpose.msra.mxu0 0.0
    %5659 = vmatprep.subr.mxu0 0.0
    %5660 = vmatpush1.xpose.msra.mxu0 0.0
    %5661 = vmatprep.subr.mxu0 0.0
    %5662 = vmatpush1.xpose.msra.mxu0 0.0
    %5663 = vmatprep.subr.mxu0 0.0
    %5664 = vmatpush1.xpose.msra.mxu0 0.0
    %5665 = vmatprep.subr.mxu0 0.0
    %5666 = vmatpush1.xpose.msra.mxu0 0.0
    %5667 = vmatprep.subr.mxu0 0.0
    %5668 = vmatpush1.xpose.msra.mxu0 0.0
    %5669 = vmatprep.mubr.f32.mxu0 0.0
    %5670 = vmatmul.mubr.f32.gmra.mrb[0].mxu0 %v5603
    %v5671 = vpop.f32.mrb[0].mxu0
    %v5672 = vadd.f32 0.0, %v5671
    %v5673 = vpop.f32.mrb[0].mxu0
    %5674 = vdwg.mxu0
    %v5675 = vsel %vm3934, %v5672, -1e+30
    %v5676 = vsel %vm3936, %v5675, -inf
    %5677 = vmax.xlane.f32.xlu0 %v5676
    %v5678 = vpop.xlane.xlu0 %5677
    %v5679 = vsub.f32 %v5675, %v5678
    %v5680 = vmul.f32 %v5679, 1.442695
    %v5681 = vpow.pop %v5680
    %v5682 = vsel %vm3936, %v5681, 0.0
    %5683 = vadd.xlane.f32.xlu0 %v5682
    %v5684 = vpop.xlane.xlu0 %5683
    %v5685 = vrcp.pop %v5684
    %v5686 = vmul.f32 %v5681, %v5685
    %v5688 = vsel %vm3948, %v5686, 0
    %5690 = vmatprep.subr.mxu0 0.0
    %5691 = vmatpush1.msra.mxu0 %v3661
    %5692 = vmatprep.subr.mxu0 0.0
    %5693 = vmatpush1.msra.mxu0 0.0
    %5694 = vmatprep.subr.mxu0 0.0
    %5695 = vmatpush1.msra.mxu0 0.0
    %5696 = vmatprep.subr.mxu0 0.0
    %5697 = vmatpush1.msra.mxu0 0.0
    %5698 = vmatprep.subr.mxu0 0.0
    %5699 = vmatpush1.msra.mxu0 0.0
    %5700 = vmatprep.subr.mxu0 0.0
    %5701 = vmatpush1.msra.mxu0 0.0
    %5702 = vmatprep.subr.mxu0 0.0
    %5703 = vmatpush1.msra.mxu0 0.0
    %5704 = vmatprep.subr.mxu0 0.0
    %5705 = vmatpush1.msra.mxu0 0.0
    %5706 = vmatprep.subr.mxu0 0.0
    %5707 = vmatpush1.msra.mxu0 0.0
    %5708 = vmatprep.subr.mxu0 0.0
    %5709 = vmatpush1.msra.mxu0 0.0
    %5710 = vmatprep.subr.mxu0 0.0
    %5711 = vmatpush1.msra.mxu0 0.0
    %5712 = vmatprep.subr.mxu0 0.0
    %5713 = vmatpush1.msra.mxu0 0.0
    %5714 = vmatprep.subr.mxu0 0.0
    %5715 = vmatpush1.msra.mxu0 0.0
    %5716 = vmatprep.subr.mxu0 0.0
    %5717 = vmatpush1.msra.mxu0 0.0
    %5718 = vmatprep.subr.mxu0 0.0
    %5719 = vmatpush1.msra.mxu0 0.0
    %5720 = vmatprep.subr.mxu0 0.0
    %5721 = vmatpush1.msra.mxu0 0.0
    %5722 = vmatprep.subr.mxu0 0.0
    %5723 = vmatpush1.msra.mxu0 0.0
    %5724 = vmatprep.subr.mxu0 0.0
    %5725 = vmatpush1.msra.mxu0 0.0
    %5726 = vmatprep.subr.mxu0 0.0
    %5727 = vmatpush1.msra.mxu0 0.0
    %5728 = vmatprep.subr.mxu0 0.0
    %5729 = vmatpush1.msra.mxu0 0.0
    %5730 = vmatprep.subr.mxu0 0.0
    %5731 = vmatpush1.msra.mxu0 0.0
    %5732 = vmatprep.subr.mxu0 0.0
    %5733 = vmatpush1.msra.mxu0 0.0
    %5734 = vmatprep.subr.mxu0 0.0
    %5735 = vmatpush1.msra.mxu0 0.0
    %5736 = vmatprep.subr.mxu0 0.0
    %5737 = vmatpush1.msra.mxu0 0.0
    %5738 = vmatprep.subr.mxu0 0.0
    %5739 = vmatpush1.msra.mxu0 0.0
    %5740 = vmatprep.subr.mxu0 0.0
    %5741 = vmatpush1.msra.mxu0 0.0
    %5742 = vmatprep.subr.mxu0 0.0
    %5743 = vmatpush1.msra.mxu0 0.0
    %5744 = vmatprep.subr.mxu0 0.0
    %5745 = vmatpush1.msra.mxu0 0.0
    %5746 = vmatprep.subr.mxu0 0.0
    %5747 = vmatpush1.msra.mxu0 0.0
    %5748 = vmatprep.subr.mxu0 0.0
    %5749 = vmatpush1.msra.mxu0 0.0
    %5750 = vmatprep.subr.mxu0 0.0
    %5751 = vmatpush1.msra.mxu0 0.0
    %5752 = vmatprep.subr.mxu0 0.0
    %5753 = vmatpush1.msra.mxu0 0.0
    %5754 = vmatprep.mubr.f32.mxu0 0.0
    %5755 = vmatmul.mubr.f32.gmra.mrb[0].mxu0 %v5688
    %v5756 = vpop.f32.mrb[0].mxu0
    %v5757 = vadd.f32 0.0, %v5756
    %v5758 = vpop.f32.mrb[0].mxu0
    %5759 = vdwg.mxu0
    %5761 = vrot.lane.b32.xlu0 %v5757, 32
    %v5762 = vpop.permute.xlu0 %5761
    %v5764 = vsel %vm343, %v5601, %v5762
    %v5766 = vsel %vm3691, %v5764, 0
    %5768 = vmatprep.subr.mxu0 0.0
    %5769 = vmatpush1.msra.mxu0 %v239
    %5770 = vmatprep.subr.mxu0 0.0
    %5771 = vmatpush1.msra.mxu0 %v240
    %5772 = vmatprep.subr.mxu0 0.0
    %5773 = vmatpush1.msra.mxu0 %v241
    %5774 = vmatprep.subr.mxu0 0.0
    %5775 = vmatpush1.msra.mxu0 %v242
    %5776 = vmatprep.subr.mxu0 0.0
    %5777 = vmatpush1.msra.mxu0 %v243
    %5778 = vmatprep.subr.mxu0 0.0
    %5779 = vmatpush1.msra.mxu0 %v244
    %5780 = vmatprep.subr.mxu0 0.0
    %5781 = vmatpush1.msra.mxu0 %v245
    %5782 = vmatprep.subr.mxu0 0.0
    %5783 = vmatpush1.msra.mxu0 %v246
    %5784 = vmatprep.subr.mxu0 0.0
    %5785 = vmatpush1.msra.mxu0 0.0
    %5786 = vmatprep.subr.mxu0 0.0
    %5787 = vmatpush1.msra.mxu0 0.0
    %5788 = vmatprep.subr.mxu0 0.0
    %5789 = vmatpush1.msra.mxu0 0.0
    %5790 = vmatprep.subr.mxu0 0.0
    %5791 = vmatpush1.msra.mxu0 0.0
    %5792 = vmatprep.subr.mxu0 0.0
    %5793 = vmatpush1.msra.mxu0 0.0
    %5794 = vmatprep.subr.mxu0 0.0
    %5795 = vmatpush1.msra.mxu0 0.0
    %5796 = vmatprep.subr.mxu0 0.0
    %5797 = vmatpush1.msra.mxu0 0.0
    %5798 = vmatprep.subr.mxu0 0.0
    %5799 = vmatpush1.msra.mxu0 0.0
    %5800 = vmatprep.subr.mxu0 0.0
    %5801 = vmatpush1.msra.mxu0 0.0
    %5802 = vmatprep.subr.mxu0 0.0
    %5803 = vmatpush1.msra.mxu0 0.0
    %5804 = vmatprep.subr.mxu0 0.0
    %5805 = vmatpush1.msra.mxu0 0.0
    %5806 = vmatprep.subr.mxu0 0.0
    %5807 = vmatpush1.msra.mxu0 0.0
    %5808 = vmatprep.subr.mxu0 0.0
    %5809 = vmatpush1.msra.mxu0 0.0
    %5810 = vmatprep.subr.mxu0 0.0
    %5811 = vmatpush1.msra.mxu0 0.0
    %5812 = vmatprep.subr.mxu0 0.0
    %5813 = vmatpush1.msra.mxu0 0.0
    %5814 = vmatprep.subr.mxu0 0.0
    %5815 = vmatpush1.msra.mxu0 0.0
    %5816 = vmatprep.subr.mxu0 0.0
    %5817 = vmatpush1.msra.mxu0 0.0
    %5818 = vmatprep.subr.mxu0 0.0
    %5819 = vmatpush1.msra.mxu0 0.0
    %5820 = vmatprep.subr.mxu0 0.0
    %5821 = vmatpush1.msra.mxu0 0.0
    %5822 = vmatprep.subr.mxu0 0.0
    %5823 = vmatpush1.msra.mxu0 0.0
    %5824 = vmatprep.subr.mxu0 0.0
    %5825 = vmatpush1.msra.mxu0 0.0
    %5826 = vmatprep.subr.mxu0 0.0
    %5827 = vmatpush1.msra.mxu0 0.0
    %5828 = vmatprep.subr.mxu0 0.0
    %5829 = vmatpush1.msra.mxu0 0.0
    %5830 = vmatprep.subr.mxu0 0.0
    %5831 = vmatpush1.msra.mxu0 0.0
    %5832 = vmatprep.mubr.f32.mxu0 0.0
    %5833 = vmatmul.mubr.f32.gmra.mrb[0].mxu0 %v5766
    %v5834 = vpop.f32.mrb[0].mxu0
    %v5835 = vadd.f32 %v247, %v5834
    %v5836 = vpop.f32.mrb[0].mxu0
    %5837 = vdwg.mxu0
    %v5838 = vtanh.pop %v5835
    %v5840 = vsel %vm343, %v5838, 0
    %5842 = vmatprep.subr.mxu0 0.0
    %5843 = vmatpush1.msra.mxu0 %v248
    %5844 = vmatprep.subr.mxu0 0.0
    %5845 = vmatpush1.msra.mxu0 %v249
    %5846 = vmatprep.subr.mxu0 0.0
    %5847 = vmatpush1.msra.mxu0 %v250
    %5848 = vmatprep.subr.mxu0 0.0
    %5849 = vmatpush1.msra.mxu0 %v251
    %5850 = vmatprep.subr.mxu0 0.0
    %5851 = vmatpush1.msra.mxu0 0.0
    %5852 = vmatprep.subr.mxu0 0.0
    %5853 = vmatpush1.msra.mxu0 0.0
    %5854 = vmatprep.subr.mxu0 0.0
    %5855 = vmatpush1.msra.mxu0 0.0
    %5856 = vmatprep.subr.mxu0 0.0
    %5857 = vmatpush1.msra.mxu0 0.0
    %5858 = vmatprep.subr.mxu0 0.0
    %5859 = vmatpush1.msra.mxu0 0.0
    %5860 = vmatprep.subr.mxu0 0.0
    %5861 = vmatpush1.msra.mxu0 0.0
    %5862 = vmatprep.subr.mxu0 0.0
    %5863 = vmatpush1.msra.mxu0 0.0
    %5864 = vmatprep.subr.mxu0 0.0
    %5865 = vmatpush1.msra.mxu0 0.0
    %5866 = vmatprep.subr.mxu0 0.0
    %5867 = vmatpush1.msra.mxu0 0.0
    %5868 = vmatprep.subr.mxu0 0.0
    %5869 = vmatpush1.msra.mxu0 0.0
    %5870 = vmatprep.subr.mxu0 0.0
    %5871 = vmatpush1.msra.mxu0 0.0
    %5872 = vmatprep.subr.mxu0 0.0
    %5873 = vmatpush1.msra.mxu0 0.0
    %5874 = vmatprep.subr.mxu0 0.0
    %5875 = vmatpush1.msra.mxu0 0.0
    %5876 = vmatprep.subr.mxu0 0.0
    %5877 = vmatpush1.msra.mxu0 0.0
    %5878 = vmatprep.subr.mxu0 0.0
    %5879 = vmatpush1.msra.mxu0 0.0
    %5880 = vmatprep.subr.mxu0 0.0
    %5881 = vmatpush1.msra.mxu0 0.0
    %5882 = vmatprep.subr.mxu0 0.0
    %5883 = vmatpush1.msra.mxu0 0.0
    %5884 = vmatprep.subr.mxu0 0.0
    %5885 = vmatpush1.msra.mxu0 0.0
    %5886 = vmatprep.subr.mxu0 0.0
    %5887 = vmatpush1.msra.mxu0 0.0
    %5888 = vmatprep.subr.mxu0 0.0
    %5889 = vmatpush1.msra.mxu0 0.0
    %5890 = vmatprep.subr.mxu0 0.0
    %5891 = vmatpush1.msra.mxu0 0.0
    %5892 = vmatprep.subr.mxu0 0.0
    %5893 = vmatpush1.msra.mxu0 0.0
    %5894 = vmatprep.subr.mxu0 0.0
    %5895 = vmatpush1.msra.mxu0 0.0
    %5896 = vmatprep.subr.mxu0 0.0
    %5897 = vmatpush1.msra.mxu0 0.0
    %5898 = vmatprep.subr.mxu0 0.0
    %5899 = vmatpush1.msra.mxu0 0.0
    %5900 = vmatprep.subr.mxu0 0.0
    %5901 = vmatpush1.msra.mxu0 0.0
    %5902 = vmatprep.subr.mxu0 0.0
    %5903 = vmatpush1.msra.mxu0 0.0
    %5904 = vmatprep.subr.mxu0 0.0
    %5905 = vmatpush1.msra.mxu0 0.0
    %5906 = vmatprep.mubr.f32.mxu0 0.0
    %5907 = vmatmul.mubr.f32.gmra.mrb[0].mxu0 %v5840
    %v5908 = vpop.f32.mrb[0].mxu0
    %v5909 = vadd.f32 %v252, %v5908
    %v5910 = vpop.f32.mrb[0].mxu0
    %5911 = vdwg.mxu0
    %v5912 = vsel %vm4174, %v5909, -1e+30
    %v5913 = vsel %vm300, %v5912, -inf
    %5914 = vmax.xlane.f32.xlu0 %v5913
    %v5915 = vpop.xlane.xlu0 %5914
    %v5916 = vsub.f32 %v5912, %v5915
    %v5917 = vmul.f32 %v5916, 1.442695
    %v5918 = vpow.pop %v5917
    %v5919 = vsel %vm300, %v5918, 0.0
    %5920 = vadd.xlane.f32.xlu0 %v5919
    %v5921 = vpop.xlane.xlu0 %5920
    %v5922 = vrcp.pop %v5921
    %vm5923 = vcmp.eq.f32.partialorder %v5912, %v5915
    %v5924 = vsel %vm5923, %v254, 128
    %v5925 = vsel %vm300, %v5924, 2147483647
    %v5926 = vand.u32 %v5925, 65535
    %v5927 = vshra.s32 %v5925, 16
    %v5928 = vcvt.s32.f32 %v5926
    %v5929 = vcvt.s32.f32 %v5927
    %5930 = vmin.xlane.f32.xlu0 %v5929
    %v5931 = vpop.xlane.xlu0 %5930
    %vm5932 = vcmp.eq.f32.partialorder %v5929, %v5931
    %v5933 = vsel %vm5932, %v5928, inf
    %5934 = vmin.xlane.f32.xlu0 %v5933
    %v5935 = vpop.xlane.xlu0 %5934
    %v5936 = vcvt.f32.s32 %v5935
    %v5937 = vcvt.f32.s32 %v5931
    %v5938 = vshll.u32 %v5937, 16
    %v5939 = vadd.s32 %v5938, %v5936
    %vm5940 = vcmp.eq.s32.totalorder %v254, %v5939
    %v5941 = vsel %vm5940, 1, 0
    %v5942 = vcvt.s32.f32 %v5941
    %5943 = vmatprep.subr.mxu0 0.0
    %5944 = vmatpush1.msra.mxu0 %v164
    %5945 = vmatprep.subr.mxu0 0.0
    %5946 = vmatpush1.msra.mxu0 %v165
    %5947 = vmatprep.subr.mxu0 0.0
    %5948 = vmatpush1.msra.mxu0 %v166
    %5949 = vmatprep.subr.mxu0 0.0
    %5950 = vmatpush1.msra.mxu0 %v167
    %5951 = vmatprep.subr.mxu0 0.0
    %5952 = vmatpush1.msra.mxu0 %v168
    %5953 = vmatprep.subr.mxu0 0.0
    %5954 = vmatpush1.msra.mxu0 %v169
    %5955 = vmatprep.subr.mxu0 0.0
    %5956 = vmatpush1.msra.mxu0 %v170
    %5957 = vmatprep.subr.mxu0 0.0
    %5958 = vmatpush1.msra.mxu0 %v171
    %5959 = vmatprep.subr.mxu0 0.0
    %5960 = vmatpush1.msra.mxu0 %v172
    %5961 = vmatprep.subr.mxu0 0.0
    %5962 = vmatpush1.msra.mxu0 %v173
    %5963 = vmatprep.subr.mxu0 0.0
    %5964 = vmatpush1.msra.mxu0 %v174
    %5965 = vmatprep.subr.mxu0 0.0
    %5966 = vmatpush1.msra.mxu0 %v175
    %5967 = vmatprep.subr.mxu0 0.0
    %5968 = vmatpush1.msra.mxu0 %v176
    %5969 = vmatprep.subr.mxu0 0.0
    %5970 = vmatpush1.msra.mxu0 %v177
    %5971 = vmatprep.subr.mxu0 0.0
    %5972 = vmatpush1.msra.mxu0 %v178
    %5973 = vmatprep.subr.mxu0 0.0
    %5974 = vmatpush1.msra.mxu0 %v179
    %5975 = vmatprep.subr.mxu0 0.0
    %5976 = vmatpush1.msra.mxu0 0.0
    %5977 = vmatprep.subr.mxu0 0.0
    %5978 = vmatpush1.msra.mxu0 0.0
    %5979 = vmatprep.subr.mxu0 0.0
    %5980 = vmatpush1.msra.mxu0 0.0
    %5981 = vmatprep.subr.mxu0 0.0
    %5982 = vmatpush1.msra.mxu0 0.0
    %5983 = vmatprep.subr.mxu0 0.0
    %5984 = vmatpush1.msra.mxu0 0.0
    %5985 = vmatprep.subr.mxu0 0.0
    %5986 = vmatpush1.msra.mxu0 0.0
    %5987 = vmatprep.subr.mxu0 0.0
    %5988 = vmatpush1.msra.mxu0 0.0
    %5989 = vmatprep.subr.mxu0 0.0
    %5990 = vmatpush1.msra.mxu0 0.0
    %5991 = vmatprep.subr.mxu0 0.0
    %5992 = vmatpush1.msra.mxu0 0.0
    %5993 = vmatprep.subr.mxu0 0.0
    %5994 = vmatpush1.msra.mxu0 0.0
    %5995 = vmatprep.subr.mxu0 0.0
    %5996 = vmatpush1.msra.mxu0 0.0
    %5997 = vmatprep.subr.mxu0 0.0
    %5998 = vmatpush1.msra.mxu0 0.0
    %5999 = vmatprep.subr.mxu0 0.0
    %6000 = vmatpush1.msra.mxu0 0.0
    %6001 = vmatprep.subr.mxu0 0.0
    %6002 = vmatpush1.msra.mxu0 0.0
    %6003 = vmatprep.subr.mxu0 0.0
    %6004 = vmatpush1.msra.mxu0 0.0
    %6005 = vmatprep.subr.mxu0 0.0
    %6006 = vmatpush1.msra.mxu0 0.0
    %6007 = vmatprep.mubr.f32.mxu0 0.0
    %6008 = vmatmul.mubr.f32.gmra.mrb[0].mxu0 %v5942
    %v6009 = vpop.f32.mrb[0].mxu0
    %v6010 = vadd.f32 0.0, %v6009
    %v6011 = vpop.f32.mrb[0].mxu0
    %6012 = vdwg.mxu0
    %6013 = vrot.lane.b32.xlu0 %v5601, 32
    %v6014 = vpop.permute.xlu0 %6013
    %v6016 = vsel %vm343, %v6010, %v6014
    %v6018 = vsel %vm3691, %v6016, 0
    %6020 = vmatprep.subr.mxu0 %v207
    %6021 = vmatpush1.msra.mxu0 %v206
    %6022 = vmatprep.subr.mxu0 %v211
    %6023 = vmatpush1.msra.mxu0 %v210
    %6024 = vmatprep.subr.mxu0 %v215
    %6025 = vmatpush1.msra.mxu0 %v214
    %6026 = vmatprep.subr.mxu0 %v219
    %6027 = vmatpush1.msra.mxu0 %v218
    %6028 = vmatprep.subr.mxu0 %v223
    %6029 = vmatpush1.msra.mxu0 %v222
    %6030 = vmatprep.subr.mxu0 %v227
    %6031 = vmatpush1.msra.mxu0 %v226
    %6032 = vmatprep.subr.mxu0 %v231
    %6033 = vmatpush1.msra.mxu0 %v230
    %6034 = vmatprep.subr.mxu0 %v235
    %6035 = vmatpush1.msra.mxu0 %v234
    %6036 = vmatprep.subr.mxu0 0.0
    %6037 = vmatpush1.msra.mxu0 0.0
    %6038 = vmatprep.subr.mxu0 0.0
    %6039 = vmatpush1.msra.mxu0 0.0
    %6040 = vmatprep.subr.mxu0 0.0
    %6041 = vmatpush1.msra.mxu0 0.0
    %6042 = vmatprep.subr.mxu0 0.0
    %6043 = vmatpush1.msra.mxu0 0.0
    %6044 = vmatprep.subr.mxu0 0.0
    %6045 = vmatpush1.msra.mxu0 0.0
    %6046 = vmatprep.subr.mxu0 0.0
    %6047 = vmatpush1.msra.mxu0 0.0
    %6048 = vmatprep.subr.mxu0 0.0
    %6049 = vmatpush1.msra.mxu0 0.0
    %6050 = vmatprep.subr.mxu0 0.0
    %6051 = vmatpush1.msra.mxu0 0.0
    %6052 = vmatprep.subr.mxu0 0.0
    %6053 = vmatpush1.msra.mxu0 0.0
    %6054 = vmatprep.subr.mxu0 0.0
    %6055 = vmatpush1.msra.mxu0 0.0
    %6056 = vmatprep.subr.mxu0 0.0
    %6057 = vmatpush1.msra.mxu0 0.0
    %6058 = vmatprep.subr.mxu0 0.0
    %6059 = vmatpush1.msra.mxu0 0.0
    %6060 = vmatprep.subr.mxu0 0.0
    %6061 = vmatpush1.msra.mxu0 0.0
    %6062 = vmatprep.subr.mxu0 0.0
    %6063 = vmatpush1.msra.mxu0 0.0
    %6064 = vmatprep.subr.mxu0 0.0
    %6065 = vmatpush1.msra.mxu0 0.0
    %6066 = vmatprep.subr.mxu0 0.0
    %6067 = vmatpush1.msra.mxu0 0.0
    %6068 = vmatprep.subr.mxu0 0.0
    %6069 = vmatpush1.msra.mxu0 0.0
    %6070 = vmatprep.subr.mxu0 0.0
    %6071 = vmatpush1.msra.mxu0 0.0
    %6072 = vmatprep.subr.mxu0 0.0
    %6073 = vmatpush1.msra.mxu0 0.0
    %6074 = vmatprep.subr.mxu0 0.0
    %6075 = vmatpush1.msra.mxu0 0.0
    %6076 = vmatprep.subr.mxu0 0.0
    %6077 = vmatpush1.msra.mxu0 0.0
    %6078 = vmatprep.subr.mxu0 0.0
    %6079 = vmatpush1.msra.mxu0 0.0
    %6080 = vmatprep.subr.mxu0 0.0
    %6081 = vmatpush1.msra.mxu0 0.0
    %6082 = vmatprep.subr.mxu0 0.0
    %6083 = vmatpush1.msra.mxu0 0.0
    %6084 = vmatprep.mubr.f32.mxu0 0.0
    %6085 = vmatmul.mubr.f32.gmra.mrb[0].mxu0 %v6018
    %v6086 = vpop.f32.mrb[0].mxu0
    %v6087 = vadd.f32 %v3674, %v6086
    %v6088 = vpop.f32.mrb[0].mxu0
    %v6089 = vadd.f32 %v3678, %v6088
    %6090 = vdwg.mxu0
    %6091 = vmatprep.subr.mxu0 %v209
    %6092 = vmatpush1.msra.mxu0 %v208
    %6093 = vmatprep.subr.mxu0 %v213
    %6094 = vmatpush1.msra.mxu0 %v212
    %6095 = vmatprep.subr.mxu0 %v217
    %6096 = vmatpush1.msra.mxu0 %v216
    %6097 = vmatprep.subr.mxu0 %v221
    %6098 = vmatpush1.msra.mxu0 %v220
    %6099 = vmatprep.subr.mxu0 %v225
    %6100 = vmatpush1.msra.mxu0 %v224
    %6101 = vmatprep.subr.mxu0 %v229
    %6102 = vmatpush1.msra.mxu0 %v228
    %6103 = vmatprep.subr.mxu0 %v233
    %6104 = vmatpush1.msra.mxu0 %v232
    %6105 = vmatprep.subr.mxu0 %v237
    %6106 = vmatpush1.msra.mxu0 %v236
    %6107 = vmatprep.subr.mxu0 0.0
    %6108 = vmatpush1.msra.mxu0 0.0
    %6109 = vmatprep.subr.mxu0 0.0
    %6110 = vmatpush1.msra.mxu0 0.0
    %6111 = vmatprep.subr.mxu0 0.0
    %6112 = vmatpush1.msra.mxu0 0.0
    %6113 = vmatprep.subr.mxu0 0.0
    %6114 = vmatpush1.msra.mxu0 0.0
    %6115 = vmatprep.subr.mxu0 0.0
    %6116 = vmatpush1.msra.mxu0 0.0
    %6117 = vmatprep.subr.mxu0 0.0
    %6118 = vmatpush1.msra.mxu0 0.0
    %6119 = vmatprep.subr.mxu0 0.0
    %6120 = vmatpush1.msra.mxu0 0.0
    %6121 = vmatprep.subr.mxu0 0.0
    %6122 = vmatpush1.msra.mxu0 0.0
    %6123 = vmatprep.subr.mxu0 0.0
    %6124 = vmatpush1.msra.mxu0 0.0
    %6125 = vmatprep.subr.mxu0 0.0
    %6126 = vmatpush1.msra.mxu0 0.0
    %6127 = vmatprep.subr.mxu0 0.0
    %6128 = vmatpush1.msra.mxu0 0.0
    %6129 = vmatprep.subr.mxu0 0.0
    %6130 = vmatpush1.msra.mxu0 0.0
    %6131 = vmatprep.subr.mxu0 0.0
    %6132 = vmatpush1.msra.mxu0 0.0
    %6133 = vmatprep.subr.mxu0 0.0
    %6134 = vmatpush1.msra.mxu0 0.0
    %6135 = vmatprep.subr.mxu0 0.0
    %6136 = vmatpush1.msra.mxu0 0.0
    %6137 = vmatprep.subr.mxu0 0.0
    %6138 = vmatpush1.msra.mxu0 0.0
    %6139 = vmatprep.subr.mxu0 0.0
    %6140 = vmatpush1.msra.mxu0 0.0
    %6141 = vmatprep.subr.mxu0 0.0
    %6142 = vmatpush1.msra.mxu0 0.0
    %6143 = vmatprep.subr.mxu0 0.0
    %6144 = vmatpush1.msra.mxu0 0.0
    %6145 = vmatprep.subr.mxu0 0.0
    %6146 = vmatpush1.msra.mxu0 0.0
    %6147 = vmatprep.subr.mxu0 0.0
    %6148 = vmatpush1.msra.mxu0 0.0
    %6149 = vmatprep.subr.mxu0 0.0
    %6150 = vmatpush1.msra.mxu0 0.0
    %6151 = vmatprep.subr.mxu0 0.0
    %6152 = vmatpush1.msra.mxu0 0.0
    %6153 = vmatprep.subr.mxu0 0.0
    %6154 = vmatpush1.msra.mxu0 0.0
    %6155 = vmatprep.mubr.f32.mxu0 0.0
    %6156 = vmatmul.mubr.f32.gmra.mrb[0].mxu0 %v6018
    %v6157 = vpop.f32.mrb[0].mxu0
    %v6158 = vadd.f32 %v3682, %v6157
    %v6159 = vpop.f32.mrb[0].mxu0
    %v6160 = vadd.f32 %v3686, %v6159
    %6161 = vdwg.mxu0
    %v6162 = vxor.u32 %v6087, 2147483648
    %v6163 = vmul.f32 %v6162, 1.442695
    %v6164 = vpow.pop %v6163
    %v6165 = vadd.f32 %v6164, 1.0
    %v6166 = vrcp.pop %v6165
    %v6167 = vmul.f32 1.0, %v6166
    %v6168 = vxor.u32 %v6089, 2147483648
    %v6169 = vmul.f32 %v6168, 1.442695
    %v6170 = vpow.pop %v6169
    %v6171 = vadd.f32 %v6170, 1.0
    %v6172 = vrcp.pop %v6171
    %v6173 = vmul.f32 1.0, %v6172
    %v6174 = vmul.f32 %v6167, %v6160
    %v6175 = vadd.f32 %v6158, %v6174
    %v6176 = vtanh.pop %v6175
    %v6177 = vsub.f32 1.0, %v6173
    %v6178 = vmul.f32 %v6177, %v6176
    %v6179 = vmul.f32 %v6173, %v5601
    %v6180 = vadd.f32 %v6178, %v6179
    %v6182 = vsel %vm343, %v6180, 0
    %6184 = vmatprep.subr.mxu0 0.0
    %6185 = vmatpush1.xpose.msra.mxu0 %v3861
    %6186 = vmatprep.subr.mxu0 0.0
    %6187 = vmatpush1.xpose.msra.mxu0 0.0
    %6188 = vmatprep.subr.mxu0 0.0
    %6189 = vmatpush1.xpose.msra.mxu0 0.0
    %6190 = vmatprep.subr.mxu0 0.0
    %6191 = vmatpush1.xpose.msra.mxu0 0.0
    %6192 = vmatprep.subr.mxu0 0.0
    %6193 = vmatpush1.xpose.msra.mxu0 0.0
    %6194 = vmatprep.subr.mxu0 0.0
    %6195 = vmatpush1.xpose.msra.mxu0 0.0
    %6196 = vmatprep.subr.mxu0 0.0
    %6197 = vmatpush1.xpose.msra.mxu0 0.0
    %6198 = vmatprep.subr.mxu0 0.0
    %6199 = vmatpush1.xpose.msra.mxu0 0.0
    %6200 = vmatprep.subr.mxu0 0.0
    %6201 = vmatpush1.xpose.msra.mxu0 0.0
    %6202 = vmatprep.subr.mxu0 0.0
    %6203 = vmatpush1.xpose.msra.mxu0 0.0
    %6204 = vmatprep.subr.mxu0 0.0
    %6205 = vmatpush1.xpose.msra.mxu0 0.0
    %6206 = vmatprep.subr.mxu0 0.0
    %6207 = vmatpush1.xpose.msra.mxu0 0.0
    %6208 = vmatprep.subr.mxu0 0.0
    %6209 = vmatpush1.xpose.msra.mxu0 0.0
    %6210 = vmatprep.subr.mxu0 0.0
    %6211 = vmatpush1.xpose.msra.mxu0 0.0
    %6212 = vmatprep.subr.mxu0 0.0
    %6213 = vmatpush1.xpose.msra.mxu0 0.0
    %6214 = vmatprep.subr.mxu0 0.0
    %6215 = vmatpush1.xpose.msra.mxu0 0.0
    %6216 = vmatprep.subr.mxu0 0.0
    %6217 = vmatpush1.xpose.msra.mxu0 0.0
    %6218 = vmatprep.subr.mxu0 0.0
    %6219 = vmatpush1.xpose.msra.mxu0 0.0
    %6220 = vmatprep.subr.mxu0 0.0
    %6221 = vmatpush1.xpose.msra.mxu0 0.0
    %6222 = vmatprep.subr.mxu0 0.0
    %6223 = vmatpush1.xpose.msra.mxu0 0.0
    %6224 = vmatprep.subr.mxu0 0.0
    %6225 = vmatpush1.xpose.msra.mxu0 0.0
    %6226 = vmatprep.subr.mxu0 0.0
    %6227 = vmatpush1.xpose.msra.mxu0 0.0
    %6228 = vmatprep.subr.mxu0 0.0
    %6229 = vmatpush1.xpose.msra.mxu0 0.0
    %6230 = vmatprep.subr.mxu0 0.0
    %6231 = vmatpush1.xpose.msra.mxu0 0.0
    %6232 = vmatprep.subr.mxu0 0.0
    %6233 = vmatpush1.xpose.msra.mxu0 0.0
    %6234 = vmatprep.subr.mxu0 0.0
    %6235 = vmatpush1.xpose.msra.mxu0 0.0
    %6236 = vmatprep.subr.mxu0 0.0
    %6237 = vmatpush1.xpose.msra.mxu0 0.0
    %6238 = vmatprep.subr.mxu0 0.0
    %6239 = vmatpush1.xpose.msra.mxu0 0.0
    %6240 = vmatprep.subr.mxu0 0.0
    %6241 = vmatpush1.xpose.msra.mxu0 0.0
    %6242 = vmatprep.subr.mxu0 0.0
    %6243 = vmatpush1.xpose.msra.mxu0 0.0
    %6244 = vmatprep.subr.mxu0 0.0
    %6245 = vmatpush1.xpose.msra.mxu0 0.0
    %6246 = vmatprep.subr.mxu0 0.0
    %6247 = vmatpush1.xpose.msra.mxu0 0.0
    %6248 = vmatprep.mubr.f32.mxu0 0.0
    %6249 = vmatmul.mubr.f32.gmra.mrb[0].mxu0 %v6182
    %v6250 = vpop.f32.mrb[0].mxu0
    %v6251 = vadd.f32 0.0, %v6250
    %v6252 = vpop.f32.mrb[0].mxu0
    %6253 = vdwg.mxu0
    %v6254 = vsel %vm3934, %v6251, -1e+30
    %v6255 = vsel %vm3936, %v6254, -inf
    %6256 = vmax.xlane.f32.xlu0 %v6255
    %v6257 = vpop.xlane.xlu0 %6256
    %v6258 = vsub.f32 %v6254, %v6257
    %v6259 = vmul.f32 %v6258, 1.442695
    %v6260 = vpow.pop %v6259
    %v6261 = vsel %vm3936, %v6260, 0.0
    %6262 = vadd.xlane.f32.xlu0 %v6261
    %v6263 = vpop.xlane.xlu0 %6262
    %v6264 = vrcp.pop %v6263
    %v6265 = vmul.f32 %v6260, %v6264
    %v6267 = vsel %vm3948, %v6265, 0
    %6269 = vmatprep.subr.mxu0 0.0
    %6270 = vmatpush1.msra.mxu0 %v3661
    %6271 = vmatprep.subr.mxu0 0.0
    %6272 = vmatpush1.msra.mxu0 0.0
    %6273 = vmatprep.subr.mxu0 0.0
    %6274 = vmatpush1.msra.mxu0 0.0
    %6275 = vmatprep.subr.mxu0 0.0
    %6276 = vmatpush1.msra.mxu0 0.0
    %6277 = vmatprep.subr.mxu0 0.0
    %6278 = vmatpush1.msra.mxu0 0.0
    %6279 = vmatprep.subr.mxu0 0.0
    %6280 = vmatpush1.msra.mxu0 0.0
    %6281 = vmatprep.subr.mxu0 0.0
    %6282 = vmatpush1.msra.mxu0 0.0
    %6283 = vmatprep.subr.mxu0 0.0
    %6284 = vmatpush1.msra.mxu0 0.0
    %6285 = vmatprep.subr.mxu0 0.0
    %6286 = vmatpush1.msra.mxu0 0.0
    %6287 = vmatprep.subr.mxu0 0.0
    %6288 = vmatpush1.msra.mxu0 0.0
    %6289 = vmatprep.subr.mxu0 0.0
    %6290 = vmatpush1.msra.mxu0 0.0
    %6291 = vmatprep.subr.mxu0 0.0
    %6292 = vmatpush1.msra.mxu0 0.0
    %6293 = vmatprep.subr.mxu0 0.0
    %6294 = vmatpush1.msra.mxu0 0.0
    %6295 = vmatprep.subr.mxu0 0.0
    %6296 = vmatpush1.msra.mxu0 0.0
    %6297 = vmatprep.subr.mxu0 0.0
    %6298 = vmatpush1.msra.mxu0 0.0
    %6299 = vmatprep.subr.mxu0 0.0
    %6300 = vmatpush1.msra.mxu0 0.0
    %6301 = vmatprep.subr.mxu0 0.0
    %6302 = vmatpush1.msra.mxu0 0.0
    %6303 = vmatprep.subr.mxu0 0.0
    %6304 = vmatpush1.msra.mxu0 0.0
    %6305 = vmatprep.subr.mxu0 0.0
    %6306 = vmatpush1.msra.mxu0 0.0
    %6307 = vmatprep.subr.mxu0 0.0
    %6308 = vmatpush1.msra.mxu0 0.0
    %6309 = vmatprep.subr.mxu0 0.0
    %6310 = vmatpush1.msra.mxu0 0.0
    %6311 = vmatprep.subr.mxu0 0.0
    %6312 = vmatpush1.msra.mxu0 0.0
    %6313 = vmatprep.subr.mxu0 0.0
    %6314 = vmatpush1.msra.mxu0 0.0
    %6315 = vmatprep.subr.mxu0 0.0
    %6316 = vmatpush1.msra.mxu0 0.0
    %6317 = vmatprep.subr.mxu0 0.0
    %6318 = vmatpush1.msra.mxu0 0.0
    %6319 = vmatprep.subr.mxu0 0.0
    %6320 = vmatpush1.msra.mxu0 0.0
    %6321 = vmatprep.subr.mxu0 0.0
    %6322 = vmatpush1.msra.mxu0 0.0
    %6323 = vmatprep.subr.mxu0 0.0
    %6324 = vmatpush1.msra.mxu0 0.0
    %6325 = vmatprep.subr.mxu0 0.0
    %6326 = vmatpush1.msra.mxu0 0.0
    %6327 = vmatprep.subr.mxu0 0.0
    %6328 = vmatpush1.msra.mxu0 0.0
    %6329 = vmatprep.subr.mxu0 0.0
    %6330 = vmatpush1.msra.mxu0 0.0
    %6331 = vmatprep.subr.mxu0 0.0
    %6332 = vmatpush1.msra.mxu0 0.0
    %6333 = vmatprep.mubr.f32.mxu0 0.0
    %6334 = vmatmul.mubr.f32.gmra.mrb[0].mxu0 %v6267
    %v6335 = vpop.f32.mrb[0].mxu0
    %v6336 = vadd.f32 0.0, %v6335
    %v6337 = vpop.f32.mrb[0].mxu0
    %6338 = vdwg.mxu0
    %6340 = vrot.lane.b32.xlu0 %v6336, 32
    %v6341 = vpop.permute.xlu0 %6340
    %v6343 = vsel %vm343, %v6180, %v6341
    %v6345 = vsel %vm3691, %v6343, 0
    %6347 = vmatprep.subr.mxu0 0.0
    %6348 = vmatpush1.msra.mxu0 %v239
    %6349 = vmatprep.subr.mxu0 0.0
    %6350 = vmatpush1.msra.mxu0 %v240
    %6351 = vmatprep.subr.mxu0 0.0
    %6352 = vmatpush1.msra.mxu0 %v241
    %6353 = vmatprep.subr.mxu0 0.0
    %6354 = vmatpush1.msra.mxu0 %v242
    %6355 = vmatprep.subr.mxu0 0.0
    %6356 = vmatpush1.msra.mxu0 %v243
    %6357 = vmatprep.subr.mxu0 0.0
    %6358 = vmatpush1.msra.mxu0 %v244
    %6359 = vmatprep.subr.mxu0 0.0
    %6360 = vmatpush1.msra.mxu0 %v245
    %6361 = vmatprep.subr.mxu0 0.0
    %6362 = vmatpush1.msra.mxu0 %v246
    %6363 = vmatprep.subr.mxu0 0.0
    %6364 = vmatpush1.msra.mxu0 0.0
    %6365 = vmatprep.subr.mxu0 0.0
    %6366 = vmatpush1.msra.mxu0 0.0
    %6367 = vmatprep.subr.mxu0 0.0
    %6368 = vmatpush1.msra.mxu0 0.0
    %6369 = vmatprep.subr.mxu0 0.0
    %6370 = vmatpush1.msra.mxu0 0.0
    %6371 = vmatprep.subr.mxu0 0.0
    %6372 = vmatpush1.msra.mxu0 0.0
    %6373 = vmatprep.subr.mxu0 0.0
    %6374 = vmatpush1.msra.mxu0 0.0
    %6375 = vmatprep.subr.mxu0 0.0
    %6376 = vmatpush1.msra.mxu0 0.0
    %6377 = vmatprep.subr.mxu0 0.0
    %6378 = vmatpush1.msra.mxu0 0.0
    %6379 = vmatprep.subr.mxu0 0.0
    %6380 = vmatpush1.msra.mxu0 0.0
    %6381 = vmatprep.subr.mxu0 0.0
    %6382 = vmatpush1.msra.mxu0 0.0
    %6383 = vmatprep.subr.mxu0 0.0
    %6384 = vmatpush1.msra.mxu0 0.0
    %6385 = vmatprep.subr.mxu0 0.0
    %6386 = vmatpush1.msra.mxu0 0.0
    %6387 = vmatprep.subr.mxu0 0.0
    %6388 = vmatpush1.msra.mxu0 0.0
    %6389 = vmatprep.subr.mxu0 0.0
    %6390 = vmatpush1.msra.mxu0 0.0
    %6391 = vmatprep.subr.mxu0 0.0
    %6392 = vmatpush1.msra.mxu0 0.0
    %6393 = vmatprep.subr.mxu0 0.0
    %6394 = vmatpush1.msra.mxu0 0.0
    %6395 = vmatprep.subr.mxu0 0.0
    %6396 = vmatpush1.msra.mxu0 0.0
    %6397 = vmatprep.subr.mxu0 0.0
    %6398 = vmatpush1.msra.mxu0 0.0
    %6399 = vmatprep.subr.mxu0 0.0
    %6400 = vmatpush1.msra.mxu0 0.0
    %6401 = vmatprep.subr.mxu0 0.0
    %6402 = vmatpush1.msra.mxu0 0.0
    %6403 = vmatprep.subr.mxu0 0.0
    %6404 = vmatpush1.msra.mxu0 0.0
    %6405 = vmatprep.subr.mxu0 0.0
    %6406 = vmatpush1.msra.mxu0 0.0
    %6407 = vmatprep.subr.mxu0 0.0
    %6408 = vmatpush1.msra.mxu0 0.0
    %6409 = vmatprep.subr.mxu0 0.0
    %6410 = vmatpush1.msra.mxu0 0.0
    %6411 = vmatprep.mubr.f32.mxu0 0.0
    %6412 = vmatmul.mubr.f32.gmra.mrb[0].mxu0 %v6345
    %v6413 = vpop.f32.mrb[0].mxu0
    %v6414 = vadd.f32 %v247, %v6413
    %v6415 = vpop.f32.mrb[0].mxu0
    %6416 = vdwg.mxu0
    %v6417 = vtanh.pop %v6414
    %v6419 = vsel %vm343, %v6417, 0
    %6421 = vmatprep.subr.mxu0 0.0
    %6422 = vmatpush1.msra.mxu0 %v248
    %6423 = vmatprep.subr.mxu0 0.0
    %6424 = vmatpush1.msra.mxu0 %v249
    %6425 = vmatprep.subr.mxu0 0.0
    %6426 = vmatpush1.msra.mxu0 %v250
    %6427 = vmatprep.subr.mxu0 0.0
    %6428 = vmatpush1.msra.mxu0 %v251
    %6429 = vmatprep.subr.mxu0 0.0
    %6430 = vmatpush1.msra.mxu0 0.0
    %6431 = vmatprep.subr.mxu0 0.0
    %6432 = vmatpush1.msra.mxu0 0.0
    %6433 = vmatprep.subr.mxu0 0.0
    %6434 = vmatpush1.msra.mxu0 0.0
    %6435 = vmatprep.subr.mxu0 0.0
    %6436 = vmatpush1.msra.mxu0 0.0
    %6437 = vmatprep.subr.mxu0 0.0
    %6438 = vmatpush1.msra.mxu0 0.0
    %6439 = vmatprep.subr.mxu0 0.0
    %6440 = vmatpush1.msra.mxu0 0.0
    %6441 = vmatprep.subr.mxu0 0.0
    %6442 = vmatpush1.msra.mxu0 0.0
    %6443 = vmatprep.subr.mxu0 0.0
    %6444 = vmatpush1.msra.mxu0 0.0
    %6445 = vmatprep.subr.mxu0 0.0
    %6446 = vmatpush1.msra.mxu0 0.0
    %6447 = vmatprep.subr.mxu0 0.0
    %6448 = vmatpush1.msra.mxu0 0.0
    %6449 = vmatprep.subr.mxu0 0.0
    %6450 = vmatpush1.msra.mxu0 0.0
    %6451 = vmatprep.subr.mxu0 0.0
    %6452 = vmatpush1.msra.mxu0 0.0
    %6453 = vmatprep.subr.mxu0 0.0
    %6454 = vmatpush1.msra.mxu0 0.0
    %6455 = vmatprep.subr.mxu0 0.0
    %6456 = vmatpush1.msra.mxu0 0.0
    %6457 = vmatprep.subr.mxu0 0.0
    %6458 = vmatpush1.msra.mxu0 0.0
    %6459 = vmatprep.subr.mxu0 0.0
    %6460 = vmatpush1.msra.mxu0 0.0
    %6461 = vmatprep.subr.mxu0 0.0
    %6462 = vmatpush1.msra.mxu0 0.0
    %6463 = vmatprep.subr.mxu0 0.0
    %6464 = vmatpush1.msra.mxu0 0.0
    %6465 = vmatprep.subr.mxu0 0.0
    %6466 = vmatpush1.msra.mxu0 0.0
    %6467 = vmatprep.subr.mxu0 0.0
    %6468 = vmatpush1.msra.mxu0 0.0
    %6469 = vmatprep.subr.mxu0 0.0
    %6470 = vmatpush1.msra.mxu0 0.0
    %6471 = vmatprep.subr.mxu0 0.0
    %6472 = vmatpush1.msra.mxu0 0.0
    %6473 = vmatprep.subr.mxu0 0.0
    %6474 = vmatpush1.msra.mxu0 0.0
    %6475 = vmatprep.subr.mxu0 0.0
    %6476 = vmatpush1.msra.mxu0 0.0
    %6477 = vmatprep.subr.mxu0 0.0
    %6478 = vmatpush1.msra.mxu0 0.0
    %6479 = vmatprep.subr.mxu0 0.0
    %6480 = vmatpush1.msra.mxu0 0.0
    %6481 = vmatprep.subr.mxu0 0.0
    %6482 = vmatpush1.msra.mxu0 0.0
    %6483 = vmatprep.subr.mxu0 0.0
    %6484 = vmatpush1.msra.mxu0 0.0
    %6485 = vmatprep.mubr.f32.mxu0 0.0
    %6486 = vmatmul.mubr.f32.gmra.mrb[0].mxu0 %v6419
    %v6487 = vpop.f32.mrb[0].mxu0
    %v6488 = vadd.f32 %v252, %v6487
    %v6489 = vpop.f32.mrb[0].mxu0
    %6490 = vdwg.mxu0
    %v6491 = vsel %vm4174, %v6488, -1e+30
    %v6492 = vsel %vm300, %v6491, -inf
    %6493 = vmax.xlane.f32.xlu0 %v6492
    %v6494 = vpop.xlane.xlu0 %6493
    %v6495 = vsub.f32 %v6491, %v6494
    %v6496 = vmul.f32 %v6495, 1.442695
    %v6497 = vpow.pop %v6496
    %v6498 = vsel %vm300, %v6497, 0.0
    %6499 = vadd.xlane.f32.xlu0 %v6498
    %v6500 = vpop.xlane.xlu0 %6499
    %v6501 = vrcp.pop %v6500
    %vm6502 = vcmp.eq.f32.partialorder %v6491, %v6494
    %v6503 = vsel %vm6502, %v254, 128
    %v6504 = vsel %vm300, %v6503, 2147483647
    %v6505 = vand.u32 %v6504, 65535
    %v6506 = vshra.s32 %v6504, 16
    %v6507 = vcvt.s32.f32 %v6505
    %v6508 = vcvt.s32.f32 %v6506
    %6509 = vmin.xlane.f32.xlu0 %v6508
    %v6510 = vpop.xlane.xlu0 %6509
    %vm6511 = vcmp.eq.f32.partialorder %v6508, %v6510
    %v6512 = vsel %vm6511, %v6507, inf
    %6513 = vmin.xlane.f32.xlu0 %v6512
    %v6514 = vpop.xlane.xlu0 %6513
    %v6515 = vcvt.f32.s32 %v6514
    %v6516 = vcvt.f32.s32 %v6510
    %v6517 = vshll.u32 %v6516, 16
    %v6518 = vadd.s32 %v6517, %v6515
    %vm6519 = vcmp.eq.s32.totalorder %v254, %v6518
    %v6520 = vsel %vm6519, 1, 0
    %v6521 = vcvt.s32.f32 %v6520
    %6522 = vmatprep.subr.mxu0 0.0
    %6523 = vmatpush1.msra.mxu0 %v164
    %6524 = vmatprep.subr.mxu0 0.0
    %6525 = vmatpush1.msra.mxu0 %v165
    %6526 = vmatprep.subr.mxu0 0.0
    %6527 = vmatpush1.msra.mxu0 %v166
    %6528 = vmatprep.subr.mxu0 0.0
    %6529 = vmatpush1.msra.mxu0 %v167
    %6530 = vmatprep.subr.mxu0 0.0
    %6531 = vmatpush1.msra.mxu0 %v168
    %6532 = vmatprep.subr.mxu0 0.0
    %6533 = vmatpush1.msra.mxu0 %v169
    %6534 = vmatprep.subr.mxu0 0.0
    %6535 = vmatpush1.msra.mxu0 %v170
    %6536 = vmatprep.subr.mxu0 0.0
    %6537 = vmatpush1.msra.mxu0 %v171
    %6538 = vmatprep.subr.mxu0 0.0
    %6539 = vmatpush1.msra.mxu0 %v172
    %6540 = vmatprep.subr.mxu0 0.0
    %6541 = vmatpush1.msra.mxu0 %v173
    %6542 = vmatprep.subr.mxu0 0.0
    %6543 = vmatpush1.msra.mxu0 %v174
    %6544 = vmatprep.subr.mxu0 0.0
    %6545 = vmatpush1.msra.mxu0 %v175
    %6546 = vmatprep.subr.mxu0 0.0
    %6547 = vmatpush1.msra.mxu0 %v176
    %6548 = vmatprep.subr.mxu0 0.0
    %6549 = vmatpush1.msra.mxu0 %v177
    %6550 = vmatprep.subr.mxu0 0.0
    %6551 = vmatpush1.msra.mxu0 %v178
    %6552 = vmatprep.subr.mxu0 0.0
    %6553 = vmatpush1.msra.mxu0 %v179
    %6554 = vmatprep.subr.mxu0 0.0
    %6555 = vmatpush1.msra.mxu0 0.0
    %6556 = vmatprep.subr.mxu0 0.0
    %6557 = vmatpush1.msra.mxu0 0.0
    %6558 = vmatprep.subr.mxu0 0.0
    %6559 = vmatpush1.msra.mxu0 0.0
    %6560 = vmatprep.subr.mxu0 0.0
    %6561 = vmatpush1.msra.mxu0 0.0
    %6562 = vmatprep.subr.mxu0 0.0
    %6563 = vmatpush1.msra.mxu0 0.0
    %6564 = vmatprep.subr.mxu0 0.0
    %6565 = vmatpush1.msra.mxu0 0.0
    %6566 = vmatprep.subr.mxu0 0.0
    %6567 = vmatpush1.msra.mxu0 0.0
    %6568 = vmatprep.subr.mxu0 0.0
    %6569 = vmatpush1.msra.mxu0 0.0
    %6570 = vmatprep.subr.mxu0 0.0
    %6571 = vmatpush1.msra.mxu0 0.0
    %6572 = vmatprep.subr.mxu0 0.0
    %6573 = vmatpush1.msra.mxu0 0.0
    %6574 = vmatprep.subr.mxu0 0.0
    %6575 = vmatpush1.msra.mxu0 0.0
    %6576 = vmatprep.subr.mxu0 0.0
    %6577 = vmatpush1.msra.mxu0 0.0
    %6578 = vmatprep.subr.mxu0 0.0
    %6579 = vmatpush1.msra.mxu0 0.0
    %6580 = vmatprep.subr.mxu0 0.0
    %6581 = vmatpush1.msra.mxu0 0.0
    %6582 = vmatprep.subr.mxu0 0.0
    %6583 = vmatpush1.msra.mxu0 0.0
    %6584 = vmatprep.subr.mxu0 0.0
    %6585 = vmatpush1.msra.mxu0 0.0
    %6586 = vmatprep.mubr.f32.mxu0 0.0
    %6587 = vmatmul.mubr.f32.gmra.mrb[0].mxu0 %v6521
    %v6588 = vpop.f32.mrb[0].mxu0
    %v6589 = vadd.f32 0.0, %v6588
    %v6590 = vpop.f32.mrb[0].mxu0
    %6591 = vdwg.mxu0
    %6592 = vrot.lane.b32.xlu0 %v6180, 32
    %v6593 = vpop.permute.xlu0 %6592
    %v6595 = vsel %vm343, %v6589, %v6593
    %v6597 = vsel %vm3691, %v6595, 0
    %6599 = vmatprep.subr.mxu0 %v207
    %6600 = vmatpush1.msra.mxu0 %v206
    %6601 = vmatprep.subr.mxu0 %v211
    %6602 = vmatpush1.msra.mxu0 %v210
    %6603 = vmatprep.subr.mxu0 %v215
    %6604 = vmatpush1.msra.mxu0 %v214
    %6605 = vmatprep.subr.mxu0 %v219
    %6606 = vmatpush1.msra.mxu0 %v218
    %6607 = vmatprep.subr.mxu0 %v223
    %6608 = vmatpush1.msra.mxu0 %v222
    %6609 = vmatprep.subr.mxu0 %v227
    %6610 = vmatpush1.msra.mxu0 %v226
    %6611 = vmatprep.subr.mxu0 %v231
    %6612 = vmatpush1.msra.mxu0 %v230
    %6613 = vmatprep.subr.mxu0 %v235
    %6614 = vmatpush1.msra.mxu0 %v234
    %6615 = vmatprep.subr.mxu0 0.0
    %6616 = vmatpush1.msra.mxu0 0.0
    %6617 = vmatprep.subr.mxu0 0.0
    %6618 = vmatpush1.msra.mxu0 0.0
    %6619 = vmatprep.subr.mxu0 0.0
    %6620 = vmatpush1.msra.mxu0 0.0
    %6621 = vmatprep.subr.mxu0 0.0
    %6622 = vmatpush1.msra.mxu0 0.0
    %6623 = vmatprep.subr.mxu0 0.0
    %6624 = vmatpush1.msra.mxu0 0.0
    %6625 = vmatprep.subr.mxu0 0.0
    %6626 = vmatpush1.msra.mxu0 0.0
    %6627 = vmatprep.subr.mxu0 0.0
    %6628 = vmatpush1.msra.mxu0 0.0
    %6629 = vmatprep.subr.mxu0 0.0
    %6630 = vmatpush1.msra.mxu0 0.0
    %6631 = vmatprep.subr.mxu0 0.0
    %6632 = vmatpush1.msra.mxu0 0.0
    %6633 = vmatprep.subr.mxu0 0.0
    %6634 = vmatpush1.msra.mxu0 0.0
    %6635 = vmatprep.subr.mxu0 0.0
    %6636 = vmatpush1.msra.mxu0 0.0
    %6637 = vmatprep.subr.mxu0 0.0
    %6638 = vmatpush1.msra.mxu0 0.0
    %6639 = vmatprep.subr.mxu0 0.0
    %6640 = vmatpush1.msra.mxu0 0.0
    %6641 = vmatprep.subr.mxu0 0.0
    %6642 = vmatpush1.msra.mxu0 0.0
    %6643 = vmatprep.subr.mxu0 0.0
    %6644 = vmatpush1.msra.mxu0 0.0
    %6645 = vmatprep.subr.mxu0 0.0
    %6646 = vmatpush1.msra.mxu0 0.0
    %6647 = vmatprep.subr.mxu0 0.0
    %6648 = vmatpush1.msra.mxu0 0.0
    %6649 = vmatprep.subr.mxu0 0.0
    %6650 = vmatpush1.msra.mxu0 0.0
    %6651 = vmatprep.subr.mxu0 0.0
    %6652 = vmatpush1.msra.mxu0 0.0
    %6653 = vmatprep.subr.mxu0 0.0
    %6654 = vmatpush1.msra.mxu0 0.0
    %6655 = vmatprep.subr.mxu0 0.0
    %6656 = vmatpush1.msra.mxu0 0.0
    %6657 = vmatprep.subr.mxu0 0.0
    %6658 = vmatpush1.msra.mxu0 0.0
    %6659 = vmatprep.subr.mxu0 0.0
    %6660 = vmatpush1.msra.mxu0 0.0
    %6661 = vmatprep.subr.mxu0 0.0
    %6662 = vmatpush1.msra.mxu0 0.0
    %6663 = vmatprep.mubr.f32.mxu0 0.0
    %6664 = vmatmul.mubr.f32.gmra.mrb[0].mxu0 %v6597
    %v6665 = vpop.f32.mrb[0].mxu0
    %v6666 = vadd.f32 %v3674, %v6665
    %v6667 = vpop.f32.mrb[0].mxu0
    %v6668 = vadd.f32 %v3678, %v6667
    %6669 = vdwg.mxu0
    %6670 = vmatprep.subr.mxu0 %v209
    %6671 = vmatpush1.msra.mxu0 %v208
    %6672 = vmatprep.subr.mxu0 %v213
    %6673 = vmatpush1.msra.mxu0 %v212
    %6674 = vmatprep.subr.mxu0 %v217
    %6675 = vmatpush1.msra.mxu0 %v216
    %6676 = vmatprep.subr.mxu0 %v221
    %6677 = vmatpush1.msra.mxu0 %v220
    %6678 = vmatprep.subr.mxu0 %v225
    %6679 = vmatpush1.msra.mxu0 %v224
    %6680 = vmatprep.subr.mxu0 %v229
    %6681 = vmatpush1.msra.mxu0 %v228
    %6682 = vmatprep.subr.mxu0 %v233
    %6683 = vmatpush1.msra.mxu0 %v232
    %6684 = vmatprep.subr.mxu0 %v237
    %6685 = vmatpush1.msra.mxu0 %v236
    %6686 = vmatprep.subr.mxu0 0.0
    %6687 = vmatpush1.msra.mxu0 0.0
    %6688 = vmatprep.subr.mxu0 0.0
    %6689 = vmatpush1.msra.mxu0 0.0
    %6690 = vmatprep.subr.mxu0 0.0
    %6691 = vmatpush1.msra.mxu0 0.0
    %6692 = vmatprep.subr.mxu0 0.0
    %6693 = vmatpush1.msra.mxu0 0.0
    %6694 = vmatprep.subr.mxu0 0.0
    %6695 = vmatpush1.msra.mxu0 0.0
    %6696 = vmatprep.subr.mxu0 0.0
    %6697 = vmatpush1.msra.mxu0 0.0
    %6698 = vmatprep.subr.mxu0 0.0
    %6699 = vmatpush1.msra.mxu0 0.0
    %6700 = vmatprep.subr.mxu0 0.0
    %6701 = vmatpush1.msra.mxu0 0.0
    %6702 = vmatprep.subr.mxu0 0.0
    %6703 = vmatpush1.msra.mxu0 0.0
    %6704 = vmatprep.subr.mxu0 0.0
    %6705 = vmatpush1.msra.mxu0 0.0
    %6706 = vmatprep.subr.mxu0 0.0
    %6707 = vmatpush1.msra.mxu0 0.0
    %6708 = vmatprep.subr.mxu0 0.0
    %6709 = vmatpush1.msra.mxu0 0.0
    %6710 = vmatprep.subr.mxu0 0.0
    %6711 = vmatpush1.msra.mxu0 0.0
    %6712 = vmatprep.subr.mxu0 0.0
    %6713 = vmatpush1.msra.mxu0 0.0
    %6714 = vmatprep.subr.mxu0 0.0
    %6715 = vmatpush1.msra.mxu0 0.0
    %6716 = vmatprep.subr.mxu0 0.0
    %6717 = vmatpush1.msra.mxu0 0.0
    %6718 = vmatprep.subr.mxu0 0.0
    %6719 = vmatpush1.msra.mxu0 0.0
    %6720 = vmatprep.subr.mxu0 0.0
    %6721 = vmatpush1.msra.mxu0 0.0
    %6722 = vmatprep.subr.mxu0 0.0
    %6723 = vmatpush1.msra.mxu0 0.0
    %6724 = vmatprep.subr.mxu0 0.0
    %6725 = vmatpush1.msra.mxu0 0.0
    %6726 = vmatprep.subr.mxu0 0.0
    %6727 = vmatpush1.msra.mxu0 0.0
    %6728 = vmatprep.subr.mxu0 0.0
    %6729 = vmatpush1.msra.mxu0 0.0
    %6730 = vmatprep.subr.mxu0 0.0
    %6731 = vmatpush1.msra.mxu0 0.0
    %6732 = vmatprep.subr.mxu0 0.0
    %6733 = vmatpush1.msra.mxu0 0.0
    %6734 = vmatprep.mubr.f32.mxu0 0.0
    %6735 = vmatmul.mubr.f32.gmra.mrb[0].mxu0 %v6597
    %v6736 = vpop.f32.mrb[0].mxu0
    %v6737 = vadd.f32 %v3682, %v6736
    %v6738 = vpop.f32.mrb[0].mxu0
    %v6739 = vadd.f32 %v3686, %v6738
    %6740 = vdwg.mxu0
    %v6741 = vxor.u32 %v6666, 2147483648
    %v6742 = vmul.f32 %v6741, 1.442695
    %v6743 = vpow.pop %v6742
    %v6744 = vadd.f32 %v6743, 1.0
    %v6745 = vrcp.pop %v6744
    %v6746 = vmul.f32 1.0, %v6745
    %v6747 = vxor.u32 %v6668, 2147483648
    %v6748 = vmul.f32 %v6747, 1.442695
    %v6749 = vpow.pop %v6748
    %v6750 = vadd.f32 %v6749, 1.0
    %v6751 = vrcp.pop %v6750
    %v6752 = vmul.f32 1.0, %v6751
    %v6753 = vmul.f32 %v6746, %v6739
    %v6754 = vadd.f32 %v6737, %v6753
    %v6755 = vtanh.pop %v6754
    %v6756 = vsub.f32 1.0, %v6752
    %v6757 = vmul.f32 %v6756, %v6755
    %v6758 = vmul.f32 %v6752, %v6180
    %v6759 = vadd.f32 %v6757, %v6758
    %v6761 = vsel %vm343, %v6759, 0
    %6763 = vmatprep.subr.mxu0 0.0
    %6764 = vmatpush1.xpose.msra.mxu0 %v3861
    %6765 = vmatprep.subr.mxu0 0.0
    %6766 = vmatpush1.xpose.msra.mxu0 0.0
    %6767 = vmatprep.subr.mxu0 0.0
    %6768 = vmatpush1.xpose.msra.mxu0 0.0
    %6769 = vmatprep.subr.mxu0 0.0
    %6770 = vmatpush1.xpose.msra.mxu0 0.0
    %6771 = vmatprep.subr.mxu0 0.0
    %6772 = vmatpush1.xpose.msra.mxu0 0.0
    %6773 = vmatprep.subr.mxu0 0.0
    %6774 = vmatpush1.xpose.msra.mxu0 0.0
    %6775 = vmatprep.subr.mxu0 0.0
    %6776 = vmatpush1.xpose.msra.mxu0 0.0
    %6777 = vmatprep.subr.mxu0 0.0
    %6778 = vmatpush1.xpose.msra.mxu0 0.0
    %6779 = vmatprep.subr.mxu0 0.0
    %6780 = vmatpush1.xpose.msra.mxu0 0.0
    %6781 = vmatprep.subr.mxu0 0.0
    %6782 = vmatpush1.xpose.msra.mxu0 0.0
    %6783 = vmatprep.subr.mxu0 0.0
    %6784 = vmatpush1.xpose.msra.mxu0 0.0
    %6785 = vmatprep.subr.mxu0 0.0
    %6786 = vmatpush1.xpose.msra.mxu0 0.0
    %6787 = vmatprep.subr.mxu0 0.0
    %6788 = vmatpush1.xpose.msra.mxu0 0.0
    %6789 = vmatprep.subr.mxu0 0.0
    %6790 = vmatpush1.xpose.msra.mxu0 0.0
    %6791 = vmatprep.subr.mxu0 0.0
    %6792 = vmatpush1.xpose.msra.mxu0 0.0
    %6793 = vmatprep.subr.mxu0 0.0
    %6794 = vmatpush1.xpose.msra.mxu0 0.0
    %6795 = vmatprep.subr.mxu0 0.0
    %6796 = vmatpush1.xpose.msra.mxu0 0.0
    %6797 = vmatprep.subr.mxu0 0.0
    %6798 = vmatpush1.xpose.msra.mxu0 0.0
    %6799 = vmatprep.subr.mxu0 0.0
    %6800 = vmatpush1.xpose.msra.mxu0 0.0
    %6801 = vmatprep.subr.mxu0 0.0
    %6802 = vmatpush1.xpose.msra.mxu0 0.0
    %6803 = vmatprep.subr.mxu0 0.0
    %6804 = vmatpush1.xpose.msra.mxu0 0.0
    %6805 = vmatprep.subr.mxu0 0.0
    %6806 = vmatpush1.xpose.msra.mxu0 0.0
    %6807 = vmatprep.subr.mxu0 0.0
    %6808 = vmatpush1.xpose.msra.mxu0 0.0
    %6809 = vmatprep.subr.mxu0 0.0
    %6810 = vmatpush1.xpose.msra.mxu0 0.0
    %6811 = vmatprep.subr.mxu0 0.0
    %6812 = vmatpush1.xpose.msra.mxu0 0.0
    %6813 = vmatprep.subr.mxu0 0.0
    %6814 = vmatpush1.xpose.msra.mxu0 0.0
    %6815 = vmatprep.subr.mxu0 0.0
    %6816 = vmatpush1.xpose.msra.mxu0 0.0
    %6817 = vmatprep.subr.mxu0 0.0
    %6818 = vmatpush1.xpose.msra.mxu0 0.0
    %6819 = vmatprep.subr.mxu0 0.0
    %6820 = vmatpush1.xpose.msra.mxu0 0.0
    %6821 = vmatprep.subr.mxu0 0.0
    %6822 = vmatpush1.xpose.msra.mxu0 0.0
    %6823 = vmatprep.subr.mxu0 0.0
    %6824 = vmatpush1.xpose.msra.mxu0 0.0
    %6825 = vmatprep.subr.mxu0 0.0
    %6826 = vmatpush1.xpose.msra.mxu0 0.0
    %6827 = vmatprep.mubr.f32.mxu0 0.0
    %6828 = vmatmul.mubr.f32.gmra.mrb[0].mxu0 %v6761
    %v6829 = vpop.f32.mrb[0].mxu0
    %v6830 = vadd.f32 0.0, %v6829
    %v6831 = vpop.f32.mrb[0].mxu0
    %6832 = vdwg.mxu0
    %v6833 = vsel %vm3934, %v6830, -1e+30
    %v6834 = vsel %vm3936, %v6833, -inf
    %6835 = vmax.xlane.f32.xlu0 %v6834
    %v6836 = vpop.xlane.xlu0 %6835
    %v6837 = vsub.f32 %v6833, %v6836
    %v6838 = vmul.f32 %v6837, 1.442695
    %v6839 = vpow.pop %v6838
    %v6840 = vsel %vm3936, %v6839, 0.0
    %6841 = vadd.xlane.f32.xlu0 %v6840
    %v6842 = vpop.xlane.xlu0 %6841
    %v6843 = vrcp.pop %v6842
    %v6844 = vmul.f32 %v6839, %v6843
    %v6846 = vsel %vm3948, %v6844, 0
    %6848 = vmatprep.subr.mxu0 0.0
    %6849 = vmatpush1.msra.mxu0 %v3661
    %6850 = vmatprep.subr.mxu0 0.0
    %6851 = vmatpush1.msra.mxu0 0.0
    %6852 = vmatprep.subr.mxu0 0.0
    %6853 = vmatpush1.msra.mxu0 0.0
    %6854 = vmatprep.subr.mxu0 0.0
    %6855 = vmatpush1.msra.mxu0 0.0
    %6856 = vmatprep.subr.mxu0 0.0
    %6857 = vmatpush1.msra.mxu0 0.0
    %6858 = vmatprep.subr.mxu0 0.0
    %6859 = vmatpush1.msra.mxu0 0.0
    %6860 = vmatprep.subr.mxu0 0.0
    %6861 = vmatpush1.msra.mxu0 0.0
    %6862 = vmatprep.subr.mxu0 0.0
    %6863 = vmatpush1.msra.mxu0 0.0
    %6864 = vmatprep.subr.mxu0 0.0
    %6865 = vmatpush1.msra.mxu0 0.0
    %6866 = vmatprep.subr.mxu0 0.0
    %6867 = vmatpush1.msra.mxu0 0.0
    %6868 = vmatprep.subr.mxu0 0.0
    %6869 = vmatpush1.msra.mxu0 0.0
    %6870 = vmatprep.subr.mxu0 0.0
    %6871 = vmatpush1.msra.mxu0 0.0
    %6872 = vmatprep.subr.mxu0 0.0
    %6873 = vmatpush1.msra.mxu0 0.0
    %6874 = vmatprep.subr.mxu0 0.0
    %6875 = vmatpush1.msra.mxu0 0.0
    %6876 = vmatprep.subr.mxu0 0.0
    %6877 = vmatpush1.msra.mxu0 0.0
    %6878 = vmatprep.subr.mxu0 0.0
    %6879 = vmatpush1.msra.mxu0 0.0
    %6880 = vmatprep.subr.mxu0 0.0
    %6881 = vmatpush1.msra.mxu0 0.0
    %6882 = vmatprep.subr.mxu0 0.0
    %6883 = vmatpush1.msra.mxu0 0.0
    %6884 = vmatprep.subr.mxu0 0.0
    %6885 = vmatpush1.msra.mxu0 0.0
    %6886 = vmatprep.subr.mxu0 0.0
    %6887 = vmatpush1.msra.mxu0 0.0
    %6888 = vmatprep.subr.mxu0 0.0
    %6889 = vmatpush1.msra.mxu0 0.0
    %6890 = vmatprep.subr.mxu0 0.0
    %6891 = vmatpush1.msra.mxu0 0.0
    %6892 = vmatprep.subr.mxu0 0.0
    %6893 = vmatpush1.msra.mxu0 0.0
    %6894 = vmatprep.subr.mxu0 0.0
    %6895 = vmatpush1.msra.mxu0 0.0
    %6896 = vmatprep.subr.mxu0 0.0
    %6897 = vmatpush1.msra.mxu0 0.0
    %6898 = vmatprep.subr.mxu0 0.0
    %6899 = vmatpush1.msra.mxu0 0.0
    %6900 = vmatprep.subr.mxu0 0.0
    %6901 = vmatpush1.msra.mxu0 0.0
    %6902 = vmatprep.subr.mxu0 0.0
    %6903 = vmatpush1.msra.mxu0 0.0
    %6904 = vmatprep.subr.mxu0 0.0
    %6905 = vmatpush1.msra.mxu0 0.0
    %6906 = vmatprep.subr.mxu0 0.0
    %6907 = vmatpush1.msra.mxu0 0.0
    %6908 = vmatprep.subr.mxu0 0.0
    %6909 = vmatpush1.msra.mxu0 0.0
    %6910 = vmatprep.subr.mxu0 0.0
    %6911 = vmatpush1.msra.mxu0 0.0
    %6912 = vmatprep.mubr.f32.mxu0 0.0
    %6913 = vmatmul.mubr.f32.gmra.mrb[0].mxu0 %v6846
    %v6914 = vpop.f32.mrb[0].mxu0
    %v6915 = vadd.f32 0.0, %v6914
    %v6916 = vpop.f32.mrb[0].mxu0
    %6917 = vdwg.mxu0
    %6919 = vrot.lane.b32.xlu0 %v6915, 32
    %v6920 = vpop.permute.xlu0 %6919
    %v6922 = vsel %vm343, %v6759, %v6920
    %v6924 = vsel %vm3691, %v6922, 0
    %6926 = vmatprep.subr.mxu0 0.0
    %6927 = vmatpush1.msra.mxu0 %v239
    %6928 = vmatprep.subr.mxu0 0.0
    %6929 = vmatpush1.msra.mxu0 %v240
    %6930 = vmatprep.subr.mxu0 0.0
    %6931 = vmatpush1.msra.mxu0 %v241
    %6932 = vmatprep.subr.mxu0 0.0
    %6933 = vmatpush1.msra.mxu0 %v242
    %6934 = vmatprep.subr.mxu0 0.0
    %6935 = vmatpush1.msra.mxu0 %v243
    %6936 = vmatprep.subr.mxu0 0.0
    %6937 = vmatpush1.msra.mxu0 %v244
    %6938 = vmatprep.subr.mxu0 0.0
    %6939 = vmatpush1.msra.mxu0 %v245
    %6940 = vmatprep.subr.mxu0 0.0
    %6941 = vmatpush1.msra.mxu0 %v246
    %6942 = vmatprep.subr.mxu0 0.0
    %6943 = vmatpush1.msra.mxu0 0.0
    %6944 = vmatprep.subr.mxu0 0.0
    %6945 = vmatpush1.msra.mxu0 0.0
    %6946 = vmatprep.subr.mxu0 0.0
    %6947 = vmatpush1.msra.mxu0 0.0
    %6948 = vmatprep.subr.mxu0 0.0
    %6949 = vmatpush1.msra.mxu0 0.0
    %6950 = vmatprep.subr.mxu0 0.0
    %6951 = vmatpush1.msra.mxu0 0.0
    %6952 = vmatprep.subr.mxu0 0.0
    %6953 = vmatpush1.msra.mxu0 0.0
    %6954 = vmatprep.subr.mxu0 0.0
    %6955 = vmatpush1.msra.mxu0 0.0
    %6956 = vmatprep.subr.mxu0 0.0
    %6957 = vmatpush1.msra.mxu0 0.0
    %6958 = vmatprep.subr.mxu0 0.0
    %6959 = vmatpush1.msra.mxu0 0.0
    %6960 = vmatprep.subr.mxu0 0.0
    %6961 = vmatpush1.msra.mxu0 0.0
    %6962 = vmatprep.subr.mxu0 0.0
    %6963 = vmatpush1.msra.mxu0 0.0
    %6964 = vmatprep.subr.mxu0 0.0
    %6965 = vmatpush1.msra.mxu0 0.0
    %6966 = vmatprep.subr.mxu0 0.0
    %6967 = vmatpush1.msra.mxu0 0.0
    %6968 = vmatprep.subr.mxu0 0.0
    %6969 = vmatpush1.msra.mxu0 0.0
    %6970 = vmatprep.subr.mxu0 0.0
    %6971 = vmatpush1.msra.mxu0 0.0
    %6972 = vmatprep.subr.mxu0 0.0
    %6973 = vmatpush1.msra.mxu0 0.0
    %6974 = vmatprep.subr.mxu0 0.0
    %6975 = vmatpush1.msra.mxu0 0.0
    %6976 = vmatprep.subr.mxu0 0.0
    %6977 = vmatpush1.msra.mxu0 0.0
    %6978 = vmatprep.subr.mxu0 0.0
    %6979 = vmatpush1.msra.mxu0 0.0
    %6980 = vmatprep.subr.mxu0 0.0
    %6981 = vmatpush1.msra.mxu0 0.0
    %6982 = vmatprep.subr.mxu0 0.0
    %6983 = vmatpush1.msra.mxu0 0.0
    %6984 = vmatprep.subr.mxu0 0.0
    %6985 = vmatpush1.msra.mxu0 0.0
    %6986 = vmatprep.subr.mxu0 0.0
    %6987 = vmatpush1.msra.mxu0 0.0
    %6988 = vmatprep.subr.mxu0 0.0
    %6989 = vmatpush1.msra.mxu0 0.0
    %6990 = vmatprep.mubr.f32.mxu0 0.0
    %6991 = vmatmul.mubr.f32.gmra.mrb[0].mxu0 %v6924
    %v6992 = vpop.f32.mrb[0].mxu0
    %v6993 = vadd.f32 %v247, %v6992
    %v6994 = vpop.f32.mrb[0].mxu0
    %6995 = vdwg.mxu0
    %v6996 = vtanh.pop %v6993
    %v6998 = vsel %vm343, %v6996, 0
    %7000 = vmatprep.subr.mxu0 0.0
    %7001 = vmatpush1.msra.mxu0 %v248
    %7002 = vmatprep.subr.mxu0 0.0
    %7003 = vmatpush1.msra.mxu0 %v249
    %7004 = vmatprep.subr.mxu0 0.0
    %7005 = vmatpush1.msra.mxu0 %v250
    %7006 = vmatprep.subr.mxu0 0.0
    %7007 = vmatpush1.msra.mxu0 %v251
    %7008 = vmatprep.subr.mxu0 0.0
    %7009 = vmatpush1.msra.mxu0 0.0
    %7010 = vmatprep.subr.mxu0 0.0
    %7011 = vmatpush1.msra.mxu0 0.0
    %7012 = vmatprep.subr.mxu0 0.0
    %7013 = vmatpush1.msra.mxu0 0.0
    %7014 = vmatprep.subr.mxu0 0.0
    %7015 = vmatpush1.msra.mxu0 0.0
    %7016 = vmatprep.subr.mxu0 0.0
    %7017 = vmatpush1.msra.mxu0 0.0
    %7018 = vmatprep.subr.mxu0 0.0
    %7019 = vmatpush1.msra.mxu0 0.0
    %7020 = vmatprep.subr.mxu0 0.0
    %7021 = vmatpush1.msra.mxu0 0.0
    %7022 = vmatprep.subr.mxu0 0.0
    %7023 = vmatpush1.msra.mxu0 0.0
    %7024 = vmatprep.subr.mxu0 0.0
    %7025 = vmatpush1.msra.mxu0 0.0
    %7026 = vmatprep.subr.mxu0 0.0
    %7027 = vmatpush1.msra.mxu0 0.0
    %7028 = vmatprep.subr.mxu0 0.0
    %7029 = vmatpush1.msra.mxu0 0.0
    %7030 = vmatprep.subr.mxu0 0.0
    %7031 = vmatpush1.msra.mxu0 0.0
    %7032 = vmatprep.subr.mxu0 0.0
    %7033 = vmatpush1.msra.mxu0 0.0
    %7034 = vmatprep.subr.mxu0 0.0
    %7035 = vmatpush1.msra.mxu0 0.0
    %7036 = vmatprep.subr.mxu0 0.0
    %7037 = vmatpush1.msra.mxu0 0.0
    %7038 = vmatprep.subr.mxu0 0.0
    %7039 = vmatpush1.msra.mxu0 0.0
    %7040 = vmatprep.subr.mxu0 0.0
    %7041 = vmatpush1.msra.mxu0 0.0
    %7042 = vmatprep.subr.mxu0 0.0
    %7043 = vmatpush1.msra.mxu0 0.0
    %7044 = vmatprep.subr.mxu0 0.0
    %7045 = vmatpush1.msra.mxu0 0.0
    %7046 = vmatprep.subr.mxu0 0.0
    %7047 = vmatpush1.msra.mxu0 0.0
    %7048 = vmatprep.subr.mxu0 0.0
    %7049 = vmatpush1.msra.mxu0 0.0
    %7050 = vmatprep.subr.mxu0 0.0
    %7051 = vmatpush1.msra.mxu0 0.0
    %7052 = vmatprep.subr.mxu0 0.0
    %7053 = vmatpush1.msra.mxu0 0.0
    %7054 = vmatprep.subr.mxu0 0.0
    %7055 = vmatpush1.msra.mxu0 0.0
    %7056 = vmatprep.subr.mxu0 0.0
    %7057 = vmatpush1.msra.mxu0 0.0
    %7058 = vmatprep.subr.mxu0 0.0
    %7059 = vmatpush1.msra.mxu0 0.0
    %7060 = vmatprep.subr.mxu0 0.0
    %7061 = vmatpush1.msra.mxu0 0.0
    %7062 = vmatprep.subr.mxu0 0.0
    %7063 = vmatpush1.msra.mxu0 0.0
    %7064 = vmatprep.mubr.f32.mxu0 0.0
    %7065 = vmatmul.mubr.f32.gmra.mrb[0].mxu0 %v6998
    %v7066 = vpop.f32.mrb[0].mxu0
    %v7067 = vadd.f32 %v252, %v7066
    %v7068 = vpop.f32.mrb[0].mxu0
    %7069 = vdwg.mxu0
    %v7070 = vsel %vm4174, %v7067, -1e+30
    %v7071 = vsel %vm300, %v7070, -inf
    %7072 = vmax.xlane.f32.xlu0 %v7071
    %v7073 = vpop.xlane.xlu0 %7072
    %v7074 = vsub.f32 %v7070, %v7073
    %v7075 = vmul.f32 %v7074, 1.442695
    %v7076 = vpow.pop %v7075
    %v7077 = vsel %vm300, %v7076, 0.0
    %7078 = vadd.xlane.f32.xlu0 %v7077
    %v7079 = vpop.xlane.xlu0 %7078
    %v7080 = vrcp.pop %v7079
    %vm7081 = vcmp.eq.f32.partialorder %v7070, %v7073
    %v7082 = vsel %vm7081, %v254, 128
    %v7083 = vsel %vm300, %v7082, 2147483647
    %v7084 = vand.u32 %v7083, 65535
    %v7085 = vshra.s32 %v7083, 16
    %v7086 = vcvt.s32.f32 %v7084
    %v7087 = vcvt.s32.f32 %v7085
    %7088 = vmin.xlane.f32.xlu0 %v7087
    %v7089 = vpop.xlane.xlu0 %7088
    %vm7090 = vcmp.eq.f32.partialorder %v7087, %v7089
    %v7091 = vsel %vm7090, %v7086, inf
    %7092 = vmin.xlane.f32.xlu0 %v7091
    %v7093 = vpop.xlane.xlu0 %7092
    %v7094 = vcvt.f32.s32 %v7093
    %v7095 = vcvt.f32.s32 %v7089
    %v7096 = vshll.u32 %v7095, 16
    %v7097 = vadd.s32 %v7096, %v7094
    %vm7098 = vcmp.eq.s32.totalorder %v254, %v7097
    %v7099 = vsel %vm7098, 1, 0
    %v7100 = vcvt.s32.f32 %v7099
    %7101 = vmatprep.subr.mxu0 0.0
    %7102 = vmatpush1.msra.mxu0 %v164
    %7103 = vmatprep.subr.mxu0 0.0
    %7104 = vmatpush1.msra.mxu0 %v165
    %7105 = vmatprep.subr.mxu0 0.0
    %7106 = vmatpush1.msra.mxu0 %v166
    %7107 = vmatprep.subr.mxu0 0.0
    %7108 = vmatpush1.msra.mxu0 %v167
    %7109 = vmatprep.subr.mxu0 0.0
    %7110 = vmatpush1.msra.mxu0 %v168
    %7111 = vmatprep.subr.mxu0 0.0
    %7112 = vmatpush1.msra.mxu0 %v169
    %7113 = vmatprep.subr.mxu0 0.0
    %7114 = vmatpush1.msra.mxu0 %v170
    %7115 = vmatprep.subr.mxu0 0.0
    %7116 = vmatpush1.msra.mxu0 %v171
    %7117 = vmatprep.subr.mxu0 0.0
    %7118 = vmatpush1.msra.mxu0 %v172
    %7119 = vmatprep.subr.mxu0 0.0
    %7120 = vmatpush1.msra.mxu0 %v173
    %7121 = vmatprep.subr.mxu0 0.0
    %7122 = vmatpush1.msra.mxu0 %v174
    %7123 = vmatprep.subr.mxu0 0.0
    %7124 = vmatpush1.msra.mxu0 %v175
    %7125 = vmatprep.subr.mxu0 0.0
    %7126 = vmatpush1.msra.mxu0 %v176
    %7127 = vmatprep.subr.mxu0 0.0
    %7128 = vmatpush1.msra.mxu0 %v177
    %7129 = vmatprep.subr.mxu0 0.0
    %7130 = vmatpush1.msra.mxu0 %v178
    %7131 = vmatprep.subr.mxu0 0.0
    %7132 = vmatpush1.msra.mxu0 %v179
    %7133 = vmatprep.subr.mxu0 0.0
    %7134 = vmatpush1.msra.mxu0 0.0
    %7135 = vmatprep.subr.mxu0 0.0
    %7136 = vmatpush1.msra.mxu0 0.0
    %7137 = vmatprep.subr.mxu0 0.0
    %7138 = vmatpush1.msra.mxu0 0.0
    %7139 = vmatprep.subr.mxu0 0.0
    %7140 = vmatpush1.msra.mxu0 0.0
    %7141 = vmatprep.subr.mxu0 0.0
    %7142 = vmatpush1.msra.mxu0 0.0
    %7143 = vmatprep.subr.mxu0 0.0
    %7144 = vmatpush1.msra.mxu0 0.0
    %7145 = vmatprep.subr.mxu0 0.0
    %7146 = vmatpush1.msra.mxu0 0.0
    %7147 = vmatprep.subr.mxu0 0.0
    %7148 = vmatpush1.msra.mxu0 0.0
    %7149 = vmatprep.subr.mxu0 0.0
    %7150 = vmatpush1.msra.mxu0 0.0
    %7151 = vmatprep.subr.mxu0 0.0
    %7152 = vmatpush1.msra.mxu0 0.0
    %7153 = vmatprep.subr.mxu0 0.0
    %7154 = vmatpush1.msra.mxu0 0.0
    %7155 = vmatprep.subr.mxu0 0.0
    %7156 = vmatpush1.msra.mxu0 0.0
    %7157 = vmatprep.subr.mxu0 0.0
    %7158 = vmatpush1.msra.mxu0 0.0
    %7159 = vmatprep.subr.mxu0 0.0
    %7160 = vmatpush1.msra.mxu0 0.0
    %7161 = vmatprep.subr.mxu0 0.0
    %7162 = vmatpush1.msra.mxu0 0.0
    %7163 = vmatprep.subr.mxu0 0.0
    %7164 = vmatpush1.msra.mxu0 0.0
    %7165 = vmatprep.mubr.f32.mxu0 0.0
    %7166 = vmatmul.mubr.f32.gmra.mrb[0].mxu0 %v7100
    %v7167 = vpop.f32.mrb[0].mxu0
    %v7168 = vadd.f32 0.0, %v7167
    %v7169 = vpop.f32.mrb[0].mxu0
    %7170 = vdwg.mxu0
    %7171 = vrot.lane.b32.xlu0 %v6759, 32
    %v7172 = vpop.permute.xlu0 %7171
    %v7174 = vsel %vm343, %v7168, %v7172
    %v7176 = vsel %vm3691, %v7174, 0
    %7178 = vmatprep.subr.mxu0 %v207
    %7179 = vmatpush1.msra.mxu0 %v206
    %7180 = vmatprep.subr.mxu0 %v211
    %7181 = vmatpush1.msra.mxu0 %v210
    %7182 = vmatprep.subr.mxu0 %v215
    %7183 = vmatpush1.msra.mxu0 %v214
    %7184 = vmatprep.subr.mxu0 %v219
    %7185 = vmatpush1.msra.mxu0 %v218
    %7186 = vmatprep.subr.mxu0 %v223
    %7187 = vmatpush1.msra.mxu0 %v222
    %7188 = vmatprep.subr.mxu0 %v227
    %7189 = vmatpush1.msra.mxu0 %v226
    %7190 = vmatprep.subr.mxu0 %v231
    %7191 = vmatpush1.msra.mxu0 %v230
    %7192 = vmatprep.subr.mxu0 %v235
    %7193 = vmatpush1.msra.mxu0 %v234
    %7194 = vmatprep.subr.mxu0 0.0
    %7195 = vmatpush1.msra.mxu0 0.0
    %7196 = vmatprep.subr.mxu0 0.0
    %7197 = vmatpush1.msra.mxu0 0.0
    %7198 = vmatprep.subr.mxu0 0.0
    %7199 = vmatpush1.msra.mxu0 0.0
    %7200 = vmatprep.subr.mxu0 0.0
    %7201 = vmatpush1.msra.mxu0 0.0
    %7202 = vmatprep.subr.mxu0 0.0
    %7203 = vmatpush1.msra.mxu0 0.0
    %7204 = vmatprep.subr.mxu0 0.0
    %7205 = vmatpush1.msra.mxu0 0.0
    %7206 = vmatprep.subr.mxu0 0.0
    %7207 = vmatpush1.msra.mxu0 0.0
    %7208 = vmatprep.subr.mxu0 0.0
    %7209 = vmatpush1.msra.mxu0 0.0
    %7210 = vmatprep.subr.mxu0 0.0
    %7211 = vmatpush1.msra.mxu0 0.0
    %7212 = vmatprep.subr.mxu0 0.0
    %7213 = vmatpush1.msra.mxu0 0.0
    %7214 = vmatprep.subr.mxu0 0.0
    %7215 = vmatpush1.msra.mxu0 0.0
    %7216 = vmatprep.subr.mxu0 0.0
    %7217 = vmatpush1.msra.mxu0 0.0
    %7218 = vmatprep.subr.mxu0 0.0
    %7219 = vmatpush1.msra.mxu0 0.0
    %7220 = vmatprep.subr.mxu0 0.0
    %7221 = vmatpush1.msra.mxu0 0.0
    %7222 = vmatprep.subr.mxu0 0.0
    %7223 = vmatpush1.msra.mxu0 0.0
    %7224 = vmatprep.subr.mxu0 0.0
    %7225 = vmatpush1.msra.mxu0 0.0
    %7226 = vmatprep.subr.mxu0 0.0
    %7227 = vmatpush1.msra.mxu0 0.0
    %7228 = vmatprep.subr.mxu0 0.0
    %7229 = vmatpush1.msra.mxu0 0.0
    %7230 = vmatprep.subr.mxu0 0.0
    %7231 = vmatpush1.msra.mxu0 0.0
    %7232 = vmatprep.subr.mxu0 0.0
    %7233 = vmatpush1.msra.mxu0 0.0
    %7234 = vmatprep.subr.mxu0 0.0
    %7235 = vmatpush1.msra.mxu0 0.0
    %7236 = vmatprep.subr.mxu0 0.0
    %7237 = vmatpush1.msra.mxu0 0.0
    %7238 = vmatprep.subr.mxu0 0.0
    %7239 = vmatpush1.msra.mxu0 0.0
    %7240 = vmatprep.subr.mxu0 0.0
    %7241 = vmatpush1.msra.mxu0 0.0
    %7242 = vmatprep.mubr.f32.mxu0 0.0
    %7243 = vmatmul.mubr.f32.gmra.mrb[0].mxu0 %v7176
    %v7244 = vpop.f32.mrb[0].mxu0
    %v7245 = vadd.f32 %v3674, %v7244
    %v7246 = vpop.f32.mrb[0].mxu0
    %v7247 = vadd.f32 %v3678, %v7246
    %7248 = vdwg.mxu0
    %7249 = vmatprep.subr.mxu0 %v209
    %7250 = vmatpush1.msra.mxu0 %v208
    %7251 = vmatprep.subr.mxu0 %v213
    %7252 = vmatpush1.msra.mxu0 %v212
    %7253 = vmatprep.subr.mxu0 %v217
    %7254 = vmatpush1.msra.mxu0 %v216
    %7255 = vmatprep.subr.mxu0 %v221
    %7256 = vmatpush1.msra.mxu0 %v220
    %7257 = vmatprep.subr.mxu0 %v225
    %7258 = vmatpush1.msra.mxu0 %v224
    %7259 = vmatprep.subr.mxu0 %v229
    %7260 = vmatpush1.msra.mxu0 %v228
    %7261 = vmatprep.subr.mxu0 %v233
    %7262 = vmatpush1.msra.mxu0 %v232
    %7263 = vmatprep.subr.mxu0 %v237
    %7264 = vmatpush1.msra.mxu0 %v236
    %7265 = vmatprep.subr.mxu0 0.0
    %7266 = vmatpush1.msra.mxu0 0.0
    %7267 = vmatprep.subr.mxu0 0.0
    %7268 = vmatpush1.msra.mxu0 0.0
    %7269 = vmatprep.subr.mxu0 0.0
    %7270 = vmatpush1.msra.mxu0 0.0
    %7271 = vmatprep.subr.mxu0 0.0
    %7272 = vmatpush1.msra.mxu0 0.0
    %7273 = vmatprep.subr.mxu0 0.0
    %7274 = vmatpush1.msra.mxu0 0.0
    %7275 = vmatprep.subr.mxu0 0.0
    %7276 = vmatpush1.msra.mxu0 0.0
    %7277 = vmatprep.subr.mxu0 0.0
    %7278 = vmatpush1.msra.mxu0 0.0
    %7279 = vmatprep.subr.mxu0 0.0
    %7280 = vmatpush1.msra.mxu0 0.0
    %7281 = vmatprep.subr.mxu0 0.0
    %7282 = vmatpush1.msra.mxu0 0.0
    %7283 = vmatprep.subr.mxu0 0.0
    %7284 = vmatpush1.msra.mxu0 0.0
    %7285 = vmatprep.subr.mxu0 0.0
    %7286 = vmatpush1.msra.mxu0 0.0
    %7287 = vmatprep.subr.mxu0 0.0
    %7288 = vmatpush1.msra.mxu0 0.0
    %7289 = vmatprep.subr.mxu0 0.0
    %7290 = vmatpush1.msra.mxu0 0.0
    %7291 = vmatprep.subr.mxu0 0.0
    %7292 = vmatpush1.msra.mxu0 0.0
    %7293 = vmatprep.subr.mxu0 0.0
    %7294 = vmatpush1.msra.mxu0 0.0
    %7295 = vmatprep.subr.mxu0 0.0
    %7296 = vmatpush1.msra.mxu0 0.0
    %7297 = vmatprep.subr.mxu0 0.0
    %7298 = vmatpush1.msra.mxu0 0.0
    %7299 = vmatprep.subr.mxu0 0.0
    %7300 = vmatpush1.msra.mxu0 0.0
    %7301 = vmatprep.subr.mxu0 0.0
    %7302 = vmatpush1.msra.mxu0 0.0
    %7303 = vmatprep.subr.mxu0 0.0
    %7304 = vmatpush1.msra.mxu0 0.0
    %7305 = vmatprep.subr.mxu0 0.0
    %7306 = vmatpush1.msra.mxu0 0.0
    %7307 = vmatprep.subr.mxu0 0.0
    %7308 = vmatpush1.msra.mxu0 0.0
    %7309 = vmatprep.subr.mxu0 0.0
    %7310 = vmatpush1.msra.mxu0 0.0
    %7311 = vmatprep.subr.mxu0 0.0
    %7312 = vmatpush1.msra.mxu0 0.0
    %7313 = vmatprep.mubr.f32.mxu0 0.0
    %7314 = vmatmul.mubr.f32.gmra.mrb[0].mxu0 %v7176
    %v7315 = vpop.f32.mrb[0].mxu0
    %v7316 = vadd.f32 %v3682, %v7315
    %v7317 = vpop.f32.mrb[0].mxu0
    %v7318 = vadd.f32 %v3686, %v7317
    %7319 = vdwg.mxu0
    %v7320 = vxor.u32 %v7245, 2147483648
    %v7321 = vmul.f32 %v7320, 1.442695
    %v7322 = vpow.pop %v7321
    %v7323 = vadd.f32 %v7322, 1.0
    %v7324 = vrcp.pop %v7323
    %v7325 = vmul.f32 1.0, %v7324
    %v7326 = vxor.u32 %v7247, 2147483648
    %v7327 = vmul.f32 %v7326, 1.442695
    %v7328 = vpow.pop %v7327
    %v7329 = vadd.f32 %v7328, 1.0
    %v7330 = vrcp.pop %v7329
    %v7331 = vmul.f32 1.0, %v7330
    %v7332 = vmul.f32 %v7325, %v7318
    %v7333 = vadd.f32 %v7316, %v7332
    %v7334 = vtanh.pop %v7333
    %v7335 = vsub.f32 1.0, %v7331
    %v7336 = vmul.f32 %v7335, %v7334
    %v7337 = vmul.f32 %v7331, %v6759
    %v7338 = vadd.f32 %v7336, %v7337
    %v7340 = vsel %vm343, %v7338, 0
    %7342 = vmatprep.subr.mxu0 0.0
    %7343 = vmatpush1.xpose.msra.mxu0 %v3861
    %7344 = vmatprep.subr.mxu0 0.0
    %7345 = vmatpush1.xpose.msra.mxu0 0.0
    %7346 = vmatprep.subr.mxu0 0.0
    %7347 = vmatpush1.xpose.msra.mxu0 0.0
    %7348 = vmatprep.subr.mxu0 0.0
    %7349 = vmatpush1.xpose.msra.mxu0 0.0
    %7350 = vmatprep.subr.mxu0 0.0
    %7351 = vmatpush1.xpose.msra.mxu0 0.0
    %7352 = vmatprep.subr.mxu0 0.0
    %7353 = vmatpush1.xpose.msra.mxu0 0.0
    %7354 = vmatprep.subr.mxu0 0.0
    %7355 = vmatpush1.xpose.msra.mxu0 0.0
    %7356 = vmatprep.subr.mxu0 0.0
    %7357 = vmatpush1.xpose.msra.mxu0 0.0
    %7358 = vmatprep.subr.mxu0 0.0
    %7359 = vmatpush1.xpose.msra.mxu0 0.0
    %7360 = vmatprep.subr.mxu0 0.0
    %7361 = vmatpush1.xpose.msra.mxu0 0.0
    %7362 = vmatprep.subr.mxu0 0.0
    %7363 = vmatpush1.xpose.msra.mxu0 0.0
    %7364 = vmatprep.subr.mxu0 0.0
    %7365 = vmatpush1.xpose.msra.mxu0 0.0
    %7366 = vmatprep.subr.mxu0 0.0
    %7367 = vmatpush1.xpose.msra.mxu0 0.0
    %7368 = vmatprep.subr.mxu0 0.0
    %7369 = vmatpush1.xpose.msra.mxu0 0.0
    %7370 = vmatprep.subr.mxu0 0.0
    %7371 = vmatpush1.xpose.msra.mxu0 0.0
    %7372 = vmatprep.subr.mxu0 0.0
    %7373 = vmatpush1.xpose.msra.mxu0 0.0
    %7374 = vmatprep.subr.mxu0 0.0
    %7375 = vmatpush1.xpose.msra.mxu0 0.0
    %7376 = vmatprep.subr.mxu0 0.0
    %7377 = vmatpush1.xpose.msra.mxu0 0.0
    %7378 = vmatprep.subr.mxu0 0.0
    %7379 = vmatpush1.xpose.msra.mxu0 0.0
    %7380 = vmatprep.subr.mxu0 0.0
    %7381 = vmatpush1.xpose.msra.mxu0 0.0
    %7382 = vmatprep.subr.mxu0 0.0
    %7383 = vmatpush1.xpose.msra.mxu0 0.0
    %7384 = vmatprep.subr.mxu0 0.0
    %7385 = vmatpush1.xpose.msra.mxu0 0.0
    %7386 = vmatprep.subr.mxu0 0.0
    %7387 = vmatpush1.xpose.msra.mxu0 0.0
    %7388 = vmatprep.subr.mxu0 0.0
    %7389 = vmatpush1.xpose.msra.mxu0 0.0
    %7390 = vmatprep.subr.mxu0 0.0
    %7391 = vmatpush1.xpose.msra.mxu0 0.0
    %7392 = vmatprep.subr.mxu0 0.0
    %7393 = vmatpush1.xpose.msra.mxu0 0.0
    %7394 = vmatprep.subr.mxu0 0.0
    %7395 = vmatpush1.xpose.msra.mxu0 0.0
    %7396 = vmatprep.subr.mxu0 0.0
    %7397 = vmatpush1.xpose.msra.mxu0 0.0
    %7398 = vmatprep.subr.mxu0 0.0
    %7399 = vmatpush1.xpose.msra.mxu0 0.0
    %7400 = vmatprep.subr.mxu0 0.0
    %7401 = vmatpush1.xpose.msra.mxu0 0.0
    %7402 = vmatprep.subr.mxu0 0.0
    %7403 = vmatpush1.xpose.msra.mxu0 0.0
    %7404 = vmatprep.subr.mxu0 0.0
    %7405 = vmatpush1.xpose.msra.mxu0 0.0
    %7406 = vmatprep.mubr.f32.mxu0 0.0
    %7407 = vmatmul.mubr.f32.gmra.mrb[0].mxu0 %v7340
    %v7408 = vpop.f32.mrb[0].mxu0
    %v7409 = vadd.f32 0.0, %v7408
    %v7410 = vpop.f32.mrb[0].mxu0
    %7411 = vdwg.mxu0
    %v7412 = vsel %vm3934, %v7409, -1e+30
    %v7413 = vsel %vm3936, %v7412, -inf
    %7414 = vmax.xlane.f32.xlu0 %v7413
    %v7415 = vpop.xlane.xlu0 %7414
    %v7416 = vsub.f32 %v7412, %v7415
    %v7417 = vmul.f32 %v7416, 1.442695
    %v7418 = vpow.pop %v7417
    %v7419 = vsel %vm3936, %v7418, 0.0
    %7420 = vadd.xlane.f32.xlu0 %v7419
    %v7421 = vpop.xlane.xlu0 %7420
    %v7422 = vrcp.pop %v7421
    %v7423 = vmul.f32 %v7418, %v7422
    %v7425 = vsel %vm3948, %v7423, 0
    %7427 = vmatprep.subr.mxu0 0.0
    %7428 = vmatpush1.msra.mxu0 %v3661
    %7429 = vmatprep.subr.mxu0 0.0
    %7430 = vmatpush1.msra.mxu0 0.0
    %7431 = vmatprep.subr.mxu0 0.0
    %7432 = vmatpush1.msra.mxu0 0.0
    %7433 = vmatprep.subr.mxu0 0.0
    %7434 = vmatpush1.msra.mxu0 0.0
    %7435 = vmatprep.subr.mxu0 0.0
    %7436 = vmatpush1.msra.mxu0 0.0
    %7437 = vmatprep.subr.mxu0 0.0
    %7438 = vmatpush1.msra.mxu0 0.0
    %7439 = vmatprep.subr.mxu0 0.0
    %7440 = vmatpush1.msra.mxu0 0.0
    %7441 = vmatprep.subr.mxu0 0.0
    %7442 = vmatpush1.msra.mxu0 0.0
    %7443 = vmatprep.subr.mxu0 0.0
    %7444 = vmatpush1.msra.mxu0 0.0
    %7445 = vmatprep.subr.mxu0 0.0
    %7446 = vmatpush1.msra.mxu0 0.0
    %7447 = vmatprep.subr.mxu0 0.0
    %7448 = vmatpush1.msra.mxu0 0.0
    %7449 = vmatprep.subr.mxu0 0.0
    %7450 = vmatpush1.msra.mxu0 0.0
    %7451 = vmatprep.subr.mxu0 0.0
    %7452 = vmatpush1.msra.mxu0 0.0
    %7453 = vmatprep.subr.mxu0 0.0
    %7454 = vmatpush1.msra.mxu0 0.0
    %7455 = vmatprep.subr.mxu0 0.0
    %7456 = vmatpush1.msra.mxu0 0.0
    %7457 = vmatprep.subr.mxu0 0.0
    %7458 = vmatpush1.msra.mxu0 0.0
    %7459 = vmatprep.subr.mxu0 0.0
    %7460 = vmatpush1.msra.mxu0 0.0
    %7461 = vmatprep.subr.mxu0 0.0
    %7462 = vmatpush1.msra.mxu0 0.0
    %7463 = vmatprep.subr.mxu0 0.0
    %7464 = vmatpush1.msra.mxu0 0.0
    %7465 = vmatprep.subr.mxu0 0.0
    %7466 = vmatpush1.msra.mxu0 0.0
    %7467 = vmatprep.subr.mxu0 0.0
    %7468 = vmatpush1.msra.mxu0 0.0
    %7469 = vmatprep.subr.mxu0 0.0
    %7470 = vmatpush1.msra.mxu0 0.0
    %7471 = vmatprep.subr.mxu0 0.0
    %7472 = vmatpush1.msra.mxu0 0.0
    %7473 = vmatprep.subr.mxu0 0.0
    %7474 = vmatpush1.msra.mxu0 0.0
    %7475 = vmatprep.subr.mxu0 0.0
    %7476 = vmatpush1.msra.mxu0 0.0
    %7477 = vmatprep.subr.mxu0 0.0
    %7478 = vmatpush1.msra.mxu0 0.0
    %7479 = vmatprep.subr.mxu0 0.0
    %7480 = vmatpush1.msra.mxu0 0.0
    %7481 = vmatprep.subr.mxu0 0.0
    %7482 = vmatpush1.msra.mxu0 0.0
    %7483 = vmatprep.subr.mxu0 0.0
    %7484 = vmatpush1.msra.mxu0 0.0
    %7485 = vmatprep.subr.mxu0 0.0
    %7486 = vmatpush1.msra.mxu0 0.0
    %7487 = vmatprep.subr.mxu0 0.0
    %7488 = vmatpush1.msra.mxu0 0.0
    %7489 = vmatprep.subr.mxu0 0.0
    %7490 = vmatpush1.msra.mxu0 0.0
    %7491 = vmatprep.mubr.f32.mxu0 0.0
    %7492 = vmatmul.mubr.f32.gmra.mrb[0].mxu0 %v7425
    %v7493 = vpop.f32.mrb[0].mxu0
    %v7494 = vadd.f32 0.0, %v7493
    %v7495 = vpop.f32.mrb[0].mxu0
    %7496 = vdwg.mxu0
    %7498 = vrot.lane.b32.xlu0 %v7494, 32
    %v7499 = vpop.permute.xlu0 %7498
    %v7501 = vsel %vm343, %v7338, %v7499
    %v7503 = vsel %vm3691, %v7501, 0
    %7505 = vmatprep.subr.mxu0 0.0
    %7506 = vmatpush1.msra.mxu0 %v239
    %7507 = vmatprep.subr.mxu0 0.0
    %7508 = vmatpush1.msra.mxu0 %v240
    %7509 = vmatprep.subr.mxu0 0.0
    %7510 = vmatpush1.msra.mxu0 %v241
    %7511 = vmatprep.subr.mxu0 0.0
    %7512 = vmatpush1.msra.mxu0 %v242
    %7513 = vmatprep.subr.mxu0 0.0
    %7514 = vmatpush1.msra.mxu0 %v243
    %7515 = vmatprep.subr.mxu0 0.0
    %7516 = vmatpush1.msra.mxu0 %v244
    %7517 = vmatprep.subr.mxu0 0.0
    %7518 = vmatpush1.msra.mxu0 %v245
    %7519 = vmatprep.subr.mxu0 0.0
    %7520 = vmatpush1.msra.mxu0 %v246
    %7521 = vmatprep.subr.mxu0 0.0
    %7522 = vmatpush1.msra.mxu0 0.0
    %7523 = vmatprep.subr.mxu0 0.0
    %7524 = vmatpush1.msra.mxu0 0.0
    %7525 = vmatprep.subr.mxu0 0.0
    %7526 = vmatpush1.msra.mxu0 0.0
    %7527 = vmatprep.subr.mxu0 0.0
    %7528 = vmatpush1.msra.mxu0 0.0
    %7529 = vmatprep.subr.mxu0 0.0
    %7530 = vmatpush1.msra.mxu0 0.0
    %7531 = vmatprep.subr.mxu0 0.0
    %7532 = vmatpush1.msra.mxu0 0.0
    %7533 = vmatprep.subr.mxu0 0.0
    %7534 = vmatpush1.msra.mxu0 0.0
    %7535 = vmatprep.subr.mxu0 0.0
    %7536 = vmatpush1.msra.mxu0 0.0
    %7537 = vmatprep.subr.mxu0 0.0
    %7538 = vmatpush1.msra.mxu0 0.0
    %7539 = vmatprep.subr.mxu0 0.0
    %7540 = vmatpush1.msra.mxu0 0.0
    %7541 = vmatprep.subr.mxu0 0.0
    %7542 = vmatpush1.msra.mxu0 0.0
    %7543 = vmatprep.subr.mxu0 0.0
    %7544 = vmatpush1.msra.mxu0 0.0
    %7545 = vmatprep.subr.mxu0 0.0
    %7546 = vmatpush1.msra.mxu0 0.0
    %7547 = vmatprep.subr.mxu0 0.0
    %7548 = vmatpush1.msra.mxu0 0.0
    %7549 = vmatprep.subr.mxu0 0.0
    %7550 = vmatpush1.msra.mxu0 0.0
    %7551 = vmatprep.subr.mxu0 0.0
    %7552 = vmatpush1.msra.mxu0 0.0
    %7553 = vmatprep.subr.mxu0 0.0
    %7554 = vmatpush1.msra.mxu0 0.0
    %7555 = vmatprep.subr.mxu0 0.0
    %7556 = vmatpush1.msra.mxu0 0.0
    %7557 = vmatprep.subr.mxu0 0.0
    %7558 = vmatpush1.msra.mxu0 0.0
    %7559 = vmatprep.subr.mxu0 0.0
    %7560 = vmatpush1.msra.mxu0 0.0
    %7561 = vmatprep.subr.mxu0 0.0
    %7562 = vmatpush1.msra.mxu0 0.0
    %7563 = vmatprep.subr.mxu0 0.0
    %7564 = vmatpush1.msra.mxu0 0.0
    %7565 = vmatprep.subr.mxu0 0.0
    %7566 = vmatpush1.msra.mxu0 0.0
    %7567 = vmatprep.subr.mxu0 0.0
    %7568 = vmatpush1.msra.mxu0 0.0
    %7569 = vmatprep.mubr.f32.mxu0 0.0
    %7570 = vmatmul.mubr.f32.gmra.mrb[0].mxu0 %v7503
    %v7571 = vpop.f32.mrb[0].mxu0
    %v7572 = vadd.f32 %v247, %v7571
    %v7573 = vpop.f32.mrb[0].mxu0
    %7574 = vdwg.mxu0
    %v7575 = vtanh.pop %v7572
    %v7577 = vsel %vm343, %v7575, 0
    %7579 = vmatprep.subr.mxu0 0.0
    %7580 = vmatpush1.msra.mxu0 %v248
    %7581 = vmatprep.subr.mxu0 0.0
    %7582 = vmatpush1.msra.mxu0 %v249
    %7583 = vmatprep.subr.mxu0 0.0
    %7584 = vmatpush1.msra.mxu0 %v250
    %7585 = vmatprep.subr.mxu0 0.0
    %7586 = vmatpush1.msra.mxu0 %v251
    %7587 = vmatprep.subr.mxu0 0.0
    %7588 = vmatpush1.msra.mxu0 0.0
    %7589 = vmatprep.subr.mxu0 0.0
    %7590 = vmatpush1.msra.mxu0 0.0
    %7591 = vmatprep.subr.mxu0 0.0
    %7592 = vmatpush1.msra.mxu0 0.0
    %7593 = vmatprep.subr.mxu0 0.0
    %7594 = vmatpush1.msra.mxu0 0.0
    %7595 = vmatprep.subr.mxu0 0.0
    %7596 = vmatpush1.msra.mxu0 0.0
    %7597 = vmatprep.subr.mxu0 0.0
    %7598 = vmatpush1.msra.mxu0 0.0
    %7599 = vmatprep.subr.mxu0 0.0
    %7600 = vmatpush1.msra.mxu0 0.0
    %7601 = vmatprep.subr.mxu0 0.0
    %7602 = vmatpush1.msra.mxu0 0.0
    %7603 = vmatprep.subr.mxu0 0.0
    %7604 = vmatpush1.msra.mxu0 0.0
    %7605 = vmatprep.subr.mxu0 0.0
    %7606 = vmatpush1.msra.mxu0 0.0
    %7607 = vmatprep.subr.mxu0 0.0
    %7608 = vmatpush1.msra.mxu0 0.0
    %7609 = vmatprep.subr.mxu0 0.0
    %7610 = vmatpush1.msra.mxu0 0.0
    %7611 = vmatprep.subr.mxu0 0.0
    %7612 = vmatpush1.msra.mxu0 0.0
    %7613 = vmatprep.subr.mxu0 0.0
    %7614 = vmatpush1.msra.mxu0 0.0
    %7615 = vmatprep.subr.mxu0 0.0
    %7616 = vmatpush1.msra.mxu0 0.0
    %7617 = vmatprep.subr.mxu0 0.0
    %7618 = vmatpush1.msra.mxu0 0.0
    %7619 = vmatprep.subr.mxu0 0.0
    %7620 = vmatpush1.msra.mxu0 0.0
    %7621 = vmatprep.subr.mxu0 0.0
    %7622 = vmatpush1.msra.mxu0 0.0
    %7623 = vmatprep.subr.mxu0 0.0
    %7624 = vmatpush1.msra.mxu0 0.0
    %7625 = vmatprep.subr.mxu0 0.0
    %7626 = vmatpush1.msra.mxu0 0.0
    %7627 = vmatprep.subr.mxu0 0.0
    %7628 = vmatpush1.msra.mxu0 0.0
    %7629 = vmatprep.subr.mxu0 0.0
    %7630 = vmatpush1.msra.mxu0 0.0
    %7631 = vmatprep.subr.mxu0 0.0
    %7632 = vmatpush1.msra.mxu0 0.0
    %7633 = vmatprep.subr.mxu0 0.0
    %7634 = vmatpush1.msra.mxu0 0.0
    %7635 = vmatprep.subr.mxu0 0.0
    %7636 = vmatpush1.msra.mxu0 0.0
    %7637 = vmatprep.subr.mxu0 0.0
    %7638 = vmatpush1.msra.mxu0 0.0
    %7639 = vmatprep.subr.mxu0 0.0
    %7640 = vmatpush1.msra.mxu0 0.0
    %7641 = vmatprep.subr.mxu0 0.0
    %7642 = vmatpush1.msra.mxu0 0.0
    %7643 = vmatprep.mubr.f32.mxu0 0.0
    %7644 = vmatmul.mubr.f32.gmra.mrb[0].mxu0 %v7577
    %v7645 = vpop.f32.mrb[0].mxu0
    %v7646 = vadd.f32 %v252, %v7645
    %v7647 = vpop.f32.mrb[0].mxu0
    %7648 = vdwg.mxu0
    %v7649 = vsel %vm4174, %v7646, -1e+30
    %v7650 = vsel %vm300, %v7649, -inf
    %7651 = vmax.xlane.f32.xlu0 %v7650
    %v7652 = vpop.xlane.xlu0 %7651
    %v7653 = vsub.f32 %v7649, %v7652
    %v7654 = vmul.f32 %v7653, 1.442695
    %v7655 = vpow.pop %v7654
    %v7656 = vsel %vm300, %v7655, 0.0
    %7657 = vadd.xlane.f32.xlu0 %v7656
    %v7658 = vpop.xlane.xlu0 %7657
    %v7659 = vrcp.pop %v7658
    %vm7660 = vcmp.eq.f32.partialorder %v7649, %v7652
    %v7661 = vsel %vm7660, %v254, 128
    %v7662 = vsel %vm300, %v7661, 2147483647
    %v7663 = vand.u32 %v7662, 65535
    %v7664 = vshra.s32 %v7662, 16
    %v7665 = vcvt.s32.f32 %v7663
    %v7666 = vcvt.s32.f32 %v7664
    %7667 = vmin.xlane.f32.xlu0 %v7666
    %v7668 = vpop.xlane.xlu0 %7667
    %vm7669 = vcmp.eq.f32.partialorder %v7666, %v7668
    %v7670 = vsel %vm7669, %v7665, inf
    %7671 = vmin.xlane.f32.xlu0 %v7670
    %v7672 = vpop.xlane.xlu0 %7671
    %v7673 = vcvt.f32.s32 %v7672
    %v7674 = vcvt.f32.s32 %v7668
    %v7675 = vshll.u32 %v7674, 16
    %v7676 = vadd.s32 %v7675, %v7673
    %vm7677 = vcmp.eq.s32.totalorder %v254, %v7676
    %v7678 = vsel %vm7677, 1, 0
    %v7679 = vcvt.s32.f32 %v7678
    %7680 = vmatprep.subr.mxu0 0.0
    %7681 = vmatpush1.msra.mxu0 %v164
    %7682 = vmatprep.subr.mxu0 0.0
    %7683 = vmatpush1.msra.mxu0 %v165
    %7684 = vmatprep.subr.mxu0 0.0
    %7685 = vmatpush1.msra.mxu0 %v166
    %7686 = vmatprep.subr.mxu0 0.0
    %7687 = vmatpush1.msra.mxu0 %v167
    %7688 = vmatprep.subr.mxu0 0.0
    %7689 = vmatpush1.msra.mxu0 %v168
    %7690 = vmatprep.subr.mxu0 0.0
    %7691 = vmatpush1.msra.mxu0 %v169
    %7692 = vmatprep.subr.mxu0 0.0
    %7693 = vmatpush1.msra.mxu0 %v170
    %7694 = vmatprep.subr.mxu0 0.0
    %7695 = vmatpush1.msra.mxu0 %v171
    %7696 = vmatprep.subr.mxu0 0.0
    %7697 = vmatpush1.msra.mxu0 %v172
    %7698 = vmatprep.subr.mxu0 0.0
    %7699 = vmatpush1.msra.mxu0 %v173
    %7700 = vmatprep.subr.mxu0 0.0
    %7701 = vmatpush1.msra.mxu0 %v174
    %7702 = vmatprep.subr.mxu0 0.0
    %7703 = vmatpush1.msra.mxu0 %v175
    %7704 = vmatprep.subr.mxu0 0.0
    %7705 = vmatpush1.msra.mxu0 %v176
    %7706 = vmatprep.subr.mxu0 0.0
    %7707 = vmatpush1.msra.mxu0 %v177
    %7708 = vmatprep.subr.mxu0 0.0
    %7709 = vmatpush1.msra.mxu0 %v178
    %7710 = vmatprep.subr.mxu0 0.0
    %7711 = vmatpush1.msra.mxu0 %v179
    %7712 = vmatprep.subr.mxu0 0.0
    %7713 = vmatpush1.msra.mxu0 0.0
    %7714 = vmatprep.subr.mxu0 0.0
    %7715 = vmatpush1.msra.mxu0 0.0
    %7716 = vmatprep.subr.mxu0 0.0
    %7717 = vmatpush1.msra.mxu0 0.0
    %7718 = vmatprep.subr.mxu0 0.0
    %7719 = vmatpush1.msra.mxu0 0.0
    %7720 = vmatprep.subr.mxu0 0.0
    %7721 = vmatpush1.msra.mxu0 0.0
    %7722 = vmatprep.subr.mxu0 0.0
    %7723 = vmatpush1.msra.mxu0 0.0
    %7724 = vmatprep.subr.mxu0 0.0
    %7725 = vmatpush1.msra.mxu0 0.0
    %7726 = vmatprep.subr.mxu0 0.0
    %7727 = vmatpush1.msra.mxu0 0.0
    %7728 = vmatprep.subr.mxu0 0.0
    %7729 = vmatpush1.msra.mxu0 0.0
    %7730 = vmatprep.subr.mxu0 0.0
    %7731 = vmatpush1.msra.mxu0 0.0
    %7732 = vmatprep.subr.mxu0 0.0
    %7733 = vmatpush1.msra.mxu0 0.0
    %7734 = vmatprep.subr.mxu0 0.0
    %7735 = vmatpush1.msra.mxu0 0.0
    %7736 = vmatprep.subr.mxu0 0.0
    %7737 = vmatpush1.msra.mxu0 0.0
    %7738 = vmatprep.subr.mxu0 0.0
    %7739 = vmatpush1.msra.mxu0 0.0
    %7740 = vmatprep.subr.mxu0 0.0
    %7741 = vmatpush1.msra.mxu0 0.0
    %7742 = vmatprep.subr.mxu0 0.0
    %7743 = vmatpush1.msra.mxu0 0.0
    %7744 = vmatprep.mubr.f32.mxu0 0.0
    %7745 = vmatmul.mubr.f32.gmra.mrb[0].mxu0 %v7679
    %v7746 = vpop.f32.mrb[0].mxu0
    %v7747 = vadd.f32 0.0, %v7746
    %v7748 = vpop.f32.mrb[0].mxu0
    %7749 = vdwg.mxu0
    %7750 = vrot.lane.b32.xlu0 %v7338, 32
    %v7751 = vpop.permute.xlu0 %7750
    %v7753 = vsel %vm343, %v7747, %v7751
    %v7755 = vsel %vm3691, %v7753, 0
    %7757 = vmatprep.subr.mxu0 %v207
    %7758 = vmatpush1.msra.mxu0 %v206
    %7759 = vmatprep.subr.mxu0 %v211
    %7760 = vmatpush1.msra.mxu0 %v210
    %7761 = vmatprep.subr.mxu0 %v215
    %7762 = vmatpush1.msra.mxu0 %v214
    %7763 = vmatprep.subr.mxu0 %v219
    %7764 = vmatpush1.msra.mxu0 %v218
    %7765 = vmatprep.subr.mxu0 %v223
    %7766 = vmatpush1.msra.mxu0 %v222
    %7767 = vmatprep.subr.mxu0 %v227
    %7768 = vmatpush1.msra.mxu0 %v226
    %7769 = vmatprep.subr.mxu0 %v231
    %7770 = vmatpush1.msra.mxu0 %v230
    %7771 = vmatprep.subr.mxu0 %v235
    %7772 = vmatpush1.msra.mxu0 %v234
    %7773 = vmatprep.subr.mxu0 0.0
    %7774 = vmatpush1.msra.mxu0 0.0
    %7775 = vmatprep.subr.mxu0 0.0
    %7776 = vmatpush1.msra.mxu0 0.0
    %7777 = vmatprep.subr.mxu0 0.0
    %7778 = vmatpush1.msra.mxu0 0.0
    %7779 = vmatprep.subr.mxu0 0.0
    %7780 = vmatpush1.msra.mxu0 0.0
    %7781 = vmatprep.subr.mxu0 0.0
    %7782 = vmatpush1.msra.mxu0 0.0
    %7783 = vmatprep.subr.mxu0 0.0
    %7784 = vmatpush1.msra.mxu0 0.0
    %7785 = vmatprep.subr.mxu0 0.0
    %7786 = vmatpush1.msra.mxu0 0.0
    %7787 = vmatprep.subr.mxu0 0.0
    %7788 = vmatpush1.msra.mxu0 0.0
    %7789 = vmatprep.subr.mxu0 0.0
    %7790 = vmatpush1.msra.mxu0 0.0
    %7791 = vmatprep.subr.mxu0 0.0
    %7792 = vmatpush1.msra.mxu0 0.0
    %7793 = vmatprep.subr.mxu0 0.0
    %7794 = vmatpush1.msra.mxu0 0.0
    %7795 = vmatprep.subr.mxu0 0.0
    %7796 = vmatpush1.msra.mxu0 0.0
    %7797 = vmatprep.subr.mxu0 0.0
    %7798 = vmatpush1.msra.mxu0 0.0
    %7799 = vmatprep.subr.mxu0 0.0
    %7800 = vmatpush1.msra.mxu0 0.0
    %7801 = vmatprep.subr.mxu0 0.0
    %7802 = vmatpush1.msra.mxu0 0.0
    %7803 = vmatprep.subr.mxu0 0.0
    %7804 = vmatpush1.msra.mxu0 0.0
    %7805 = vmatprep.subr.mxu0 0.0
    %7806 = vmatpush1.msra.mxu0 0.0
    %7807 = vmatprep.subr.mxu0 0.0
    %7808 = vmatpush1.msra.mxu0 0.0
    %7809 = vmatprep.subr.mxu0 0.0
    %7810 = vmatpush1.msra.mxu0 0.0
    %7811 = vmatprep.subr.mxu0 0.0
    %7812 = vmatpush1.msra.mxu0 0.0
    %7813 = vmatprep.subr.mxu0 0.0
    %7814 = vmatpush1.msra.mxu0 0.0
    %7815 = vmatprep.subr.mxu0 0.0
    %7816 = vmatpush1.msra.mxu0 0.0
    %7817 = vmatprep.subr.mxu0 0.0
    %7818 = vmatpush1.msra.mxu0 0.0
    %7819 = vmatprep.subr.mxu0 0.0
    %7820 = vmatpush1.msra.mxu0 0.0
    %7821 = vmatprep.mubr.f32.mxu0 0.0
    %7822 = vmatmul.mubr.f32.gmra.mrb[0].mxu0 %v7755
    %v7823 = vpop.f32.mrb[0].mxu0
    %v7824 = vadd.f32 %v3674, %v7823
    %v7825 = vpop.f32.mrb[0].mxu0
    %v7826 = vadd.f32 %v3678, %v7825
    %7827 = vdwg.mxu0
    %7828 = vmatprep.subr.mxu0 %v209
    %7829 = vmatpush1.msra.mxu0 %v208
    %7830 = vmatprep.subr.mxu0 %v213
    %7831 = vmatpush1.msra.mxu0 %v212
    %7832 = vmatprep.subr.mxu0 %v217
    %7833 = vmatpush1.msra.mxu0 %v216
    %7834 = vmatprep.subr.mxu0 %v221
    %7835 = vmatpush1.msra.mxu0 %v220
    %7836 = vmatprep.subr.mxu0 %v225
    %7837 = vmatpush1.msra.mxu0 %v224
    %7838 = vmatprep.subr.mxu0 %v229
    %7839 = vmatpush1.msra.mxu0 %v228
    %7840 = vmatprep.subr.mxu0 %v233
    %7841 = vmatpush1.msra.mxu0 %v232
    %7842 = vmatprep.subr.mxu0 %v237
    %7843 = vmatpush1.msra.mxu0 %v236
    %7844 = vmatprep.subr.mxu0 0.0
    %7845 = vmatpush1.msra.mxu0 0.0
    %7846 = vmatprep.subr.mxu0 0.0
    %7847 = vmatpush1.msra.mxu0 0.0
    %7848 = vmatprep.subr.mxu0 0.0
    %7849 = vmatpush1.msra.mxu0 0.0
    %7850 = vmatprep.subr.mxu0 0.0
    %7851 = vmatpush1.msra.mxu0 0.0
    %7852 = vmatprep.subr.mxu0 0.0
    %7853 = vmatpush1.msra.mxu0 0.0
    %7854 = vmatprep.subr.mxu0 0.0
    %7855 = vmatpush1.msra.mxu0 0.0
    %7856 = vmatprep.subr.mxu0 0.0
    %7857 = vmatpush1.msra.mxu0 0.0
    %7858 = vmatprep.subr.mxu0 0.0
    %7859 = vmatpush1.msra.mxu0 0.0
    %7860 = vmatprep.subr.mxu0 0.0
    %7861 = vmatpush1.msra.mxu0 0.0
    %7862 = vmatprep.subr.mxu0 0.0
    %7863 = vmatpush1.msra.mxu0 0.0
    %7864 = vmatprep.subr.mxu0 0.0
    %7865 = vmatpush1.msra.mxu0 0.0
    %7866 = vmatprep.subr.mxu0 0.0
    %7867 = vmatpush1.msra.mxu0 0.0
    %7868 = vmatprep.subr.mxu0 0.0
    %7869 = vmatpush1.msra.mxu0 0.0
    %7870 = vmatprep.subr.mxu0 0.0
    %7871 = vmatpush1.msra.mxu0 0.0
    %7872 = vmatprep.subr.mxu0 0.0
    %7873 = vmatpush1.msra.mxu0 0.0
    %7874 = vmatprep.subr.mxu0 0.0
    %7875 = vmatpush1.msra.mxu0 0.0
    %7876 = vmatprep.subr.mxu0 0.0
    %7877 = vmatpush1.msra.mxu0 0.0
    %7878 = vmatprep.subr.mxu0 0.0
    %7879 = vmatpush1.msra.mxu0 0.0
    %7880 = vmatprep.subr.mxu0 0.0
    %7881 = vmatpush1.msra.mxu0 0.0
    %7882 = vmatprep.subr.mxu0 0.0
    %7883 = vmatpush1.msra.mxu0 0.0
    %7884 = vmatprep.subr.mxu0 0.0
    %7885 = vmatpush1.msra.mxu0 0.0
    %7886 = vmatprep.subr.mxu0 0.0
    %7887 = vmatpush1.msra.mxu0 0.0
    %7888 = vmatprep.subr.mxu0 0.0
    %7889 = vmatpush1.msra.mxu0 0.0
    %7890 = vmatprep.subr.mxu0 0.0
    %7891 = vmatpush1.msra.mxu0 0.0
    %7892 = vmatprep.mubr.f32.mxu0 0.0
    %7893 = vmatmul.mubr.f32.gmra.mrb[0].mxu0 %v7755
    %v7894 = vpop.f32.mrb[0].mxu0
    %v7895 = vadd.f32 %v3682, %v7894
    %v7896 = vpop.f32.mrb[0].mxu0
    %v7897 = vadd.f32 %v3686, %v7896
    %7898 = vdwg.mxu0
    %v7899 = vxor.u32 %v7824, 2147483648
    %v7900 = vmul.f32 %v7899, 1.442695
    %v7901 = vpow.pop %v7900
    %v7902 = vadd.f32 %v7901, 1.0
    %v7903 = vrcp.pop %v7902
    %v7904 = vmul.f32 1.0, %v7903
    %v7905 = vxor.u32 %v7826, 2147483648
    %v7906 = vmul.f32 %v7905, 1.442695
    %v7907 = vpow.pop %v7906
    %v7908 = vadd.f32 %v7907, 1.0
    %v7909 = vrcp.pop %v7908
    %v7910 = vmul.f32 1.0, %v7909
    %v7911 = vmul.f32 %v7904, %v7897
    %v7912 = vadd.f32 %v7895, %v7911
    %v7913 = vtanh.pop %v7912
    %v7914 = vsub.f32 1.0, %v7910
    %v7915 = vmul.f32 %v7914, %v7913
    %v7916 = vmul.f32 %v7910, %v7338
    %v7917 = vadd.f32 %v7915, %v7916
    %v7919 = vsel %vm343, %v7917, 0
    %7921 = vmatprep.subr.mxu0 0.0
    %7922 = vmatpush1.xpose.msra.mxu0 %v3861
    %7923 = vmatprep.subr.mxu0 0.0
    %7924 = vmatpush1.xpose.msra.mxu0 0.0
    %7925 = vmatprep.subr.mxu0 0.0
    %7926 = vmatpush1.xpose.msra.mxu0 0.0
    %7927 = vmatprep.subr.mxu0 0.0
    %7928 = vmatpush1.xpose.msra.mxu0 0.0
    %7929 = vmatprep.subr.mxu0 0.0
    %7930 = vmatpush1.xpose.msra.mxu0 0.0
    %7931 = vmatprep.subr.mxu0 0.0
    %7932 = vmatpush1.xpose.msra.mxu0 0.0
    %7933 = vmatprep.subr.mxu0 0.0
    %7934 = vmatpush1.xpose.msra.mxu0 0.0
    %7935 = vmatprep.subr.mxu0 0.0
    %7936 = vmatpush1.xpose.msra.mxu0 0.0
    %7937 = vmatprep.subr.mxu0 0.0
    %7938 = vmatpush1.xpose.msra.mxu0 0.0
    %7939 = vmatprep.subr.mxu0 0.0
    %7940 = vmatpush1.xpose.msra.mxu0 0.0
    %7941 = vmatprep.subr.mxu0 0.0
    %7942 = vmatpush1.xpose.msra.mxu0 0.0
    %7943 = vmatprep.subr.mxu0 0.0
    %7944 = vmatpush1.xpose.msra.mxu0 0.0
    %7945 = vmatprep.subr.mxu0 0.0
    %7946 = vmatpush1.xpose.msra.mxu0 0.0
    %7947 = vmatprep.subr.mxu0 0.0
    %7948 = vmatpush1.xpose.msra.mxu0 0.0
    %7949 = vmatprep.subr.mxu0 0.0
    %7950 = vmatpush1.xpose.msra.mxu0 0.0
    %7951 = vmatprep.subr.mxu0 0.0
    %7952 = vmatpush1.xpose.msra.mxu0 0.0
    %7953 = vmatprep.subr.mxu0 0.0
    %7954 = vmatpush1.xpose.msra.mxu0 0.0
    %7955 = vmatprep.subr.mxu0 0.0
    %7956 = vmatpush1.xpose.msra.mxu0 0.0
    %7957 = vmatprep.subr.mxu0 0.0
    %7958 = vmatpush1.xpose.msra.mxu0 0.0
    %7959 = vmatprep.subr.mxu0 0.0
    %7960 = vmatpush1.xpose.msra.mxu0 0.0
    %7961 = vmatprep.subr.mxu0 0.0
    %7962 = vmatpush1.xpose.msra.mxu0 0.0
    %7963 = vmatprep.subr.mxu0 0.0
    %7964 = vmatpush1.xpose.msra.mxu0 0.0
    %7965 = vmatprep.subr.mxu0 0.0
    %7966 = vmatpush1.xpose.msra.mxu0 0.0
    %7967 = vmatprep.subr.mxu0 0.0
    %7968 = vmatpush1.xpose.msra.mxu0 0.0
    %7969 = vmatprep.subr.mxu0 0.0
    %7970 = vmatpush1.xpose.msra.mxu0 0.0
    %7971 = vmatprep.subr.mxu0 0.0
    %7972 = vmatpush1.xpose.msra.mxu0 0.0
    %7973 = vmatprep.subr.mxu0 0.0
    %7974 = vmatpush1.xpose.msra.mxu0 0.0
    %7975 = vmatprep.subr.mxu0 0.0
    %7976 = vmatpush1.xpose.msra.mxu0 0.0
    %7977 = vmatprep.subr.mxu0 0.0
    %7978 = vmatpush1.xpose.msra.mxu0 0.0
    %7979 = vmatprep.subr.mxu0 0.0
    %7980 = vmatpush1.xpose.msra.mxu0 0.0
    %7981 = vmatprep.subr.mxu0 0.0
    %7982 = vmatpush1.xpose.msra.mxu0 0.0
    %7983 = vmatprep.subr.mxu0 0.0
    %7984 = vmatpush1.xpose.msra.mxu0 0.0
    %7985 = vmatprep.mubr.f32.mxu0 0.0
    %7986 = vmatmul.mubr.f32.gmra.mrb[0].mxu0 %v7919
    %v7987 = vpop.f32.mrb[0].mxu0
    %v7988 = vadd.f32 0.0, %v7987
    %v7989 = vpop.f32.mrb[0].mxu0
    %7990 = vdwg.mxu0
    %v7991 = vsel %vm3934, %v7988, -1e+30
    %v7992 = vsel %vm3936, %v7991, -inf
    %7993 = vmax.xlane.f32.xlu0 %v7992
    %v7994 = vpop.xlane.xlu0 %7993
    %v7995 = vsub.f32 %v7991, %v7994
    %v7996 = vmul.f32 %v7995, 1.442695
    %v7997 = vpow.pop %v7996
    %v7998 = vsel %vm3936, %v7997, 0.0
    %7999 = vadd.xlane.f32.xlu0 %v7998
    %v8000 = vpop.xlane.xlu0 %7999
    %v8001 = vrcp.pop %v8000
    %v8002 = vmul.f32 %v7997, %v8001
    %v8004 = vsel %vm3948, %v8002, 0
    %8006 = vmatprep.subr.mxu0 0.0
    %8007 = vmatpush1.msra.mxu0 %v3661
    %8008 = vmatprep.subr.mxu0 0.0
    %8009 = vmatpush1.msra.mxu0 0.0
    %8010 = vmatprep.subr.mxu0 0.0
    %8011 = vmatpush1.msra.mxu0 0.0
    %8012 = vmatprep.subr.mxu0 0.0
    %8013 = vmatpush1.msra.mxu0 0.0
    %8014 = vmatprep.subr.mxu0 0.0
    %8015 = vmatpush1.msra.mxu0 0.0
    %8016 = vmatprep.subr.mxu0 0.0
    %8017 = vmatpush1.msra.mxu0 0.0
    %8018 = vmatprep.subr.mxu0 0.0
    %8019 = vmatpush1.msra.mxu0 0.0
    %8020 = vmatprep.subr.mxu0 0.0
    %8021 = vmatpush1.msra.mxu0 0.0
    %8022 = vmatprep.subr.mxu0 0.0
    %8023 = vmatpush1.msra.mxu0 0.0
    %8024 = vmatprep.subr.mxu0 0.0
    %8025 = vmatpush1.msra.mxu0 0.0
    %8026 = vmatprep.subr.mxu0 0.0
    %8027 = vmatpush1.msra.mxu0 0.0
    %8028 = vmatprep.subr.mxu0 0.0
    %8029 = vmatpush1.msra.mxu0 0.0
    %8030 = vmatprep.subr.mxu0 0.0
    %8031 = vmatpush1.msra.mxu0 0.0
    %8032 = vmatprep.subr.mxu0 0.0
    %8033 = vmatpush1.msra.mxu0 0.0
    %8034 = vmatprep.subr.mxu0 0.0
    %8035 = vmatpush1.msra.mxu0 0.0
    %8036 = vmatprep.subr.mxu0 0.0
    %8037 = vmatpush1.msra.mxu0 0.0
    %8038 = vmatprep.subr.mxu0 0.0
    %8039 = vmatpush1.msra.mxu0 0.0
    %8040 = vmatprep.subr.mxu0 0.0
    %8041 = vmatpush1.msra.mxu0 0.0
    %8042 = vmatprep.subr.mxu0 0.0
    %8043 = vmatpush1.msra.mxu0 0.0
    %8044 = vmatprep.subr.mxu0 0.0
    %8045 = vmatpush1.msra.mxu0 0.0
    %8046 = vmatprep.subr.mxu0 0.0
    %8047 = vmatpush1.msra.mxu0 0.0
    %8048 = vmatprep.subr.mxu0 0.0
    %8049 = vmatpush1.msra.mxu0 0.0
    %8050 = vmatprep.subr.mxu0 0.0
    %8051 = vmatpush1.msra.mxu0 0.0
    %8052 = vmatprep.subr.mxu0 0.0
    %8053 = vmatpush1.msra.mxu0 0.0
    %8054 = vmatprep.subr.mxu0 0.0
    %8055 = vmatpush1.msra.mxu0 0.0
    %8056 = vmatprep.subr.mxu0 0.0
    %8057 = vmatpush1.msra.mxu0 0.0
    %8058 = vmatprep.subr.mxu0 0.0
    %8059 = vmatpush1.msra.mxu0 0.0
    %8060 = vmatprep.subr.mxu0 0.0
    %8061 = vmatpush1.msra.mxu0 0.0
    %8062 = vmatprep.subr.mxu0 0.0
    %8063 = vmatpush1.msra.mxu0 0.0
    %8064 = vmatprep.subr.mxu0 0.0
    %8065 = vmatpush1.msra.mxu0 0.0
    %8066 = vmatprep.subr.mxu0 0.0
    %8067 = vmatpush1.msra.mxu0 0.0
    %8068 = vmatprep.subr.mxu0 0.0
    %8069 = vmatpush1.msra.mxu0 0.0
    %8070 = vmatprep.mubr.f32.mxu0 0.0
    %8071 = vmatmul.mubr.f32.gmra.mrb[0].mxu0 %v8004
    %v8072 = vpop.f32.mrb[0].mxu0
    %v8073 = vadd.f32 0.0, %v8072
    %v8074 = vpop.f32.mrb[0].mxu0
    %8075 = vdwg.mxu0
    %8077 = vrot.lane.b32.xlu0 %v8073, 32
    %v8078 = vpop.permute.xlu0 %8077
    %v8080 = vsel %vm343, %v7917, %v8078
    %v8082 = vsel %vm3691, %v8080, 0
    %8084 = vmatprep.subr.mxu0 0.0
    %8085 = vmatpush1.msra.mxu0 %v239
    %8086 = vmatprep.subr.mxu0 0.0
    %8087 = vmatpush1.msra.mxu0 %v240
    %8088 = vmatprep.subr.mxu0 0.0
    %8089 = vmatpush1.msra.mxu0 %v241
    %8090 = vmatprep.subr.mxu0 0.0
    %8091 = vmatpush1.msra.mxu0 %v242
    %8092 = vmatprep.subr.mxu0 0.0
    %8093 = vmatpush1.msra.mxu0 %v243
    %8094 = vmatprep.subr.mxu0 0.0
    %8095 = vmatpush1.msra.mxu0 %v244
    %8096 = vmatprep.subr.mxu0 0.0
    %8097 = vmatpush1.msra.mxu0 %v245
    %8098 = vmatprep.subr.mxu0 0.0
    %8099 = vmatpush1.msra.mxu0 %v246
    %8100 = vmatprep.subr.mxu0 0.0
    %8101 = vmatpush1.msra.mxu0 0.0
    %8102 = vmatprep.subr.mxu0 0.0
    %8103 = vmatpush1.msra.mxu0 0.0
    %8104 = vmatprep.subr.mxu0 0.0
    %8105 = vmatpush1.msra.mxu0 0.0
    %8106 = vmatprep.subr.mxu0 0.0
    %8107 = vmatpush1.msra.mxu0 0.0
    %8108 = vmatprep.subr.mxu0 0.0
    %8109 = vmatpush1.msra.mxu0 0.0
    %8110 = vmatprep.subr.mxu0 0.0
    %8111 = vmatpush1.msra.mxu0 0.0
    %8112 = vmatprep.subr.mxu0 0.0
    %8113 = vmatpush1.msra.mxu0 0.0
    %8114 = vmatprep.subr.mxu0 0.0
    %8115 = vmatpush1.msra.mxu0 0.0
    %8116 = vmatprep.subr.mxu0 0.0
    %8117 = vmatpush1.msra.mxu0 0.0
    %8118 = vmatprep.subr.mxu0 0.0
    %8119 = vmatpush1.msra.mxu0 0.0
    %8120 = vmatprep.subr.mxu0 0.0
    %8121 = vmatpush1.msra.mxu0 0.0
    %8122 = vmatprep.subr.mxu0 0.0
    %8123 = vmatpush1.msra.mxu0 0.0
    %8124 = vmatprep.subr.mxu0 0.0
    %8125 = vmatpush1.msra.mxu0 0.0
    %8126 = vmatprep.subr.mxu0 0.0
    %8127 = vmatpush1.msra.mxu0 0.0
    %8128 = vmatprep.subr.mxu0 0.0
    %8129 = vmatpush1.msra.mxu0 0.0
    %8130 = vmatprep.subr.mxu0 0.0
    %8131 = vmatpush1.msra.mxu0 0.0
    %8132 = vmatprep.subr.mxu0 0.0
    %8133 = vmatpush1.msra.mxu0 0.0
    %8134 = vmatprep.subr.mxu0 0.0
    %8135 = vmatpush1.msra.mxu0 0.0
    %8136 = vmatprep.subr.mxu0 0.0
    %8137 = vmatpush1.msra.mxu0 0.0
    %8138 = vmatprep.subr.mxu0 0.0
    %8139 = vmatpush1.msra.mxu0 0.0
    %8140 = vmatprep.subr.mxu0 0.0
    %8141 = vmatpush1.msra.mxu0 0.0
    %8142 = vmatprep.subr.mxu0 0.0
    %8143 = vmatpush1.msra.mxu0 0.0
    %8144 = vmatprep.subr.mxu0 0.0
    %8145 = vmatpush1.msra.mxu0 0.0
    %8146 = vmatprep.subr.mxu0 0.0
    %8147 = vmatpush1.msra.mxu0 0.0
    %8148 = vmatprep.mubr.f32.mxu0 0.0
    %8149 = vmatmul.mubr.f32.gmra.mrb[0].mxu0 %v8082
    %v8150 = vpop.f32.mrb[0].mxu0
    %v8151 = vadd.f32 %v247, %v8150
    %v8152 = vpop.f32.mrb[0].mxu0
    %8153 = vdwg.mxu0
    %v8154 = vtanh.pop %v8151
    %v8156 = vsel %vm343, %v8154, 0
    %8158 = vmatprep.subr.mxu0 0.0
    %8159 = vmatpush1.msra.mxu0 %v248
    %8160 = vmatprep.subr.mxu0 0.0
    %8161 = vmatpush1.msra.mxu0 %v249
    %8162 = vmatprep.subr.mxu0 0.0
    %8163 = vmatpush1.msra.mxu0 %v250
    %8164 = vmatprep.subr.mxu0 0.0
    %8165 = vmatpush1.msra.mxu0 %v251
    %8166 = vmatprep.subr.mxu0 0.0
    %8167 = vmatpush1.msra.mxu0 0.0
    %8168 = vmatprep.subr.mxu0 0.0
    %8169 = vmatpush1.msra.mxu0 0.0
    %8170 = vmatprep.subr.mxu0 0.0
    %8171 = vmatpush1.msra.mxu0 0.0
    %8172 = vmatprep.subr.mxu0 0.0
    %8173 = vmatpush1.msra.mxu0 0.0
    %8174 = vmatprep.subr.mxu0 0.0
    %8175 = vmatpush1.msra.mxu0 0.0
    %8176 = vmatprep.subr.mxu0 0.0
    %8177 = vmatpush1.msra.mxu0 0.0
    %8178 = vmatprep.subr.mxu0 0.0
    %8179 = vmatpush1.msra.mxu0 0.0
    %8180 = vmatprep.subr.mxu0 0.0
    %8181 = vmatpush1.msra.mxu0 0.0
    %8182 = vmatprep.subr.mxu0 0.0
    %8183 = vmatpush1.msra.mxu0 0.0
    %8184 = vmatprep.subr.mxu0 0.0
    %8185 = vmatpush1.msra.mxu0 0.0
    %8186 = vmatprep.subr.mxu0 0.0
    %8187 = vmatpush1.msra.mxu0 0.0
    %8188 = vmatprep.subr.mxu0 0.0
    %8189 = vmatpush1.msra.mxu0 0.0
    %8190 = vmatprep.subr.mxu0 0.0
    %8191 = vmatpush1.msra.mxu0 0.0
    %8192 = vmatprep.subr.mxu0 0.0
    %8193 = vmatpush1.msra.mxu0 0.0
    %8194 = vmatprep.subr.mxu0 0.0
    %8195 = vmatpush1.msra.mxu0 0.0
    %8196 = vmatprep.subr.mxu0 0.0
    %8197 = vmatpush1.msra.mxu0 0.0
    %8198 = vmatprep.subr.mxu0 0.0
    %8199 = vmatpush1.msra.mxu0 0.0
    %8200 = vmatprep.subr.mxu0 0.0
    %8201 = vmatpush1.msra.mxu0 0.0
    %8202 = vmatprep.subr.mxu0 0.0
    %8203 = vmatpush1.msra.mxu0 0.0
    %8204 = vmatprep.subr.mxu0 0.0
    %8205 = vmatpush1.msra.mxu0 0.0
    %8206 = vmatprep.subr.mxu0 0.0
    %8207 = vmatpush1.msra.mxu0 0.0
    %8208 = vmatprep.subr.mxu0 0.0
    %8209 = vmatpush1.msra.mxu0 0.0
    %8210 = vmatprep.subr.mxu0 0.0
    %8211 = vmatpush1.msra.mxu0 0.0
    %8212 = vmatprep.subr.mxu0 0.0
    %8213 = vmatpush1.msra.mxu0 0.0
    %8214 = vmatprep.subr.mxu0 0.0
    %8215 = vmatpush1.msra.mxu0 0.0
    %8216 = vmatprep.subr.mxu0 0.0
    %8217 = vmatpush1.msra.mxu0 0.0
    %8218 = vmatprep.subr.mxu0 0.0
    %8219 = vmatpush1.msra.mxu0 0.0
    %8220 = vmatprep.subr.mxu0 0.0
    %8221 = vmatpush1.msra.mxu0 0.0
    %8222 = vmatprep.mubr.f32.mxu0 0.0
    %8223 = vmatmul.mubr.f32.gmra.mrb[0].mxu0 %v8156
    %v8224 = vpop.f32.mrb[0].mxu0
    %v8225 = vadd.f32 %v252, %v8224
    %v8226 = vpop.f32.mrb[0].mxu0
    %8227 = vdwg.mxu0
    %v8228 = vsel %vm4174, %v8225, -1e+30
    %v8229 = vsel %vm300, %v8228, -inf
    %8230 = vmax.xlane.f32.xlu0 %v8229
    %v8231 = vpop.xlane.xlu0 %8230
    %v8232 = vsub.f32 %v8228, %v8231
    %v8233 = vmul.f32 %v8232, 1.442695
    %v8234 = vpow.pop %v8233
    %v8235 = vsel %vm300, %v8234, 0.0
    %8236 = vadd.xlane.f32.xlu0 %v8235
    %v8237 = vpop.xlane.xlu0 %8236
    %v8238 = vrcp.pop %v8237
    %vm8239 = vcmp.eq.f32.partialorder %v8228, %v8231
    %v8240 = vsel %vm8239, %v254, 128
    %v8241 = vsel %vm300, %v8240, 2147483647
    %v8242 = vand.u32 %v8241, 65535
    %v8243 = vshra.s32 %v8241, 16
    %v8244 = vcvt.s32.f32 %v8242
    %v8245 = vcvt.s32.f32 %v8243
    %8246 = vmin.xlane.f32.xlu0 %v8245
    %v8247 = vpop.xlane.xlu0 %8246
    %vm8248 = vcmp.eq.f32.partialorder %v8245, %v8247
    %v8249 = vsel %vm8248, %v8244, inf
    %8250 = vmin.xlane.f32.xlu0 %v8249
    %v8251 = vpop.xlane.xlu0 %8250
    %v8252 = vcvt.f32.s32 %v8251
    %v8253 = vcvt.f32.s32 %v8247
    %v8254 = vshll.u32 %v8253, 16
    %v8255 = vadd.s32 %v8254, %v8252
    %v8257 = vrot.slane %v4764, 7
    %v8260 = vrot.slane %v5343, 6
    %v8263 = vrot.slane %v5922, 5
    %v8266 = vrot.slane %v6501, 4
    %v8269 = vrot.slane %v7080, 3
    %v8272 = vrot.slane %v7659, 2
    %v8275 = vrot.slane %v8238, 1
    %v8277 = vsel %vm300, %v4185, %v8257
    %v8278 = vsel %vm302, %v8277, %v8260
    %v8279 = vsel %vm304, %v8278, %v8263
    %v8280 = vsel %vm306, %v8279, %v8266
    %v8281 = vsel %vm308, %v8280, %v8269
    %v8282 = vsel %vm310, %v8281, %v8272
    %v8283 = vsel %vm312, %v8282, %v8275
    %v8284 = vrot.slane %v4781, 7
    %v8285 = vrot.slane %v5360, 6
    %v8286 = vrot.slane %v5939, 5
    %v8287 = vrot.slane %v6518, 4
    %v8288 = vrot.slane %v7097, 3
    %v8289 = vrot.slane %v7676, 2
    %v8290 = vrot.slane %v8255, 1
    %v8291 = vsel %vm300, %v4202, %v8284
    %v8292 = vsel %vm302, %v8291, %v8285
    %v8293 = vsel %vm304, %v8292, %v8286
    %v8294 = vsel %vm306, %v8293, %v8287
    %v8295 = vsel %vm308, %v8294, %v8288
    %v8296 = vsel %vm310, %v8295, %v8289
    %v8297 = vsel %vm312, %v8296, %v8290
    %8299 = vset.pattern.permute.xlu0 0
    %8300 = vperm.xlu0 %8299, %v8283
    %v8301 = vpop.permute.xlu0 %8300
    %8303 = vst [vmem:[#allocation17] sm:$0xff] %v8301
    %8304 = vset.pattern.permute.xlu0 0
    %8305 = vperm.xlu0 %8304, %v8297
    %v8306 = vpop.permute.xlu0 %8305
    %8307 = vst [vmem:[#allocation18] sm:$0xff] %v8306
    // Predicated region
    $region102: #{tpu_custom_call.1} parent=1 // pred_check
      _
    $region103: #{tpu_custom_call.1} parent=1 // pred_check_branch
      %8309 = sbr.rel (0) target = $region105
    $region104: #{tpu_custom_call.1} parent=1 // pred_region
      %s8311 = ssub.s32 128, 128
      %8312 = vsyncadd [#allocation5], %s8311
      %s8314 = sshll.u32 [#allocation17], 4
      %s8315 = int_to_ptr.vmem [resolvable:$true] %s8314
      %8317 = dma.vmem_to_hbm [thread:$0]  %s8315, 128, %s17, [#allocation5]
    $region105: #{tpu_custom_call.1} parent=1 // pred_fallthru
      _
    // Predicated region
    $region106: #{tpu_custom_call.1} parent=1 // pred_check
      _
    $region107: #{tpu_custom_call.1} parent=1 // pred_check_branch
      %8319 = sbr.rel (0) target = $region109
    $region108: #{tpu_custom_call.1} parent=1 // pred_region
      %s8321 = ssub.s32 128, 128
      %8322 = vsyncadd [#allocation19], %s8321
      %s8324 = sshll.u32 [#allocation18], 4
      %s8325 = int_to_ptr.vmem [resolvable:$true] %s8324
      %8327 = dma.vmem_to_hbm [thread:$0]  %s8325, 128, %s18, [#allocation19]
    $region109: #{tpu_custom_call.1} parent=1 // pred_fallthru
      _
    // Predicated region
    $region110: #{tpu_custom_call.1} parent=1 // pred_check
      _
    $region111: #{tpu_custom_call.1} parent=1 // pred_check_branch
      %8329 = sbr.rel (0) target = $region113
    $region112: #{tpu_custom_call.1} parent=1 // pred_region
      %8330 = dma.done [#allocation5], 128
    $region113: #{tpu_custom_call.1} parent=1 // pred_fallthru
      _
    // Predicated region
    $region114: #{tpu_custom_call.1} parent=1 // pred_check
      _
    $region115: #{tpu_custom_call.1} parent=1 // pred_check_branch
      %8332 = sbr.rel (0) target = $region117
    $region116: #{tpu_custom_call.1} parent=1 // pred_region
      %8333 = dma.done [#allocation19], 128
    $region117: #{tpu_custom_call.1} parent=1 // pred_fallthru
      _
    %8334 = vsyncpa [#allocation4], 1
    %8335 = vsyncpa [#allocation9], 1
    %8336 = vsyncpa [#allocation12], 1
    %8337 = vsyncpa [#allocation15], 1
    %8338 = vsyncpa [#allocation5], 1
    %8339 = vsyncpa [#allocation19], 1
    %8340 = vsyncpa [#allocation6], 1

</llo_original>
